<compile_context>
chip_gen: v7x
topology: tpu7x:2x2x1
jax: 0.10.0
libtpu: 0.0.40
codegen_flags: <defaults>
</compile_context>

<pallas_src>
import functools

import jax
import jax.numpy as jnp
from jax.experimental import pallas as pl
from jax.experimental.pallas import tpu as pltpu


LANE = 128        # TPU lane width
SUBLANE_F32 = 8   # f32 sublane count


def _round_up(x, m):
    return (x + m - 1) // m * m


def _pick_bb(batch, sub, bb_max=64):
    """Batch tile: multiple of `sub`, <= bb_max (vreg pressure), and chosen so
    the grid has >= 2 'parallel' steps when the batch allows (v7x megacore)."""
    bp = _round_up(max(batch, sub), sub)
    if bp <= sub:
        return sub
    half = _round_up((bp + 1) // 2, sub)
    return max(sub, min(bb_max, half))


# ----------------------------------------------------------------------------
# Pallas kernel: all GRU layers + the full time recurrence in ONE call.
# ----------------------------------------------------------------------------
def fused_gru_kernel(gi0_ref, wi_ref, wh_ref, out_ref, hseq_ref, gi_ref, *,
                     n_layers, hidden_pad, time_unroll, proj_chunk):
    """Fused multi-layer GRU (PyTorch gate convention, bias=False).

    gi0_ref : (T, Bb, G) act-dtype  precomputed layer-0 input projections,
                                    gates (r, z, n) packed along last dim
    wi_ref  : (max(L-1,1), Hp, G)   input->hidden weights for layers 1..L-1
    wh_ref  : (L, Hp, G)            hidden->hidden weights for all layers
    out_ref : (Bb, Hp) f32          final hidden state of the LAST layer
    hseq_ref: (*, Bb, Hp) VMEM scratch  (inter-layer activations)
    gi_ref  : (*, Bb, G)  VMEM scratch  (input projections for layers > 0)
    """
    T, Bb, G = gi0_ref.shape
    Hp = hidden_pad
    mxu_dtype = wh_ref.dtype

    for l in range(n_layers):
        is_last = (l == n_layers - 1)
        if l == 0:
            gi_src = gi0_ref
        else:
            # Hoisted input projection for layer l, chunked over time so the
            # live set stays bounded while each chunk is one lane-dense dot.
            for t0 in range(0, T, proj_chunk):
                t1 = min(T, t0 + proj_chunk)
                x = hseq_ref[t0:t1].reshape((t1 - t0) * Bb, Hp)
                g = jnp.dot(x.astype(mxu_dtype), wi_ref[l - 1],
                            preferred_element_type=jnp.float32)
                gi_ref[t0:t1] = g.reshape(t1 - t0, Bb, G).astype(gi_ref.dtype)
            gi_src = gi_ref

        wh = wh_ref[l]                      # [Hp, G], resident for the layer

        def step(t, h, wh=wh, gi_src=gi_src, is_last=is_last):
            gi = gi_src[t].astype(jnp.float32)                       # [Bb, G]
            # Single fused gate matmul on the recurrent critical path.
            gh = jnp.dot(h.astype(mxu_dtype), wh,
                         preferred_element_type=jnp.float32)         # [Bb, G]
            # PyTorch GRU (bias=False), gate order (r, z, n).
            # sigmoid(x) == 0.5*(1+tanh(0.5*x)): 1 EUP push instead of 2.
            r = 0.5 * (1.0 + jnp.tanh(0.5 * (gi[:, 0:Hp] + gh[:, 0:Hp])))
            z = 0.5 * (1.0 + jnp.tanh(0.5 * (gi[:, Hp:2 * Hp]
                                             + gh[:, Hp:2 * Hp])))
            n = jnp.tanh(gi[:, 2 * Hp:3 * Hp] + r * gh[:, 2 * Hp:3 * Hp])
            h_new = n + z * (h - n)          # == (1-z)*n + z*h
            if not is_last:
                hseq_ref[t] = h_new.astype(hseq_ref.dtype)   # VMEM only
            return h_new

        h0 = jnp.zeros((Bb, Hp), jnp.float32)
        h_last = jax.lax.fori_loop(0, T, step, h0, unroll=time_unroll)

        if is_last:
            out_ref[...] = h_last.astype(out_ref.dtype)


# ----------------------------------------------------------------------------
# Weight packing: [3, in_dim, H] (gates r,z,n) -> [rows, 3*Hp], zero-padded.
# ----------------------------------------------------------------------------
def _pack_gates(w3, h_pad, row_pad=None):
    _, in_dim, H = w3.shape
    rows = in_dim if row_pad is None else row_pad
    out = jnp.zeros((rows, 3 * h_pad), jnp.float32)
    for g in range(3):
        out = out.at[:in_dim, g * h_pad:g * h_pad + H].set(w3[g])
    return out


# ----------------------------------------------------------------------------
# Forward pass (embedding + hoisted layer-0 projection in XLA, GRU in Pallas).
# ----------------------------------------------------------------------------
def gru4rec_forward(params, item_seq, *, mxu_dtype=jnp.float32,
                    act_dtype=None, batch_tile=None):
    if act_dtype is None:
        act_dtype = mxu_dtype
    emb_tbl = params["embedding"]
    w_i, w_h = params["w_i"], params["w_h"]
    L = len(w_h)
    H = w_h[0].shape[-1]
    E = emb_tbl.shape[1]
    B, T = item_seq.shape

    Hp = _round_up(H, LANE)
    G = 3 * Hp

    # Batch tile: sublane-granular in act_dtype, capped at 64, >=2 grid steps
    # when the batch allows (so "parallel" actually uses both v7x TCs).
    sub = SUBLANE_F32 * (4 // jnp.dtype(act_dtype).itemsize)
    Bb = batch_tile if batch_tile is not None else _pick_bb(B, sub)
    Bp = _round_up(max(B, Bb), Bb)
    NB = Bp // Bb

    # --- plain-JAX prologue --------------------------------------------------
    # Embedding lookup (row 0 is all zeros == padding_idx=0); emb_dropout is
    # the identity in eval/inference mode.
    emb = jnp.take(emb_tbl, item_seq, axis=0)                    # [B, T, E]

    # Hoisted layer-0 input->hidden projection: one [B*T, E] @ [E, G] matmul
    # instead of three tiny per-step matmuls inside the recurrence.
    # TODO(synk): on v5e/v6e this projection can instead be computed inside
    # the kernel (per batch block) to skip the gi0 HBM round-trip entirely.
    wi0 = _pack_gates(w_i[0], Hp).astype(mxu_dtype)              # [E, G]
    gi0 = jnp.dot(emb.reshape(B * T, E).astype(mxu_dtype), wi0,
                  preferred_element_type=jnp.float32).reshape(B, T, G)
    # Contiguous per-block layout [NB, T, Bb, G]: one slab DMA per grid step
    # instead of T strided row DMAs over a [T, Bp, G] array.
    gi0 = jnp.pad(gi0, ((0, Bp - B), (0, 0), (0, 0)))            # [Bp, T, G]
    gi0 = gi0.reshape(NB, Bb, T, G).transpose(0, 2, 1, 3)        # [NB,T,Bb,G]
    gi0 = gi0.astype(act_dtype)    # bf16 halves the dominant HBM round-trip

    # Gate-fused, lane-padded recurrent weights.
    wh_all = jnp.stack([_pack_gates(w, Hp, Hp) for w in w_h])    # [L, Hp, G]
    if L > 1:
        wi_rest = jnp.stack([_pack_gates(w, Hp, Hp) for w in w_i[1:]])
    else:
        wi_rest = jnp.zeros((1, Hp, G), jnp.float32)             # unused dummy
    wh_all = wh_all.astype(mxu_dtype)
    wi_rest = wi_rest.astype(mxu_dtype)

    scr_t = T if L > 1 else 1
    time_unroll = T if T <= 16 else 4
    proj_chunk = max(1, min(T, 256 // Bb))    # ~256 rows per hoisted-proj dot

    kernel = functools.partial(fused_gru_kernel, n_layers=L, hidden_pad=Hp,
                               time_unroll=time_unroll, proj_chunk=proj_chunk)

    act_b = jnp.dtype(act_dtype).itemsize
    mxu_b = jnp.dtype(mxu_dtype).itemsize
    vmem_need = (2 * T * Bb * G * act_b                    # gi0 block, 2-buf
                 + (wi_rest.shape[0] + L) * Hp * G * mxu_b  # weights, 1-buf
                 + 2 * Bb * Hp * 4                          # out block, 2-buf
                 + scr_t * Bb * Hp * act_b                  # hseq scratch
                 + scr_t * Bb * G * act_b)                  # gi scratch
    vmem_limit = int(min(128 * 1024 * 1024,
                         max(4 * 1024 * 1024, 2 * vmem_need + (1 << 20))))

    cost = pl.CostEstimate(
        flops=2 * Bp * T * (2 * L - 1) * Hp * G,
        transcendentals=Bp * T * L * G,
        bytes_accessed=(Bp * T * G * act_b
                        + (wi_rest.shape[0] + L) * Hp * G * mxu_b
                        + Bp * Hp * 4),
    )

    def build(single_buffer_weights):
        # Grid-invariant weights single-buffered: halves their VMEM footprint
        # (matters at production H on v7x's 64 MiB VMEM).
        wmode = ({"pipeline_mode": pl.Buffered(1)}
                 if single_buffer_weights else {})
        return pl.pallas_call(
            kernel,
            out_shape=jax.ShapeDtypeStruct((Bp, Hp), jnp.float32),
            grid_spec=pltpu.PrefetchScalarGridSpec(
                num_scalar_prefetch=0,
                grid=(NB,),                          # parallel batch axis
                in_specs=[
                    pl.BlockSpec((None, T, Bb, G), lambda b: (b, 0, 0, 0)),
                    pl.BlockSpec((wi_rest.shape[0], Hp, G),
                                 lambda b: (0, 0, 0), **wmode),
                    pl.BlockSpec((L, Hp, G), lambda b: (0, 0, 0), **wmode),
                ],
                out_specs=pl.BlockSpec((Bb, Hp), lambda b: (b, 0)),
                scratch_shapes=[
                    pltpu.VMEM((scr_t, Bb, Hp), act_dtype),  # inter-layer h
                    pltpu.VMEM((scr_t, Bb, G), act_dtype),   # gi for layers>0
                ],
            ),
            compiler_params=pltpu.CompilerParams(
                dimension_semantics=("parallel",),
                vmem_limit_bytes=vmem_limit),
            cost_estimate=cost,
        )

    try:
        out = build(True)(gi0, wi_rest, wh_all)
    except Exception:
        # pipeline_mode / Buffered(1) not supported by this JAX build:
        # fall back to default (double-buffered) weight blocks.
        out = build(False)(gi0, wi_rest, wh_all)

    # Strip the batch/lane padding: session_embedding == hidden[-1].
    return out[:B, :H]


# ----------------------------------------------------------------------------
# Parameter init (mirrors the PyTorch module's shapes).
# ----------------------------------------------------------------------------
def init_params(key, vocab_size, embedding_size, hidden_size, n_layers):
    keys = jax.random.split(key, 2 + 2 * n_layers + 2)
    emb = jax.random.normal(keys[0], (vocab_size, embedding_size), jnp.float32)
    emb = emb.at[0].set(0.0)  # padding_idx=0

    k = 1.0 / jnp.sqrt(hidden_size)
    w_i, w_h = [], []
    for l in range(n_layers):
        in_dim = embedding_size if l == 0 else hidden_size
        # PyTorch stores weight_ih_l{l} as [3H, in_dim]; we keep it split per
        # gate and transposed: [3, in_dim, H], gate order (r, z, n).
        wi = jax.random.uniform(keys[2 + 2 * l], (3, in_dim, hidden_size),
                                jnp.float32, -k, k)
        wh = jax.random.uniform(keys[3 + 2 * l], (3, hidden_size, hidden_size),
                                jnp.float32, -k, k)
        w_i.append(wi)
        w_h.append(wh)

    # The dense layer's params exist in the module but its output is discarded
    # by forward(), so they are unused for the returned value.
    return {"embedding": emb, "w_i": w_i, "w_h": w_h}


# ----------------------------------------------------------------------------
# Pure-JAX reference (lax.scan) for the correctness check.
# ----------------------------------------------------------------------------
def gru4rec_reference(params, item_seq):
    emb = jnp.take(params["embedding"], item_seq, axis=0)    # [B, T, E]
    x = jnp.transpose(emb, (1, 0, 2))                        # [T, B, E]
    B = item_seq.shape[0]
    for l in range(len(params["w_i"])):
        wi, wh = params["w_i"][l], params["w_h"][l]
        H = wh.shape[-1]

        def step(h, xt):
            r = jax.nn.sigmoid(xt @ wi[0] + h @ wh[0])
            z = jax.nn.sigmoid(xt @ wi[1] + h @ wh[1])
            n = jnp.tanh(xt @ wi[2] + r * (h @ wh[2]))
            h_new = (1.0 - z) * n + z * h
            return h_new, h_new

        h0 = jnp.zeros((B, H), jnp.float32)
        _, x = jax.lax.scan(step, h0, x)
    return x[-1]


if __name__ == "__main__":
    # Small config consistent with the module's __init__.
    embedding_size = 32
    hidden_size = 32
    n_layers = 2          # args.block_num
    num_items = 49        # vocab_size = num_items + 1 = 50
    vocab_size = num_items + 1
    T = 8

    key = jax.random.PRNGKey(0)
    pkey, dkey1, dkey2 = jax.random.split(key, 3)
    params = init_params(pkey, vocab_size, embedding_size, hidden_size,
                         n_layers)

    # --- Test 1: tiny batch, exact f32 MXU + f32 activation path ------------
    B = 2
    item_seq = jax.random.randint(dkey1, (B, T), 0, vocab_size,
                                  dtype=jnp.int32)
    ref = gru4rec_reference(params, item_seq)
    out = jax.block_until_ready(gru4rec_forward(params, item_seq))
    assert out.shape == (B, hidden_size)
    assert jnp.allclose(out, ref, atol=1e-4, rtol=1e-4), (
        f"f32 mismatch: max abs diff {jnp.max(jnp.abs(out - ref))}")

    # --- Test 2: multi-block batch (grid >= 2, heuristic Bb), f32 -----------
    B2 = 20
    item_seq2 = jax.random.randint(dkey2, (B2, T), 0, vocab_size,
                                   dtype=jnp.int32)
    ref2 = gru4rec_reference(params, item_seq2)
    out2 = jax.block_until_ready(gru4rec_forward(params, item_seq2))
    assert out2.shape == (B2, hidden_size)
    assert jnp.allclose(out2, ref2, atol=1e-4, rtol=1e-4), (
        f"f32 multi-block mismatch: max abs diff "
        f"{jnp.max(jnp.abs(out2 - ref2))}")

    # --- Test 3: bf16 at the MXU AND bf16 gi0/scratches ----------------------
    # (v5e/v6e/v7x recommendation); f32 accumulation and gate math, loose tol.
    out_bf16 = jax.block_until_ready(
        gru4rec_forward(params, item_seq, mxu_dtype=jnp.bfloat16))
    assert jnp.max(jnp.abs(out_bf16 - ref)) < 1e-1, (
        f"bf16 mismatch: max abs diff {jnp.max(jnp.abs(out_bf16 - ref))}")

    print("KERNEL_OK")
</pallas_src>

<mosaic_0001>
module attributes {stable_mosaic.version = 11 : i64} {
  func.func @fused_gru_kernel(%arg0: i32, %arg1: memref<1x8x8x384xf32, #tpu.memory_space<vmem>>, %arg2: memref<1x128x384xf32, #tpu.memory_space<vmem>>, %arg3: memref<2x128x384xf32, #tpu.memory_space<vmem>>, %arg4: memref<8x128xf32, #tpu.memory_space<vmem>>, %arg5: memref<8x8x128xf32, #tpu.memory_space<vmem>>, %arg6: memref<8x8x384xf32, #tpu.memory_space<vmem>>) attributes {dimension_semantics = [#tpu.dimension_semantics<parallel>], iteration_bounds = array<i64: 1>, scalar_prefetch = 0 : i64, scratch_operands = 2 : i64, tpu.core_type = #tpu.core_type<tc>, window_params = [{transform_indices = @transform_0, window_bounds = array<i64: 1, 8, 8, 384>}, {pipeline_mode = #tpu.pipeline_mode<synchronous>, transform_indices = @transform_1, window_bounds = array<i64: 1, 128, 384>}, {pipeline_mode = #tpu.pipeline_mode<synchronous>, transform_indices = @transform_2, window_bounds = array<i64: 2, 128, 384>}, {transform_indices = @transform_3, window_bounds = array<i64: 8, 128>}]} {
    %c0 = arith.constant 0 : index
    %c0_0 = arith.constant 0 : index
    %c0_1 = arith.constant 0 : index
    %0 = vector.load %arg3[%c0, %c0_0, %c0_1] : memref<2x128x384xf32, #tpu.memory_space<vmem>>, vector<1x128x384xf32>
    %1 = vector.shape_cast %0 : vector<1x128x384xf32> to vector<128x384xf32>
    %cst = arith.constant 0.000000e+00 : f32
    %2 = vector.broadcast %cst : f32 to vector<8x128xf32>
    %c0_i32 = arith.constant 0 : i32
    %c0_2 = arith.constant 0 : index
    %3 = arith.index_cast %c0_i32 : i32 to index
    %c0_3 = arith.constant 0 : index
    %c0_4 = arith.constant 0 : index
    %4 = vector.load %arg1[%c0_2, %3, %c0_3, %c0_4] : memref<1x8x8x384xf32, #tpu.memory_space<vmem>>, vector<1x1x8x384xf32>
    %5 = vector.shape_cast %4 : vector<1x1x8x384xf32> to vector<8x384xf32>
    %cst_5 = arith.constant dense<0.000000e+00> : vector<8x384xf32>
    %6 = tpu.matmul %2, %1, %cst_5 {dimension_numbers = #tpu.dot_dimension_numbers<[1], [0], [0], [1], [0, 0, 1, 1], [], []>} : vector<8x128xf32>, vector<128x384xf32>, vector<8x384xf32> -> vector<8x384xf32>
    %7 = vector.extract_strided_slice %5 {offsets = [0, 0], sizes = [8, 128], strides = [1, 1]} : vector<8x384xf32> to vector<8x128xf32>
    %8 = vector.extract_strided_slice %6 {offsets = [0, 0], sizes = [8, 128], strides = [1, 1]} : vector<8x384xf32> to vector<8x128xf32>
    %9 = arith.addf %7, %8 : vector<8x128xf32>
    %cst_6 = arith.constant 5.000000e-01 : f32
    %10 = vector.broadcast %cst_6 : f32 to vector<8x128xf32>
    %11 = arith.mulf %10, %9 : vector<8x128xf32>
    %12 = math.tanh %11 : vector<8x128xf32>
    %cst_7 = arith.constant 1.000000e+00 : f32
    %13 = vector.broadcast %cst_7 : f32 to vector<8x128xf32>
    %14 = arith.addf %13, %12 : vector<8x128xf32>
    %cst_8 = arith.constant 5.000000e-01 : f32
    %15 = vector.broadcast %cst_8 : f32 to vector<8x128xf32>
    %16 = arith.mulf %15, %14 : vector<8x128xf32>
    %17 = vector.extract_strided_slice %5 {offsets = [0, 128], sizes = [8, 128], strides = [1, 1]} : vector<8x384xf32> to vector<8x128xf32>
    %18 = vector.extract_strided_slice %6 {offsets = [0, 128], sizes = [8, 128], strides = [1, 1]} : vector<8x384xf32> to vector<8x128xf32>
    %19 = arith.addf %17, %18 : vector<8x128xf32>
    %cst_9 = arith.constant 5.000000e-01 : f32
    %20 = vector.broadcast %cst_9 : f32 to vector<8x128xf32>
    %21 = arith.mulf %20, %19 : vector<8x128xf32>
    %22 = math.tanh %21 : vector<8x128xf32>
    %cst_10 = arith.constant 1.000000e+00 : f32
    %23 = vector.broadcast %cst_10 : f32 to vector<8x128xf32>
    %24 = arith.addf %23, %22 : vector<8x128xf32>
    %cst_11 = arith.constant 5.000000e-01 : f32
    %25 = vector.broadcast %cst_11 : f32 to vector<8x128xf32>
    %26 = arith.mulf %25, %24 : vector<8x128xf32>
    %27 = vector.extract_strided_slice %5 {offsets = [0, 256], sizes = [8, 128], strides = [1, 1]} : vector<8x384xf32> to vector<8x128xf32>
    %28 = vector.extract_strided_slice %6 {offsets = [0, 256], sizes = [8, 128], strides = [1, 1]} : vector<8x384xf32> to vector<8x128xf32>
    %29 = arith.mulf %16, %28 : vector<8x128xf32>
    %30 = arith.addf %27, %29 : vector<8x128xf32>
    %31 = math.tanh %30 : vector<8x128xf32>
    %32 = arith.subf %2, %31 : vector<8x128xf32>
    %33 = arith.mulf %26, %32 : vector<8x128xf32>
    %34 = arith.addf %31, %33 : vector<8x128xf32>
    %35 = arith.index_cast %c0_i32 : i32 to index
    %c0_12 = arith.constant 0 : index
    %c0_13 = arith.constant 0 : index
    %36 = vector.load %arg5[%35, %c0_12, %c0_13] : memref<8x8x128xf32, #tpu.memory_space<vmem>>, vector<1x8x128xf32>
    %37 = vector.shape_cast %36 : vector<1x8x128xf32> to vector<8x128xf32>
    %38 = vector.shape_cast %34 : vector<8x128xf32> to vector<1x8x128xf32>
    tpu.vector_store %arg5[%35, %c0_12, %c0_13], %38 {strides = array<i32>} : memref<8x8x128xf32, #tpu.memory_space<vmem>>, vector<1x8x128xf32>,
    %c1_i32 = arith.constant 1 : i32
    %c0_14 = arith.constant 0 : index
    %39 = arith.index_cast %c1_i32 : i32 to index
    %c0_15 = arith.constant 0 : index
    %c0_16 = arith.constant 0 : index
    %40 = vector.load %arg1[%c0_14, %39, %c0_15, %c0_16] : memref<1x8x8x384xf32, #tpu.memory_space<vmem>>, vector<1x1x8x384xf32>
    %41 = vector.shape_cast %40 : vector<1x1x8x384xf32> to vector<8x384xf32>
    %cst_17 = arith.constant dense<0.000000e+00> : vector<8x384xf32>
    %42 = tpu.matmul %34, %1, %cst_17 {dimension_numbers = #tpu.dot_dimension_numbers<[1], [0], [0], [1], [0, 0, 1, 1], [], []>} : vector<8x128xf32>, vector<128x384xf32>, vector<8x384xf32> -> vector<8x384xf32>
    %43 = vector.extract_strided_slice %41 {offsets = [0, 0], sizes = [8, 128], strides = [1, 1]} : vector<8x384xf32> to vector<8x128xf32>
    %44 = vector.extract_strided_slice %42 {offsets = [0, 0], sizes = [8, 128], strides = [1, 1]} : vector<8x384xf32> to vector<8x128xf32>
    %45 = arith.addf %43, %44 : vector<8x128xf32>
    %cst_18 = arith.constant 5.000000e-01 : f32
    %46 = vector.broadcast %cst_18 : f32 to vector<8x128xf32>
    %47 = arith.mulf %46, %45 : vector<8x128xf32>
    %48 = math.tanh %47 : vector<8x128xf32>
    %cst_19 = arith.constant 1.000000e+00 : f32
    %49 = vector.broadcast %cst_19 : f32 to vector<8x128xf32>
    %50 = arith.addf %49, %48 : vector<8x128xf32>
    %cst_20 = arith.constant 5.000000e-01 : f32
    %51 = vector.broadcast %cst_20 : f32 to vector<8x128xf32>
    %52 = arith.mulf %51, %50 : vector<8x128xf32>
    %53 = vector.extract_strided_slice %41 {offsets = [0, 128], sizes = [8, 128], strides = [1, 1]} : vector<8x384xf32> to vector<8x128xf32>
    %54 = vector.extract_strided_slice %42 {offsets = [0, 128], sizes = [8, 128], strides = [1, 1]} : vector<8x384xf32> to vector<8x128xf32>
    %55 = arith.addf %53, %54 : vector<8x128xf32>
    %cst_21 = arith.constant 5.000000e-01 : f32
    %56 = vector.broadcast %cst_21 : f32 to vector<8x128xf32>
    %57 = arith.mulf %56, %55 : vector<8x128xf32>
    %58 = math.tanh %57 : vector<8x128xf32>
    %cst_22 = arith.constant 1.000000e+00 : f32
    %59 = vector.broadcast %cst_22 : f32 to vector<8x128xf32>
    %60 = arith.addf %59, %58 : vector<8x128xf32>
    %cst_23 = arith.constant 5.000000e-01 : f32
    %61 = vector.broadcast %cst_23 : f32 to vector<8x128xf32>
    %62 = arith.mulf %61, %60 : vector<8x128xf32>
    %63 = vector.extract_strided_slice %41 {offsets = [0, 256], sizes = [8, 128], strides = [1, 1]} : vector<8x384xf32> to vector<8x128xf32>
    %64 = vector.extract_strided_slice %42 {offsets = [0, 256], sizes = [8, 128], strides = [1, 1]} : vector<8x384xf32> to vector<8x128xf32>
    %65 = arith.mulf %52, %64 : vector<8x128xf32>
    %66 = arith.addf %63, %65 : vector<8x128xf32>
    %67 = math.tanh %66 : vector<8x128xf32>
    %68 = arith.subf %34, %67 : vector<8x128xf32>
    %69 = arith.mulf %62, %68 : vector<8x128xf32>
    %70 = arith.addf %67, %69 : vector<8x128xf32>
    %71 = arith.index_cast %c1_i32 : i32 to index
    %c0_24 = arith.constant 0 : index
    %c0_25 = arith.constant 0 : index
    %72 = vector.load %arg5[%71, %c0_24, %c0_25] : memref<8x8x128xf32, #tpu.memory_space<vmem>>, vector<1x8x128xf32>
    %73 = vector.shape_cast %72 : vector<1x8x128xf32> to vector<8x128xf32>
    %74 = vector.shape_cast %70 : vector<8x128xf32> to vector<1x8x128xf32>
    tpu.vector_store %arg5[%71, %c0_24, %c0_25], %74 {strides = array<i32>} : memref<8x8x128xf32, #tpu.memory_space<vmem>>, vector<1x8x128xf32>,
    %c2_i32 = arith.constant 2 : i32
    %c0_26 = arith.constant 0 : index
    %75 = arith.index_cast %c2_i32 : i32 to index
    %c0_27 = arith.constant 0 : index
    %c0_28 = arith.constant 0 : index
    %76 = vector.load %arg1[%c0_26, %75, %c0_27, %c0_28] : memref<1x8x8x384xf32, #tpu.memory_space<vmem>>, vector<1x1x8x384xf32>
    %77 = vector.shape_cast %76 : vector<1x1x8x384xf32> to vector<8x384xf32>
    %cst_29 = arith.constant dense<0.000000e+00> : vector<8x384xf32>
    %78 = tpu.matmul %70, %1, %cst_29 {dimension_numbers = #tpu.dot_dimension_numbers<[1], [0], [0], [1], [0, 0, 1, 1], [], []>} : vector<8x128xf32>, vector<128x384xf32>, vector<8x384xf32> -> vector<8x384xf32>
    %79 = vector.extract_strided_slice %77 {offsets = [0, 0], sizes = [8, 128], strides = [1, 1]} : vector<8x384xf32> to vector<8x128xf32>
    %80 = vector.extract_strided_slice %78 {offsets = [0, 0], sizes = [8, 128], strides = [1, 1]} : vector<8x384xf32> to vector<8x128xf32>
    %81 = arith.addf %79, %80 : vector<8x128xf32>
    %cst_30 = arith.constant 5.000000e-01 : f32
    %82 = vector.broadcast %cst_30 : f32 to vector<8x128xf32>
    %83 = arith.mulf %82, %81 : vector<8x128xf32>
    %84 = math.tanh %83 : vector<8x128xf32>
    %cst_31 = arith.constant 1.000000e+00 : f32
    %85 = vector.broadcast %cst_31 : f32 to vector<8x128xf32>
    %86 = arith.addf %85, %84 : vector<8x128xf32>
    %cst_32 = arith.constant 5.000000e-01 : f32
    %87 = vector.broadcast %cst_32 : f32 to vector<8x128xf32>
    %88 = arith.mulf %87, %86 : vector<8x128xf32>
    %89 = vector.extract_strided_slice %77 {offsets = [0, 128], sizes = [8, 128], strides = [1, 1]} : vector<8x384xf32> to vector<8x128xf32>
    %90 = vector.extract_strided_slice %78 {offsets = [0, 128], sizes = [8, 128], strides = [1, 1]} : vector<8x384xf32> to vector<8x128xf32>
    %91 = arith.addf %89, %90 : vector<8x128xf32>
    %cst_33 = arith.constant 5.000000e-01 : f32
    %92 = vector.broadcast %cst_33 : f32 to vector<8x128xf32>
    %93 = arith.mulf %92, %91 : vector<8x128xf32>
    %94 = math.tanh %93 : vector<8x128xf32>
    %cst_34 = arith.constant 1.000000e+00 : f32
    %95 = vector.broadcast %cst_34 : f32 to vector<8x128xf32>
    %96 = arith.addf %95, %94 : vector<8x128xf32>
    %cst_35 = arith.constant 5.000000e-01 : f32
    %97 = vector.broadcast %cst_35 : f32 to vector<8x128xf32>
    %98 = arith.mulf %97, %96 : vector<8x128xf32>
    %99 = vector.extract_strided_slice %77 {offsets = [0, 256], sizes = [8, 128], strides = [1, 1]} : vector<8x384xf32> to vector<8x128xf32>
    %100 = vector.extract_strided_slice %78 {offsets = [0, 256], sizes = [8, 128], strides = [1, 1]} : vector<8x384xf32> to vector<8x128xf32>
    %101 = arith.mulf %88, %100 : vector<8x128xf32>
    %102 = arith.addf %99, %101 : vector<8x128xf32>
    %103 = math.tanh %102 : vector<8x128xf32>
    %104 = arith.subf %70, %103 : vector<8x128xf32>
    %105 = arith.mulf %98, %104 : vector<8x128xf32>
    %106 = arith.addf %103, %105 : vector<8x128xf32>
    %107 = arith.index_cast %c2_i32 : i32 to index
    %c0_36 = arith.constant 0 : index
    %c0_37 = arith.constant 0 : index
    %108 = vector.load %arg5[%107, %c0_36, %c0_37] : memref<8x8x128xf32, #tpu.memory_space<vmem>>, vector<1x8x128xf32>
    %109 = vector.shape_cast %108 : vector<1x8x128xf32> to vector<8x128xf32>
    %110 = vector.shape_cast %106 : vector<8x128xf32> to vector<1x8x128xf32>
    tpu.vector_store %arg5[%107, %c0_36, %c0_37], %110 {strides = array<i32>} : memref<8x8x128xf32, #tpu.memory_space<vmem>>, vector<1x8x128xf32>,
    %c3_i32 = arith.constant 3 : i32
    %c0_38 = arith.constant 0 : index
    %111 = arith.index_cast %c3_i32 : i32 to index
    %c0_39 = arith.constant 0 : index
    %c0_40 = arith.constant 0 : index
    %112 = vector.load %arg1[%c0_38, %111, %c0_39, %c0_40] : memref<1x8x8x384xf32, #tpu.memory_space<vmem>>, vector<1x1x8x384xf32>
    %113 = vector.shape_cast %112 : vector<1x1x8x384xf32> to vector<8x384xf32>
    %cst_41 = arith.constant dense<0.000000e+00> : vector<8x384xf32>
    %114 = tpu.matmul %106, %1, %cst_41 {dimension_numbers = #tpu.dot_dimension_numbers<[1], [0], [0], [1], [0, 0, 1, 1], [], []>} : vector<8x128xf32>, vector<128x384xf32>, vector<8x384xf32> -> vector<8x384xf32>
    %115 = vector.extract_strided_slice %113 {offsets = [0, 0], sizes = [8, 128], strides = [1, 1]} : vector<8x384xf32> to vector<8x128xf32>
    %116 = vector.extract_strided_slice %114 {offsets = [0, 0], sizes = [8, 128], strides = [1, 1]} : vector<8x384xf32> to vector<8x128xf32>
    %117 = arith.addf %115, %116 : vector<8x128xf32>
    %cst_42 = arith.constant 5.000000e-01 : f32
    %118 = vector.broadcast %cst_42 : f32 to vector<8x128xf32>
    %119 = arith.mulf %118, %117 : vector<8x128xf32>
    %120 = math.tanh %119 : vector<8x128xf32>
    %cst_43 = arith.constant 1.000000e+00 : f32
    %121 = vector.broadcast %cst_43 : f32 to vector<8x128xf32>
    %122 = arith.addf %121, %120 : vector<8x128xf32>
    %cst_44 = arith.constant 5.000000e-01 : f32
    %123 = vector.broadcast %cst_44 : f32 to vector<8x128xf32>
    %124 = arith.mulf %123, %122 : vector<8x128xf32>
    %125 = vector.extract_strided_slice %113 {offsets = [0, 128], sizes = [8, 128], strides = [1, 1]} : vector<8x384xf32> to vector<8x128xf32>
    %126 = vector.extract_strided_slice %114 {offsets = [0, 128], sizes = [8, 128], strides = [1, 1]} : vector<8x384xf32> to vector<8x128xf32>
    %127 = arith.addf %125, %126 : vector<8x128xf32>
    %cst_45 = arith.constant 5.000000e-01 : f32
    %128 = vector.broadcast %cst_45 : f32 to vector<8x128xf32>
    %129 = arith.mulf %128, %127 : vector<8x128xf32>
    %130 = math.tanh %129 : vector<8x128xf32>
    %cst_46 = arith.constant 1.000000e+00 : f32
    %131 = vector.broadcast %cst_46 : f32 to vector<8x128xf32>
    %132 = arith.addf %131, %130 : vector<8x128xf32>
    %cst_47 = arith.constant 5.000000e-01 : f32
    %133 = vector.broadcast %cst_47 : f32 to vector<8x128xf32>
    %134 = arith.mulf %133, %132 : vector<8x128xf32>
    %135 = vector.extract_strided_slice %113 {offsets = [0, 256], sizes = [8, 128], strides = [1, 1]} : vector<8x384xf32> to vector<8x128xf32>
    %136 = vector.extract_strided_slice %114 {offsets = [0, 256], sizes = [8, 128], strides = [1, 1]} : vector<8x384xf32> to vector<8x128xf32>
    %137 = arith.mulf %124, %136 : vector<8x128xf32>
    %138 = arith.addf %135, %137 : vector<8x128xf32>
    %139 = math.tanh %138 : vector<8x128xf32>
    %140 = arith.subf %106, %139 : vector<8x128xf32>
    %141 = arith.mulf %134, %140 : vector<8x128xf32>
    %142 = arith.addf %139, %141 : vector<8x128xf32>
    %143 = arith.index_cast %c3_i32 : i32 to index
    %c0_48 = arith.constant 0 : index
    %c0_49 = arith.constant 0 : index
    %144 = vector.load %arg5[%143, %c0_48, %c0_49] : memref<8x8x128xf32, #tpu.memory_space<vmem>>, vector<1x8x128xf32>
    %145 = vector.shape_cast %144 : vector<1x8x128xf32> to vector<8x128xf32>
    %146 = vector.shape_cast %142 : vector<8x128xf32> to vector<1x8x128xf32>
    tpu.vector_store %arg5[%143, %c0_48, %c0_49], %146 {strides = array<i32>} : memref<8x8x128xf32, #tpu.memory_space<vmem>>, vector<1x8x128xf32>,
    %c4_i32 = arith.constant 4 : i32
    %c0_50 = arith.constant 0 : index
    %147 = arith.index_cast %c4_i32 : i32 to index
    %c0_51 = arith.constant 0 : index
    %c0_52 = arith.constant 0 : index
    %148 = vector.load %arg1[%c0_50, %147, %c0_51, %c0_52] : memref<1x8x8x384xf32, #tpu.memory_space<vmem>>, vector<1x1x8x384xf32>
    %149 = vector.shape_cast %148 : vector<1x1x8x384xf32> to vector<8x384xf32>
    %cst_53 = arith.constant dense<0.000000e+00> : vector<8x384xf32>
    %150 = tpu.matmul %142, %1, %cst_53 {dimension_numbers = #tpu.dot_dimension_numbers<[1], [0], [0], [1], [0, 0, 1, 1], [], []>} : vector<8x128xf32>, vector<128x384xf32>, vector<8x384xf32> -> vector<8x384xf32>
    %151 = vector.extract_strided_slice %149 {offsets = [0, 0], sizes = [8, 128], strides = [1, 1]} : vector<8x384xf32> to vector<8x128xf32>
    %152 = vector.extract_strided_slice %150 {offsets = [0, 0], sizes = [8, 128], strides = [1, 1]} : vector<8x384xf32> to vector<8x128xf32>
    %153 = arith.addf %151, %152 : vector<8x128xf32>
    %cst_54 = arith.constant 5.000000e-01 : f32
    %154 = vector.broadcast %cst_54 : f32 to vector<8x128xf32>
    %155 = arith.mulf %154, %153 : vector<8x128xf32>
    %156 = math.tanh %155 : vector<8x128xf32>
    %cst_55 = arith.constant 1.000000e+00 : f32
    %157 = vector.broadcast %cst_55 : f32 to vector<8x128xf32>
    %158 = arith.addf %157, %156 : vector<8x128xf32>
    %cst_56 = arith.constant 5.000000e-01 : f32
    %159 = vector.broadcast %cst_56 : f32 to vector<8x128xf32>
    %160 = arith.mulf %159, %158 : vector<8x128xf32>
    %161 = vector.extract_strided_slice %149 {offsets = [0, 128], sizes = [8, 128], strides = [1, 1]} : vector<8x384xf32> to vector<8x128xf32>
    %162 = vector.extract_strided_slice %150 {offsets = [0, 128], sizes = [8, 128], strides = [1, 1]} : vector<8x384xf32> to vector<8x128xf32>
    %163 = arith.addf %161, %162 : vector<8x128xf32>
    %cst_57 = arith.constant 5.000000e-01 : f32
    %164 = vector.broadcast %cst_57 : f32 to vector<8x128xf32>
    %165 = arith.mulf %164, %163 : vector<8x128xf32>
    %166 = math.tanh %165 : vector<8x128xf32>
    %cst_58 = arith.constant 1.000000e+00 : f32
    %167 = vector.broadcast %cst_58 : f32 to vector<8x128xf32>
    %168 = arith.addf %167, %166 : vector<8x128xf32>
    %cst_59 = arith.constant 5.000000e-01 : f32
    %169 = vector.broadcast %cst_59 : f32 to vector<8x128xf32>
    %170 = arith.mulf %169, %168 : vector<8x128xf32>
    %171 = vector.extract_strided_slice %149 {offsets = [0, 256], sizes = [8, 128], strides = [1, 1]} : vector<8x384xf32> to vector<8x128xf32>
    %172 = vector.extract_strided_slice %150 {offsets = [0, 256], sizes = [8, 128], strides = [1, 1]} : vector<8x384xf32> to vector<8x128xf32>
    %173 = arith.mulf %160, %172 : vector<8x128xf32>
    %174 = arith.addf %171, %173 : vector<8x128xf32>
    %175 = math.tanh %174 : vector<8x128xf32>
    %176 = arith.subf %142, %175 : vector<8x128xf32>
    %177 = arith.mulf %170, %176 : vector<8x128xf32>
    %178 = arith.addf %175, %177 : vector<8x128xf32>
    %179 = arith.index_cast %c4_i32 : i32 to index
    %c0_60 = arith.constant 0 : index
    %c0_61 = arith.constant 0 : index
    %180 = vector.load %arg5[%179, %c0_60, %c0_61] : memref<8x8x128xf32, #tpu.memory_space<vmem>>, vector<1x8x128xf32>
    %181 = vector.shape_cast %180 : vector<1x8x128xf32> to vector<8x128xf32>
    %182 = vector.shape_cast %178 : vector<8x128xf32> to vector<1x8x128xf32>
    tpu.vector_store %arg5[%179, %c0_60, %c0_61], %182 {strides = array<i32>} : memref<8x8x128xf32, #tpu.memory_space<vmem>>, vector<1x8x128xf32>,
    %c5_i32 = arith.constant 5 : i32
    %c0_62 = arith.constant 0 : index
    %183 = arith.index_cast %c5_i32 : i32 to index
    %c0_63 = arith.constant 0 : index
    %c0_64 = arith.constant 0 : index
    %184 = vector.load %arg1[%c0_62, %183, %c0_63, %c0_64] : memref<1x8x8x384xf32, #tpu.memory_space<vmem>>, vector<1x1x8x384xf32>
    %185 = vector.shape_cast %184 : vector<1x1x8x384xf32> to vector<8x384xf32>
    %cst_65 = arith.constant dense<0.000000e+00> : vector<8x384xf32>
    %186 = tpu.matmul %178, %1, %cst_65 {dimension_numbers = #tpu.dot_dimension_numbers<[1], [0], [0], [1], [0, 0, 1, 1], [], []>} : vector<8x128xf32>, vector<128x384xf32>, vector<8x384xf32> -> vector<8x384xf32>
    %187 = vector.extract_strided_slice %185 {offsets = [0, 0], sizes = [8, 128], strides = [1, 1]} : vector<8x384xf32> to vector<8x128xf32>
    %188 = vector.extract_strided_slice %186 {offsets = [0, 0], sizes = [8, 128], strides = [1, 1]} : vector<8x384xf32> to vector<8x128xf32>
    %189 = arith.addf %187, %188 : vector<8x128xf32>
    %cst_66 = arith.constant 5.000000e-01 : f32
    %190 = vector.broadcast %cst_66 : f32 to vector<8x128xf32>
    %191 = arith.mulf %190, %189 : vector<8x128xf32>
    %192 = math.tanh %191 : vector<8x128xf32>
    %cst_67 = arith.constant 1.000000e+00 : f32
    %193 = vector.broadcast %cst_67 : f32 to vector<8x128xf32>
    %194 = arith.addf %193, %192 : vector<8x128xf32>
    %cst_68 = arith.constant 5.000000e-01 : f32
    %195 = vector.broadcast %cst_68 : f32 to vector<8x128xf32>
    %196 = arith.mulf %195, %194 : vector<8x128xf32>
    %197 = vector.extract_strided_slice %185 {offsets = [0, 128], sizes = [8, 128], strides = [1, 1]} : vector<8x384xf32> to vector<8x128xf32>
    %198 = vector.extract_strided_slice %186 {offsets = [0, 128], sizes = [8, 128], strides = [1, 1]} : vector<8x384xf32> to vector<8x128xf32>
    %199 = arith.addf %197, %198 : vector<8x128xf32>
    %cst_69 = arith.constant 5.000000e-01 : f32
    %200 = vector.broadcast %cst_69 : f32 to vector<8x128xf32>
    %201 = arith.mulf %200, %199 : vector<8x128xf32>
    %202 = math.tanh %201 : vector<8x128xf32>
    %cst_70 = arith.constant 1.000000e+00 : f32
    %203 = vector.broadcast %cst_70 : f32 to vector<8x128xf32>
    %204 = arith.addf %203, %202 : vector<8x128xf32>
    %cst_71 = arith.constant 5.000000e-01 : f32
    %205 = vector.broadcast %cst_71 : f32 to vector<8x128xf32>
    %206 = arith.mulf %205, %204 : vector<8x128xf32>
    %207 = vector.extract_strided_slice %185 {offsets = [0, 256], sizes = [8, 128], strides = [1, 1]} : vector<8x384xf32> to vector<8x128xf32>
    %208 = vector.extract_strided_slice %186 {offsets = [0, 256], sizes = [8, 128], strides = [1, 1]} : vector<8x384xf32> to vector<8x128xf32>
    %209 = arith.mulf %196, %208 : vector<8x128xf32>
    %210 = arith.addf %207, %209 : vector<8x128xf32>
    %211 = math.tanh %210 : vector<8x128xf32>
    %212 = arith.subf %178, %211 : vector<8x128xf32>
    %213 = arith.mulf %206, %212 : vector<8x128xf32>
    %214 = arith.addf %211, %213 : vector<8x128xf32>
    %215 = arith.index_cast %c5_i32 : i32 to index
    %c0_72 = arith.constant 0 : index
    %c0_73 = arith.constant 0 : index
    %216 = vector.load %arg5[%215, %c0_72, %c0_73] : memref<8x8x128xf32, #tpu.memory_space<vmem>>, vector<1x8x128xf32>
    %217 = vector.shape_cast %216 : vector<1x8x128xf32> to vector<8x128xf32>
    %218 = vector.shape_cast %214 : vector<8x128xf32> to vector<1x8x128xf32>
    tpu.vector_store %arg5[%215, %c0_72, %c0_73], %218 {strides = array<i32>} : memref<8x8x128xf32, #tpu.memory_space<vmem>>, vector<1x8x128xf32>,
    %c6_i32 = arith.constant 6 : i32
    %c0_74 = arith.constant 0 : index
    %219 = arith.index_cast %c6_i32 : i32 to index
    %c0_75 = arith.constant 0 : index
    %c0_76 = arith.constant 0 : index
    %220 = vector.load %arg1[%c0_74, %219, %c0_75, %c0_76] : memref<1x8x8x384xf32, #tpu.memory_space<vmem>>, vector<1x1x8x384xf32>
    %221 = vector.shape_cast %220 : vector<1x1x8x384xf32> to vector<8x384xf32>
    %cst_77 = arith.constant dense<0.000000e+00> : vector<8x384xf32>
    %222 = tpu.matmul %214, %1, %cst_77 {dimension_numbers = #tpu.dot_dimension_numbers<[1], [0], [0], [1], [0, 0, 1, 1], [], []>} : vector<8x128xf32>, vector<128x384xf32>, vector<8x384xf32> -> vector<8x384xf32>
    %223 = vector.extract_strided_slice %221 {offsets = [0, 0], sizes = [8, 128], strides = [1, 1]} : vector<8x384xf32> to vector<8x128xf32>
    %224 = vector.extract_strided_slice %222 {offsets = [0, 0], sizes = [8, 128], strides = [1, 1]} : vector<8x384xf32> to vector<8x128xf32>
    %225 = arith.addf %223, %224 : vector<8x128xf32>
    %cst_78 = arith.constant 5.000000e-01 : f32
    %226 = vector.broadcast %cst_78 : f32 to vector<8x128xf32>
    %227 = arith.mulf %226, %225 : vector<8x128xf32>
    %228 = math.tanh %227 : vector<8x128xf32>
    %cst_79 = arith.constant 1.000000e+00 : f32
    %229 = vector.broadcast %cst_79 : f32 to vector<8x128xf32>
    %230 = arith.addf %229, %228 : vector<8x128xf32>
    %cst_80 = arith.constant 5.000000e-01 : f32
    %231 = vector.broadcast %cst_80 : f32 to vector<8x128xf32>
    %232 = arith.mulf %231, %230 : vector<8x128xf32>
    %233 = vector.extract_strided_slice %221 {offsets = [0, 128], sizes = [8, 128], strides = [1, 1]} : vector<8x384xf32> to vector<8x128xf32>
    %234 = vector.extract_strided_slice %222 {offsets = [0, 128], sizes = [8, 128], strides = [1, 1]} : vector<8x384xf32> to vector<8x128xf32>
    %235 = arith.addf %233, %234 : vector<8x128xf32>
    %cst_81 = arith.constant 5.000000e-01 : f32
    %236 = vector.broadcast %cst_81 : f32 to vector<8x128xf32>
    %237 = arith.mulf %236, %235 : vector<8x128xf32>
    %238 = math.tanh %237 : vector<8x128xf32>
    %cst_82 = arith.constant 1.000000e+00 : f32
    %239 = vector.broadcast %cst_82 : f32 to vector<8x128xf32>
    %240 = arith.addf %239, %238 : vector<8x128xf32>
    %cst_83 = arith.constant 5.000000e-01 : f32
    %241 = vector.broadcast %cst_83 : f32 to vector<8x128xf32>
    %242 = arith.mulf %241, %240 : vector<8x128xf32>
    %243 = vector.extract_strided_slice %221 {offsets = [0, 256], sizes = [8, 128], strides = [1, 1]} : vector<8x384xf32> to vector<8x128xf32>
    %244 = vector.extract_strided_slice %222 {offsets = [0, 256], sizes = [8, 128], strides = [1, 1]} : vector<8x384xf32> to vector<8x128xf32>
    %245 = arith.mulf %232, %244 : vector<8x128xf32>
    %246 = arith.addf %243, %245 : vector<8x128xf32>
    %247 = math.tanh %246 : vector<8x128xf32>
    %248 = arith.subf %214, %247 : vector<8x128xf32>
    %249 = arith.mulf %242, %248 : vector<8x128xf32>
    %250 = arith.addf %247, %249 : vector<8x128xf32>
    %251 = arith.index_cast %c6_i32 : i32 to index
    %c0_84 = arith.constant 0 : index
    %c0_85 = arith.constant 0 : index
    %252 = vector.load %arg5[%251, %c0_84, %c0_85] : memref<8x8x128xf32, #tpu.memory_space<vmem>>, vector<1x8x128xf32>
    %253 = vector.shape_cast %252 : vector<1x8x128xf32> to vector<8x128xf32>
    %254 = vector.shape_cast %250 : vector<8x128xf32> to vector<1x8x128xf32>
    tpu.vector_store %arg5[%251, %c0_84, %c0_85], %254 {strides = array<i32>} : memref<8x8x128xf32, #tpu.memory_space<vmem>>, vector<1x8x128xf32>,
    %c7_i32 = arith.constant 7 : i32
    %c0_86 = arith.constant 0 : index
    %255 = arith.index_cast %c7_i32 : i32 to index
    %c0_87 = arith.constant 0 : index
    %c0_88 = arith.constant 0 : index
    %256 = vector.load %arg1[%c0_86, %255, %c0_87, %c0_88] : memref<1x8x8x384xf32, #tpu.memory_space<vmem>>, vector<1x1x8x384xf32>
    %257 = vector.shape_cast %256 : vector<1x1x8x384xf32> to vector<8x384xf32>
    %cst_89 = arith.constant dense<0.000000e+00> : vector<8x384xf32>
    %258 = tpu.matmul %250, %1, %cst_89 {dimension_numbers = #tpu.dot_dimension_numbers<[1], [0], [0], [1], [0, 0, 1, 1], [], []>} : vector<8x128xf32>, vector<128x384xf32>, vector<8x384xf32> -> vector<8x384xf32>
    %259 = vector.extract_strided_slice %257 {offsets = [0, 0], sizes = [8, 128], strides = [1, 1]} : vector<8x384xf32> to vector<8x128xf32>
    %260 = vector.extract_strided_slice %258 {offsets = [0, 0], sizes = [8, 128], strides = [1, 1]} : vector<8x384xf32> to vector<8x128xf32>
    %261 = arith.addf %259, %260 : vector<8x128xf32>
    %cst_90 = arith.constant 5.000000e-01 : f32
    %262 = vector.broadcast %cst_90 : f32 to vector<8x128xf32>
    %263 = arith.mulf %262, %261 : vector<8x128xf32>
    %264 = math.tanh %263 : vector<8x128xf32>
    %cst_91 = arith.constant 1.000000e+00 : f32
    %265 = vector.broadcast %cst_91 : f32 to vector<8x128xf32>
    %266 = arith.addf %265, %264 : vector<8x128xf32>
    %cst_92 = arith.constant 5.000000e-01 : f32
    %267 = vector.broadcast %cst_92 : f32 to vector<8x128xf32>
    %268 = arith.mulf %267, %266 : vector<8x128xf32>
    %269 = vector.extract_strided_slice %257 {offsets = [0, 128], sizes = [8, 128], strides = [1, 1]} : vector<8x384xf32> to vector<8x128xf32>
    %270 = vector.extract_strided_slice %258 {offsets = [0, 128], sizes = [8, 128], strides = [1, 1]} : vector<8x384xf32> to vector<8x128xf32>
    %271 = arith.addf %269, %270 : vector<8x128xf32>
    %cst_93 = arith.constant 5.000000e-01 : f32
    %272 = vector.broadcast %cst_93 : f32 to vector<8x128xf32>
    %273 = arith.mulf %272, %271 : vector<8x128xf32>
    %274 = math.tanh %273 : vector<8x128xf32>
    %cst_94 = arith.constant 1.000000e+00 : f32
    %275 = vector.broadcast %cst_94 : f32 to vector<8x128xf32>
    %276 = arith.addf %275, %274 : vector<8x128xf32>
    %cst_95 = arith.constant 5.000000e-01 : f32
    %277 = vector.broadcast %cst_95 : f32 to vector<8x128xf32>
    %278 = arith.mulf %277, %276 : vector<8x128xf32>
    %279 = vector.extract_strided_slice %257 {offsets = [0, 256], sizes = [8, 128], strides = [1, 1]} : vector<8x384xf32> to vector<8x128xf32>
    %280 = vector.extract_strided_slice %258 {offsets = [0, 256], sizes = [8, 128], strides = [1, 1]} : vector<8x384xf32> to vector<8x128xf32>
    %281 = arith.mulf %268, %280 : vector<8x128xf32>
    %282 = arith.addf %279, %281 : vector<8x128xf32>
    %283 = math.tanh %282 : vector<8x128xf32>
    %284 = arith.subf %250, %283 : vector<8x128xf32>
    %285 = arith.mulf %278, %284 : vector<8x128xf32>
    %286 = arith.addf %283, %285 : vector<8x128xf32>
    %287 = arith.index_cast %c7_i32 : i32 to index
    %c0_96 = arith.constant 0 : index
    %c0_97 = arith.constant 0 : index
    %288 = vector.load %arg5[%287, %c0_96, %c0_97] : memref<8x8x128xf32, #tpu.memory_space<vmem>>, vector<1x8x128xf32>
    %289 = vector.shape_cast %288 : vector<1x8x128xf32> to vector<8x128xf32>
    %290 = vector.shape_cast %286 : vector<8x128xf32> to vector<1x8x128xf32>
    tpu.vector_store %arg5[%287, %c0_96, %c0_97], %290 {strides = array<i32>} : memref<8x8x128xf32, #tpu.memory_space<vmem>>, vector<1x8x128xf32>,
    %c8_i32 = arith.constant 8 : i32
    %c0_98 = arith.constant 0 : index
    %c0_99 = arith.constant 0 : index
    %c0_100 = arith.constant 0 : index
    %291 = vector.load %arg5[%c0_98, %c0_99, %c0_100] : memref<8x8x128xf32, #tpu.memory_space<vmem>>, vector<8x8x128xf32>
    %292 = vector.shape_cast %291 : vector<8x8x128xf32> to vector<64x128xf32>
    %c0_101 = arith.constant 0 : index
    %c0_102 = arith.constant 0 : index
    %c0_103 = arith.constant 0 : index
    %293 = vector.load %arg2[%c0_101, %c0_102, %c0_103] : memref<1x128x384xf32, #tpu.memory_space<vmem>>, vector<1x128x384xf32>
    %294 = vector.shape_cast %293 : vector<1x128x384xf32> to vector<128x384xf32>
    %cst_104 = arith.constant dense<0.000000e+00> : vector<64x384xf32>
    %295 = tpu.matmul %292, %294, %cst_104 {dimension_numbers = #tpu.dot_dimension_numbers<[1], [0], [0], [1], [0, 0, 1, 1], [], []>} : vector<64x128xf32>, vector<128x384xf32>, vector<64x384xf32> -> vector<64x384xf32>
    %296 = vector.shape_cast %295 : vector<64x384xf32> to vector<8x8x384xf32>
    %c0_105 = arith.constant 0 : index
    %c0_106 = arith.constant 0 : index
    %c0_107 = arith.constant 0 : index
    %297 = vector.load %arg6[%c0_105, %c0_106, %c0_107] : memref<8x8x384xf32, #tpu.memory_space<vmem>>, vector<8x8x384xf32>
    tpu.vector_store %arg6[%c0_105, %c0_106, %c0_107], %296 {strides = array<i32>} : memref<8x8x384xf32, #tpu.memory_space<vmem>>, vector<8x8x384xf32>,
    %c1 = arith.constant 1 : index
    %c0_108 = arith.constant 0 : index
    %c0_109 = arith.constant 0 : index
    %298 = vector.load %arg3[%c1, %c0_108, %c0_109] : memref<2x128x384xf32, #tpu.memory_space<vmem>>, vector<1x128x384xf32>
    %299 = vector.shape_cast %298 : vector<1x128x384xf32> to vector<128x384xf32>
    %cst_110 = arith.constant 0.000000e+00 : f32
    %300 = vector.broadcast %cst_110 : f32 to vector<8x128xf32>
    %c0_i32_111 = arith.constant 0 : i32
    %301 = arith.index_cast %c0_i32_111 : i32 to index
    %c0_112 = arith.constant 0 : index
    %c0_113 = arith.constant 0 : index
    %302 = vector.load %arg6[%301, %c0_112, %c0_113] : memref<8x8x384xf32, #tpu.memory_space<vmem>>, vector<1x8x384xf32>
    %303 = vector.shape_cast %302 : vector<1x8x384xf32> to vector<8x384xf32>
    %cst_114 = arith.constant dense<0.000000e+00> : vector<8x384xf32>
    %304 = tpu.matmul %300, %299, %cst_114 {dimension_numbers = #tpu.dot_dimension_numbers<[1], [0], [0], [1], [0, 0, 1, 1], [], []>} : vector<8x128xf32>, vector<128x384xf32>, vector<8x384xf32> -> vector<8x384xf32>
    %305 = vector.extract_strided_slice %303 {offsets = [0, 0], sizes = [8, 128], strides = [1, 1]} : vector<8x384xf32> to vector<8x128xf32>
    %306 = vector.extract_strided_slice %304 {offsets = [0, 0], sizes = [8, 128], strides = [1, 1]} : vector<8x384xf32> to vector<8x128xf32>
    %307 = arith.addf %305, %306 : vector<8x128xf32>
    %cst_115 = arith.constant 5.000000e-01 : f32
    %308 = vector.broadcast %cst_115 : f32 to vector<8x128xf32>
    %309 = arith.mulf %308, %307 : vector<8x128xf32>
    %310 = math.tanh %309 : vector<8x128xf32>
    %cst_116 = arith.constant 1.000000e+00 : f32
    %311 = vector.broadcast %cst_116 : f32 to vector<8x128xf32>
    %312 = arith.addf %311, %310 : vector<8x128xf32>
    %cst_117 = arith.constant 5.000000e-01 : f32
    %313 = vector.broadcast %cst_117 : f32 to vector<8x128xf32>
    %314 = arith.mulf %313, %312 : vector<8x128xf32>
    %315 = vector.extract_strided_slice %303 {offsets = [0, 128], sizes = [8, 128], strides = [1, 1]} : vector<8x384xf32> to vector<8x128xf32>
    %316 = vector.extract_strided_slice %304 {offsets = [0, 128], sizes = [8, 128], strides = [1, 1]} : vector<8x384xf32> to vector<8x128xf32>
    %317 = arith.addf %315, %316 : vector<8x128xf32>
    %cst_118 = arith.constant 5.000000e-01 : f32
    %318 = vector.broadcast %cst_118 : f32 to vector<8x128xf32>
    %319 = arith.mulf %318, %317 : vector<8x128xf32>
    %320 = math.tanh %319 : vector<8x128xf32>
    %cst_119 = arith.constant 1.000000e+00 : f32
    %321 = vector.broadcast %cst_119 : f32 to vector<8x128xf32>
    %322 = arith.addf %321, %320 : vector<8x128xf32>
    %cst_120 = arith.constant 5.000000e-01 : f32
    %323 = vector.broadcast %cst_120 : f32 to vector<8x128xf32>
    %324 = arith.mulf %323, %322 : vector<8x128xf32>
    %325 = vector.extract_strided_slice %303 {offsets = [0, 256], sizes = [8, 128], strides = [1, 1]} : vector<8x384xf32> to vector<8x128xf32>
    %326 = vector.extract_strided_slice %304 {offsets = [0, 256], sizes = [8, 128], strides = [1, 1]} : vector<8x384xf32> to vector<8x128xf32>
    %327 = arith.mulf %314, %326 : vector<8x128xf32>
    %328 = arith.addf %325, %327 : vector<8x128xf32>
    %329 = math.tanh %328 : vector<8x128xf32>
    %330 = arith.subf %300, %329 : vector<8x128xf32>
    %331 = arith.mulf %324, %330 : vector<8x128xf32>
    %332 = arith.addf %329, %331 : vector<8x128xf32>
    %c1_i32_121 = arith.constant 1 : i32
    %333 = arith.index_cast %c1_i32_121 : i32 to index
    %c0_122 = arith.constant 0 : index
    %c0_123 = arith.constant 0 : index
    %334 = vector.load %arg6[%333, %c0_122, %c0_123] : memref<8x8x384xf32, #tpu.memory_space<vmem>>, vector<1x8x384xf32>
    %335 = vector.shape_cast %334 : vector<1x8x384xf32> to vector<8x384xf32>
    %cst_124 = arith.constant dense<0.000000e+00> : vector<8x384xf32>
    %336 = tpu.matmul %332, %299, %cst_124 {dimension_numbers = #tpu.dot_dimension_numbers<[1], [0], [0], [1], [0, 0, 1, 1], [], []>} : vector<8x128xf32>, vector<128x384xf32>, vector<8x384xf32> -> vector<8x384xf32>
    %337 = vector.extract_strided_slice %335 {offsets = [0, 0], sizes = [8, 128], strides = [1, 1]} : vector<8x384xf32> to vector<8x128xf32>
    %338 = vector.extract_strided_slice %336 {offsets = [0, 0], sizes = [8, 128], strides = [1, 1]} : vector<8x384xf32> to vector<8x128xf32>
    %339 = arith.addf %337, %338 : vector<8x128xf32>
    %cst_125 = arith.constant 5.000000e-01 : f32
    %340 = vector.broadcast %cst_125 : f32 to vector<8x128xf32>
    %341 = arith.mulf %340, %339 : vector<8x128xf32>
    %342 = math.tanh %341 : vector<8x128xf32>
    %cst_126 = arith.constant 1.000000e+00 : f32
    %343 = vector.broadcast %cst_126 : f32 to vector<8x128xf32>
    %344 = arith.addf %343, %342 : vector<8x128xf32>
    %cst_127 = arith.constant 5.000000e-01 : f32
    %345 = vector.broadcast %cst_127 : f32 to vector<8x128xf32>
    %346 = arith.mulf %345, %344 : vector<8x128xf32>
    %347 = vector.extract_strided_slice %335 {offsets = [0, 128], sizes = [8, 128], strides = [1, 1]} : vector<8x384xf32> to vector<8x128xf32>
    %348 = vector.extract_strided_slice %336 {offsets = [0, 128], sizes = [8, 128], strides = [1, 1]} : vector<8x384xf32> to vector<8x128xf32>
    %349 = arith.addf %347, %348 : vector<8x128xf32>
    %cst_128 = arith.constant 5.000000e-01 : f32
    %350 = vector.broadcast %cst_128 : f32 to vector<8x128xf32>
    %351 = arith.mulf %350, %349 : vector<8x128xf32>
    %352 = math.tanh %351 : vector<8x128xf32>
    %cst_129 = arith.constant 1.000000e+00 : f32
    %353 = vector.broadcast %cst_129 : f32 to vector<8x128xf32>
    %354 = arith.addf %353, %352 : vector<8x128xf32>
    %cst_130 = arith.constant 5.000000e-01 : f32
    %355 = vector.broadcast %cst_130 : f32 to vector<8x128xf32>
    %356 = arith.mulf %355, %354 : vector<8x128xf32>
    %357 = vector.extract_strided_slice %335 {offsets = [0, 256], sizes = [8, 128], strides = [1, 1]} : vector<8x384xf32> to vector<8x128xf32>
    %358 = vector.extract_strided_slice %336 {offsets = [0, 256], sizes = [8, 128], strides = [1, 1]} : vector<8x384xf32> to vector<8x128xf32>
    %359 = arith.mulf %346, %358 : vector<8x128xf32>
    %360 = arith.addf %357, %359 : vector<8x128xf32>
    %361 = math.tanh %360 : vector<8x128xf32>
    %362 = arith.subf %332, %361 : vector<8x128xf32>
    %363 = arith.mulf %356, %362 : vector<8x128xf32>
    %364 = arith.addf %361, %363 : vector<8x128xf32>
    %c2_i32_131 = arith.constant 2 : i32
    %365 = arith.index_cast %c2_i32_131 : i32 to index
    %c0_132 = arith.constant 0 : index
    %c0_133 = arith.constant 0 : index
    %366 = vector.load %arg6[%365, %c0_132, %c0_133] : memref<8x8x384xf32, #tpu.memory_space<vmem>>, vector<1x8x384xf32>
    %367 = vector.shape_cast %366 : vector<1x8x384xf32> to vector<8x384xf32>
    %cst_134 = arith.constant dense<0.000000e+00> : vector<8x384xf32>
    %368 = tpu.matmul %364, %299, %cst_134 {dimension_numbers = #tpu.dot_dimension_numbers<[1], [0], [0], [1], [0, 0, 1, 1], [], []>} : vector<8x128xf32>, vector<128x384xf32>, vector<8x384xf32> -> vector<8x384xf32>
    %369 = vector.extract_strided_slice %367 {offsets = [0, 0], sizes = [8, 128], strides = [1, 1]} : vector<8x384xf32> to vector<8x128xf32>
    %370 = vector.extract_strided_slice %368 {offsets = [0, 0], sizes = [8, 128], strides = [1, 1]} : vector<8x384xf32> to vector<8x128xf32>
    %371 = arith.addf %369, %370 : vector<8x128xf32>
    %cst_135 = arith.constant 5.000000e-01 : f32
    %372 = vector.broadcast %cst_135 : f32 to vector<8x128xf32>
    %373 = arith.mulf %372, %371 : vector<8x128xf32>
    %374 = math.tanh %373 : vector<8x128xf32>
    %cst_136 = arith.constant 1.000000e+00 : f32
    %375 = vector.broadcast %cst_136 : f32 to vector<8x128xf32>
    %376 = arith.addf %375, %374 : vector<8x128xf32>
    %cst_137 = arith.constant 5.000000e-01 : f32
    %377 = vector.broadcast %cst_137 : f32 to vector<8x128xf32>
    %378 = arith.mulf %377, %376 : vector<8x128xf32>
    %379 = vector.extract_strided_slice %367 {offsets = [0, 128], sizes = [8, 128], strides = [1, 1]} : vector<8x384xf32> to vector<8x128xf32>
    %380 = vector.extract_strided_slice %368 {offsets = [0, 128], sizes = [8, 128], strides = [1, 1]} : vector<8x384xf32> to vector<8x128xf32>
    %381 = arith.addf %379, %380 : vector<8x128xf32>
    %cst_138 = arith.constant 5.000000e-01 : f32
    %382 = vector.broadcast %cst_138 : f32 to vector<8x128xf32>
    %383 = arith.mulf %382, %381 : vector<8x128xf32>
    %384 = math.tanh %383 : vector<8x128xf32>
    %cst_139 = arith.constant 1.000000e+00 : f32
    %385 = vector.broadcast %cst_139 : f32 to vector<8x128xf32>
    %386 = arith.addf %385, %384 : vector<8x128xf32>
    %cst_140 = arith.constant 5.000000e-01 : f32
    %387 = vector.broadcast %cst_140 : f32 to vector<8x128xf32>
    %388 = arith.mulf %387, %386 : vector<8x128xf32>
    %389 = vector.extract_strided_slice %367 {offsets = [0, 256], sizes = [8, 128], strides = [1, 1]} : vector<8x384xf32> to vector<8x128xf32>
    %390 = vector.extract_strided_slice %368 {offsets = [0, 256], sizes = [8, 128], strides = [1, 1]} : vector<8x384xf32> to vector<8x128xf32>
    %391 = arith.mulf %378, %390 : vector<8x128xf32>
    %392 = arith.addf %389, %391 : vector<8x128xf32>
    %393 = math.tanh %392 : vector<8x128xf32>
    %394 = arith.subf %364, %393 : vector<8x128xf32>
    %395 = arith.mulf %388, %394 : vector<8x128xf32>
    %396 = arith.addf %393, %395 : vector<8x128xf32>
    %c3_i32_141 = arith.constant 3 : i32
    %397 = arith.index_cast %c3_i32_141 : i32 to index
    %c0_142 = arith.constant 0 : index
    %c0_143 = arith.constant 0 : index
    %398 = vector.load %arg6[%397, %c0_142, %c0_143] : memref<8x8x384xf32, #tpu.memory_space<vmem>>, vector<1x8x384xf32>
    %399 = vector.shape_cast %398 : vector<1x8x384xf32> to vector<8x384xf32>
    %cst_144 = arith.constant dense<0.000000e+00> : vector<8x384xf32>
    %400 = tpu.matmul %396, %299, %cst_144 {dimension_numbers = #tpu.dot_dimension_numbers<[1], [0], [0], [1], [0, 0, 1, 1], [], []>} : vector<8x128xf32>, vector<128x384xf32>, vector<8x384xf32> -> vector<8x384xf32>
    %401 = vector.extract_strided_slice %399 {offsets = [0, 0], sizes = [8, 128], strides = [1, 1]} : vector<8x384xf32> to vector<8x128xf32>
    %402 = vector.extract_strided_slice %400 {offsets = [0, 0], sizes = [8, 128], strides = [1, 1]} : vector<8x384xf32> to vector<8x128xf32>
    %403 = arith.addf %401, %402 : vector<8x128xf32>
    %cst_145 = arith.constant 5.000000e-01 : f32
    %404 = vector.broadcast %cst_145 : f32 to vector<8x128xf32>
    %405 = arith.mulf %404, %403 : vector<8x128xf32>
    %406 = math.tanh %405 : vector<8x128xf32>
    %cst_146 = arith.constant 1.000000e+00 : f32
    %407 = vector.broadcast %cst_146 : f32 to vector<8x128xf32>
    %408 = arith.addf %407, %406 : vector<8x128xf32>
    %cst_147 = arith.constant 5.000000e-01 : f32
    %409 = vector.broadcast %cst_147 : f32 to vector<8x128xf32>
    %410 = arith.mulf %409, %408 : vector<8x128xf32>
    %411 = vector.extract_strided_slice %399 {offsets = [0, 128], sizes = [8, 128], strides = [1, 1]} : vector<8x384xf32> to vector<8x128xf32>
    %412 = vector.extract_strided_slice %400 {offsets = [0, 128], sizes = [8, 128], strides = [1, 1]} : vector<8x384xf32> to vector<8x128xf32>
    %413 = arith.addf %411, %412 : vector<8x128xf32>
    %cst_148 = arith.constant 5.000000e-01 : f32
    %414 = vector.broadcast %cst_148 : f32 to vector<8x128xf32>
    %415 = arith.mulf %414, %413 : vector<8x128xf32>
    %416 = math.tanh %415 : vector<8x128xf32>
    %cst_149 = arith.constant 1.000000e+00 : f32
    %417 = vector.broadcast %cst_149 : f32 to vector<8x128xf32>
    %418 = arith.addf %417, %416 : vector<8x128xf32>
    %cst_150 = arith.constant 5.000000e-01 : f32
    %419 = vector.broadcast %cst_150 : f32 to vector<8x128xf32>
    %420 = arith.mulf %419, %418 : vector<8x128xf32>
    %421 = vector.extract_strided_slice %399 {offsets = [0, 256], sizes = [8, 128], strides = [1, 1]} : vector<8x384xf32> to vector<8x128xf32>
    %422 = vector.extract_strided_slice %400 {offsets = [0, 256], sizes = [8, 128], strides = [1, 1]} : vector<8x384xf32> to vector<8x128xf32>
    %423 = arith.mulf %410, %422 : vector<8x128xf32>
    %424 = arith.addf %421, %423 : vector<8x128xf32>
    %425 = math.tanh %424 : vector<8x128xf32>
    %426 = arith.subf %396, %425 : vector<8x128xf32>
    %427 = arith.mulf %420, %426 : vector<8x128xf32>
    %428 = arith.addf %425, %427 : vector<8x128xf32>
    %c4_i32_151 = arith.constant 4 : i32
    %429 = arith.index_cast %c4_i32_151 : i32 to index
    %c0_152 = arith.constant 0 : index
    %c0_153 = arith.constant 0 : index
    %430 = vector.load %arg6[%429, %c0_152, %c0_153] : memref<8x8x384xf32, #tpu.memory_space<vmem>>, vector<1x8x384xf32>
    %431 = vector.shape_cast %430 : vector<1x8x384xf32> to vector<8x384xf32>
    %cst_154 = arith.constant dense<0.000000e+00> : vector<8x384xf32>
    %432 = tpu.matmul %428, %299, %cst_154 {dimension_numbers = #tpu.dot_dimension_numbers<[1], [0], [0], [1], [0, 0, 1, 1], [], []>} : vector<8x128xf32>, vector<128x384xf32>, vector<8x384xf32> -> vector<8x384xf32>
    %433 = vector.extract_strided_slice %431 {offsets = [0, 0], sizes = [8, 128], strides = [1, 1]} : vector<8x384xf32> to vector<8x128xf32>
    %434 = vector.extract_strided_slice %432 {offsets = [0, 0], sizes = [8, 128], strides = [1, 1]} : vector<8x384xf32> to vector<8x128xf32>
    %435 = arith.addf %433, %434 : vector<8x128xf32>
    %cst_155 = arith.constant 5.000000e-01 : f32
    %436 = vector.broadcast %cst_155 : f32 to vector<8x128xf32>
    %437 = arith.mulf %436, %435 : vector<8x128xf32>
    %438 = math.tanh %437 : vector<8x128xf32>
    %cst_156 = arith.constant 1.000000e+00 : f32
    %439 = vector.broadcast %cst_156 : f32 to vector<8x128xf32>
    %440 = arith.addf %439, %438 : vector<8x128xf32>
    %cst_157 = arith.constant 5.000000e-01 : f32
    %441 = vector.broadcast %cst_157 : f32 to vector<8x128xf32>
    %442 = arith.mulf %441, %440 : vector<8x128xf32>
    %443 = vector.extract_strided_slice %431 {offsets = [0, 128], sizes = [8, 128], strides = [1, 1]} : vector<8x384xf32> to vector<8x128xf32>
    %444 = vector.extract_strided_slice %432 {offsets = [0, 128], sizes = [8, 128], strides = [1, 1]} : vector<8x384xf32> to vector<8x128xf32>
    %445 = arith.addf %443, %444 : vector<8x128xf32>
    %cst_158 = arith.constant 5.000000e-01 : f32
    %446 = vector.broadcast %cst_158 : f32 to vector<8x128xf32>
    %447 = arith.mulf %446, %445 : vector<8x128xf32>
    %448 = math.tanh %447 : vector<8x128xf32>
    %cst_159 = arith.constant 1.000000e+00 : f32
    %449 = vector.broadcast %cst_159 : f32 to vector<8x128xf32>
    %450 = arith.addf %449, %448 : vector<8x128xf32>
    %cst_160 = arith.constant 5.000000e-01 : f32
    %451 = vector.broadcast %cst_160 : f32 to vector<8x128xf32>
    %452 = arith.mulf %451, %450 : vector<8x128xf32>
    %453 = vector.extract_strided_slice %431 {offsets = [0, 256], sizes = [8, 128], strides = [1, 1]} : vector<8x384xf32> to vector<8x128xf32>
    %454 = vector.extract_strided_slice %432 {offsets = [0, 256], sizes = [8, 128], strides = [1, 1]} : vector<8x384xf32> to vector<8x128xf32>
    %455 = arith.mulf %442, %454 : vector<8x128xf32>
    %456 = arith.addf %453, %455 : vector<8x128xf32>
    %457 = math.tanh %456 : vector<8x128xf32>
    %458 = arith.subf %428, %457 : vector<8x128xf32>
    %459 = arith.mulf %452, %458 : vector<8x128xf32>
    %460 = arith.addf %457, %459 : vector<8x128xf32>
    %c5_i32_161 = arith.constant 5 : i32
    %461 = arith.index_cast %c5_i32_161 : i32 to index
    %c0_162 = arith.constant 0 : index
    %c0_163 = arith.constant 0 : index
    %462 = vector.load %arg6[%461, %c0_162, %c0_163] : memref<8x8x384xf32, #tpu.memory_space<vmem>>, vector<1x8x384xf32>
    %463 = vector.shape_cast %462 : vector<1x8x384xf32> to vector<8x384xf32>
    %cst_164 = arith.constant dense<0.000000e+00> : vector<8x384xf32>
    %464 = tpu.matmul %460, %299, %cst_164 {dimension_numbers = #tpu.dot_dimension_numbers<[1], [0], [0], [1], [0, 0, 1, 1], [], []>} : vector<8x128xf32>, vector<128x384xf32>, vector<8x384xf32> -> vector<8x384xf32>
    %465 = vector.extract_strided_slice %463 {offsets = [0, 0], sizes = [8, 128], strides = [1, 1]} : vector<8x384xf32> to vector<8x128xf32>
    %466 = vector.extract_strided_slice %464 {offsets = [0, 0], sizes = [8, 128], strides = [1, 1]} : vector<8x384xf32> to vector<8x128xf32>
    %467 = arith.addf %465, %466 : vector<8x128xf32>
    %cst_165 = arith.constant 5.000000e-01 : f32
    %468 = vector.broadcast %cst_165 : f32 to vector<8x128xf32>
    %469 = arith.mulf %468, %467 : vector<8x128xf32>
    %470 = math.tanh %469 : vector<8x128xf32>
    %cst_166 = arith.constant 1.000000e+00 : f32
    %471 = vector.broadcast %cst_166 : f32 to vector<8x128xf32>
    %472 = arith.addf %471, %470 : vector<8x128xf32>
    %cst_167 = arith.constant 5.000000e-01 : f32
    %473 = vector.broadcast %cst_167 : f32 to vector<8x128xf32>
    %474 = arith.mulf %473, %472 : vector<8x128xf32>
    %475 = vector.extract_strided_slice %463 {offsets = [0, 128], sizes = [8, 128], strides = [1, 1]} : vector<8x384xf32> to vector<8x128xf32>
    %476 = vector.extract_strided_slice %464 {offsets = [0, 128], sizes = [8, 128], strides = [1, 1]} : vector<8x384xf32> to vector<8x128xf32>
    %477 = arith.addf %475, %476 : vector<8x128xf32>
    %cst_168 = arith.constant 5.000000e-01 : f32
    %478 = vector.broadcast %cst_168 : f32 to vector<8x128xf32>
    %479 = arith.mulf %478, %477 : vector<8x128xf32>
    %480 = math.tanh %479 : vector<8x128xf32>
    %cst_169 = arith.constant 1.000000e+00 : f32
    %481 = vector.broadcast %cst_169 : f32 to vector<8x128xf32>
    %482 = arith.addf %481, %480 : vector<8x128xf32>
    %cst_170 = arith.constant 5.000000e-01 : f32
    %483 = vector.broadcast %cst_170 : f32 to vector<8x128xf32>
    %484 = arith.mulf %483, %482 : vector<8x128xf32>
    %485 = vector.extract_strided_slice %463 {offsets = [0, 256], sizes = [8, 128], strides = [1, 1]} : vector<8x384xf32> to vector<8x128xf32>
    %486 = vector.extract_strided_slice %464 {offsets = [0, 256], sizes = [8, 128], strides = [1, 1]} : vector<8x384xf32> to vector<8x128xf32>
    %487 = arith.mulf %474, %486 : vector<8x128xf32>
    %488 = arith.addf %485, %487 : vector<8x128xf32>
    %489 = math.tanh %488 : vector<8x128xf32>
    %490 = arith.subf %460, %489 : vector<8x128xf32>
    %491 = arith.mulf %484, %490 : vector<8x128xf32>
    %492 = arith.addf %489, %491 : vector<8x128xf32>
    %c6_i32_171 = arith.constant 6 : i32
    %493 = arith.index_cast %c6_i32_171 : i32 to index
    %c0_172 = arith.constant 0 : index
    %c0_173 = arith.constant 0 : index
    %494 = vector.load %arg6[%493, %c0_172, %c0_173] : memref<8x8x384xf32, #tpu.memory_space<vmem>>, vector<1x8x384xf32>
    %495 = vector.shape_cast %494 : vector<1x8x384xf32> to vector<8x384xf32>
    %cst_174 = arith.constant dense<0.000000e+00> : vector<8x384xf32>
    %496 = tpu.matmul %492, %299, %cst_174 {dimension_numbers = #tpu.dot_dimension_numbers<[1], [0], [0], [1], [0, 0, 1, 1], [], []>} : vector<8x128xf32>, vector<128x384xf32>, vector<8x384xf32> -> vector<8x384xf32>
    %497 = vector.extract_strided_slice %495 {offsets = [0, 0], sizes = [8, 128], strides = [1, 1]} : vector<8x384xf32> to vector<8x128xf32>
    %498 = vector.extract_strided_slice %496 {offsets = [0, 0], sizes = [8, 128], strides = [1, 1]} : vector<8x384xf32> to vector<8x128xf32>
    %499 = arith.addf %497, %498 : vector<8x128xf32>
    %cst_175 = arith.constant 5.000000e-01 : f32
    %500 = vector.broadcast %cst_175 : f32 to vector<8x128xf32>
    %501 = arith.mulf %500, %499 : vector<8x128xf32>
    %502 = math.tanh %501 : vector<8x128xf32>
    %cst_176 = arith.constant 1.000000e+00 : f32
    %503 = vector.broadcast %cst_176 : f32 to vector<8x128xf32>
    %504 = arith.addf %503, %502 : vector<8x128xf32>
    %cst_177 = arith.constant 5.000000e-01 : f32
    %505 = vector.broadcast %cst_177 : f32 to vector<8x128xf32>
    %506 = arith.mulf %505, %504 : vector<8x128xf32>
    %507 = vector.extract_strided_slice %495 {offsets = [0, 128], sizes = [8, 128], strides = [1, 1]} : vector<8x384xf32> to vector<8x128xf32>
    %508 = vector.extract_strided_slice %496 {offsets = [0, 128], sizes = [8, 128], strides = [1, 1]} : vector<8x384xf32> to vector<8x128xf32>
    %509 = arith.addf %507, %508 : vector<8x128xf32>
    %cst_178 = arith.constant 5.000000e-01 : f32
    %510 = vector.broadcast %cst_178 : f32 to vector<8x128xf32>
    %511 = arith.mulf %510, %509 : vector<8x128xf32>
    %512 = math.tanh %511 : vector<8x128xf32>
    %cst_179 = arith.constant 1.000000e+00 : f32
    %513 = vector.broadcast %cst_179 : f32 to vector<8x128xf32>
    %514 = arith.addf %513, %512 : vector<8x128xf32>
    %cst_180 = arith.constant 5.000000e-01 : f32
    %515 = vector.broadcast %cst_180 : f32 to vector<8x128xf32>
    %516 = arith.mulf %515, %514 : vector<8x128xf32>
    %517 = vector.extract_strided_slice %495 {offsets = [0, 256], sizes = [8, 128], strides = [1, 1]} : vector<8x384xf32> to vector<8x128xf32>
    %518 = vector.extract_strided_slice %496 {offsets = [0, 256], sizes = [8, 128], strides = [1, 1]} : vector<8x384xf32> to vector<8x128xf32>
    %519 = arith.mulf %506, %518 : vector<8x128xf32>
    %520 = arith.addf %517, %519 : vector<8x128xf32>
    %521 = math.tanh %520 : vector<8x128xf32>
    %522 = arith.subf %492, %521 : vector<8x128xf32>
    %523 = arith.mulf %516, %522 : vector<8x128xf32>
    %524 = arith.addf %521, %523 : vector<8x128xf32>
    %c7_i32_181 = arith.constant 7 : i32
    %525 = arith.index_cast %c7_i32_181 : i32 to index
    %c0_182 = arith.constant 0 : index
    %c0_183 = arith.constant 0 : index
    %526 = vector.load %arg6[%525, %c0_182, %c0_183] : memref<8x8x384xf32, #tpu.memory_space<vmem>>, vector<1x8x384xf32>
    %527 = vector.shape_cast %526 : vector<1x8x384xf32> to vector<8x384xf32>
    %cst_184 = arith.constant dense<0.000000e+00> : vector<8x384xf32>
    %528 = tpu.matmul %524, %299, %cst_184 {dimension_numbers = #tpu.dot_dimension_numbers<[1], [0], [0], [1], [0, 0, 1, 1], [], []>} : vector<8x128xf32>, vector<128x384xf32>, vector<8x384xf32> -> vector<8x384xf32>
    %529 = vector.extract_strided_slice %527 {offsets = [0, 0], sizes = [8, 128], strides = [1, 1]} : vector<8x384xf32> to vector<8x128xf32>
    %530 = vector.extract_strided_slice %528 {offsets = [0, 0], sizes = [8, 128], strides = [1, 1]} : vector<8x384xf32> to vector<8x128xf32>
    %531 = arith.addf %529, %530 : vector<8x128xf32>
    %cst_185 = arith.constant 5.000000e-01 : f32
    %532 = vector.broadcast %cst_185 : f32 to vector<8x128xf32>
    %533 = arith.mulf %532, %531 : vector<8x128xf32>
    %534 = math.tanh %533 : vector<8x128xf32>
    %cst_186 = arith.constant 1.000000e+00 : f32
    %535 = vector.broadcast %cst_186 : f32 to vector<8x128xf32>
    %536 = arith.addf %535, %534 : vector<8x128xf32>
    %cst_187 = arith.constant 5.000000e-01 : f32
    %537 = vector.broadcast %cst_187 : f32 to vector<8x128xf32>
    %538 = arith.mulf %537, %536 : vector<8x128xf32>
    %539 = vector.extract_strided_slice %527 {offsets = [0, 128], sizes = [8, 128], strides = [1, 1]} : vector<8x384xf32> to vector<8x128xf32>
    %540 = vector.extract_strided_slice %528 {offsets = [0, 128], sizes = [8, 128], strides = [1, 1]} : vector<8x384xf32> to vector<8x128xf32>
    %541 = arith.addf %539, %540 : vector<8x128xf32>
    %cst_188 = arith.constant 5.000000e-01 : f32
    %542 = vector.broadcast %cst_188 : f32 to vector<8x128xf32>
    %543 = arith.mulf %542, %541 : vector<8x128xf32>
    %544 = math.tanh %543 : vector<8x128xf32>
    %cst_189 = arith.constant 1.000000e+00 : f32
    %545 = vector.broadcast %cst_189 : f32 to vector<8x128xf32>
    %546 = arith.addf %545, %544 : vector<8x128xf32>
    %cst_190 = arith.constant 5.000000e-01 : f32
    %547 = vector.broadcast %cst_190 : f32 to vector<8x128xf32>
    %548 = arith.mulf %547, %546 : vector<8x128xf32>
    %549 = vector.extract_strided_slice %527 {offsets = [0, 256], sizes = [8, 128], strides = [1, 1]} : vector<8x384xf32> to vector<8x128xf32>
    %550 = vector.extract_strided_slice %528 {offsets = [0, 256], sizes = [8, 128], strides = [1, 1]} : vector<8x384xf32> to vector<8x128xf32>
    %551 = arith.mulf %538, %550 : vector<8x128xf32>
    %552 = arith.addf %549, %551 : vector<8x128xf32>
    %553 = math.tanh %552 : vector<8x128xf32>
    %554 = arith.subf %524, %553 : vector<8x128xf32>
    %555 = arith.mulf %548, %554 : vector<8x128xf32>
    %556 = arith.addf %553, %555 : vector<8x128xf32>
    %c8_i32_191 = arith.constant 8 : i32
    %c0_192 = arith.constant 0 : index
    %c0_193 = arith.constant 0 : index
    %557 = vector.load %arg4[%c0_192, %c0_193] : memref<8x128xf32, #tpu.memory_space<vmem>>, vector<8x128xf32>
    tpu.vector_store %arg4[%c0_192, %c0_193], %556 {strides = array<i32>} : memref<8x128xf32, #tpu.memory_space<vmem>>, vector<8x128xf32>,
    return
  }
  func.func @transform_0(%arg0: i32) -> (i32, i32, i32, i32) {
    %c0_i32 = arith.constant 0 : i32
    %c0_i32_0 = arith.constant 0 : i32
    %c0_i32_1 = arith.constant 0 : i32
    %c0_i32_2 = arith.constant 0 : i32
    return %arg0, %c0_i32, %c0_i32_0, %c0_i32_1 : i32, i32, i32, i32
  }
  func.func @transform_1(%arg0: i32) -> (i32, i32, i32) {
    %c0_i32 = arith.constant 0 : i32
    %c0_i32_0 = arith.constant 0 : i32
    %c0_i32_1 = arith.constant 0 : i32
    %c0_i32_2 = arith.constant 0 : i32
    return %c0_i32, %c0_i32_0, %c0_i32_1 : i32, i32, i32
  }
  func.func @transform_2(%arg0: i32) -> (i32, i32, i32) {
    %c0_i32 = arith.constant 0 : i32
    %c0_i32_0 = arith.constant 0 : i32
    %c0_i32_1 = arith.constant 0 : i32
    %c0_i32_2 = arith.constant 0 : i32
    return %c0_i32, %c0_i32_0, %c0_i32_1 : i32, i32, i32
  }
  func.func @transform_3(%arg0: i32) -> (i32, i32) {
    %c0_i32 = arith.constant 0 : i32
    %c0_i32_0 = arith.constant 0 : i32
    return %arg0, %c0_i32 : i32, i32
  }
}

module attributes {stable_mosaic.version = 11 : i64} {
  func.func @fused_gru_kernel(%arg0: i32, %arg1: memref<1x8x8x384xf32, #tpu.memory_space<vmem>>, %arg2: memref<1x128x384xf32, #tpu.memory_space<vmem>>, %arg3: memref<2x128x384xf32, #tpu.memory_space<vmem>>, %arg4: memref<8x128xf32, #tpu.memory_space<vmem>>, %arg5: memref<8x8x128xf32, #tpu.memory_space<vmem>>, %arg6: memref<8x8x384xf32, #tpu.memory_space<vmem>>) attributes {dimension_semantics = [#tpu.dimension_semantics<parallel>], iteration_bounds = array<i64: 1>, scalar_prefetch = 0 : i64, scratch_operands = 2 : i64, tpu.core_type = #tpu.core_type<tc>, window_params = [{transform_indices = @transform_0, window_bounds = array<i64: 1, 8, 8, 384>}, {pipeline_mode = #tpu.pipeline_mode<synchronous>, transform_indices = @transform_1, window_bounds = array<i64: 1, 128, 384>}, {pipeline_mode = #tpu.pipeline_mode<synchronous>, transform_indices = @transform_2, window_bounds = array<i64: 2, 128, 384>}, {transform_indices = @transform_3, window_bounds = array<i64: 8, 128>}]} {
    %c0 = arith.constant 0 : index
    %c0_0 = arith.constant 0 : index
    %c0_1 = arith.constant 0 : index
    %0 = vector.load %arg3[%c0, %c0_0, %c0_1] : memref<2x128x384xf32, #tpu.memory_space<vmem>>, vector<1x128x384xf32>
    %1 = vector.shape_cast %0 : vector<1x128x384xf32> to vector<128x384xf32>
    %cst = arith.constant 0.000000e+00 : f32
    %2 = vector.broadcast %cst : f32 to vector<8x128xf32>
    %c0_i32 = arith.constant 0 : i32
    %c0_2 = arith.constant 0 : index
    %3 = arith.index_cast %c0_i32 : i32 to index
    %c0_3 = arith.constant 0 : index
    %c0_4 = arith.constant 0 : index
    %4 = vector.load %arg1[%c0_2, %3, %c0_3, %c0_4] : memref<1x8x8x384xf32, #tpu.memory_space<vmem>>, vector<1x1x8x384xf32>
    %5 = vector.shape_cast %4 : vector<1x1x8x384xf32> to vector<8x384xf32>
    %cst_5 = arith.constant dense<0.000000e+00> : vector<8x384xf32>
    %6 = tpu.matmul %2, %1, %cst_5 {dimension_numbers = #tpu.dot_dimension_numbers<[1], [0], [0], [1], [0, 0, 1, 1], [], []>} : vector<8x128xf32>, vector<128x384xf32>, vector<8x384xf32> -> vector<8x384xf32>
    %7 = vector.extract_strided_slice %5 {offsets = [0, 0], sizes = [8, 128], strides = [1, 1]} : vector<8x384xf32> to vector<8x128xf32>
    %8 = vector.extract_strided_slice %6 {offsets = [0, 0], sizes = [8, 128], strides = [1, 1]} : vector<8x384xf32> to vector<8x128xf32>
    %9 = arith.addf %7, %8 : vector<8x128xf32>
    %cst_6 = arith.constant 5.000000e-01 : f32
    %10 = vector.broadcast %cst_6 : f32 to vector<8x128xf32>
    %11 = arith.mulf %10, %9 : vector<8x128xf32>
    %12 = math.tanh %11 : vector<8x128xf32>
    %cst_7 = arith.constant 1.000000e+00 : f32
    %13 = vector.broadcast %cst_7 : f32 to vector<8x128xf32>
    %14 = arith.addf %13, %12 : vector<8x128xf32>
    %cst_8 = arith.constant 5.000000e-01 : f32
    %15 = vector.broadcast %cst_8 : f32 to vector<8x128xf32>
    %16 = arith.mulf %15, %14 : vector<8x128xf32>
    %17 = vector.extract_strided_slice %5 {offsets = [0, 128], sizes = [8, 128], strides = [1, 1]} : vector<8x384xf32> to vector<8x128xf32>
    %18 = vector.extract_strided_slice %6 {offsets = [0, 128], sizes = [8, 128], strides = [1, 1]} : vector<8x384xf32> to vector<8x128xf32>
    %19 = arith.addf %17, %18 : vector<8x128xf32>
    %cst_9 = arith.constant 5.000000e-01 : f32
    %20 = vector.broadcast %cst_9 : f32 to vector<8x128xf32>
    %21 = arith.mulf %20, %19 : vector<8x128xf32>
    %22 = math.tanh %21 : vector<8x128xf32>
    %cst_10 = arith.constant 1.000000e+00 : f32
    %23 = vector.broadcast %cst_10 : f32 to vector<8x128xf32>
    %24 = arith.addf %23, %22 : vector<8x128xf32>
    %cst_11 = arith.constant 5.000000e-01 : f32
    %25 = vector.broadcast %cst_11 : f32 to vector<8x128xf32>
    %26 = arith.mulf %25, %24 : vector<8x128xf32>
    %27 = vector.extract_strided_slice %5 {offsets = [0, 256], sizes = [8, 128], strides = [1, 1]} : vector<8x384xf32> to vector<8x128xf32>
    %28 = vector.extract_strided_slice %6 {offsets = [0, 256], sizes = [8, 128], strides = [1, 1]} : vector<8x384xf32> to vector<8x128xf32>
    %29 = arith.mulf %16, %28 : vector<8x128xf32>
    %30 = arith.addf %27, %29 : vector<8x128xf32>
    %31 = math.tanh %30 : vector<8x128xf32>
    %32 = arith.subf %2, %31 : vector<8x128xf32>
    %33 = arith.mulf %26, %32 : vector<8x128xf32>
    %34 = arith.addf %31, %33 : vector<8x128xf32>
    %35 = arith.index_cast %c0_i32 : i32 to index
    %c0_12 = arith.constant 0 : index
    %c0_13 = arith.constant 0 : index
    %36 = vector.load %arg5[%35, %c0_12, %c0_13] : memref<8x8x128xf32, #tpu.memory_space<vmem>>, vector<1x8x128xf32>
    %37 = vector.shape_cast %36 : vector<1x8x128xf32> to vector<8x128xf32>
    %38 = vector.shape_cast %34 : vector<8x128xf32> to vector<1x8x128xf32>
    tpu.vector_store %arg5[%35, %c0_12, %c0_13], %38 {strides = array<i32>} : memref<8x8x128xf32, #tpu.memory_space<vmem>>, vector<1x8x128xf32>,
    %c1_i32 = arith.constant 1 : i32
    %c0_14 = arith.constant 0 : index
    %39 = arith.index_cast %c1_i32 : i32 to index
    %c0_15 = arith.constant 0 : index
    %c0_16 = arith.constant 0 : index
    %40 = vector.load %arg1[%c0_14, %39, %c0_15, %c0_16] : memref<1x8x8x384xf32, #tpu.memory_space<vmem>>, vector<1x1x8x384xf32>
    %41 = vector.shape_cast %40 : vector<1x1x8x384xf32> to vector<8x384xf32>
    %cst_17 = arith.constant dense<0.000000e+00> : vector<8x384xf32>
    %42 = tpu.matmul %34, %1, %cst_17 {dimension_numbers = #tpu.dot_dimension_numbers<[1], [0], [0], [1], [0, 0, 1, 1], [], []>} : vector<8x128xf32>, vector<128x384xf32>, vector<8x384xf32> -> vector<8x384xf32>
    %43 = vector.extract_strided_slice %41 {offsets = [0, 0], sizes = [8, 128], strides = [1, 1]} : vector<8x384xf32> to vector<8x128xf32>
    %44 = vector.extract_strided_slice %42 {offsets = [0, 0], sizes = [8, 128], strides = [1, 1]} : vector<8x384xf32> to vector<8x128xf32>
    %45 = arith.addf %43, %44 : vector<8x128xf32>
    %cst_18 = arith.constant 5.000000e-01 : f32
    %46 = vector.broadcast %cst_18 : f32 to vector<8x128xf32>
    %47 = arith.mulf %46, %45 : vector<8x128xf32>
    %48 = math.tanh %47 : vector<8x128xf32>
    %cst_19 = arith.constant 1.000000e+00 : f32
    %49 = vector.broadcast %cst_19 : f32 to vector<8x128xf32>
    %50 = arith.addf %49, %48 : vector<8x128xf32>
    %cst_20 = arith.constant 5.000000e-01 : f32
    %51 = vector.broadcast %cst_20 : f32 to vector<8x128xf32>
    %52 = arith.mulf %51, %50 : vector<8x128xf32>
    %53 = vector.extract_strided_slice %41 {offsets = [0, 128], sizes = [8, 128], strides = [1, 1]} : vector<8x384xf32> to vector<8x128xf32>
    %54 = vector.extract_strided_slice %42 {offsets = [0, 128], sizes = [8, 128], strides = [1, 1]} : vector<8x384xf32> to vector<8x128xf32>
    %55 = arith.addf %53, %54 : vector<8x128xf32>
    %cst_21 = arith.constant 5.000000e-01 : f32
    %56 = vector.broadcast %cst_21 : f32 to vector<8x128xf32>
    %57 = arith.mulf %56, %55 : vector<8x128xf32>
    %58 = math.tanh %57 : vector<8x128xf32>
    %cst_22 = arith.constant 1.000000e+00 : f32
    %59 = vector.broadcast %cst_22 : f32 to vector<8x128xf32>
    %60 = arith.addf %59, %58 : vector<8x128xf32>
    %cst_23 = arith.constant 5.000000e-01 : f32
    %61 = vector.broadcast %cst_23 : f32 to vector<8x128xf32>
    %62 = arith.mulf %61, %60 : vector<8x128xf32>
    %63 = vector.extract_strided_slice %41 {offsets = [0, 256], sizes = [8, 128], strides = [1, 1]} : vector<8x384xf32> to vector<8x128xf32>
    %64 = vector.extract_strided_slice %42 {offsets = [0, 256], sizes = [8, 128], strides = [1, 1]} : vector<8x384xf32> to vector<8x128xf32>
    %65 = arith.mulf %52, %64 : vector<8x128xf32>
    %66 = arith.addf %63, %65 : vector<8x128xf32>
    %67 = math.tanh %66 : vector<8x128xf32>
    %68 = arith.subf %34, %67 : vector<8x128xf32>
    %69 = arith.mulf %62, %68 : vector<8x128xf32>
    %70 = arith.addf %67, %69 : vector<8x128xf32>
    %71 = arith.index_cast %c1_i32 : i32 to index
    %c0_24 = arith.constant 0 : index
    %c0_25 = arith.constant 0 : index
    %72 = vector.load %arg5[%71, %c0_24, %c0_25] : memref<8x8x128xf32, #tpu.memory_space<vmem>>, vector<1x8x128xf32>
    %73 = vector.shape_cast %72 : vector<1x8x128xf32> to vector<8x128xf32>
    %74 = vector.shape_cast %70 : vector<8x128xf32> to vector<1x8x128xf32>
    tpu.vector_store %arg5[%71, %c0_24, %c0_25], %74 {strides = array<i32>} : memref<8x8x128xf32, #tpu.memory_space<vmem>>, vector<1x8x128xf32>,
    %c2_i32 = arith.constant 2 : i32
    %c0_26 = arith.constant 0 : index
    %75 = arith.index_cast %c2_i32 : i32 to index
    %c0_27 = arith.constant 0 : index
    %c0_28 = arith.constant 0 : index
    %76 = vector.load %arg1[%c0_26, %75, %c0_27, %c0_28] : memref<1x8x8x384xf32, #tpu.memory_space<vmem>>, vector<1x1x8x384xf32>
    %77 = vector.shape_cast %76 : vector<1x1x8x384xf32> to vector<8x384xf32>
    %cst_29 = arith.constant dense<0.000000e+00> : vector<8x384xf32>
    %78 = tpu.matmul %70, %1, %cst_29 {dimension_numbers = #tpu.dot_dimension_numbers<[1], [0], [0], [1], [0, 0, 1, 1], [], []>} : vector<8x128xf32>, vector<128x384xf32>, vector<8x384xf32> -> vector<8x384xf32>
    %79 = vector.extract_strided_slice %77 {offsets = [0, 0], sizes = [8, 128], strides = [1, 1]} : vector<8x384xf32> to vector<8x128xf32>
    %80 = vector.extract_strided_slice %78 {offsets = [0, 0], sizes = [8, 128], strides = [1, 1]} : vector<8x384xf32> to vector<8x128xf32>
    %81 = arith.addf %79, %80 : vector<8x128xf32>
    %cst_30 = arith.constant 5.000000e-01 : f32
    %82 = vector.broadcast %cst_30 : f32 to vector<8x128xf32>
    %83 = arith.mulf %82, %81 : vector<8x128xf32>
    %84 = math.tanh %83 : vector<8x128xf32>
    %cst_31 = arith.constant 1.000000e+00 : f32
    %85 = vector.broadcast %cst_31 : f32 to vector<8x128xf32>
    %86 = arith.addf %85, %84 : vector<8x128xf32>
    %cst_32 = arith.constant 5.000000e-01 : f32
    %87 = vector.broadcast %cst_32 : f32 to vector<8x128xf32>
    %88 = arith.mulf %87, %86 : vector<8x128xf32>
    %89 = vector.extract_strided_slice %77 {offsets = [0, 128], sizes = [8, 128], strides = [1, 1]} : vector<8x384xf32> to vector<8x128xf32>
    %90 = vector.extract_strided_slice %78 {offsets = [0, 128], sizes = [8, 128], strides = [1, 1]} : vector<8x384xf32> to vector<8x128xf32>
    %91 = arith.addf %89, %90 : vector<8x128xf32>
    %cst_33 = arith.constant 5.000000e-01 : f32
    %92 = vector.broadcast %cst_33 : f32 to vector<8x128xf32>
    %93 = arith.mulf %92, %91 : vector<8x128xf32>
    %94 = math.tanh %93 : vector<8x128xf32>
    %cst_34 = arith.constant 1.000000e+00 : f32
    %95 = vector.broadcast %cst_34 : f32 to vector<8x128xf32>
    %96 = arith.addf %95, %94 : vector<8x128xf32>
    %cst_35 = arith.constant 5.000000e-01 : f32
    %97 = vector.broadcast %cst_35 : f32 to vector<8x128xf32>
    %98 = arith.mulf %97, %96 : vector<8x128xf32>
    %99 = vector.extract_strided_slice %77 {offsets = [0, 256], sizes = [8, 128], strides = [1, 1]} : vector<8x384xf32> to vector<8x128xf32>
    %100 = vector.extract_strided_slice %78 {offsets = [0, 256], sizes = [8, 128], strides = [1, 1]} : vector<8x384xf32> to vector<8x128xf32>
    %101 = arith.mulf %88, %100 : vector<8x128xf32>
    %102 = arith.addf %99, %101 : vector<8x128xf32>
    %103 = math.tanh %102 : vector<8x128xf32>
    %104 = arith.subf %70, %103 : vector<8x128xf32>
    %105 = arith.mulf %98, %104 : vector<8x128xf32>
    %106 = arith.addf %103, %105 : vector<8x128xf32>
    %107 = arith.index_cast %c2_i32 : i32 to index
    %c0_36 = arith.constant 0 : index
    %c0_37 = arith.constant 0 : index
    %108 = vector.load %arg5[%107, %c0_36, %c0_37] : memref<8x8x128xf32, #tpu.memory_space<vmem>>, vector<1x8x128xf32>
    %109 = vector.shape_cast %108 : vector<1x8x128xf32> to vector<8x128xf32>
    %110 = vector.shape_cast %106 : vector<8x128xf32> to vector<1x8x128xf32>
    tpu.vector_store %arg5[%107, %c0_36, %c0_37], %110 {strides = array<i32>} : memref<8x8x128xf32, #tpu.memory_space<vmem>>, vector<1x8x128xf32>,
    %c3_i32 = arith.constant 3 : i32
    %c0_38 = arith.constant 0 : index
    %111 = arith.index_cast %c3_i32 : i32 to index
    %c0_39 = arith.constant 0 : index
    %c0_40 = arith.constant 0 : index
    %112 = vector.load %arg1[%c0_38, %111, %c0_39, %c0_40] : memref<1x8x8x384xf32, #tpu.memory_space<vmem>>, vector<1x1x8x384xf32>
    %113 = vector.shape_cast %112 : vector<1x1x8x384xf32> to vector<8x384xf32>
    %cst_41 = arith.constant dense<0.000000e+00> : vector<8x384xf32>
    %114 = tpu.matmul %106, %1, %cst_41 {dimension_numbers = #tpu.dot_dimension_numbers<[1], [0], [0], [1], [0, 0, 1, 1], [], []>} : vector<8x128xf32>, vector<128x384xf32>, vector<8x384xf32> -> vector<8x384xf32>
    %115 = vector.extract_strided_slice %113 {offsets = [0, 0], sizes = [8, 128], strides = [1, 1]} : vector<8x384xf32> to vector<8x128xf32>
    %116 = vector.extract_strided_slice %114 {offsets = [0, 0], sizes = [8, 128], strides = [1, 1]} : vector<8x384xf32> to vector<8x128xf32>
    %117 = arith.addf %115, %116 : vector<8x128xf32>
    %cst_42 = arith.constant 5.000000e-01 : f32
    %118 = vector.broadcast %cst_42 : f32 to vector<8x128xf32>
    %119 = arith.mulf %118, %117 : vector<8x128xf32>
    %120 = math.tanh %119 : vector<8x128xf32>
    %cst_43 = arith.constant 1.000000e+00 : f32
    %121 = vector.broadcast %cst_43 : f32 to vector<8x128xf32>
    %122 = arith.addf %121, %120 : vector<8x128xf32>
    %cst_44 = arith.constant 5.000000e-01 : f32
    %123 = vector.broadcast %cst_44 : f32 to vector<8x128xf32>
    %124 = arith.mulf %123, %122 : vector<8x128xf32>
    %125 = vector.extract_strided_slice %113 {offsets = [0, 128], sizes = [8, 128], strides = [1, 1]} : vector<8x384xf32> to vector<8x128xf32>
    %126 = vector.extract_strided_slice %114 {offsets = [0, 128], sizes = [8, 128], strides = [1, 1]} : vector<8x384xf32> to vector<8x128xf32>
    %127 = arith.addf %125, %126 : vector<8x128xf32>
    %cst_45 = arith.constant 5.000000e-01 : f32
    %128 = vector.broadcast %cst_45 : f32 to vector<8x128xf32>
    %129 = arith.mulf %128, %127 : vector<8x128xf32>
    %130 = math.tanh %129 : vector<8x128xf32>
    %cst_46 = arith.constant 1.000000e+00 : f32
    %131 = vector.broadcast %cst_46 : f32 to vector<8x128xf32>
    %132 = arith.addf %131, %130 : vector<8x128xf32>
    %cst_47 = arith.constant 5.000000e-01 : f32
    %133 = vector.broadcast %cst_47 : f32 to vector<8x128xf32>
    %134 = arith.mulf %133, %132 : vector<8x128xf32>
    %135 = vector.extract_strided_slice %113 {offsets = [0, 256], sizes = [8, 128], strides = [1, 1]} : vector<8x384xf32> to vector<8x128xf32>
    %136 = vector.extract_strided_slice %114 {offsets = [0, 256], sizes = [8, 128], strides = [1, 1]} : vector<8x384xf32> to vector<8x128xf32>
    %137 = arith.mulf %124, %136 : vector<8x128xf32>
    %138 = arith.addf %135, %137 : vector<8x128xf32>
    %139 = math.tanh %138 : vector<8x128xf32>
    %140 = arith.subf %106, %139 : vector<8x128xf32>
    %141 = arith.mulf %134, %140 : vector<8x128xf32>
    %142 = arith.addf %139, %141 : vector<8x128xf32>
    %143 = arith.index_cast %c3_i32 : i32 to index
    %c0_48 = arith.constant 0 : index
    %c0_49 = arith.constant 0 : index
    %144 = vector.load %arg5[%143, %c0_48, %c0_49] : memref<8x8x128xf32, #tpu.memory_space<vmem>>, vector<1x8x128xf32>
    %145 = vector.shape_cast %144 : vector<1x8x128xf32> to vector<8x128xf32>
    %146 = vector.shape_cast %142 : vector<8x128xf32> to vector<1x8x128xf32>
    tpu.vector_store %arg5[%143, %c0_48, %c0_49], %146 {strides = array<i32>} : memref<8x8x128xf32, #tpu.memory_space<vmem>>, vector<1x8x128xf32>,
    %c4_i32 = arith.constant 4 : i32
    %c0_50 = arith.constant 0 : index
    %147 = arith.index_cast %c4_i32 : i32 to index
    %c0_51 = arith.constant 0 : index
    %c0_52 = arith.constant 0 : index
    %148 = vector.load %arg1[%c0_50, %147, %c0_51, %c0_52] : memref<1x8x8x384xf32, #tpu.memory_space<vmem>>, vector<1x1x8x384xf32>
    %149 = vector.shape_cast %148 : vector<1x1x8x384xf32> to vector<8x384xf32>
    %cst_53 = arith.constant dense<0.000000e+00> : vector<8x384xf32>
    %150 = tpu.matmul %142, %1, %cst_53 {dimension_numbers = #tpu.dot_dimension_numbers<[1], [0], [0], [1], [0, 0, 1, 1], [], []>} : vector<8x128xf32>, vector<128x384xf32>, vector<8x384xf32> -> vector<8x384xf32>
    %151 = vector.extract_strided_slice %149 {offsets = [0, 0], sizes = [8, 128], strides = [1, 1]} : vector<8x384xf32> to vector<8x128xf32>
    %152 = vector.extract_strided_slice %150 {offsets = [0, 0], sizes = [8, 128], strides = [1, 1]} : vector<8x384xf32> to vector<8x128xf32>
    %153 = arith.addf %151, %152 : vector<8x128xf32>
    %cst_54 = arith.constant 5.000000e-01 : f32
    %154 = vector.broadcast %cst_54 : f32 to vector<8x128xf32>
    %155 = arith.mulf %154, %153 : vector<8x128xf32>
    %156 = math.tanh %155 : vector<8x128xf32>
    %cst_55 = arith.constant 1.000000e+00 : f32
    %157 = vector.broadcast %cst_55 : f32 to vector<8x128xf32>
    %158 = arith.addf %157, %156 : vector<8x128xf32>
    %cst_56 = arith.constant 5.000000e-01 : f32
    %159 = vector.broadcast %cst_56 : f32 to vector<8x128xf32>
    %160 = arith.mulf %159, %158 : vector<8x128xf32>
    %161 = vector.extract_strided_slice %149 {offsets = [0, 128], sizes = [8, 128], strides = [1, 1]} : vector<8x384xf32> to vector<8x128xf32>
    %162 = vector.extract_strided_slice %150 {offsets = [0, 128], sizes = [8, 128], strides = [1, 1]} : vector<8x384xf32> to vector<8x128xf32>
    %163 = arith.addf %161, %162 : vector<8x128xf32>
    %cst_57 = arith.constant 5.000000e-01 : f32
    %164 = vector.broadcast %cst_57 : f32 to vector<8x128xf32>
    %165 = arith.mulf %164, %163 : vector<8x128xf32>
    %166 = math.tanh %165 : vector<8x128xf32>
    %cst_58 = arith.constant 1.000000e+00 : f32
    %167 = vector.broadcast %cst_58 : f32 to vector<8x128xf32>
    %168 = arith.addf %167, %166 : vector<8x128xf32>
    %cst_59 = arith.constant 5.000000e-01 : f32
    %169 = vector.broadcast %cst_59 : f32 to vector<8x128xf32>
    %170 = arith.mulf %169, %168 : vector<8x128xf32>
    %171 = vector.extract_strided_slice %149 {offsets = [0, 256], sizes = [8, 128], strides = [1, 1]} : vector<8x384xf32> to vector<8x128xf32>
    %172 = vector.extract_strided_slice %150 {offsets = [0, 256], sizes = [8, 128], strides = [1, 1]} : vector<8x384xf32> to vector<8x128xf32>
    %173 = arith.mulf %160, %172 : vector<8x128xf32>
    %174 = arith.addf %171, %173 : vector<8x128xf32>
    %175 = math.tanh %174 : vector<8x128xf32>
    %176 = arith.subf %142, %175 : vector<8x128xf32>
    %177 = arith.mulf %170, %176 : vector<8x128xf32>
    %178 = arith.addf %175, %177 : vector<8x128xf32>
    %179 = arith.index_cast %c4_i32 : i32 to index
    %c0_60 = arith.constant 0 : index
    %c0_61 = arith.constant 0 : index
    %180 = vector.load %arg5[%179, %c0_60, %c0_61] : memref<8x8x128xf32, #tpu.memory_space<vmem>>, vector<1x8x128xf32>
    %181 = vector.shape_cast %180 : vector<1x8x128xf32> to vector<8x128xf32>
    %182 = vector.shape_cast %178 : vector<8x128xf32> to vector<1x8x128xf32>
    tpu.vector_store %arg5[%179, %c0_60, %c0_61], %182 {strides = array<i32>} : memref<8x8x128xf32, #tpu.memory_space<vmem>>, vector<1x8x128xf32>,
    %c5_i32 = arith.constant 5 : i32
    %c0_62 = arith.constant 0 : index
    %183 = arith.index_cast %c5_i32 : i32 to index
    %c0_63 = arith.constant 0 : index
    %c0_64 = arith.constant 0 : index
    %184 = vector.load %arg1[%c0_62, %183, %c0_63, %c0_64] : memref<1x8x8x384xf32, #tpu.memory_space<vmem>>, vector<1x1x8x384xf32>
    %185 = vector.shape_cast %184 : vector<1x1x8x384xf32> to vector<8x384xf32>
    %cst_65 = arith.constant dense<0.000000e+00> : vector<8x384xf32>
    %186 = tpu.matmul %178, %1, %cst_65 {dimension_numbers = #tpu.dot_dimension_numbers<[1], [0], [0], [1], [0, 0, 1, 1], [], []>} : vector<8x128xf32>, vector<128x384xf32>, vector<8x384xf32> -> vector<8x384xf32>
    %187 = vector.extract_strided_slice %185 {offsets = [0, 0], sizes = [8, 128], strides = [1, 1]} : vector<8x384xf32> to vector<8x128xf32>
    %188 = vector.extract_strided_slice %186 {offsets = [0, 0], sizes = [8, 128], strides = [1, 1]} : vector<8x384xf32> to vector<8x128xf32>
    %189 = arith.addf %187, %188 : vector<8x128xf32>
    %cst_66 = arith.constant 5.000000e-01 : f32
    %190 = vector.broadcast %cst_66 : f32 to vector<8x128xf32>
    %191 = arith.mulf %190, %189 : vector<8x128xf32>
    %192 = math.tanh %191 : vector<8x128xf32>
    %cst_67 = arith.constant 1.000000e+00 : f32
    %193 = vector.broadcast %cst_67 : f32 to vector<8x128xf32>
    %194 = arith.addf %193, %192 : vector<8x128xf32>
    %cst_68 = arith.constant 5.000000e-01 : f32
    %195 = vector.broadcast %cst_68 : f32 to vector<8x128xf32>
    %196 = arith.mulf %195, %194 : vector<8x128xf32>
    %197 = vector.extract_strided_slice %185 {offsets = [0, 128], sizes = [8, 128], strides = [1, 1]} : vector<8x384xf32> to vector<8x128xf32>
    %198 = vector.extract_strided_slice %186 {offsets = [0, 128], sizes = [8, 128], strides = [1, 1]} : vector<8x384xf32> to vector<8x128xf32>
    %199 = arith.addf %197, %198 : vector<8x128xf32>
    %cst_69 = arith.constant 5.000000e-01 : f32
    %200 = vector.broadcast %cst_69 : f32 to vector<8x128xf32>
    %201 = arith.mulf %200, %199 : vector<8x128xf32>
    %202 = math.tanh %201 : vector<8x128xf32>
    %cst_70 = arith.constant 1.000000e+00 : f32
    %203 = vector.broadcast %cst_70 : f32 to vector<8x128xf32>
    %204 = arith.addf %203, %202 : vector<8x128xf32>
    %cst_71 = arith.constant 5.000000e-01 : f32
    %205 = vector.broadcast %cst_71 : f32 to vector<8x128xf32>
    %206 = arith.mulf %205, %204 : vector<8x128xf32>
    %207 = vector.extract_strided_slice %185 {offsets = [0, 256], sizes = [8, 128], strides = [1, 1]} : vector<8x384xf32> to vector<8x128xf32>
    %208 = vector.extract_strided_slice %186 {offsets = [0, 256], sizes = [8, 128], strides = [1, 1]} : vector<8x384xf32> to vector<8x128xf32>
    %209 = arith.mulf %196, %208 : vector<8x128xf32>
    %210 = arith.addf %207, %209 : vector<8x128xf32>
    %211 = math.tanh %210 : vector<8x128xf32>
    %212 = arith.subf %178, %211 : vector<8x128xf32>
    %213 = arith.mulf %206, %212 : vector<8x128xf32>
    %214 = arith.addf %211, %213 : vector<8x128xf32>
    %215 = arith.index_cast %c5_i32 : i32 to index
    %c0_72 = arith.constant 0 : index
    %c0_73 = arith.constant 0 : index
    %216 = vector.load %arg5[%215, %c0_72, %c0_73] : memref<8x8x128xf32, #tpu.memory_space<vmem>>, vector<1x8x128xf32>
    %217 = vector.shape_cast %216 : vector<1x8x128xf32> to vector<8x128xf32>
    %218 = vector.shape_cast %214 : vector<8x128xf32> to vector<1x8x128xf32>
    tpu.vector_store %arg5[%215, %c0_72, %c0_73], %218 {strides = array<i32>} : memref<8x8x128xf32, #tpu.memory_space<vmem>>, vector<1x8x128xf32>,
    %c6_i32 = arith.constant 6 : i32
    %c0_74 = arith.constant 0 : index
    %219 = arith.index_cast %c6_i32 : i32 to index
    %c0_75 = arith.constant 0 : index
    %c0_76 = arith.constant 0 : index
    %220 = vector.load %arg1[%c0_74, %219, %c0_75, %c0_76] : memref<1x8x8x384xf32, #tpu.memory_space<vmem>>, vector<1x1x8x384xf32>
    %221 = vector.shape_cast %220 : vector<1x1x8x384xf32> to vector<8x384xf32>
    %cst_77 = arith.constant dense<0.000000e+00> : vector<8x384xf32>
    %222 = tpu.matmul %214, %1, %cst_77 {dimension_numbers = #tpu.dot_dimension_numbers<[1], [0], [0], [1], [0, 0, 1, 1], [], []>} : vector<8x128xf32>, vector<128x384xf32>, vector<8x384xf32> -> vector<8x384xf32>
    %223 = vector.extract_strided_slice %221 {offsets = [0, 0], sizes = [8, 128], strides = [1, 1]} : vector<8x384xf32> to vector<8x128xf32>
    %224 = vector.extract_strided_slice %222 {offsets = [0, 0], sizes = [8, 128], strides = [1, 1]} : vector<8x384xf32> to vector<8x128xf32>
    %225 = arith.addf %223, %224 : vector<8x128xf32>
    %cst_78 = arith.constant 5.000000e-01 : f32
    %226 = vector.broadcast %cst_78 : f32 to vector<8x128xf32>
    %227 = arith.mulf %226, %225 : vector<8x128xf32>
    %228 = math.tanh %227 : vector<8x128xf32>
    %cst_79 = arith.constant 1.000000e+00 : f32
    %229 = vector.broadcast %cst_79 : f32 to vector<8x128xf32>
    %230 = arith.addf %229, %228 : vector<8x128xf32>
    %cst_80 = arith.constant 5.000000e-01 : f32
    %231 = vector.broadcast %cst_80 : f32 to vector<8x128xf32>
    %232 = arith.mulf %231, %230 : vector<8x128xf32>
    %233 = vector.extract_strided_slice %221 {offsets = [0, 128], sizes = [8, 128], strides = [1, 1]} : vector<8x384xf32> to vector<8x128xf32>
    %234 = vector.extract_strided_slice %222 {offsets = [0, 128], sizes = [8, 128], strides = [1, 1]} : vector<8x384xf32> to vector<8x128xf32>
    %235 = arith.addf %233, %234 : vector<8x128xf32>
    %cst_81 = arith.constant 5.000000e-01 : f32
    %236 = vector.broadcast %cst_81 : f32 to vector<8x128xf32>
    %237 = arith.mulf %236, %235 : vector<8x128xf32>
    %238 = math.tanh %237 : vector<8x128xf32>
    %cst_82 = arith.constant 1.000000e+00 : f32
    %239 = vector.broadcast %cst_82 : f32 to vector<8x128xf32>
    %240 = arith.addf %239, %238 : vector<8x128xf32>
    %cst_83 = arith.constant 5.000000e-01 : f32
    %241 = vector.broadcast %cst_83 : f32 to vector<8x128xf32>
    %242 = arith.mulf %241, %240 : vector<8x128xf32>
    %243 = vector.extract_strided_slice %221 {offsets = [0, 256], sizes = [8, 128], strides = [1, 1]} : vector<8x384xf32> to vector<8x128xf32>
    %244 = vector.extract_strided_slice %222 {offsets = [0, 256], sizes = [8, 128], strides = [1, 1]} : vector<8x384xf32> to vector<8x128xf32>
    %245 = arith.mulf %232, %244 : vector<8x128xf32>
    %246 = arith.addf %243, %245 : vector<8x128xf32>
    %247 = math.tanh %246 : vector<8x128xf32>
    %248 = arith.subf %214, %247 : vector<8x128xf32>
    %249 = arith.mulf %242, %248 : vector<8x128xf32>
    %250 = arith.addf %247, %249 : vector<8x128xf32>
    %251 = arith.index_cast %c6_i32 : i32 to index
    %c0_84 = arith.constant 0 : index
    %c0_85 = arith.constant 0 : index
    %252 = vector.load %arg5[%251, %c0_84, %c0_85] : memref<8x8x128xf32, #tpu.memory_space<vmem>>, vector<1x8x128xf32>
    %253 = vector.shape_cast %252 : vector<1x8x128xf32> to vector<8x128xf32>
    %254 = vector.shape_cast %250 : vector<8x128xf32> to vector<1x8x128xf32>
    tpu.vector_store %arg5[%251, %c0_84, %c0_85], %254 {strides = array<i32>} : memref<8x8x128xf32, #tpu.memory_space<vmem>>, vector<1x8x128xf32>,
    %c7_i32 = arith.constant 7 : i32
    %c0_86 = arith.constant 0 : index
    %255 = arith.index_cast %c7_i32 : i32 to index
    %c0_87 = arith.constant 0 : index
    %c0_88 = arith.constant 0 : index
    %256 = vector.load %arg1[%c0_86, %255, %c0_87, %c0_88] : memref<1x8x8x384xf32, #tpu.memory_space<vmem>>, vector<1x1x8x384xf32>
    %257 = vector.shape_cast %256 : vector<1x1x8x384xf32> to vector<8x384xf32>
    %cst_89 = arith.constant dense<0.000000e+00> : vector<8x384xf32>
    %258 = tpu.matmul %250, %1, %cst_89 {dimension_numbers = #tpu.dot_dimension_numbers<[1], [0], [0], [1], [0, 0, 1, 1], [], []>} : vector<8x128xf32>, vector<128x384xf32>, vector<8x384xf32> -> vector<8x384xf32>
    %259 = vector.extract_strided_slice %257 {offsets = [0, 0], sizes = [8, 128], strides = [1, 1]} : vector<8x384xf32> to vector<8x128xf32>
    %260 = vector.extract_strided_slice %258 {offsets = [0, 0], sizes = [8, 128], strides = [1, 1]} : vector<8x384xf32> to vector<8x128xf32>
    %261 = arith.addf %259, %260 : vector<8x128xf32>
    %cst_90 = arith.constant 5.000000e-01 : f32
    %262 = vector.broadcast %cst_90 : f32 to vector<8x128xf32>
    %263 = arith.mulf %262, %261 : vector<8x128xf32>
    %264 = math.tanh %263 : vector<8x128xf32>
    %cst_91 = arith.constant 1.000000e+00 : f32
    %265 = vector.broadcast %cst_91 : f32 to vector<8x128xf32>
    %266 = arith.addf %265, %264 : vector<8x128xf32>
    %cst_92 = arith.constant 5.000000e-01 : f32
    %267 = vector.broadcast %cst_92 : f32 to vector<8x128xf32>
    %268 = arith.mulf %267, %266 : vector<8x128xf32>
    %269 = vector.extract_strided_slice %257 {offsets = [0, 128], sizes = [8, 128], strides = [1, 1]} : vector<8x384xf32> to vector<8x128xf32>
    %270 = vector.extract_strided_slice %258 {offsets = [0, 128], sizes = [8, 128], strides = [1, 1]} : vector<8x384xf32> to vector<8x128xf32>
    %271 = arith.addf %269, %270 : vector<8x128xf32>
    %cst_93 = arith.constant 5.000000e-01 : f32
    %272 = vector.broadcast %cst_93 : f32 to vector<8x128xf32>
    %273 = arith.mulf %272, %271 : vector<8x128xf32>
    %274 = math.tanh %273 : vector<8x128xf32>
    %cst_94 = arith.constant 1.000000e+00 : f32
    %275 = vector.broadcast %cst_94 : f32 to vector<8x128xf32>
    %276 = arith.addf %275, %274 : vector<8x128xf32>
    %cst_95 = arith.constant 5.000000e-01 : f32
    %277 = vector.broadcast %cst_95 : f32 to vector<8x128xf32>
    %278 = arith.mulf %277, %276 : vector<8x128xf32>
    %279 = vector.extract_strided_slice %257 {offsets = [0, 256], sizes = [8, 128], strides = [1, 1]} : vector<8x384xf32> to vector<8x128xf32>
    %280 = vector.extract_strided_slice %258 {offsets = [0, 256], sizes = [8, 128], strides = [1, 1]} : vector<8x384xf32> to vector<8x128xf32>
    %281 = arith.mulf %268, %280 : vector<8x128xf32>
    %282 = arith.addf %279, %281 : vector<8x128xf32>
    %283 = math.tanh %282 : vector<8x128xf32>
    %284 = arith.subf %250, %283 : vector<8x128xf32>
    %285 = arith.mulf %278, %284 : vector<8x128xf32>
    %286 = arith.addf %283, %285 : vector<8x128xf32>
    %287 = arith.index_cast %c7_i32 : i32 to index
    %c0_96 = arith.constant 0 : index
    %c0_97 = arith.constant 0 : index
    %288 = vector.load %arg5[%287, %c0_96, %c0_97] : memref<8x8x128xf32, #tpu.memory_space<vmem>>, vector<1x8x128xf32>
    %289 = vector.shape_cast %288 : vector<1x8x128xf32> to vector<8x128xf32>
    %290 = vector.shape_cast %286 : vector<8x128xf32> to vector<1x8x128xf32>
    tpu.vector_store %arg5[%287, %c0_96, %c0_97], %290 {strides = array<i32>} : memref<8x8x128xf32, #tpu.memory_space<vmem>>, vector<1x8x128xf32>,
    %c8_i32 = arith.constant 8 : i32
    %c0_98 = arith.constant 0 : index
    %c0_99 = arith.constant 0 : index
    %c0_100 = arith.constant 0 : index
    %291 = vector.load %arg5[%c0_98, %c0_99, %c0_100] : memref<8x8x128xf32, #tpu.memory_space<vmem>>, vector<8x8x128xf32>
    %292 = vector.shape_cast %291 : vector<8x8x128xf32> to vector<64x128xf32>
    %c0_101 = arith.constant 0 : index
    %c0_102 = arith.constant 0 : index
    %c0_103 = arith.constant 0 : index
    %293 = vector.load %arg2[%c0_101, %c0_102, %c0_103] : memref<1x128x384xf32, #tpu.memory_space<vmem>>, vector<1x128x384xf32>
    %294 = vector.shape_cast %293 : vector<1x128x384xf32> to vector<128x384xf32>
    %cst_104 = arith.constant dense<0.000000e+00> : vector<64x384xf32>
    %295 = tpu.matmul %292, %294, %cst_104 {dimension_numbers = #tpu.dot_dimension_numbers<[1], [0], [0], [1], [0, 0, 1, 1], [], []>} : vector<64x128xf32>, vector<128x384xf32>, vector<64x384xf32> -> vector<64x384xf32>
    %296 = vector.shape_cast %295 : vector<64x384xf32> to vector<8x8x384xf32>
    %c0_105 = arith.constant 0 : index
    %c0_106 = arith.constant 0 : index
    %c0_107 = arith.constant 0 : index
    %297 = vector.load %arg6[%c0_105, %c0_106, %c0_107] : memref<8x8x384xf32, #tpu.memory_space<vmem>>, vector<8x8x384xf32>
    tpu.vector_store %arg6[%c0_105, %c0_106, %c0_107], %296 {strides = array<i32>} : memref<8x8x384xf32, #tpu.memory_space<vmem>>, vector<8x8x384xf32>,
    %c1 = arith.constant 1 : index
    %c0_108 = arith.constant 0 : index
    %c0_109 = arith.constant 0 : index
    %298 = vector.load %arg3[%c1, %c0_108, %c0_109] : memref<2x128x384xf32, #tpu.memory_space<vmem>>, vector<1x128x384xf32>
    %299 = vector.shape_cast %298 : vector<1x128x384xf32> to vector<128x384xf32>
    %cst_110 = arith.constant 0.000000e+00 : f32
    %300 = vector.broadcast %cst_110 : f32 to vector<8x128xf32>
    %c0_i32_111 = arith.constant 0 : i32
    %301 = arith.index_cast %c0_i32_111 : i32 to index
    %c0_112 = arith.constant 0 : index
    %c0_113 = arith.constant 0 : index
    %302 = vector.load %arg6[%301, %c0_112, %c0_113] : memref<8x8x384xf32, #tpu.memory_space<vmem>>, vector<1x8x384xf32>
    %303 = vector.shape_cast %302 : vector<1x8x384xf32> to vector<8x384xf32>
    %cst_114 = arith.constant dense<0.000000e+00> : vector<8x384xf32>
    %304 = tpu.matmul %300, %299, %cst_114 {dimension_numbers = #tpu.dot_dimension_numbers<[1], [0], [0], [1], [0, 0, 1, 1], [], []>} : vector<8x128xf32>, vector<128x384xf32>, vector<8x384xf32> -> vector<8x384xf32>
    %305 = vector.extract_strided_slice %303 {offsets = [0, 0], sizes = [8, 128], strides = [1, 1]} : vector<8x384xf32> to vector<8x128xf32>
    %306 = vector.extract_strided_slice %304 {offsets = [0, 0], sizes = [8, 128], strides = [1, 1]} : vector<8x384xf32> to vector<8x128xf32>
    %307 = arith.addf %305, %306 : vector<8x128xf32>
    %cst_115 = arith.constant 5.000000e-01 : f32
    %308 = vector.broadcast %cst_115 : f32 to vector<8x128xf32>
    %309 = arith.mulf %308, %307 : vector<8x128xf32>
    %310 = math.tanh %309 : vector<8x128xf32>
    %cst_116 = arith.constant 1.000000e+00 : f32
    %311 = vector.broadcast %cst_116 : f32 to vector<8x128xf32>
    %312 = arith.addf %311, %310 : vector<8x128xf32>
    %cst_117 = arith.constant 5.000000e-01 : f32
    %313 = vector.broadcast %cst_117 : f32 to vector<8x128xf32>
    %314 = arith.mulf %313, %312 : vector<8x128xf32>
    %315 = vector.extract_strided_slice %303 {offsets = [0, 128], sizes = [8, 128], strides = [1, 1]} : vector<8x384xf32> to vector<8x128xf32>
    %316 = vector.extract_strided_slice %304 {offsets = [0, 128], sizes = [8, 128], strides = [1, 1]} : vector<8x384xf32> to vector<8x128xf32>
    %317 = arith.addf %315, %316 : vector<8x128xf32>
    %cst_118 = arith.constant 5.000000e-01 : f32
    %318 = vector.broadcast %cst_118 : f32 to vector<8x128xf32>
    %319 = arith.mulf %318, %317 : vector<8x128xf32>
    %320 = math.tanh %319 : vector<8x128xf32>
    %cst_119 = arith.constant 1.000000e+00 : f32
    %321 = vector.broadcast %cst_119 : f32 to vector<8x128xf32>
    %322 = arith.addf %321, %320 : vector<8x128xf32>
    %cst_120 = arith.constant 5.000000e-01 : f32
    %323 = vector.broadcast %cst_120 : f32 to vector<8x128xf32>
    %324 = arith.mulf %323, %322 : vector<8x128xf32>
    %325 = vector.extract_strided_slice %303 {offsets = [0, 256], sizes = [8, 128], strides = [1, 1]} : vector<8x384xf32> to vector<8x128xf32>
    %326 = vector.extract_strided_slice %304 {offsets = [0, 256], sizes = [8, 128], strides = [1, 1]} : vector<8x384xf32> to vector<8x128xf32>
    %327 = arith.mulf %314, %326 : vector<8x128xf32>
    %328 = arith.addf %325, %327 : vector<8x128xf32>
    %329 = math.tanh %328 : vector<8x128xf32>
    %330 = arith.subf %300, %329 : vector<8x128xf32>
    %331 = arith.mulf %324, %330 : vector<8x128xf32>
    %332 = arith.addf %329, %331 : vector<8x128xf32>
    %c1_i32_121 = arith.constant 1 : i32
    %333 = arith.index_cast %c1_i32_121 : i32 to index
    %c0_122 = arith.constant 0 : index
    %c0_123 = arith.constant 0 : index
    %334 = vector.load %arg6[%333, %c0_122, %c0_123] : memref<8x8x384xf32, #tpu.memory_space<vmem>>, vector<1x8x384xf32>
    %335 = vector.shape_cast %334 : vector<1x8x384xf32> to vector<8x384xf32>
    %cst_124 = arith.constant dense<0.000000e+00> : vector<8x384xf32>
    %336 = tpu.matmul %332, %299, %cst_124 {dimension_numbers = #tpu.dot_dimension_numbers<[1], [0], [0], [1], [0, 0, 1, 1], [], []>} : vector<8x128xf32>, vector<128x384xf32>, vector<8x384xf32> -> vector<8x384xf32>
    %337 = vector.extract_strided_slice %335 {offsets = [0, 0], sizes = [8, 128], strides = [1, 1]} : vector<8x384xf32> to vector<8x128xf32>
    %338 = vector.extract_strided_slice %336 {offsets = [0, 0], sizes = [8, 128], strides = [1, 1]} : vector<8x384xf32> to vector<8x128xf32>
    %339 = arith.addf %337, %338 : vector<8x128xf32>
    %cst_125 = arith.constant 5.000000e-01 : f32
    %340 = vector.broadcast %cst_125 : f32 to vector<8x128xf32>
    %341 = arith.mulf %340, %339 : vector<8x128xf32>
    %342 = math.tanh %341 : vector<8x128xf32>
    %cst_126 = arith.constant 1.000000e+00 : f32
    %343 = vector.broadcast %cst_126 : f32 to vector<8x128xf32>
    %344 = arith.addf %343, %342 : vector<8x128xf32>
    %cst_127 = arith.constant 5.000000e-01 : f32
    %345 = vector.broadcast %cst_127 : f32 to vector<8x128xf32>
    %346 = arith.mulf %345, %344 : vector<8x128xf32>
    %347 = vector.extract_strided_slice %335 {offsets = [0, 128], sizes = [8, 128], strides = [1, 1]} : vector<8x384xf32> to vector<8x128xf32>
    %348 = vector.extract_strided_slice %336 {offsets = [0, 128], sizes = [8, 128], strides = [1, 1]} : vector<8x384xf32> to vector<8x128xf32>
    %349 = arith.addf %347, %348 : vector<8x128xf32>
    %cst_128 = arith.constant 5.000000e-01 : f32
    %350 = vector.broadcast %cst_128 : f32 to vector<8x128xf32>
    %351 = arith.mulf %350, %349 : vector<8x128xf32>
    %352 = math.tanh %351 : vector<8x128xf32>
    %cst_129 = arith.constant 1.000000e+00 : f32
    %353 = vector.broadcast %cst_129 : f32 to vector<8x128xf32>
    %354 = arith.addf %353, %352 : vector<8x128xf32>
    %cst_130 = arith.constant 5.000000e-01 : f32
    %355 = vector.broadcast %cst_130 : f32 to vector<8x128xf32>
    %356 = arith.mulf %355, %354 : vector<8x128xf32>
    %357 = vector.extract_strided_slice %335 {offsets = [0, 256], sizes = [8, 128], strides = [1, 1]} : vector<8x384xf32> to vector<8x128xf32>
    %358 = vector.extract_strided_slice %336 {offsets = [0, 256], sizes = [8, 128], strides = [1, 1]} : vector<8x384xf32> to vector<8x128xf32>
    %359 = arith.mulf %346, %358 : vector<8x128xf32>
    %360 = arith.addf %357, %359 : vector<8x128xf32>
    %361 = math.tanh %360 : vector<8x128xf32>
    %362 = arith.subf %332, %361 : vector<8x128xf32>
    %363 = arith.mulf %356, %362 : vector<8x128xf32>
    %364 = arith.addf %361, %363 : vector<8x128xf32>
    %c2_i32_131 = arith.constant 2 : i32
    %365 = arith.index_cast %c2_i32_131 : i32 to index
    %c0_132 = arith.constant 0 : index
    %c0_133 = arith.constant 0 : index
    %366 = vector.load %arg6[%365, %c0_132, %c0_133] : memref<8x8x384xf32, #tpu.memory_space<vmem>>, vector<1x8x384xf32>
    %367 = vector.shape_cast %366 : vector<1x8x384xf32> to vector<8x384xf32>
    %cst_134 = arith.constant dense<0.000000e+00> : vector<8x384xf32>
    %368 = tpu.matmul %364, %299, %cst_134 {dimension_numbers = #tpu.dot_dimension_numbers<[1], [0], [0], [1], [0, 0, 1, 1], [], []>} : vector<8x128xf32>, vector<128x384xf32>, vector<8x384xf32> -> vector<8x384xf32>
    %369 = vector.extract_strided_slice %367 {offsets = [0, 0], sizes = [8, 128], strides = [1, 1]} : vector<8x384xf32> to vector<8x128xf32>
    %370 = vector.extract_strided_slice %368 {offsets = [0, 0], sizes = [8, 128], strides = [1, 1]} : vector<8x384xf32> to vector<8x128xf32>
    %371 = arith.addf %369, %370 : vector<8x128xf32>
    %cst_135 = arith.constant 5.000000e-01 : f32
    %372 = vector.broadcast %cst_135 : f32 to vector<8x128xf32>
    %373 = arith.mulf %372, %371 : vector<8x128xf32>
    %374 = math.tanh %373 : vector<8x128xf32>
    %cst_136 = arith.constant 1.000000e+00 : f32
    %375 = vector.broadcast %cst_136 : f32 to vector<8x128xf32>
    %376 = arith.addf %375, %374 : vector<8x128xf32>
    %cst_137 = arith.constant 5.000000e-01 : f32
    %377 = vector.broadcast %cst_137 : f32 to vector<8x128xf32>
    %378 = arith.mulf %377, %376 : vector<8x128xf32>
    %379 = vector.extract_strided_slice %367 {offsets = [0, 128], sizes = [8, 128], strides = [1, 1]} : vector<8x384xf32> to vector<8x128xf32>
    %380 = vector.extract_strided_slice %368 {offsets = [0, 128], sizes = [8, 128], strides = [1, 1]} : vector<8x384xf32> to vector<8x128xf32>
    %381 = arith.addf %379, %380 : vector<8x128xf32>
    %cst_138 = arith.constant 5.000000e-01 : f32
    %382 = vector.broadcast %cst_138 : f32 to vector<8x128xf32>
    %383 = arith.mulf %382, %381 : vector<8x128xf32>
    %384 = math.tanh %383 : vector<8x128xf32>
    %cst_139 = arith.constant 1.000000e+00 : f32
    %385 = vector.broadcast %cst_139 : f32 to vector<8x128xf32>
    %386 = arith.addf %385, %384 : vector<8x128xf32>
    %cst_140 = arith.constant 5.000000e-01 : f32
    %387 = vector.broadcast %cst_140 : f32 to vector<8x128xf32>
    %388 = arith.mulf %387, %386 : vector<8x128xf32>
    %389 = vector.extract_strided_slice %367 {offsets = [0, 256], sizes = [8, 128], strides = [1, 1]} : vector<8x384xf32> to vector<8x128xf32>
    %390 = vector.extract_strided_slice %368 {offsets = [0, 256], sizes = [8, 128], strides = [1, 1]} : vector<8x384xf32> to vector<8x128xf32>
    %391 = arith.mulf %378, %390 : vector<8x128xf32>
    %392 = arith.addf %389, %391 : vector<8x128xf32>
    %393 = math.tanh %392 : vector<8x128xf32>
    %394 = arith.subf %364, %393 : vector<8x128xf32>
    %395 = arith.mulf %388, %394 : vector<8x128xf32>
    %396 = arith.addf %393, %395 : vector<8x128xf32>
    %c3_i32_141 = arith.constant 3 : i32
    %397 = arith.index_cast %c3_i32_141 : i32 to index
    %c0_142 = arith.constant 0 : index
    %c0_143 = arith.constant 0 : index
    %398 = vector.load %arg6[%397, %c0_142, %c0_143] : memref<8x8x384xf32, #tpu.memory_space<vmem>>, vector<1x8x384xf32>
    %399 = vector.shape_cast %398 : vector<1x8x384xf32> to vector<8x384xf32>
    %cst_144 = arith.constant dense<0.000000e+00> : vector<8x384xf32>
    %400 = tpu.matmul %396, %299, %cst_144 {dimension_numbers = #tpu.dot_dimension_numbers<[1], [0], [0], [1], [0, 0, 1, 1], [], []>} : vector<8x128xf32>, vector<128x384xf32>, vector<8x384xf32> -> vector<8x384xf32>
    %401 = vector.extract_strided_slice %399 {offsets = [0, 0], sizes = [8, 128], strides = [1, 1]} : vector<8x384xf32> to vector<8x128xf32>
    %402 = vector.extract_strided_slice %400 {offsets = [0, 0], sizes = [8, 128], strides = [1, 1]} : vector<8x384xf32> to vector<8x128xf32>
    %403 = arith.addf %401, %402 : vector<8x128xf32>
    %cst_145 = arith.constant 5.000000e-01 : f32
    %404 = vector.broadcast %cst_145 : f32 to vector<8x128xf32>
    %405 = arith.mulf %404, %403 : vector<8x128xf32>
    %406 = math.tanh %405 : vector<8x128xf32>
    %cst_146 = arith.constant 1.000000e+00 : f32
    %407 = vector.broadcast %cst_146 : f32 to vector<8x128xf32>
    %408 = arith.addf %407, %406 : vector<8x128xf32>
    %cst_147 = arith.constant 5.000000e-01 : f32
    %409 = vector.broadcast %cst_147 : f32 to vector<8x128xf32>
    %410 = arith.mulf %409, %408 : vector<8x128xf32>
    %411 = vector.extract_strided_slice %399 {offsets = [0, 128], sizes = [8, 128], strides = [1, 1]} : vector<8x384xf32> to vector<8x128xf32>
    %412 = vector.extract_strided_slice %400 {offsets = [0, 128], sizes = [8, 128], strides = [1, 1]} : vector<8x384xf32> to vector<8x128xf32>
    %413 = arith.addf %411, %412 : vector<8x128xf32>
    %cst_148 = arith.constant 5.000000e-01 : f32
    %414 = vector.broadcast %cst_148 : f32 to vector<8x128xf32>
    %415 = arith.mulf %414, %413 : vector<8x128xf32>
    %416 = math.tanh %415 : vector<8x128xf32>
    %cst_149 = arith.constant 1.000000e+00 : f32
    %417 = vector.broadcast %cst_149 : f32 to vector<8x128xf32>
    %418 = arith.addf %417, %416 : vector<8x128xf32>
    %cst_150 = arith.constant 5.000000e-01 : f32
    %419 = vector.broadcast %cst_150 : f32 to vector<8x128xf32>
    %420 = arith.mulf %419, %418 : vector<8x128xf32>
    %421 = vector.extract_strided_slice %399 {offsets = [0, 256], sizes = [8, 128], strides = [1, 1]} : vector<8x384xf32> to vector<8x128xf32>
    %422 = vector.extract_strided_slice %400 {offsets = [0, 256], sizes = [8, 128], strides = [1, 1]} : vector<8x384xf32> to vector<8x128xf32>
    %423 = arith.mulf %410, %422 : vector<8x128xf32>
    %424 = arith.addf %421, %423 : vector<8x128xf32>
    %425 = math.tanh %424 : vector<8x128xf32>
    %426 = arith.subf %396, %425 : vector<8x128xf32>
    %427 = arith.mulf %420, %426 : vector<8x128xf32>
    %428 = arith.addf %425, %427 : vector<8x128xf32>
    %c4_i32_151 = arith.constant 4 : i32
    %429 = arith.index_cast %c4_i32_151 : i32 to index
    %c0_152 = arith.constant 0 : index
    %c0_153 = arith.constant 0 : index
    %430 = vector.load %arg6[%429, %c0_152, %c0_153] : memref<8x8x384xf32, #tpu.memory_space<vmem>>, vector<1x8x384xf32>
    %431 = vector.shape_cast %430 : vector<1x8x384xf32> to vector<8x384xf32>
    %cst_154 = arith.constant dense<0.000000e+00> : vector<8x384xf32>
    %432 = tpu.matmul %428, %299, %cst_154 {dimension_numbers = #tpu.dot_dimension_numbers<[1], [0], [0], [1], [0, 0, 1, 1], [], []>} : vector<8x128xf32>, vector<128x384xf32>, vector<8x384xf32> -> vector<8x384xf32>
    %433 = vector.extract_strided_slice %431 {offsets = [0, 0], sizes = [8, 128], strides = [1, 1]} : vector<8x384xf32> to vector<8x128xf32>
    %434 = vector.extract_strided_slice %432 {offsets = [0, 0], sizes = [8, 128], strides = [1, 1]} : vector<8x384xf32> to vector<8x128xf32>
    %435 = arith.addf %433, %434 : vector<8x128xf32>
    %cst_155 = arith.constant 5.000000e-01 : f32
    %436 = vector.broadcast %cst_155 : f32 to vector<8x128xf32>
    %437 = arith.mulf %436, %435 : vector<8x128xf32>
    %438 = math.tanh %437 : vector<8x128xf32>
    %cst_156 = arith.constant 1.000000e+00 : f32
    %439 = vector.broadcast %cst_156 : f32 to vector<8x128xf32>
    %440 = arith.addf %439, %438 : vector<8x128xf32>
    %cst_157 = arith.constant 5.000000e-01 : f32
    %441 = vector.broadcast %cst_157 : f32 to vector<8x128xf32>
    %442 = arith.mulf %441, %440 : vector<8x128xf32>
    %443 = vector.extract_strided_slice %431 {offsets = [0, 128], sizes = [8, 128], strides = [1, 1]} : vector<8x384xf32> to vector<8x128xf32>
    %444 = vector.extract_strided_slice %432 {offsets = [0, 128], sizes = [8, 128], strides = [1, 1]} : vector<8x384xf32> to vector<8x128xf32>
    %445 = arith.addf %443, %444 : vector<8x128xf32>
    %cst_158 = arith.constant 5.000000e-01 : f32
    %446 = vector.broadcast %cst_158 : f32 to vector<8x128xf32>
    %447 = arith.mulf %446, %445 : vector<8x128xf32>
    %448 = math.tanh %447 : vector<8x128xf32>
    %cst_159 = arith.constant 1.000000e+00 : f32
    %449 = vector.broadcast %cst_159 : f32 to vector<8x128xf32>
    %450 = arith.addf %449, %448 : vector<8x128xf32>
    %cst_160 = arith.constant 5.000000e-01 : f32
    %451 = vector.broadcast %cst_160 : f32 to vector<8x128xf32>
    %452 = arith.mulf %451, %450 : vector<8x128xf32>
    %453 = vector.extract_strided_slice %431 {offsets = [0, 256], sizes = [8, 128], strides = [1, 1]} : vector<8x384xf32> to vector<8x128xf32>
    %454 = vector.extract_strided_slice %432 {offsets = [0, 256], sizes = [8, 128], strides = [1, 1]} : vector<8x384xf32> to vector<8x128xf32>
    %455 = arith.mulf %442, %454 : vector<8x128xf32>
    %456 = arith.addf %453, %455 : vector<8x128xf32>
    %457 = math.tanh %456 : vector<8x128xf32>
    %458 = arith.subf %428, %457 : vector<8x128xf32>
    %459 = arith.mulf %452, %458 : vector<8x128xf32>
    %460 = arith.addf %457, %459 : vector<8x128xf32>
    %c5_i32_161 = arith.constant 5 : i32
    %461 = arith.index_cast %c5_i32_161 : i32 to index
    %c0_162 = arith.constant 0 : index
    %c0_163 = arith.constant 0 : index
    %462 = vector.load %arg6[%461, %c0_162, %c0_163] : memref<8x8x384xf32, #tpu.memory_space<vmem>>, vector<1x8x384xf32>
    %463 = vector.shape_cast %462 : vector<1x8x384xf32> to vector<8x384xf32>
    %cst_164 = arith.constant dense<0.000000e+00> : vector<8x384xf32>
    %464 = tpu.matmul %460, %299, %cst_164 {dimension_numbers = #tpu.dot_dimension_numbers<[1], [0], [0], [1], [0, 0, 1, 1], [], []>} : vector<8x128xf32>, vector<128x384xf32>, vector<8x384xf32> -> vector<8x384xf32>
    %465 = vector.extract_strided_slice %463 {offsets = [0, 0], sizes = [8, 128], strides = [1, 1]} : vector<8x384xf32> to vector<8x128xf32>
    %466 = vector.extract_strided_slice %464 {offsets = [0, 0], sizes = [8, 128], strides = [1, 1]} : vector<8x384xf32> to vector<8x128xf32>
    %467 = arith.addf %465, %466 : vector<8x128xf32>
    %cst_165 = arith.constant 5.000000e-01 : f32
    %468 = vector.broadcast %cst_165 : f32 to vector<8x128xf32>
    %469 = arith.mulf %468, %467 : vector<8x128xf32>
    %470 = math.tanh %469 : vector<8x128xf32>
    %cst_166 = arith.constant 1.000000e+00 : f32
    %471 = vector.broadcast %cst_166 : f32 to vector<8x128xf32>
    %472 = arith.addf %471, %470 : vector<8x128xf32>
    %cst_167 = arith.constant 5.000000e-01 : f32
    %473 = vector.broadcast %cst_167 : f32 to vector<8x128xf32>
    %474 = arith.mulf %473, %472 : vector<8x128xf32>
    %475 = vector.extract_strided_slice %463 {offsets = [0, 128], sizes = [8, 128], strides = [1, 1]} : vector<8x384xf32> to vector<8x128xf32>
    %476 = vector.extract_strided_slice %464 {offsets = [0, 128], sizes = [8, 128], strides = [1, 1]} : vector<8x384xf32> to vector<8x128xf32>
    %477 = arith.addf %475, %476 : vector<8x128xf32>
    %cst_168 = arith.constant 5.000000e-01 : f32
    %478 = vector.broadcast %cst_168 : f32 to vector<8x128xf32>
    %479 = arith.mulf %478, %477 : vector<8x128xf32>
    %480 = math.tanh %479 : vector<8x128xf32>
    %cst_169 = arith.constant 1.000000e+00 : f32
    %481 = vector.broadcast %cst_169 : f32 to vector<8x128xf32>
    %482 = arith.addf %481, %480 : vector<8x128xf32>
    %cst_170 = arith.constant 5.000000e-01 : f32
    %483 = vector.broadcast %cst_170 : f32 to vector<8x128xf32>
    %484 = arith.mulf %483, %482 : vector<8x128xf32>
    %485 = vector.extract_strided_slice %463 {offsets = [0, 256], sizes = [8, 128], strides = [1, 1]} : vector<8x384xf32> to vector<8x128xf32>
    %486 = vector.extract_strided_slice %464 {offsets = [0, 256], sizes = [8, 128], strides = [1, 1]} : vector<8x384xf32> to vector<8x128xf32>
    %487 = arith.mulf %474, %486 : vector<8x128xf32>
    %488 = arith.addf %485, %487 : vector<8x128xf32>
    %489 = math.tanh %488 : vector<8x128xf32>
    %490 = arith.subf %460, %489 : vector<8x128xf32>
    %491 = arith.mulf %484, %490 : vector<8x128xf32>
    %492 = arith.addf %489, %491 : vector<8x128xf32>
    %c6_i32_171 = arith.constant 6 : i32
    %493 = arith.index_cast %c6_i32_171 : i32 to index
    %c0_172 = arith.constant 0 : index
    %c0_173 = arith.constant 0 : index
    %494 = vector.load %arg6[%493, %c0_172, %c0_173] : memref<8x8x384xf32, #tpu.memory_space<vmem>>, vector<1x8x384xf32>
    %495 = vector.shape_cast %494 : vector<1x8x384xf32> to vector<8x384xf32>
    %cst_174 = arith.constant dense<0.000000e+00> : vector<8x384xf32>
    %496 = tpu.matmul %492, %299, %cst_174 {dimension_numbers = #tpu.dot_dimension_numbers<[1], [0], [0], [1], [0, 0, 1, 1], [], []>} : vector<8x128xf32>, vector<128x384xf32>, vector<8x384xf32> -> vector<8x384xf32>
    %497 = vector.extract_strided_slice %495 {offsets = [0, 0], sizes = [8, 128], strides = [1, 1]} : vector<8x384xf32> to vector<8x128xf32>
    %498 = vector.extract_strided_slice %496 {offsets = [0, 0], sizes = [8, 128], strides = [1, 1]} : vector<8x384xf32> to vector<8x128xf32>
    %499 = arith.addf %497, %498 : vector<8x128xf32>
    %cst_175 = arith.constant 5.000000e-01 : f32
    %500 = vector.broadcast %cst_175 : f32 to vector<8x128xf32>
    %501 = arith.mulf %500, %499 : vector<8x128xf32>
    %502 = math.tanh %501 : vector<8x128xf32>
    %cst_176 = arith.constant 1.000000e+00 : f32
    %503 = vector.broadcast %cst_176 : f32 to vector<8x128xf32>
    %504 = arith.addf %503, %502 : vector<8x128xf32>
    %cst_177 = arith.constant 5.000000e-01 : f32
    %505 = vector.broadcast %cst_177 : f32 to vector<8x128xf32>
    %506 = arith.mulf %505, %504 : vector<8x128xf32>
    %507 = vector.extract_strided_slice %495 {offsets = [0, 128], sizes = [8, 128], strides = [1, 1]} : vector<8x384xf32> to vector<8x128xf32>
    %508 = vector.extract_strided_slice %496 {offsets = [0, 128], sizes = [8, 128], strides = [1, 1]} : vector<8x384xf32> to vector<8x128xf32>
    %509 = arith.addf %507, %508 : vector<8x128xf32>
    %cst_178 = arith.constant 5.000000e-01 : f32
    %510 = vector.broadcast %cst_178 : f32 to vector<8x128xf32>
    %511 = arith.mulf %510, %509 : vector<8x128xf32>
    %512 = math.tanh %511 : vector<8x128xf32>
    %cst_179 = arith.constant 1.000000e+00 : f32
    %513 = vector.broadcast %cst_179 : f32 to vector<8x128xf32>
    %514 = arith.addf %513, %512 : vector<8x128xf32>
    %cst_180 = arith.constant 5.000000e-01 : f32
    %515 = vector.broadcast %cst_180 : f32 to vector<8x128xf32>
    %516 = arith.mulf %515, %514 : vector<8x128xf32>
    %517 = vector.extract_strided_slice %495 {offsets = [0, 256], sizes = [8, 128], strides = [1, 1]} : vector<8x384xf32> to vector<8x128xf32>
    %518 = vector.extract_strided_slice %496 {offsets = [0, 256], sizes = [8, 128], strides = [1, 1]} : vector<8x384xf32> to vector<8x128xf32>
    %519 = arith.mulf %506, %518 : vector<8x128xf32>
    %520 = arith.addf %517, %519 : vector<8x128xf32>
    %521 = math.tanh %520 : vector<8x128xf32>
    %522 = arith.subf %492, %521 : vector<8x128xf32>
    %523 = arith.mulf %516, %522 : vector<8x128xf32>
    %524 = arith.addf %521, %523 : vector<8x128xf32>
    %c7_i32_181 = arith.constant 7 : i32
    %525 = arith.index_cast %c7_i32_181 : i32 to index
    %c0_182 = arith.constant 0 : index
    %c0_183 = arith.constant 0 : index
    %526 = vector.load %arg6[%525, %c0_182, %c0_183] : memref<8x8x384xf32, #tpu.memory_space<vmem>>, vector<1x8x384xf32>
    %527 = vector.shape_cast %526 : vector<1x8x384xf32> to vector<8x384xf32>
    %cst_184 = arith.constant dense<0.000000e+00> : vector<8x384xf32>
    %528 = tpu.matmul %524, %299, %cst_184 {dimension_numbers = #tpu.dot_dimension_numbers<[1], [0], [0], [1], [0, 0, 1, 1], [], []>} : vector<8x128xf32>, vector<128x384xf32>, vector<8x384xf32> -> vector<8x384xf32>
    %529 = vector.extract_strided_slice %527 {offsets = [0, 0], sizes = [8, 128], strides = [1, 1]} : vector<8x384xf32> to vector<8x128xf32>
    %530 = vector.extract_strided_slice %528 {offsets = [0, 0], sizes = [8, 128], strides = [1, 1]} : vector<8x384xf32> to vector<8x128xf32>
    %531 = arith.addf %529, %530 : vector<8x128xf32>
    %cst_185 = arith.constant 5.000000e-01 : f32
    %532 = vector.broadcast %cst_185 : f32 to vector<8x128xf32>
    %533 = arith.mulf %532, %531 : vector<8x128xf32>
    %534 = math.tanh %533 : vector<8x128xf32>
    %cst_186 = arith.constant 1.000000e+00 : f32
    %535 = vector.broadcast %cst_186 : f32 to vector<8x128xf32>
    %536 = arith.addf %535, %534 : vector<8x128xf32>
    %cst_187 = arith.constant 5.000000e-01 : f32
    %537 = vector.broadcast %cst_187 : f32 to vector<8x128xf32>
    %538 = arith.mulf %537, %536 : vector<8x128xf32>
    %539 = vector.extract_strided_slice %527 {offsets = [0, 128], sizes = [8, 128], strides = [1, 1]} : vector<8x384xf32> to vector<8x128xf32>
    %540 = vector.extract_strided_slice %528 {offsets = [0, 128], sizes = [8, 128], strides = [1, 1]} : vector<8x384xf32> to vector<8x128xf32>
    %541 = arith.addf %539, %540 : vector<8x128xf32>
    %cst_188 = arith.constant 5.000000e-01 : f32
    %542 = vector.broadcast %cst_188 : f32 to vector<8x128xf32>
    %543 = arith.mulf %542, %541 : vector<8x128xf32>
    %544 = math.tanh %543 : vector<8x128xf32>
    %cst_189 = arith.constant 1.000000e+00 : f32
    %545 = vector.broadcast %cst_189 : f32 to vector<8x128xf32>
    %546 = arith.addf %545, %544 : vector<8x128xf32>
    %cst_190 = arith.constant 5.000000e-01 : f32
    %547 = vector.broadcast %cst_190 : f32 to vector<8x128xf32>
    %548 = arith.mulf %547, %546 : vector<8x128xf32>
    %549 = vector.extract_strided_slice %527 {offsets = [0, 256], sizes = [8, 128], strides = [1, 1]} : vector<8x384xf32> to vector<8x128xf32>
    %550 = vector.extract_strided_slice %528 {offsets = [0, 256], sizes = [8, 128], strides = [1, 1]} : vector<8x384xf32> to vector<8x128xf32>
    %551 = arith.mulf %538, %550 : vector<8x128xf32>
    %552 = arith.addf %549, %551 : vector<8x128xf32>
    %553 = math.tanh %552 : vector<8x128xf32>
    %554 = arith.subf %524, %553 : vector<8x128xf32>
    %555 = arith.mulf %548, %554 : vector<8x128xf32>
    %556 = arith.addf %553, %555 : vector<8x128xf32>
    %c8_i32_191 = arith.constant 8 : i32
    %c0_192 = arith.constant 0 : index
    %c0_193 = arith.constant 0 : index
    %557 = vector.load %arg4[%c0_192, %c0_193] : memref<8x128xf32, #tpu.memory_space<vmem>>, vector<8x128xf32>
    tpu.vector_store %arg4[%c0_192, %c0_193], %556 {strides = array<i32>} : memref<8x128xf32, #tpu.memory_space<vmem>>, vector<8x128xf32>,
    return
  }
  func.func @transform_0(%arg0: i32) -> (i32, i32, i32, i32) {
    %c0_i32 = arith.constant 0 : i32
    %c0_i32_0 = arith.constant 0 : i32
    %c0_i32_1 = arith.constant 0 : i32
    %c0_i32_2 = arith.constant 0 : i32
    return %arg0, %c0_i32, %c0_i32_0, %c0_i32_1 : i32, i32, i32, i32
  }
  func.func @transform_1(%arg0: i32) -> (i32, i32, i32) {
    %c0_i32 = arith.constant 0 : i32
    %c0_i32_0 = arith.constant 0 : i32
    %c0_i32_1 = arith.constant 0 : i32
    %c0_i32_2 = arith.constant 0 : i32
    return %c0_i32, %c0_i32_0, %c0_i32_1 : i32, i32, i32
  }
  func.func @transform_2(%arg0: i32) -> (i32, i32, i32) {
    %c0_i32 = arith.constant 0 : i32
    %c0_i32_0 = arith.constant 0 : i32
    %c0_i32_1 = arith.constant 0 : i32
    %c0_i32_2 = arith.constant 0 : i32
    return %c0_i32, %c0_i32_0, %c0_i32_1 : i32, i32, i32
  }
  func.func @transform_3(%arg0: i32) -> (i32, i32) {
    %c0_i32 = arith.constant 0 : i32
    %c0_i32_0 = arith.constant 0 : i32
    return %arg0, %c0_i32 : i32, i32
  }
}

</mosaic_0001>

<llo_original>
// kernel: tpu_custom_call.1
$region0: #{tpu_custom_call.1}
  #allocation0 [shape = 'u32[]', space=smem, size = 0x4, offset = 0x4, fixed_abs, tag = 'smem constant byte address 0x4 - core index']
  #allocation1 [shape = 'u32[144,128]{1,0:T(1,128)}', space=vmem, size = 0x12000, scoped, tag = 'internal scratch']
  #allocation2 [shape = 'f32[8,8,128]{2,1,0:T(8,128)}', space=vmem, size = 0x8000, scoped, tag = 'scratch operand']
  #allocation3 [shape = 'f32[8,8,384]{2,1,0:T(8,128)}', space=vmem, size = 0x18000, scoped, tag = 'scratch operand']
  %s0 = inlined_call_operand.hbm [shape: f32[1,8,8,384], index: 0, kind: input, shape index: {}]
  %s1 = inlined_call_operand.hbm [shape: f32[1,128,384], index: 1, kind: input, shape index: {}]
  %s2 = inlined_call_operand.hbm [shape: f32[2,128,384], index: 2, kind: input, shape index: {}]
  %s3 = inlined_call_operand.hbm [shape: f32[8,128], index: 3, kind: output, shape index: {}]
  %s4 = sld [smem:[#allocation0]]
  $region34: #{tpu_custom_call.1} parent=0
    _
  %s6 = ssub.s32 1, %s4
  %s7 = scalar_select 0, %s6, %s4
  $region1: #{tpu_custom_call.1} parent=0
    #allocation4 [shape = 'u8[98304]{0}', space=vmem, size = 0x18000, scoped, tag = 'input window, operand 0, single buffered']
    #allocation5 [shape = 's32[1]{0}', space=sflag, size = 0x4, scoped, tag = 'scoped memory for tpu_custom_call.1']
    #allocation6 [shape = 's32[1]{0}', space=sflag, size = 0x4, scoped, tag = 'scoped memory for tpu_custom_call.1']
    #allocation7 [shape = 'u8[196608]{0}', space=vmem, size = 0x30000, scoped, tag = 'input window, operand 1, single buffered']
    #allocation8 [shape = 's32[1]{0}', space=sflag, size = 0x4, scoped, tag = 'scoped memory for tpu_custom_call.1']
    #allocation9 [shape = 'u8[393216]{0}', space=vmem, size = 0x60000, scoped, tag = 'input window, operand 2, single buffered']
    #allocation10 [shape = 'u8[4096]{0}', space=vmem, size = 0x1000, scoped, tag = 'output window, operand 0, single buffered']
    %8 = vsyncpa [#allocation5], 0
    %9 = vsyncpa [#allocation8], 0
    %10 = vsyncpa [#allocation6], 0
    // Predicated region
    $region2: #{tpu_custom_call.1} parent=1 // pred_check
      _
    $region3: #{tpu_custom_call.1} parent=1 // pred_check_branch
      %12 = sbr.rel (0) target = $region5
    $region4: #{tpu_custom_call.1} parent=1 // pred_region
      %s14 = ssub.s32 3072, 3072
      %15 = vsyncadd [#allocation5], %s14
      %s16 = sshll.u32 [#allocation4], 4
      %s17 = int_to_ptr.vmem [resolvable:$true] %s16
      %22 = dma.hbm_to_vmem [thread:$0]  %s0, 3072, %s17, [#allocation5], 384, 384, 24
    $region5: #{tpu_custom_call.1} parent=1 // pred_fallthru
      _
    // Predicated region
    $region6: #{tpu_custom_call.1} parent=1 // pred_check
      _
    $region7: #{tpu_custom_call.1} parent=1 // pred_check_branch
      %24 = sbr.rel (0) target = $region9
    $region8: #{tpu_custom_call.1} parent=1 // pred_region
      %s26 = ssub.s32 6144, 6144
      %27 = vsyncadd [#allocation8], %s26
      %s28 = sshll.u32 [#allocation7], 4
      %s29 = int_to_ptr.vmem [resolvable:$true] %s28
      %34 = dma.hbm_to_vmem [thread:$0]  %s1, 6144, %s29, [#allocation8], 384, 384, 24
    $region9: #{tpu_custom_call.1} parent=1 // pred_fallthru
      _
    // Predicated region
    $region10: #{tpu_custom_call.1} parent=1 // pred_check
      _
    $region11: #{tpu_custom_call.1} parent=1 // pred_check_branch
      %36 = sbr.rel (0) target = $region13
    $region12: #{tpu_custom_call.1} parent=1 // pred_region
      %s38 = ssub.s32 12288, 12288
      %39 = vsyncadd [#allocation8], %s38
      %s40 = sshll.u32 [#allocation9], 4
      %s41 = int_to_ptr.vmem [resolvable:$true] %s40
      %46 = dma.hbm_to_vmem [thread:$0]  %s2, 12288, %s41, [#allocation8], 384, 384, 24
    $region13: #{tpu_custom_call.1} parent=1 // pred_fallthru
      _
    // Predicated region
    $region14: #{tpu_custom_call.1} parent=1 // pred_check
      _
    $region15: #{tpu_custom_call.1} parent=1 // pred_check_branch
      %48 = sbr.rel (0) target = $region17
    $region16: #{tpu_custom_call.1} parent=1 // pred_region
      %49 = dma.done [#allocation5], 3072
    $region17: #{tpu_custom_call.1} parent=1 // pred_fallthru
      _
    // Predicated region
    $region18: #{tpu_custom_call.1} parent=1 // pred_check
      _
    $region19: #{tpu_custom_call.1} parent=1 // pred_check_branch
      %51 = sbr.rel (0) target = $region21
    $region20: #{tpu_custom_call.1} parent=1 // pred_region
      %52 = dma.done [#allocation8], 6144
    $region21: #{tpu_custom_call.1} parent=1 // pred_fallthru
      _
    // Predicated region
    $region22: #{tpu_custom_call.1} parent=1 // pred_check
      _
    $region23: #{tpu_custom_call.1} parent=1 // pred_check_branch
      %54 = sbr.rel (0) target = $region25
    $region24: #{tpu_custom_call.1} parent=1 // pred_region
      %55 = dma.done [#allocation8], 12288
    $region25: #{tpu_custom_call.1} parent=1 // pred_fallthru
      _
    %v56 = vld [vmem:[#allocation9] sm:$0xff]
    %v57 = vld [vmem:[#allocation9 + $0x8] sm:$0xff]
    %v58 = vld [vmem:[#allocation9 + $0x10] sm:$0xff]
    %v59 = vld [vmem:[#allocation9 + $0x18] sm:$0xff]
    %v60 = vld [vmem:[#allocation9 + $0x20] sm:$0xff]
    %v61 = vld [vmem:[#allocation9 + $0x28] sm:$0xff]
    %v62 = vld [vmem:[#allocation9 + $0x30] sm:$0xff]
    %v63 = vld [vmem:[#allocation9 + $0x38] sm:$0xff]
    %v64 = vld [vmem:[#allocation9 + $0x40] sm:$0xff]
    %v65 = vld [vmem:[#allocation9 + $0x48] sm:$0xff]
    %v66 = vld [vmem:[#allocation9 + $0x50] sm:$0xff]
    %v67 = vld [vmem:[#allocation9 + $0x58] sm:$0xff]
    %v68 = vld [vmem:[#allocation9 + $0x60] sm:$0xff]
    %v69 = vld [vmem:[#allocation9 + $0x68] sm:$0xff]
    %v70 = vld [vmem:[#allocation9 + $0x70] sm:$0xff]
    %v71 = vld [vmem:[#allocation9 + $0x78] sm:$0xff]
    %v72 = vld [vmem:[#allocation9 + $0x80] sm:$0xff]
    %v73 = vld [vmem:[#allocation9 + $0x88] sm:$0xff]
    %v74 = vld [vmem:[#allocation9 + $0x90] sm:$0xff]
    %v75 = vld [vmem:[#allocation9 + $0x98] sm:$0xff]
    %v76 = vld [vmem:[#allocation9 + $0xa0] sm:$0xff]
    %v77 = vld [vmem:[#allocation9 + $0xa8] sm:$0xff]
    %v78 = vld [vmem:[#allocation9 + $0xb0] sm:$0xff]
    %v79 = vld [vmem:[#allocation9 + $0xb8] sm:$0xff]
    %v80 = vld [vmem:[#allocation9 + $0xc0] sm:$0xff]
    %v81 = vld [vmem:[#allocation9 + $0xc8] sm:$0xff]
    %v82 = vld [vmem:[#allocation9 + $0xd0] sm:$0xff]
    %v83 = vld [vmem:[#allocation9 + $0xd8] sm:$0xff]
    %v84 = vld [vmem:[#allocation9 + $0xe0] sm:$0xff]
    %v85 = vld [vmem:[#allocation9 + $0xe8] sm:$0xff]
    %v86 = vld [vmem:[#allocation9 + $0xf0] sm:$0xff]
    %v87 = vld [vmem:[#allocation9 + $0xf8] sm:$0xff]
    %v88 = vld [vmem:[#allocation9 + $0x100] sm:$0xff]
    %v89 = vld [vmem:[#allocation9 + $0x108] sm:$0xff]
    %v90 = vld [vmem:[#allocation9 + $0x110] sm:$0xff]
    %v91 = vld [vmem:[#allocation9 + $0x118] sm:$0xff]
    %v92 = vld [vmem:[#allocation9 + $0x120] sm:$0xff]
    %v93 = vld [vmem:[#allocation9 + $0x128] sm:$0xff]
    %v94 = vld [vmem:[#allocation9 + $0x130] sm:$0xff]
    %v95 = vld [vmem:[#allocation9 + $0x138] sm:$0xff]
    %v96 = vld [vmem:[#allocation9 + $0x140] sm:$0xff]
    %v97 = vld [vmem:[#allocation9 + $0x148] sm:$0xff]
    %v98 = vld [vmem:[#allocation9 + $0x150] sm:$0xff]
    %v99 = vld [vmem:[#allocation9 + $0x158] sm:$0xff]
    %v100 = vld [vmem:[#allocation9 + $0x160] sm:$0xff]
    %v101 = vld [vmem:[#allocation9 + $0x168] sm:$0xff]
    %v102 = vld [vmem:[#allocation9 + $0x170] sm:$0xff]
    %v103 = vld [vmem:[#allocation9 + $0x178] sm:$0xff]
    %v104 = vld [vmem:[#allocation4] sm:$0xff]
    %v105 = vld [vmem:[#allocation4 + $0x8] sm:$0xff]
    %v106 = vld [vmem:[#allocation4 + $0x10] sm:$0xff]
    %107 = vmatprep.subr.mxu0 %v57
    %108 = vmatpush1.msra.mxu0 %v56
    %109 = vmatprep.subr.mxu0 %v60
    %110 = vmatpush1.msra.mxu0 %v59
    %111 = vmatprep.subr.mxu0 %v63
    %112 = vmatpush1.msra.mxu0 %v62
    %113 = vmatprep.subr.mxu0 %v66
    %114 = vmatpush1.msra.mxu0 %v65
    %115 = vmatprep.subr.mxu0 %v69
    %116 = vmatpush1.msra.mxu0 %v68
    %117 = vmatprep.subr.mxu0 %v72
    %118 = vmatpush1.msra.mxu0 %v71
    %119 = vmatprep.subr.mxu0 %v75
    %120 = vmatpush1.msra.mxu0 %v74
    %121 = vmatprep.subr.mxu0 %v78
    %122 = vmatpush1.msra.mxu0 %v77
    %123 = vmatprep.subr.mxu0 %v81
    %124 = vmatpush1.msra.mxu0 %v80
    %125 = vmatprep.subr.mxu0 %v84
    %126 = vmatpush1.msra.mxu0 %v83
    %127 = vmatprep.subr.mxu0 %v87
    %128 = vmatpush1.msra.mxu0 %v86
    %129 = vmatprep.subr.mxu0 %v90
    %130 = vmatpush1.msra.mxu0 %v89
    %131 = vmatprep.subr.mxu0 %v93
    %132 = vmatpush1.msra.mxu0 %v92
    %133 = vmatprep.subr.mxu0 %v96
    %134 = vmatpush1.msra.mxu0 %v95
    %135 = vmatprep.subr.mxu0 %v99
    %136 = vmatpush1.msra.mxu0 %v98
    %137 = vmatprep.subr.mxu0 %v102
    %138 = vmatpush1.msra.mxu0 %v101
    %139 = vmatprep.subr.mxu0 0.0
    %140 = vmatpush1.msra.mxu0 0.0
    %141 = vmatprep.subr.mxu0 0.0
    %142 = vmatpush1.msra.mxu0 0.0
    %143 = vmatprep.subr.mxu0 0.0
    %144 = vmatpush1.msra.mxu0 0.0
    %145 = vmatprep.subr.mxu0 0.0
    %146 = vmatpush1.msra.mxu0 0.0
    %147 = vmatprep.subr.mxu0 0.0
    %148 = vmatpush1.msra.mxu0 0.0
    %149 = vmatprep.subr.mxu0 0.0
    %150 = vmatpush1.msra.mxu0 0.0
    %151 = vmatprep.subr.mxu0 0.0
    %152 = vmatpush1.msra.mxu0 0.0
    %153 = vmatprep.subr.mxu0 0.0
    %154 = vmatpush1.msra.mxu0 0.0
    %155 = vmatprep.subr.mxu0 0.0
    %156 = vmatpush1.msra.mxu0 0.0
    %157 = vmatprep.subr.mxu0 0.0
    %158 = vmatpush1.msra.mxu0 0.0
    %159 = vmatprep.subr.mxu0 0.0
    %160 = vmatpush1.msra.mxu0 0.0
    %161 = vmatprep.subr.mxu0 0.0
    %162 = vmatpush1.msra.mxu0 0.0
    %163 = vmatprep.subr.mxu0 0.0
    %164 = vmatpush1.msra.mxu0 0.0
    %165 = vmatprep.subr.mxu0 0.0
    %166 = vmatpush1.msra.mxu0 0.0
    %167 = vmatprep.subr.mxu0 0.0
    %168 = vmatpush1.msra.mxu0 0.0
    %169 = vmatprep.subr.mxu0 0.0
    %170 = vmatpush1.msra.mxu0 0.0
    %171 = vmatprep.mubr.f32.mxu0 0.0
    %172 = vmatmul.mubr.f32.gmra.mrb[0].mxu0 0.0
    %v173 = vpop.f32.mrb[0].mxu0
    %v174 = vadd.f32 0.0, %v173
    %v175 = vpop.f32.mrb[0].mxu0
    %v176 = vadd.f32 0.0, %v175
    %177 = vdwg.mxu0
    %178 = vmatprep.subr.mxu0 0.0
    %179 = vmatpush1.msra.mxu0 %v58
    %180 = vmatprep.subr.mxu0 0.0
    %181 = vmatpush1.msra.mxu0 %v61
    %182 = vmatprep.subr.mxu0 0.0
    %183 = vmatpush1.msra.mxu0 %v64
    %184 = vmatprep.subr.mxu0 0.0
    %185 = vmatpush1.msra.mxu0 %v67
    %186 = vmatprep.subr.mxu0 0.0
    %187 = vmatpush1.msra.mxu0 %v70
    %188 = vmatprep.subr.mxu0 0.0
    %189 = vmatpush1.msra.mxu0 %v73
    %190 = vmatprep.subr.mxu0 0.0
    %191 = vmatpush1.msra.mxu0 %v76
    %192 = vmatprep.subr.mxu0 0.0
    %193 = vmatpush1.msra.mxu0 %v79
    %194 = vmatprep.subr.mxu0 0.0
    %195 = vmatpush1.msra.mxu0 %v82
    %196 = vmatprep.subr.mxu0 0.0
    %197 = vmatpush1.msra.mxu0 %v85
    %198 = vmatprep.subr.mxu0 0.0
    %199 = vmatpush1.msra.mxu0 %v88
    %200 = vmatprep.subr.mxu0 0.0
    %201 = vmatpush1.msra.mxu0 %v91
    %202 = vmatprep.subr.mxu0 0.0
    %203 = vmatpush1.msra.mxu0 %v94
    %204 = vmatprep.subr.mxu0 0.0
    %205 = vmatpush1.msra.mxu0 %v97
    %206 = vmatprep.subr.mxu0 0.0
    %207 = vmatpush1.msra.mxu0 %v100
    %208 = vmatprep.subr.mxu0 0.0
    %209 = vmatpush1.msra.mxu0 %v103
    %210 = vmatprep.subr.mxu0 0.0
    %211 = vmatpush1.msra.mxu0 0.0
    %212 = vmatprep.subr.mxu0 0.0
    %213 = vmatpush1.msra.mxu0 0.0
    %214 = vmatprep.subr.mxu0 0.0
    %215 = vmatpush1.msra.mxu0 0.0
    %216 = vmatprep.subr.mxu0 0.0
    %217 = vmatpush1.msra.mxu0 0.0
    %218 = vmatprep.subr.mxu0 0.0
    %219 = vmatpush1.msra.mxu0 0.0
    %220 = vmatprep.subr.mxu0 0.0
    %221 = vmatpush1.msra.mxu0 0.0
    %222 = vmatprep.subr.mxu0 0.0
    %223 = vmatpush1.msra.mxu0 0.0
    %224 = vmatprep.subr.mxu0 0.0
    %225 = vmatpush1.msra.mxu0 0.0
    %226 = vmatprep.subr.mxu0 0.0
    %227 = vmatpush1.msra.mxu0 0.0
    %228 = vmatprep.subr.mxu0 0.0
    %229 = vmatpush1.msra.mxu0 0.0
    %230 = vmatprep.subr.mxu0 0.0
    %231 = vmatpush1.msra.mxu0 0.0
    %232 = vmatprep.subr.mxu0 0.0
    %233 = vmatpush1.msra.mxu0 0.0
    %234 = vmatprep.subr.mxu0 0.0
    %235 = vmatpush1.msra.mxu0 0.0
    %236 = vmatprep.subr.mxu0 0.0
    %237 = vmatpush1.msra.mxu0 0.0
    %238 = vmatprep.subr.mxu0 0.0
    %239 = vmatpush1.msra.mxu0 0.0
    %240 = vmatprep.subr.mxu0 0.0
    %241 = vmatpush1.msra.mxu0 0.0
    %242 = vmatprep.mubr.f32.mxu0 0.0
    %243 = vmatmul.mubr.f32.gmra.mrb[0].mxu0 0.0
    %v244 = vpop.f32.mrb[0].mxu0
    %v245 = vadd.f32 0.0, %v244
    %v246 = vpop.f32.mrb[0].mxu0
    %247 = vdwg.mxu0
    %v248 = vadd.f32 %v104, %v174
    %v249 = vmul.f32 %v248, 0.5
    %v250 = vtanh.pop %v249
    %v251 = vadd.f32 %v250, 1.0
    %v252 = vmul.f32 %v251, 0.5
    %v253 = vadd.f32 %v105, %v176
    %v254 = vmul.f32 %v253, 0.5
    %v255 = vtanh.pop %v254
    %v256 = vadd.f32 %v255, 1.0
    %v257 = vmul.f32 %v256, 0.5
    %v258 = vmul.f32 %v252, %v245
    %v259 = vadd.f32 %v106, %v258
    %v260 = vtanh.pop %v259
    %v261 = vsub.f32 0.0, %v260
    %v262 = vmul.f32 %v257, %v261
    %v263 = vadd.f32 %v260, %v262
    %264 = vst [vmem:[#allocation2] sm:$0xff] %v263
    %s265 = scalar_lea.vmem [#allocation4], 24
    %v266 = vld [vmem:[%s265] sm:$0xff]
    %v267 = vld [vmem:[%s265 + $0x8] sm:$0xff]
    %v268 = vld [vmem:[%s265 + $0x10] sm:$0xff]
    %269 = vmatprep.subr.mxu0 %v57
    %270 = vmatpush1.msra.mxu0 %v56
    %271 = vmatprep.subr.mxu0 %v60
    %272 = vmatpush1.msra.mxu0 %v59
    %273 = vmatprep.subr.mxu0 %v63
    %274 = vmatpush1.msra.mxu0 %v62
    %275 = vmatprep.subr.mxu0 %v66
    %276 = vmatpush1.msra.mxu0 %v65
    %277 = vmatprep.subr.mxu0 %v69
    %278 = vmatpush1.msra.mxu0 %v68
    %279 = vmatprep.subr.mxu0 %v72
    %280 = vmatpush1.msra.mxu0 %v71
    %281 = vmatprep.subr.mxu0 %v75
    %282 = vmatpush1.msra.mxu0 %v74
    %283 = vmatprep.subr.mxu0 %v78
    %284 = vmatpush1.msra.mxu0 %v77
    %285 = vmatprep.subr.mxu0 %v81
    %286 = vmatpush1.msra.mxu0 %v80
    %287 = vmatprep.subr.mxu0 %v84
    %288 = vmatpush1.msra.mxu0 %v83
    %289 = vmatprep.subr.mxu0 %v87
    %290 = vmatpush1.msra.mxu0 %v86
    %291 = vmatprep.subr.mxu0 %v90
    %292 = vmatpush1.msra.mxu0 %v89
    %293 = vmatprep.subr.mxu0 %v93
    %294 = vmatpush1.msra.mxu0 %v92
    %295 = vmatprep.subr.mxu0 %v96
    %296 = vmatpush1.msra.mxu0 %v95
    %297 = vmatprep.subr.mxu0 %v99
    %298 = vmatpush1.msra.mxu0 %v98
    %299 = vmatprep.subr.mxu0 %v102
    %300 = vmatpush1.msra.mxu0 %v101
    %301 = vmatprep.subr.mxu0 0.0
    %302 = vmatpush1.msra.mxu0 0.0
    %303 = vmatprep.subr.mxu0 0.0
    %304 = vmatpush1.msra.mxu0 0.0
    %305 = vmatprep.subr.mxu0 0.0
    %306 = vmatpush1.msra.mxu0 0.0
    %307 = vmatprep.subr.mxu0 0.0
    %308 = vmatpush1.msra.mxu0 0.0
    %309 = vmatprep.subr.mxu0 0.0
    %310 = vmatpush1.msra.mxu0 0.0
    %311 = vmatprep.subr.mxu0 0.0
    %312 = vmatpush1.msra.mxu0 0.0
    %313 = vmatprep.subr.mxu0 0.0
    %314 = vmatpush1.msra.mxu0 0.0
    %315 = vmatprep.subr.mxu0 0.0
    %316 = vmatpush1.msra.mxu0 0.0
    %317 = vmatprep.subr.mxu0 0.0
    %318 = vmatpush1.msra.mxu0 0.0
    %319 = vmatprep.subr.mxu0 0.0
    %320 = vmatpush1.msra.mxu0 0.0
    %321 = vmatprep.subr.mxu0 0.0
    %322 = vmatpush1.msra.mxu0 0.0
    %323 = vmatprep.subr.mxu0 0.0
    %324 = vmatpush1.msra.mxu0 0.0
    %325 = vmatprep.subr.mxu0 0.0
    %326 = vmatpush1.msra.mxu0 0.0
    %327 = vmatprep.subr.mxu0 0.0
    %328 = vmatpush1.msra.mxu0 0.0
    %329 = vmatprep.subr.mxu0 0.0
    %330 = vmatpush1.msra.mxu0 0.0
    %331 = vmatprep.subr.mxu0 0.0
    %332 = vmatpush1.msra.mxu0 0.0
    %333 = vmatprep.mubr.f32.mxu0 0.0
    %334 = vmatmul.mubr.f32.gmra.mrb[0].mxu0 %v263
    %v335 = vpop.f32.mrb[0].mxu0
    %v336 = vadd.f32 0.0, %v335
    %v337 = vpop.f32.mrb[0].mxu0
    %v338 = vadd.f32 0.0, %v337
    %339 = vdwg.mxu0
    %340 = vmatprep.subr.mxu0 0.0
    %341 = vmatpush1.msra.mxu0 %v58
    %342 = vmatprep.subr.mxu0 0.0
    %343 = vmatpush1.msra.mxu0 %v61
    %344 = vmatprep.subr.mxu0 0.0
    %345 = vmatpush1.msra.mxu0 %v64
    %346 = vmatprep.subr.mxu0 0.0
    %347 = vmatpush1.msra.mxu0 %v67
    %348 = vmatprep.subr.mxu0 0.0
    %349 = vmatpush1.msra.mxu0 %v70
    %350 = vmatprep.subr.mxu0 0.0
    %351 = vmatpush1.msra.mxu0 %v73
    %352 = vmatprep.subr.mxu0 0.0
    %353 = vmatpush1.msra.mxu0 %v76
    %354 = vmatprep.subr.mxu0 0.0
    %355 = vmatpush1.msra.mxu0 %v79
    %356 = vmatprep.subr.mxu0 0.0
    %357 = vmatpush1.msra.mxu0 %v82
    %358 = vmatprep.subr.mxu0 0.0
    %359 = vmatpush1.msra.mxu0 %v85
    %360 = vmatprep.subr.mxu0 0.0
    %361 = vmatpush1.msra.mxu0 %v88
    %362 = vmatprep.subr.mxu0 0.0
    %363 = vmatpush1.msra.mxu0 %v91
    %364 = vmatprep.subr.mxu0 0.0
    %365 = vmatpush1.msra.mxu0 %v94
    %366 = vmatprep.subr.mxu0 0.0
    %367 = vmatpush1.msra.mxu0 %v97
    %368 = vmatprep.subr.mxu0 0.0
    %369 = vmatpush1.msra.mxu0 %v100
    %370 = vmatprep.subr.mxu0 0.0
    %371 = vmatpush1.msra.mxu0 %v103
    %372 = vmatprep.subr.mxu0 0.0
    %373 = vmatpush1.msra.mxu0 0.0
    %374 = vmatprep.subr.mxu0 0.0
    %375 = vmatpush1.msra.mxu0 0.0
    %376 = vmatprep.subr.mxu0 0.0
    %377 = vmatpush1.msra.mxu0 0.0
    %378 = vmatprep.subr.mxu0 0.0
    %379 = vmatpush1.msra.mxu0 0.0
    %380 = vmatprep.subr.mxu0 0.0
    %381 = vmatpush1.msra.mxu0 0.0
    %382 = vmatprep.subr.mxu0 0.0
    %383 = vmatpush1.msra.mxu0 0.0
    %384 = vmatprep.subr.mxu0 0.0
    %385 = vmatpush1.msra.mxu0 0.0
    %386 = vmatprep.subr.mxu0 0.0
    %387 = vmatpush1.msra.mxu0 0.0
    %388 = vmatprep.subr.mxu0 0.0
    %389 = vmatpush1.msra.mxu0 0.0
    %390 = vmatprep.subr.mxu0 0.0
    %391 = vmatpush1.msra.mxu0 0.0
    %392 = vmatprep.subr.mxu0 0.0
    %393 = vmatpush1.msra.mxu0 0.0
    %394 = vmatprep.subr.mxu0 0.0
    %395 = vmatpush1.msra.mxu0 0.0
    %396 = vmatprep.subr.mxu0 0.0
    %397 = vmatpush1.msra.mxu0 0.0
    %398 = vmatprep.subr.mxu0 0.0
    %399 = vmatpush1.msra.mxu0 0.0
    %400 = vmatprep.subr.mxu0 0.0
    %401 = vmatpush1.msra.mxu0 0.0
    %402 = vmatprep.subr.mxu0 0.0
    %403 = vmatpush1.msra.mxu0 0.0
    %404 = vmatprep.mubr.f32.mxu0 0.0
    %405 = vmatmul.mubr.f32.gmra.mrb[0].mxu0 %v263
    %v406 = vpop.f32.mrb[0].mxu0
    %v407 = vadd.f32 0.0, %v406
    %v408 = vpop.f32.mrb[0].mxu0
    %409 = vdwg.mxu0
    %v410 = vadd.f32 %v266, %v336
    %v411 = vmul.f32 %v410, 0.5
    %v412 = vtanh.pop %v411
    %v413 = vadd.f32 %v412, 1.0
    %v414 = vmul.f32 %v413, 0.5
    %v415 = vadd.f32 %v267, %v338
    %v416 = vmul.f32 %v415, 0.5
    %v417 = vtanh.pop %v416
    %v418 = vadd.f32 %v417, 1.0
    %v419 = vmul.f32 %v418, 0.5
    %v420 = vmul.f32 %v414, %v407
    %v421 = vadd.f32 %v268, %v420
    %v422 = vtanh.pop %v421
    %v423 = vsub.f32 %v263, %v422
    %v424 = vmul.f32 %v419, %v423
    %v425 = vadd.f32 %v422, %v424
    %s426 = scalar_lea.vmem [#allocation2], 8
    %427 = vst [vmem:[%s426] sm:$0xff] %v425
    %s428 = scalar_lea.vmem [#allocation4], 48
    %v429 = vld [vmem:[%s428] sm:$0xff]
    %v430 = vld [vmem:[%s428 + $0x8] sm:$0xff]
    %v431 = vld [vmem:[%s428 + $0x10] sm:$0xff]
    %432 = vmatprep.subr.mxu0 %v57
    %433 = vmatpush1.msra.mxu0 %v56
    %434 = vmatprep.subr.mxu0 %v60
    %435 = vmatpush1.msra.mxu0 %v59
    %436 = vmatprep.subr.mxu0 %v63
    %437 = vmatpush1.msra.mxu0 %v62
    %438 = vmatprep.subr.mxu0 %v66
    %439 = vmatpush1.msra.mxu0 %v65
    %440 = vmatprep.subr.mxu0 %v69
    %441 = vmatpush1.msra.mxu0 %v68
    %442 = vmatprep.subr.mxu0 %v72
    %443 = vmatpush1.msra.mxu0 %v71
    %444 = vmatprep.subr.mxu0 %v75
    %445 = vmatpush1.msra.mxu0 %v74
    %446 = vmatprep.subr.mxu0 %v78
    %447 = vmatpush1.msra.mxu0 %v77
    %448 = vmatprep.subr.mxu0 %v81
    %449 = vmatpush1.msra.mxu0 %v80
    %450 = vmatprep.subr.mxu0 %v84
    %451 = vmatpush1.msra.mxu0 %v83
    %452 = vmatprep.subr.mxu0 %v87
    %453 = vmatpush1.msra.mxu0 %v86
    %454 = vmatprep.subr.mxu0 %v90
    %455 = vmatpush1.msra.mxu0 %v89
    %456 = vmatprep.subr.mxu0 %v93
    %457 = vmatpush1.msra.mxu0 %v92
    %458 = vmatprep.subr.mxu0 %v96
    %459 = vmatpush1.msra.mxu0 %v95
    %460 = vmatprep.subr.mxu0 %v99
    %461 = vmatpush1.msra.mxu0 %v98
    %462 = vmatprep.subr.mxu0 %v102
    %463 = vmatpush1.msra.mxu0 %v101
    %464 = vmatprep.subr.mxu0 0.0
    %465 = vmatpush1.msra.mxu0 0.0
    %466 = vmatprep.subr.mxu0 0.0
    %467 = vmatpush1.msra.mxu0 0.0
    %468 = vmatprep.subr.mxu0 0.0
    %469 = vmatpush1.msra.mxu0 0.0
    %470 = vmatprep.subr.mxu0 0.0
    %471 = vmatpush1.msra.mxu0 0.0
    %472 = vmatprep.subr.mxu0 0.0
    %473 = vmatpush1.msra.mxu0 0.0
    %474 = vmatprep.subr.mxu0 0.0
    %475 = vmatpush1.msra.mxu0 0.0
    %476 = vmatprep.subr.mxu0 0.0
    %477 = vmatpush1.msra.mxu0 0.0
    %478 = vmatprep.subr.mxu0 0.0
    %479 = vmatpush1.msra.mxu0 0.0
    %480 = vmatprep.subr.mxu0 0.0
    %481 = vmatpush1.msra.mxu0 0.0
    %482 = vmatprep.subr.mxu0 0.0
    %483 = vmatpush1.msra.mxu0 0.0
    %484 = vmatprep.subr.mxu0 0.0
    %485 = vmatpush1.msra.mxu0 0.0
    %486 = vmatprep.subr.mxu0 0.0
    %487 = vmatpush1.msra.mxu0 0.0
    %488 = vmatprep.subr.mxu0 0.0
    %489 = vmatpush1.msra.mxu0 0.0
    %490 = vmatprep.subr.mxu0 0.0
    %491 = vmatpush1.msra.mxu0 0.0
    %492 = vmatprep.subr.mxu0 0.0
    %493 = vmatpush1.msra.mxu0 0.0
    %494 = vmatprep.subr.mxu0 0.0
    %495 = vmatpush1.msra.mxu0 0.0
    %496 = vmatprep.mubr.f32.mxu0 0.0
    %497 = vmatmul.mubr.f32.gmra.mrb[0].mxu0 %v425
    %v498 = vpop.f32.mrb[0].mxu0
    %v499 = vadd.f32 0.0, %v498
    %v500 = vpop.f32.mrb[0].mxu0
    %v501 = vadd.f32 0.0, %v500
    %502 = vdwg.mxu0
    %503 = vmatprep.subr.mxu0 0.0
    %504 = vmatpush1.msra.mxu0 %v58
    %505 = vmatprep.subr.mxu0 0.0
    %506 = vmatpush1.msra.mxu0 %v61
    %507 = vmatprep.subr.mxu0 0.0
    %508 = vmatpush1.msra.mxu0 %v64
    %509 = vmatprep.subr.mxu0 0.0
    %510 = vmatpush1.msra.mxu0 %v67
    %511 = vmatprep.subr.mxu0 0.0
    %512 = vmatpush1.msra.mxu0 %v70
    %513 = vmatprep.subr.mxu0 0.0
    %514 = vmatpush1.msra.mxu0 %v73
    %515 = vmatprep.subr.mxu0 0.0
    %516 = vmatpush1.msra.mxu0 %v76
    %517 = vmatprep.subr.mxu0 0.0
    %518 = vmatpush1.msra.mxu0 %v79
    %519 = vmatprep.subr.mxu0 0.0
    %520 = vmatpush1.msra.mxu0 %v82
    %521 = vmatprep.subr.mxu0 0.0
    %522 = vmatpush1.msra.mxu0 %v85
    %523 = vmatprep.subr.mxu0 0.0
    %524 = vmatpush1.msra.mxu0 %v88
    %525 = vmatprep.subr.mxu0 0.0
    %526 = vmatpush1.msra.mxu0 %v91
    %527 = vmatprep.subr.mxu0 0.0
    %528 = vmatpush1.msra.mxu0 %v94
    %529 = vmatprep.subr.mxu0 0.0
    %530 = vmatpush1.msra.mxu0 %v97
    %531 = vmatprep.subr.mxu0 0.0
    %532 = vmatpush1.msra.mxu0 %v100
    %533 = vmatprep.subr.mxu0 0.0
    %534 = vmatpush1.msra.mxu0 %v103
    %535 = vmatprep.subr.mxu0 0.0
    %536 = vmatpush1.msra.mxu0 0.0
    %537 = vmatprep.subr.mxu0 0.0
    %538 = vmatpush1.msra.mxu0 0.0
    %539 = vmatprep.subr.mxu0 0.0
    %540 = vmatpush1.msra.mxu0 0.0
    %541 = vmatprep.subr.mxu0 0.0
    %542 = vmatpush1.msra.mxu0 0.0
    %543 = vmatprep.subr.mxu0 0.0
    %544 = vmatpush1.msra.mxu0 0.0
    %545 = vmatprep.subr.mxu0 0.0
    %546 = vmatpush1.msra.mxu0 0.0
    %547 = vmatprep.subr.mxu0 0.0
    %548 = vmatpush1.msra.mxu0 0.0
    %549 = vmatprep.subr.mxu0 0.0
    %550 = vmatpush1.msra.mxu0 0.0
    %551 = vmatprep.subr.mxu0 0.0
    %552 = vmatpush1.msra.mxu0 0.0
    %553 = vmatprep.subr.mxu0 0.0
    %554 = vmatpush1.msra.mxu0 0.0
    %555 = vmatprep.subr.mxu0 0.0
    %556 = vmatpush1.msra.mxu0 0.0
    %557 = vmatprep.subr.mxu0 0.0
    %558 = vmatpush1.msra.mxu0 0.0
    %559 = vmatprep.subr.mxu0 0.0
    %560 = vmatpush1.msra.mxu0 0.0
    %561 = vmatprep.subr.mxu0 0.0
    %562 = vmatpush1.msra.mxu0 0.0
    %563 = vmatprep.subr.mxu0 0.0
    %564 = vmatpush1.msra.mxu0 0.0
    %565 = vmatprep.subr.mxu0 0.0
    %566 = vmatpush1.msra.mxu0 0.0
    %567 = vmatprep.mubr.f32.mxu0 0.0
    %568 = vmatmul.mubr.f32.gmra.mrb[0].mxu0 %v425
    %v569 = vpop.f32.mrb[0].mxu0
    %v570 = vadd.f32 0.0, %v569
    %v571 = vpop.f32.mrb[0].mxu0
    %572 = vdwg.mxu0
    %v573 = vadd.f32 %v429, %v499
    %v574 = vmul.f32 %v573, 0.5
    %v575 = vtanh.pop %v574
    %v576 = vadd.f32 %v575, 1.0
    %v577 = vmul.f32 %v576, 0.5
    %v578 = vadd.f32 %v430, %v501
    %v579 = vmul.f32 %v578, 0.5
    %v580 = vtanh.pop %v579
    %v581 = vadd.f32 %v580, 1.0
    %v582 = vmul.f32 %v581, 0.5
    %v583 = vmul.f32 %v577, %v570
    %v584 = vadd.f32 %v431, %v583
    %v585 = vtanh.pop %v584
    %v586 = vsub.f32 %v425, %v585
    %v587 = vmul.f32 %v582, %v586
    %v588 = vadd.f32 %v585, %v587
    %s589 = scalar_lea.vmem [#allocation2], 16
    %590 = vst [vmem:[%s589] sm:$0xff] %v588
    %s591 = scalar_lea.vmem [#allocation4], 72
    %v592 = vld [vmem:[%s591] sm:$0xff]
    %v593 = vld [vmem:[%s591 + $0x8] sm:$0xff]
    %v594 = vld [vmem:[%s591 + $0x10] sm:$0xff]
    %595 = vmatprep.subr.mxu0 %v57
    %596 = vmatpush1.msra.mxu0 %v56
    %597 = vmatprep.subr.mxu0 %v60
    %598 = vmatpush1.msra.mxu0 %v59
    %599 = vmatprep.subr.mxu0 %v63
    %600 = vmatpush1.msra.mxu0 %v62
    %601 = vmatprep.subr.mxu0 %v66
    %602 = vmatpush1.msra.mxu0 %v65
    %603 = vmatprep.subr.mxu0 %v69
    %604 = vmatpush1.msra.mxu0 %v68
    %605 = vmatprep.subr.mxu0 %v72
    %606 = vmatpush1.msra.mxu0 %v71
    %607 = vmatprep.subr.mxu0 %v75
    %608 = vmatpush1.msra.mxu0 %v74
    %609 = vmatprep.subr.mxu0 %v78
    %610 = vmatpush1.msra.mxu0 %v77
    %611 = vmatprep.subr.mxu0 %v81
    %612 = vmatpush1.msra.mxu0 %v80
    %613 = vmatprep.subr.mxu0 %v84
    %614 = vmatpush1.msra.mxu0 %v83
    %615 = vmatprep.subr.mxu0 %v87
    %616 = vmatpush1.msra.mxu0 %v86
    %617 = vmatprep.subr.mxu0 %v90
    %618 = vmatpush1.msra.mxu0 %v89
    %619 = vmatprep.subr.mxu0 %v93
    %620 = vmatpush1.msra.mxu0 %v92
    %621 = vmatprep.subr.mxu0 %v96
    %622 = vmatpush1.msra.mxu0 %v95
    %623 = vmatprep.subr.mxu0 %v99
    %624 = vmatpush1.msra.mxu0 %v98
    %625 = vmatprep.subr.mxu0 %v102
    %626 = vmatpush1.msra.mxu0 %v101
    %627 = vmatprep.subr.mxu0 0.0
    %628 = vmatpush1.msra.mxu0 0.0
    %629 = vmatprep.subr.mxu0 0.0
    %630 = vmatpush1.msra.mxu0 0.0
    %631 = vmatprep.subr.mxu0 0.0
    %632 = vmatpush1.msra.mxu0 0.0
    %633 = vmatprep.subr.mxu0 0.0
    %634 = vmatpush1.msra.mxu0 0.0
    %635 = vmatprep.subr.mxu0 0.0
    %636 = vmatpush1.msra.mxu0 0.0
    %637 = vmatprep.subr.mxu0 0.0
    %638 = vmatpush1.msra.mxu0 0.0
    %639 = vmatprep.subr.mxu0 0.0
    %640 = vmatpush1.msra.mxu0 0.0
    %641 = vmatprep.subr.mxu0 0.0
    %642 = vmatpush1.msra.mxu0 0.0
    %643 = vmatprep.subr.mxu0 0.0
    %644 = vmatpush1.msra.mxu0 0.0
    %645 = vmatprep.subr.mxu0 0.0
    %646 = vmatpush1.msra.mxu0 0.0
    %647 = vmatprep.subr.mxu0 0.0
    %648 = vmatpush1.msra.mxu0 0.0
    %649 = vmatprep.subr.mxu0 0.0
    %650 = vmatpush1.msra.mxu0 0.0
    %651 = vmatprep.subr.mxu0 0.0
    %652 = vmatpush1.msra.mxu0 0.0
    %653 = vmatprep.subr.mxu0 0.0
    %654 = vmatpush1.msra.mxu0 0.0
    %655 = vmatprep.subr.mxu0 0.0
    %656 = vmatpush1.msra.mxu0 0.0
    %657 = vmatprep.subr.mxu0 0.0
    %658 = vmatpush1.msra.mxu0 0.0
    %659 = vmatprep.mubr.f32.mxu0 0.0
    %660 = vmatmul.mubr.f32.gmra.mrb[0].mxu0 %v588
    %v661 = vpop.f32.mrb[0].mxu0
    %v662 = vadd.f32 0.0, %v661
    %v663 = vpop.f32.mrb[0].mxu0
    %v664 = vadd.f32 0.0, %v663
    %665 = vdwg.mxu0
    %666 = vmatprep.subr.mxu0 0.0
    %667 = vmatpush1.msra.mxu0 %v58
    %668 = vmatprep.subr.mxu0 0.0
    %669 = vmatpush1.msra.mxu0 %v61
    %670 = vmatprep.subr.mxu0 0.0
    %671 = vmatpush1.msra.mxu0 %v64
    %672 = vmatprep.subr.mxu0 0.0
    %673 = vmatpush1.msra.mxu0 %v67
    %674 = vmatprep.subr.mxu0 0.0
    %675 = vmatpush1.msra.mxu0 %v70
    %676 = vmatprep.subr.mxu0 0.0
    %677 = vmatpush1.msra.mxu0 %v73
    %678 = vmatprep.subr.mxu0 0.0
    %679 = vmatpush1.msra.mxu0 %v76
    %680 = vmatprep.subr.mxu0 0.0
    %681 = vmatpush1.msra.mxu0 %v79
    %682 = vmatprep.subr.mxu0 0.0
    %683 = vmatpush1.msra.mxu0 %v82
    %684 = vmatprep.subr.mxu0 0.0
    %685 = vmatpush1.msra.mxu0 %v85
    %686 = vmatprep.subr.mxu0 0.0
    %687 = vmatpush1.msra.mxu0 %v88
    %688 = vmatprep.subr.mxu0 0.0
    %689 = vmatpush1.msra.mxu0 %v91
    %690 = vmatprep.subr.mxu0 0.0
    %691 = vmatpush1.msra.mxu0 %v94
    %692 = vmatprep.subr.mxu0 0.0
    %693 = vmatpush1.msra.mxu0 %v97
    %694 = vmatprep.subr.mxu0 0.0
    %695 = vmatpush1.msra.mxu0 %v100
    %696 = vmatprep.subr.mxu0 0.0
    %697 = vmatpush1.msra.mxu0 %v103
    %698 = vmatprep.subr.mxu0 0.0
    %699 = vmatpush1.msra.mxu0 0.0
    %700 = vmatprep.subr.mxu0 0.0
    %701 = vmatpush1.msra.mxu0 0.0
    %702 = vmatprep.subr.mxu0 0.0
    %703 = vmatpush1.msra.mxu0 0.0
    %704 = vmatprep.subr.mxu0 0.0
    %705 = vmatpush1.msra.mxu0 0.0
    %706 = vmatprep.subr.mxu0 0.0
    %707 = vmatpush1.msra.mxu0 0.0
    %708 = vmatprep.subr.mxu0 0.0
    %709 = vmatpush1.msra.mxu0 0.0
    %710 = vmatprep.subr.mxu0 0.0
    %711 = vmatpush1.msra.mxu0 0.0
    %712 = vmatprep.subr.mxu0 0.0
    %713 = vmatpush1.msra.mxu0 0.0
    %714 = vmatprep.subr.mxu0 0.0
    %715 = vmatpush1.msra.mxu0 0.0
    %716 = vmatprep.subr.mxu0 0.0
    %717 = vmatpush1.msra.mxu0 0.0
    %718 = vmatprep.subr.mxu0 0.0
    %719 = vmatpush1.msra.mxu0 0.0
    %720 = vmatprep.subr.mxu0 0.0
    %721 = vmatpush1.msra.mxu0 0.0
    %722 = vmatprep.subr.mxu0 0.0
    %723 = vmatpush1.msra.mxu0 0.0
    %724 = vmatprep.subr.mxu0 0.0
    %725 = vmatpush1.msra.mxu0 0.0
    %726 = vmatprep.subr.mxu0 0.0
    %727 = vmatpush1.msra.mxu0 0.0
    %728 = vmatprep.subr.mxu0 0.0
    %729 = vmatpush1.msra.mxu0 0.0
    %730 = vmatprep.mubr.f32.mxu0 0.0
    %731 = vmatmul.mubr.f32.gmra.mrb[0].mxu0 %v588
    %v732 = vpop.f32.mrb[0].mxu0
    %v733 = vadd.f32 0.0, %v732
    %v734 = vpop.f32.mrb[0].mxu0
    %735 = vdwg.mxu0
    %v736 = vadd.f32 %v592, %v662
    %v737 = vmul.f32 %v736, 0.5
    %v738 = vtanh.pop %v737
    %v739 = vadd.f32 %v738, 1.0
    %v740 = vmul.f32 %v739, 0.5
    %v741 = vadd.f32 %v593, %v664
    %v742 = vmul.f32 %v741, 0.5
    %v743 = vtanh.pop %v742
    %v744 = vadd.f32 %v743, 1.0
    %v745 = vmul.f32 %v744, 0.5
    %v746 = vmul.f32 %v740, %v733
    %v747 = vadd.f32 %v594, %v746
    %v748 = vtanh.pop %v747
    %v749 = vsub.f32 %v588, %v748
    %v750 = vmul.f32 %v745, %v749
    %v751 = vadd.f32 %v748, %v750
    %s752 = scalar_lea.vmem [#allocation2], 24
    %753 = vst [vmem:[%s752] sm:$0xff] %v751
    %s754 = scalar_lea.vmem [#allocation4], 96
    %v755 = vld [vmem:[%s754] sm:$0xff]
    %v756 = vld [vmem:[%s754 + $0x8] sm:$0xff]
    %v757 = vld [vmem:[%s754 + $0x10] sm:$0xff]
    %758 = vmatprep.subr.mxu0 %v57
    %759 = vmatpush1.msra.mxu0 %v56
    %760 = vmatprep.subr.mxu0 %v60
    %761 = vmatpush1.msra.mxu0 %v59
    %762 = vmatprep.subr.mxu0 %v63
    %763 = vmatpush1.msra.mxu0 %v62
    %764 = vmatprep.subr.mxu0 %v66
    %765 = vmatpush1.msra.mxu0 %v65
    %766 = vmatprep.subr.mxu0 %v69
    %767 = vmatpush1.msra.mxu0 %v68
    %768 = vmatprep.subr.mxu0 %v72
    %769 = vmatpush1.msra.mxu0 %v71
    %770 = vmatprep.subr.mxu0 %v75
    %771 = vmatpush1.msra.mxu0 %v74
    %772 = vmatprep.subr.mxu0 %v78
    %773 = vmatpush1.msra.mxu0 %v77
    %774 = vmatprep.subr.mxu0 %v81
    %775 = vmatpush1.msra.mxu0 %v80
    %776 = vmatprep.subr.mxu0 %v84
    %777 = vmatpush1.msra.mxu0 %v83
    %778 = vmatprep.subr.mxu0 %v87
    %779 = vmatpush1.msra.mxu0 %v86
    %780 = vmatprep.subr.mxu0 %v90
    %781 = vmatpush1.msra.mxu0 %v89
    %782 = vmatprep.subr.mxu0 %v93
    %783 = vmatpush1.msra.mxu0 %v92
    %784 = vmatprep.subr.mxu0 %v96
    %785 = vmatpush1.msra.mxu0 %v95
    %786 = vmatprep.subr.mxu0 %v99
    %787 = vmatpush1.msra.mxu0 %v98
    %788 = vmatprep.subr.mxu0 %v102
    %789 = vmatpush1.msra.mxu0 %v101
    %790 = vmatprep.subr.mxu0 0.0
    %791 = vmatpush1.msra.mxu0 0.0
    %792 = vmatprep.subr.mxu0 0.0
    %793 = vmatpush1.msra.mxu0 0.0
    %794 = vmatprep.subr.mxu0 0.0
    %795 = vmatpush1.msra.mxu0 0.0
    %796 = vmatprep.subr.mxu0 0.0
    %797 = vmatpush1.msra.mxu0 0.0
    %798 = vmatprep.subr.mxu0 0.0
    %799 = vmatpush1.msra.mxu0 0.0
    %800 = vmatprep.subr.mxu0 0.0
    %801 = vmatpush1.msra.mxu0 0.0
    %802 = vmatprep.subr.mxu0 0.0
    %803 = vmatpush1.msra.mxu0 0.0
    %804 = vmatprep.subr.mxu0 0.0
    %805 = vmatpush1.msra.mxu0 0.0
    %806 = vmatprep.subr.mxu0 0.0
    %807 = vmatpush1.msra.mxu0 0.0
    %808 = vmatprep.subr.mxu0 0.0
    %809 = vmatpush1.msra.mxu0 0.0
    %810 = vmatprep.subr.mxu0 0.0
    %811 = vmatpush1.msra.mxu0 0.0
    %812 = vmatprep.subr.mxu0 0.0
    %813 = vmatpush1.msra.mxu0 0.0
    %814 = vmatprep.subr.mxu0 0.0
    %815 = vmatpush1.msra.mxu0 0.0
    %816 = vmatprep.subr.mxu0 0.0
    %817 = vmatpush1.msra.mxu0 0.0
    %818 = vmatprep.subr.mxu0 0.0
    %819 = vmatpush1.msra.mxu0 0.0
    %820 = vmatprep.subr.mxu0 0.0
    %821 = vmatpush1.msra.mxu0 0.0
    %822 = vmatprep.mubr.f32.mxu0 0.0
    %823 = vmatmul.mubr.f32.gmra.mrb[0].mxu0 %v751
    %v824 = vpop.f32.mrb[0].mxu0
    %v825 = vadd.f32 0.0, %v824
    %v826 = vpop.f32.mrb[0].mxu0
    %v827 = vadd.f32 0.0, %v826
    %828 = vdwg.mxu0
    %829 = vmatprep.subr.mxu0 0.0
    %830 = vmatpush1.msra.mxu0 %v58
    %831 = vmatprep.subr.mxu0 0.0
    %832 = vmatpush1.msra.mxu0 %v61
    %833 = vmatprep.subr.mxu0 0.0
    %834 = vmatpush1.msra.mxu0 %v64
    %835 = vmatprep.subr.mxu0 0.0
    %836 = vmatpush1.msra.mxu0 %v67
    %837 = vmatprep.subr.mxu0 0.0
    %838 = vmatpush1.msra.mxu0 %v70
    %839 = vmatprep.subr.mxu0 0.0
    %840 = vmatpush1.msra.mxu0 %v73
    %841 = vmatprep.subr.mxu0 0.0
    %842 = vmatpush1.msra.mxu0 %v76
    %843 = vmatprep.subr.mxu0 0.0
    %844 = vmatpush1.msra.mxu0 %v79
    %845 = vmatprep.subr.mxu0 0.0
    %846 = vmatpush1.msra.mxu0 %v82
    %847 = vmatprep.subr.mxu0 0.0
    %848 = vmatpush1.msra.mxu0 %v85
    %849 = vmatprep.subr.mxu0 0.0
    %850 = vmatpush1.msra.mxu0 %v88
    %851 = vmatprep.subr.mxu0 0.0
    %852 = vmatpush1.msra.mxu0 %v91
    %853 = vmatprep.subr.mxu0 0.0
    %854 = vmatpush1.msra.mxu0 %v94
    %855 = vmatprep.subr.mxu0 0.0
    %856 = vmatpush1.msra.mxu0 %v97
    %857 = vmatprep.subr.mxu0 0.0
    %858 = vmatpush1.msra.mxu0 %v100
    %859 = vmatprep.subr.mxu0 0.0
    %860 = vmatpush1.msra.mxu0 %v103
    %861 = vmatprep.subr.mxu0 0.0
    %862 = vmatpush1.msra.mxu0 0.0
    %863 = vmatprep.subr.mxu0 0.0
    %864 = vmatpush1.msra.mxu0 0.0
    %865 = vmatprep.subr.mxu0 0.0
    %866 = vmatpush1.msra.mxu0 0.0
    %867 = vmatprep.subr.mxu0 0.0
    %868 = vmatpush1.msra.mxu0 0.0
    %869 = vmatprep.subr.mxu0 0.0
    %870 = vmatpush1.msra.mxu0 0.0
    %871 = vmatprep.subr.mxu0 0.0
    %872 = vmatpush1.msra.mxu0 0.0
    %873 = vmatprep.subr.mxu0 0.0
    %874 = vmatpush1.msra.mxu0 0.0
    %875 = vmatprep.subr.mxu0 0.0
    %876 = vmatpush1.msra.mxu0 0.0
    %877 = vmatprep.subr.mxu0 0.0
    %878 = vmatpush1.msra.mxu0 0.0
    %879 = vmatprep.subr.mxu0 0.0
    %880 = vmatpush1.msra.mxu0 0.0
    %881 = vmatprep.subr.mxu0 0.0
    %882 = vmatpush1.msra.mxu0 0.0
    %883 = vmatprep.subr.mxu0 0.0
    %884 = vmatpush1.msra.mxu0 0.0
    %885 = vmatprep.subr.mxu0 0.0
    %886 = vmatpush1.msra.mxu0 0.0
    %887 = vmatprep.subr.mxu0 0.0
    %888 = vmatpush1.msra.mxu0 0.0
    %889 = vmatprep.subr.mxu0 0.0
    %890 = vmatpush1.msra.mxu0 0.0
    %891 = vmatprep.subr.mxu0 0.0
    %892 = vmatpush1.msra.mxu0 0.0
    %893 = vmatprep.mubr.f32.mxu0 0.0
    %894 = vmatmul.mubr.f32.gmra.mrb[0].mxu0 %v751
    %v895 = vpop.f32.mrb[0].mxu0
    %v896 = vadd.f32 0.0, %v895
    %v897 = vpop.f32.mrb[0].mxu0
    %898 = vdwg.mxu0
    %v899 = vadd.f32 %v755, %v825
    %v900 = vmul.f32 %v899, 0.5
    %v901 = vtanh.pop %v900
    %v902 = vadd.f32 %v901, 1.0
    %v903 = vmul.f32 %v902, 0.5
    %v904 = vadd.f32 %v756, %v827
    %v905 = vmul.f32 %v904, 0.5
    %v906 = vtanh.pop %v905
    %v907 = vadd.f32 %v906, 1.0
    %v908 = vmul.f32 %v907, 0.5
    %v909 = vmul.f32 %v903, %v896
    %v910 = vadd.f32 %v757, %v909
    %v911 = vtanh.pop %v910
    %v912 = vsub.f32 %v751, %v911
    %v913 = vmul.f32 %v908, %v912
    %v914 = vadd.f32 %v911, %v913
    %s915 = scalar_lea.vmem [#allocation2], 32
    %916 = vst [vmem:[%s915] sm:$0xff] %v914
    %s917 = scalar_lea.vmem [#allocation4], 120
    %v918 = vld [vmem:[%s917] sm:$0xff]
    %v919 = vld [vmem:[%s917 + $0x8] sm:$0xff]
    %v920 = vld [vmem:[%s917 + $0x10] sm:$0xff]
    %921 = vmatprep.subr.mxu0 %v57
    %922 = vmatpush1.msra.mxu0 %v56
    %923 = vmatprep.subr.mxu0 %v60
    %924 = vmatpush1.msra.mxu0 %v59
    %925 = vmatprep.subr.mxu0 %v63
    %926 = vmatpush1.msra.mxu0 %v62
    %927 = vmatprep.subr.mxu0 %v66
    %928 = vmatpush1.msra.mxu0 %v65
    %929 = vmatprep.subr.mxu0 %v69
    %930 = vmatpush1.msra.mxu0 %v68
    %931 = vmatprep.subr.mxu0 %v72
    %932 = vmatpush1.msra.mxu0 %v71
    %933 = vmatprep.subr.mxu0 %v75
    %934 = vmatpush1.msra.mxu0 %v74
    %935 = vmatprep.subr.mxu0 %v78
    %936 = vmatpush1.msra.mxu0 %v77
    %937 = vmatprep.subr.mxu0 %v81
    %938 = vmatpush1.msra.mxu0 %v80
    %939 = vmatprep.subr.mxu0 %v84
    %940 = vmatpush1.msra.mxu0 %v83
    %941 = vmatprep.subr.mxu0 %v87
    %942 = vmatpush1.msra.mxu0 %v86
    %943 = vmatprep.subr.mxu0 %v90
    %944 = vmatpush1.msra.mxu0 %v89
    %945 = vmatprep.subr.mxu0 %v93
    %946 = vmatpush1.msra.mxu0 %v92
    %947 = vmatprep.subr.mxu0 %v96
    %948 = vmatpush1.msra.mxu0 %v95
    %949 = vmatprep.subr.mxu0 %v99
    %950 = vmatpush1.msra.mxu0 %v98
    %951 = vmatprep.subr.mxu0 %v102
    %952 = vmatpush1.msra.mxu0 %v101
    %953 = vmatprep.subr.mxu0 0.0
    %954 = vmatpush1.msra.mxu0 0.0
    %955 = vmatprep.subr.mxu0 0.0
    %956 = vmatpush1.msra.mxu0 0.0
    %957 = vmatprep.subr.mxu0 0.0
    %958 = vmatpush1.msra.mxu0 0.0
    %959 = vmatprep.subr.mxu0 0.0
    %960 = vmatpush1.msra.mxu0 0.0
    %961 = vmatprep.subr.mxu0 0.0
    %962 = vmatpush1.msra.mxu0 0.0
    %963 = vmatprep.subr.mxu0 0.0
    %964 = vmatpush1.msra.mxu0 0.0
    %965 = vmatprep.subr.mxu0 0.0
    %966 = vmatpush1.msra.mxu0 0.0
    %967 = vmatprep.subr.mxu0 0.0
    %968 = vmatpush1.msra.mxu0 0.0
    %969 = vmatprep.subr.mxu0 0.0
    %970 = vmatpush1.msra.mxu0 0.0
    %971 = vmatprep.subr.mxu0 0.0
    %972 = vmatpush1.msra.mxu0 0.0
    %973 = vmatprep.subr.mxu0 0.0
    %974 = vmatpush1.msra.mxu0 0.0
    %975 = vmatprep.subr.mxu0 0.0
    %976 = vmatpush1.msra.mxu0 0.0
    %977 = vmatprep.subr.mxu0 0.0
    %978 = vmatpush1.msra.mxu0 0.0
    %979 = vmatprep.subr.mxu0 0.0
    %980 = vmatpush1.msra.mxu0 0.0
    %981 = vmatprep.subr.mxu0 0.0
    %982 = vmatpush1.msra.mxu0 0.0
    %983 = vmatprep.subr.mxu0 0.0
    %984 = vmatpush1.msra.mxu0 0.0
    %985 = vmatprep.mubr.f32.mxu0 0.0
    %986 = vmatmul.mubr.f32.gmra.mrb[0].mxu0 %v914
    %v987 = vpop.f32.mrb[0].mxu0
    %v988 = vadd.f32 0.0, %v987
    %v989 = vpop.f32.mrb[0].mxu0
    %v990 = vadd.f32 0.0, %v989
    %991 = vdwg.mxu0
    %992 = vmatprep.subr.mxu0 0.0
    %993 = vmatpush1.msra.mxu0 %v58
    %994 = vmatprep.subr.mxu0 0.0
    %995 = vmatpush1.msra.mxu0 %v61
    %996 = vmatprep.subr.mxu0 0.0
    %997 = vmatpush1.msra.mxu0 %v64
    %998 = vmatprep.subr.mxu0 0.0
    %999 = vmatpush1.msra.mxu0 %v67
    %1000 = vmatprep.subr.mxu0 0.0
    %1001 = vmatpush1.msra.mxu0 %v70
    %1002 = vmatprep.subr.mxu0 0.0
    %1003 = vmatpush1.msra.mxu0 %v73
    %1004 = vmatprep.subr.mxu0 0.0
    %1005 = vmatpush1.msra.mxu0 %v76
    %1006 = vmatprep.subr.mxu0 0.0
    %1007 = vmatpush1.msra.mxu0 %v79
    %1008 = vmatprep.subr.mxu0 0.0
    %1009 = vmatpush1.msra.mxu0 %v82
    %1010 = vmatprep.subr.mxu0 0.0
    %1011 = vmatpush1.msra.mxu0 %v85
    %1012 = vmatprep.subr.mxu0 0.0
    %1013 = vmatpush1.msra.mxu0 %v88
    %1014 = vmatprep.subr.mxu0 0.0
    %1015 = vmatpush1.msra.mxu0 %v91
    %1016 = vmatprep.subr.mxu0 0.0
    %1017 = vmatpush1.msra.mxu0 %v94
    %1018 = vmatprep.subr.mxu0 0.0
    %1019 = vmatpush1.msra.mxu0 %v97
    %1020 = vmatprep.subr.mxu0 0.0
    %1021 = vmatpush1.msra.mxu0 %v100
    %1022 = vmatprep.subr.mxu0 0.0
    %1023 = vmatpush1.msra.mxu0 %v103
    %1024 = vmatprep.subr.mxu0 0.0
    %1025 = vmatpush1.msra.mxu0 0.0
    %1026 = vmatprep.subr.mxu0 0.0
    %1027 = vmatpush1.msra.mxu0 0.0
    %1028 = vmatprep.subr.mxu0 0.0
    %1029 = vmatpush1.msra.mxu0 0.0
    %1030 = vmatprep.subr.mxu0 0.0
    %1031 = vmatpush1.msra.mxu0 0.0
    %1032 = vmatprep.subr.mxu0 0.0
    %1033 = vmatpush1.msra.mxu0 0.0
    %1034 = vmatprep.subr.mxu0 0.0
    %1035 = vmatpush1.msra.mxu0 0.0
    %1036 = vmatprep.subr.mxu0 0.0
    %1037 = vmatpush1.msra.mxu0 0.0
    %1038 = vmatprep.subr.mxu0 0.0
    %1039 = vmatpush1.msra.mxu0 0.0
    %1040 = vmatprep.subr.mxu0 0.0
    %1041 = vmatpush1.msra.mxu0 0.0
    %1042 = vmatprep.subr.mxu0 0.0
    %1043 = vmatpush1.msra.mxu0 0.0
    %1044 = vmatprep.subr.mxu0 0.0
    %1045 = vmatpush1.msra.mxu0 0.0
    %1046 = vmatprep.subr.mxu0 0.0
    %1047 = vmatpush1.msra.mxu0 0.0
    %1048 = vmatprep.subr.mxu0 0.0
    %1049 = vmatpush1.msra.mxu0 0.0
    %1050 = vmatprep.subr.mxu0 0.0
    %1051 = vmatpush1.msra.mxu0 0.0
    %1052 = vmatprep.subr.mxu0 0.0
    %1053 = vmatpush1.msra.mxu0 0.0
    %1054 = vmatprep.subr.mxu0 0.0
    %1055 = vmatpush1.msra.mxu0 0.0
    %1056 = vmatprep.mubr.f32.mxu0 0.0
    %1057 = vmatmul.mubr.f32.gmra.mrb[0].mxu0 %v914
    %v1058 = vpop.f32.mrb[0].mxu0
    %v1059 = vadd.f32 0.0, %v1058
    %v1060 = vpop.f32.mrb[0].mxu0
    %1061 = vdwg.mxu0
    %v1062 = vadd.f32 %v918, %v988
    %v1063 = vmul.f32 %v1062, 0.5
    %v1064 = vtanh.pop %v1063
    %v1065 = vadd.f32 %v1064, 1.0
    %v1066 = vmul.f32 %v1065, 0.5
    %v1067 = vadd.f32 %v919, %v990
    %v1068 = vmul.f32 %v1067, 0.5
    %v1069 = vtanh.pop %v1068
    %v1070 = vadd.f32 %v1069, 1.0
    %v1071 = vmul.f32 %v1070, 0.5
    %v1072 = vmul.f32 %v1066, %v1059
    %v1073 = vadd.f32 %v920, %v1072
    %v1074 = vtanh.pop %v1073
    %v1075 = vsub.f32 %v914, %v1074
    %v1076 = vmul.f32 %v1071, %v1075
    %v1077 = vadd.f32 %v1074, %v1076
    %s1078 = scalar_lea.vmem [#allocation2], 40
    %1079 = vst [vmem:[%s1078] sm:$0xff] %v1077
    %s1080 = scalar_lea.vmem [#allocation4], 144
    %v1081 = vld [vmem:[%s1080] sm:$0xff]
    %v1082 = vld [vmem:[%s1080 + $0x8] sm:$0xff]
    %v1083 = vld [vmem:[%s1080 + $0x10] sm:$0xff]
    %1084 = vmatprep.subr.mxu0 %v57
    %1085 = vmatpush1.msra.mxu0 %v56
    %1086 = vmatprep.subr.mxu0 %v60
    %1087 = vmatpush1.msra.mxu0 %v59
    %1088 = vmatprep.subr.mxu0 %v63
    %1089 = vmatpush1.msra.mxu0 %v62
    %1090 = vmatprep.subr.mxu0 %v66
    %1091 = vmatpush1.msra.mxu0 %v65
    %1092 = vmatprep.subr.mxu0 %v69
    %1093 = vmatpush1.msra.mxu0 %v68
    %1094 = vmatprep.subr.mxu0 %v72
    %1095 = vmatpush1.msra.mxu0 %v71
    %1096 = vmatprep.subr.mxu0 %v75
    %1097 = vmatpush1.msra.mxu0 %v74
    %1098 = vmatprep.subr.mxu0 %v78
    %1099 = vmatpush1.msra.mxu0 %v77
    %1100 = vmatprep.subr.mxu0 %v81
    %1101 = vmatpush1.msra.mxu0 %v80
    %1102 = vmatprep.subr.mxu0 %v84
    %1103 = vmatpush1.msra.mxu0 %v83
    %1104 = vmatprep.subr.mxu0 %v87
    %1105 = vmatpush1.msra.mxu0 %v86
    %1106 = vmatprep.subr.mxu0 %v90
    %1107 = vmatpush1.msra.mxu0 %v89
    %1108 = vmatprep.subr.mxu0 %v93
    %1109 = vmatpush1.msra.mxu0 %v92
    %1110 = vmatprep.subr.mxu0 %v96
    %1111 = vmatpush1.msra.mxu0 %v95
    %1112 = vmatprep.subr.mxu0 %v99
    %1113 = vmatpush1.msra.mxu0 %v98
    %1114 = vmatprep.subr.mxu0 %v102
    %1115 = vmatpush1.msra.mxu0 %v101
    %1116 = vmatprep.subr.mxu0 0.0
    %1117 = vmatpush1.msra.mxu0 0.0
    %1118 = vmatprep.subr.mxu0 0.0
    %1119 = vmatpush1.msra.mxu0 0.0
    %1120 = vmatprep.subr.mxu0 0.0
    %1121 = vmatpush1.msra.mxu0 0.0
    %1122 = vmatprep.subr.mxu0 0.0
    %1123 = vmatpush1.msra.mxu0 0.0
    %1124 = vmatprep.subr.mxu0 0.0
    %1125 = vmatpush1.msra.mxu0 0.0
    %1126 = vmatprep.subr.mxu0 0.0
    %1127 = vmatpush1.msra.mxu0 0.0
    %1128 = vmatprep.subr.mxu0 0.0
    %1129 = vmatpush1.msra.mxu0 0.0
    %1130 = vmatprep.subr.mxu0 0.0
    %1131 = vmatpush1.msra.mxu0 0.0
    %1132 = vmatprep.subr.mxu0 0.0
    %1133 = vmatpush1.msra.mxu0 0.0
    %1134 = vmatprep.subr.mxu0 0.0
    %1135 = vmatpush1.msra.mxu0 0.0
    %1136 = vmatprep.subr.mxu0 0.0
    %1137 = vmatpush1.msra.mxu0 0.0
    %1138 = vmatprep.subr.mxu0 0.0
    %1139 = vmatpush1.msra.mxu0 0.0
    %1140 = vmatprep.subr.mxu0 0.0
    %1141 = vmatpush1.msra.mxu0 0.0
    %1142 = vmatprep.subr.mxu0 0.0
    %1143 = vmatpush1.msra.mxu0 0.0
    %1144 = vmatprep.subr.mxu0 0.0
    %1145 = vmatpush1.msra.mxu0 0.0
    %1146 = vmatprep.subr.mxu0 0.0
    %1147 = vmatpush1.msra.mxu0 0.0
    %1148 = vmatprep.mubr.f32.mxu0 0.0
    %1149 = vmatmul.mubr.f32.gmra.mrb[0].mxu0 %v1077
    %v1150 = vpop.f32.mrb[0].mxu0
    %v1151 = vadd.f32 0.0, %v1150
    %v1152 = vpop.f32.mrb[0].mxu0
    %v1153 = vadd.f32 0.0, %v1152
    %1154 = vdwg.mxu0
    %1155 = vmatprep.subr.mxu0 0.0
    %1156 = vmatpush1.msra.mxu0 %v58
    %1157 = vmatprep.subr.mxu0 0.0
    %1158 = vmatpush1.msra.mxu0 %v61
    %1159 = vmatprep.subr.mxu0 0.0
    %1160 = vmatpush1.msra.mxu0 %v64
    %1161 = vmatprep.subr.mxu0 0.0
    %1162 = vmatpush1.msra.mxu0 %v67
    %1163 = vmatprep.subr.mxu0 0.0
    %1164 = vmatpush1.msra.mxu0 %v70
    %1165 = vmatprep.subr.mxu0 0.0
    %1166 = vmatpush1.msra.mxu0 %v73
    %1167 = vmatprep.subr.mxu0 0.0
    %1168 = vmatpush1.msra.mxu0 %v76
    %1169 = vmatprep.subr.mxu0 0.0
    %1170 = vmatpush1.msra.mxu0 %v79
    %1171 = vmatprep.subr.mxu0 0.0
    %1172 = vmatpush1.msra.mxu0 %v82
    %1173 = vmatprep.subr.mxu0 0.0
    %1174 = vmatpush1.msra.mxu0 %v85
    %1175 = vmatprep.subr.mxu0 0.0
    %1176 = vmatpush1.msra.mxu0 %v88
    %1177 = vmatprep.subr.mxu0 0.0
    %1178 = vmatpush1.msra.mxu0 %v91
    %1179 = vmatprep.subr.mxu0 0.0
    %1180 = vmatpush1.msra.mxu0 %v94
    %1181 = vmatprep.subr.mxu0 0.0
    %1182 = vmatpush1.msra.mxu0 %v97
    %1183 = vmatprep.subr.mxu0 0.0
    %1184 = vmatpush1.msra.mxu0 %v100
    %1185 = vmatprep.subr.mxu0 0.0
    %1186 = vmatpush1.msra.mxu0 %v103
    %1187 = vmatprep.subr.mxu0 0.0
    %1188 = vmatpush1.msra.mxu0 0.0
    %1189 = vmatprep.subr.mxu0 0.0
    %1190 = vmatpush1.msra.mxu0 0.0
    %1191 = vmatprep.subr.mxu0 0.0
    %1192 = vmatpush1.msra.mxu0 0.0
    %1193 = vmatprep.subr.mxu0 0.0
    %1194 = vmatpush1.msra.mxu0 0.0
    %1195 = vmatprep.subr.mxu0 0.0
    %1196 = vmatpush1.msra.mxu0 0.0
    %1197 = vmatprep.subr.mxu0 0.0
    %1198 = vmatpush1.msra.mxu0 0.0
    %1199 = vmatprep.subr.mxu0 0.0
    %1200 = vmatpush1.msra.mxu0 0.0
    %1201 = vmatprep.subr.mxu0 0.0
    %1202 = vmatpush1.msra.mxu0 0.0
    %1203 = vmatprep.subr.mxu0 0.0
    %1204 = vmatpush1.msra.mxu0 0.0
    %1205 = vmatprep.subr.mxu0 0.0
    %1206 = vmatpush1.msra.mxu0 0.0
    %1207 = vmatprep.subr.mxu0 0.0
    %1208 = vmatpush1.msra.mxu0 0.0
    %1209 = vmatprep.subr.mxu0 0.0
    %1210 = vmatpush1.msra.mxu0 0.0
    %1211 = vmatprep.subr.mxu0 0.0
    %1212 = vmatpush1.msra.mxu0 0.0
    %1213 = vmatprep.subr.mxu0 0.0
    %1214 = vmatpush1.msra.mxu0 0.0
    %1215 = vmatprep.subr.mxu0 0.0
    %1216 = vmatpush1.msra.mxu0 0.0
    %1217 = vmatprep.subr.mxu0 0.0
    %1218 = vmatpush1.msra.mxu0 0.0
    %1219 = vmatprep.mubr.f32.mxu0 0.0
    %1220 = vmatmul.mubr.f32.gmra.mrb[0].mxu0 %v1077
    %v1221 = vpop.f32.mrb[0].mxu0
    %v1222 = vadd.f32 0.0, %v1221
    %v1223 = vpop.f32.mrb[0].mxu0
    %1224 = vdwg.mxu0
    %v1225 = vadd.f32 %v1081, %v1151
    %v1226 = vmul.f32 %v1225, 0.5
    %v1227 = vtanh.pop %v1226
    %v1228 = vadd.f32 %v1227, 1.0
    %v1229 = vmul.f32 %v1228, 0.5
    %v1230 = vadd.f32 %v1082, %v1153
    %v1231 = vmul.f32 %v1230, 0.5
    %v1232 = vtanh.pop %v1231
    %v1233 = vadd.f32 %v1232, 1.0
    %v1234 = vmul.f32 %v1233, 0.5
    %v1235 = vmul.f32 %v1229, %v1222
    %v1236 = vadd.f32 %v1083, %v1235
    %v1237 = vtanh.pop %v1236
    %v1238 = vsub.f32 %v1077, %v1237
    %v1239 = vmul.f32 %v1234, %v1238
    %v1240 = vadd.f32 %v1237, %v1239
    %s1241 = scalar_lea.vmem [#allocation2], 48
    %1242 = vst [vmem:[%s1241] sm:$0xff] %v1240
    %s1243 = scalar_lea.vmem [#allocation4], 168
    %v1244 = vld [vmem:[%s1243] sm:$0xff]
    %v1245 = vld [vmem:[%s1243 + $0x8] sm:$0xff]
    %v1246 = vld [vmem:[%s1243 + $0x10] sm:$0xff]
    %1247 = vmatprep.subr.mxu0 %v57
    %1248 = vmatpush1.msra.mxu0 %v56
    %1249 = vmatprep.subr.mxu0 %v60
    %1250 = vmatpush1.msra.mxu0 %v59
    %1251 = vmatprep.subr.mxu0 %v63
    %1252 = vmatpush1.msra.mxu0 %v62
    %1253 = vmatprep.subr.mxu0 %v66
    %1254 = vmatpush1.msra.mxu0 %v65
    %1255 = vmatprep.subr.mxu0 %v69
    %1256 = vmatpush1.msra.mxu0 %v68
    %1257 = vmatprep.subr.mxu0 %v72
    %1258 = vmatpush1.msra.mxu0 %v71
    %1259 = vmatprep.subr.mxu0 %v75
    %1260 = vmatpush1.msra.mxu0 %v74
    %1261 = vmatprep.subr.mxu0 %v78
    %1262 = vmatpush1.msra.mxu0 %v77
    %1263 = vmatprep.subr.mxu0 %v81
    %1264 = vmatpush1.msra.mxu0 %v80
    %1265 = vmatprep.subr.mxu0 %v84
    %1266 = vmatpush1.msra.mxu0 %v83
    %1267 = vmatprep.subr.mxu0 %v87
    %1268 = vmatpush1.msra.mxu0 %v86
    %1269 = vmatprep.subr.mxu0 %v90
    %1270 = vmatpush1.msra.mxu0 %v89
    %1271 = vmatprep.subr.mxu0 %v93
    %1272 = vmatpush1.msra.mxu0 %v92
    %1273 = vmatprep.subr.mxu0 %v96
    %1274 = vmatpush1.msra.mxu0 %v95
    %1275 = vmatprep.subr.mxu0 %v99
    %1276 = vmatpush1.msra.mxu0 %v98
    %1277 = vmatprep.subr.mxu0 %v102
    %1278 = vmatpush1.msra.mxu0 %v101
    %1279 = vmatprep.subr.mxu0 0.0
    %1280 = vmatpush1.msra.mxu0 0.0
    %1281 = vmatprep.subr.mxu0 0.0
    %1282 = vmatpush1.msra.mxu0 0.0
    %1283 = vmatprep.subr.mxu0 0.0
    %1284 = vmatpush1.msra.mxu0 0.0
    %1285 = vmatprep.subr.mxu0 0.0
    %1286 = vmatpush1.msra.mxu0 0.0
    %1287 = vmatprep.subr.mxu0 0.0
    %1288 = vmatpush1.msra.mxu0 0.0
    %1289 = vmatprep.subr.mxu0 0.0
    %1290 = vmatpush1.msra.mxu0 0.0
    %1291 = vmatprep.subr.mxu0 0.0
    %1292 = vmatpush1.msra.mxu0 0.0
    %1293 = vmatprep.subr.mxu0 0.0
    %1294 = vmatpush1.msra.mxu0 0.0
    %1295 = vmatprep.subr.mxu0 0.0
    %1296 = vmatpush1.msra.mxu0 0.0
    %1297 = vmatprep.subr.mxu0 0.0
    %1298 = vmatpush1.msra.mxu0 0.0
    %1299 = vmatprep.subr.mxu0 0.0
    %1300 = vmatpush1.msra.mxu0 0.0
    %1301 = vmatprep.subr.mxu0 0.0
    %1302 = vmatpush1.msra.mxu0 0.0
    %1303 = vmatprep.subr.mxu0 0.0
    %1304 = vmatpush1.msra.mxu0 0.0
    %1305 = vmatprep.subr.mxu0 0.0
    %1306 = vmatpush1.msra.mxu0 0.0
    %1307 = vmatprep.subr.mxu0 0.0
    %1308 = vmatpush1.msra.mxu0 0.0
    %1309 = vmatprep.subr.mxu0 0.0
    %1310 = vmatpush1.msra.mxu0 0.0
    %1311 = vmatprep.mubr.f32.mxu0 0.0
    %1312 = vmatmul.mubr.f32.gmra.mrb[0].mxu0 %v1240
    %v1313 = vpop.f32.mrb[0].mxu0
    %v1314 = vadd.f32 0.0, %v1313
    %v1315 = vpop.f32.mrb[0].mxu0
    %v1316 = vadd.f32 0.0, %v1315
    %1317 = vdwg.mxu0
    %1318 = vmatprep.subr.mxu0 0.0
    %1319 = vmatpush1.msra.mxu0 %v58
    %1320 = vmatprep.subr.mxu0 0.0
    %1321 = vmatpush1.msra.mxu0 %v61
    %1322 = vmatprep.subr.mxu0 0.0
    %1323 = vmatpush1.msra.mxu0 %v64
    %1324 = vmatprep.subr.mxu0 0.0
    %1325 = vmatpush1.msra.mxu0 %v67
    %1326 = vmatprep.subr.mxu0 0.0
    %1327 = vmatpush1.msra.mxu0 %v70
    %1328 = vmatprep.subr.mxu0 0.0
    %1329 = vmatpush1.msra.mxu0 %v73
    %1330 = vmatprep.subr.mxu0 0.0
    %1331 = vmatpush1.msra.mxu0 %v76
    %1332 = vmatprep.subr.mxu0 0.0
    %1333 = vmatpush1.msra.mxu0 %v79
    %1334 = vmatprep.subr.mxu0 0.0
    %1335 = vmatpush1.msra.mxu0 %v82
    %1336 = vmatprep.subr.mxu0 0.0
    %1337 = vmatpush1.msra.mxu0 %v85
    %1338 = vmatprep.subr.mxu0 0.0
    %1339 = vmatpush1.msra.mxu0 %v88
    %1340 = vmatprep.subr.mxu0 0.0
    %1341 = vmatpush1.msra.mxu0 %v91
    %1342 = vmatprep.subr.mxu0 0.0
    %1343 = vmatpush1.msra.mxu0 %v94
    %1344 = vmatprep.subr.mxu0 0.0
    %1345 = vmatpush1.msra.mxu0 %v97
    %1346 = vmatprep.subr.mxu0 0.0
    %1347 = vmatpush1.msra.mxu0 %v100
    %1348 = vmatprep.subr.mxu0 0.0
    %1349 = vmatpush1.msra.mxu0 %v103
    %1350 = vmatprep.subr.mxu0 0.0
    %1351 = vmatpush1.msra.mxu0 0.0
    %1352 = vmatprep.subr.mxu0 0.0
    %1353 = vmatpush1.msra.mxu0 0.0
    %1354 = vmatprep.subr.mxu0 0.0
    %1355 = vmatpush1.msra.mxu0 0.0
    %1356 = vmatprep.subr.mxu0 0.0
    %1357 = vmatpush1.msra.mxu0 0.0
    %1358 = vmatprep.subr.mxu0 0.0
    %1359 = vmatpush1.msra.mxu0 0.0
    %1360 = vmatprep.subr.mxu0 0.0
    %1361 = vmatpush1.msra.mxu0 0.0
    %1362 = vmatprep.subr.mxu0 0.0
    %1363 = vmatpush1.msra.mxu0 0.0
    %1364 = vmatprep.subr.mxu0 0.0
    %1365 = vmatpush1.msra.mxu0 0.0
    %1366 = vmatprep.subr.mxu0 0.0
    %1367 = vmatpush1.msra.mxu0 0.0
    %1368 = vmatprep.subr.mxu0 0.0
    %1369 = vmatpush1.msra.mxu0 0.0
    %1370 = vmatprep.subr.mxu0 0.0
    %1371 = vmatpush1.msra.mxu0 0.0
    %1372 = vmatprep.subr.mxu0 0.0
    %1373 = vmatpush1.msra.mxu0 0.0
    %1374 = vmatprep.subr.mxu0 0.0
    %1375 = vmatpush1.msra.mxu0 0.0
    %1376 = vmatprep.subr.mxu0 0.0
    %1377 = vmatpush1.msra.mxu0 0.0
    %1378 = vmatprep.subr.mxu0 0.0
    %1379 = vmatpush1.msra.mxu0 0.0
    %1380 = vmatprep.subr.mxu0 0.0
    %1381 = vmatpush1.msra.mxu0 0.0
    %1382 = vmatprep.mubr.f32.mxu0 0.0
    %1383 = vmatmul.mubr.f32.gmra.mrb[0].mxu0 %v1240
    %v1384 = vpop.f32.mrb[0].mxu0
    %v1385 = vadd.f32 0.0, %v1384
    %v1386 = vpop.f32.mrb[0].mxu0
    %1387 = vdwg.mxu0
    %v1388 = vadd.f32 %v1244, %v1314
    %v1389 = vmul.f32 %v1388, 0.5
    %v1390 = vtanh.pop %v1389
    %v1391 = vadd.f32 %v1390, 1.0
    %v1392 = vmul.f32 %v1391, 0.5
    %v1393 = vadd.f32 %v1245, %v1316
    %v1394 = vmul.f32 %v1393, 0.5
    %v1395 = vtanh.pop %v1394
    %v1396 = vadd.f32 %v1395, 1.0
    %v1397 = vmul.f32 %v1396, 0.5
    %v1398 = vmul.f32 %v1392, %v1385
    %v1399 = vadd.f32 %v1246, %v1398
    %v1400 = vtanh.pop %v1399
    %v1401 = vsub.f32 %v1240, %v1400
    %v1402 = vmul.f32 %v1397, %v1401
    %v1403 = vadd.f32 %v1400, %v1402
    %s1404 = scalar_lea.vmem [#allocation2], 56
    %1405 = vst [vmem:[%s1404] sm:$0xff] %v1403
    %v1406 = vld [vmem:[#allocation2] sm:$0xff]
    %v1407 = vld [vmem:[#allocation2 + $0x8] sm:$0xff]
    %v1408 = vld [vmem:[#allocation2 + $0x10] sm:$0xff]
    %v1409 = vld [vmem:[#allocation2 + $0x18] sm:$0xff]
    %v1410 = vld [vmem:[#allocation2 + $0x20] sm:$0xff]
    %v1411 = vld [vmem:[#allocation2 + $0x28] sm:$0xff]
    %v1412 = vld [vmem:[#allocation2 + $0x30] sm:$0xff]
    %v1413 = vld [vmem:[#allocation2 + $0x38] sm:$0xff]
    %v1414 = vld [vmem:[#allocation7] sm:$0xff]
    %v1415 = vld [vmem:[#allocation7 + $0x8] sm:$0xff]
    %v1416 = vld [vmem:[#allocation7 + $0x10] sm:$0xff]
    %v1417 = vld [vmem:[#allocation7 + $0x18] sm:$0xff]
    %v1418 = vld [vmem:[#allocation7 + $0x20] sm:$0xff]
    %v1419 = vld [vmem:[#allocation7 + $0x28] sm:$0xff]
    %v1420 = vld [vmem:[#allocation7 + $0x30] sm:$0xff]
    %v1421 = vld [vmem:[#allocation7 + $0x38] sm:$0xff]
    %v1422 = vld [vmem:[#allocation7 + $0x40] sm:$0xff]
    %v1423 = vld [vmem:[#allocation7 + $0x48] sm:$0xff]
    %v1424 = vld [vmem:[#allocation7 + $0x50] sm:$0xff]
    %v1425 = vld [vmem:[#allocation7 + $0x58] sm:$0xff]
    %v1426 = vld [vmem:[#allocation7 + $0x60] sm:$0xff]
    %v1427 = vld [vmem:[#allocation7 + $0x68] sm:$0xff]
    %v1428 = vld [vmem:[#allocation7 + $0x70] sm:$0xff]
    %v1429 = vld [vmem:[#allocation7 + $0x78] sm:$0xff]
    %v1430 = vld [vmem:[#allocation7 + $0x80] sm:$0xff]
    %v1431 = vld [vmem:[#allocation7 + $0x88] sm:$0xff]
    %v1432 = vld [vmem:[#allocation7 + $0x90] sm:$0xff]
    %v1433 = vld [vmem:[#allocation7 + $0x98] sm:$0xff]
    %v1434 = vld [vmem:[#allocation7 + $0xa0] sm:$0xff]
    %v1435 = vld [vmem:[#allocation7 + $0xa8] sm:$0xff]
    %v1436 = vld [vmem:[#allocation7 + $0xb0] sm:$0xff]
    %v1437 = vld [vmem:[#allocation7 + $0xb8] sm:$0xff]
    %v1438 = vld [vmem:[#allocation7 + $0xc0] sm:$0xff]
    %v1439 = vld [vmem:[#allocation7 + $0xc8] sm:$0xff]
    %v1440 = vld [vmem:[#allocation7 + $0xd0] sm:$0xff]
    %v1441 = vld [vmem:[#allocation7 + $0xd8] sm:$0xff]
    %v1442 = vld [vmem:[#allocation7 + $0xe0] sm:$0xff]
    %v1443 = vld [vmem:[#allocation7 + $0xe8] sm:$0xff]
    %v1444 = vld [vmem:[#allocation7 + $0xf0] sm:$0xff]
    %v1445 = vld [vmem:[#allocation7 + $0xf8] sm:$0xff]
    %v1446 = vld [vmem:[#allocation7 + $0x100] sm:$0xff]
    %v1447 = vld [vmem:[#allocation7 + $0x108] sm:$0xff]
    %v1448 = vld [vmem:[#allocation7 + $0x110] sm:$0xff]
    %v1449 = vld [vmem:[#allocation7 + $0x118] sm:$0xff]
    %v1450 = vld [vmem:[#allocation7 + $0x120] sm:$0xff]
    %v1451 = vld [vmem:[#allocation7 + $0x128] sm:$0xff]
    %v1452 = vld [vmem:[#allocation7 + $0x130] sm:$0xff]
    %v1453 = vld [vmem:[#allocation7 + $0x138] sm:$0xff]
    %v1454 = vld [vmem:[#allocation7 + $0x140] sm:$0xff]
    %v1455 = vld [vmem:[#allocation7 + $0x148] sm:$0xff]
    %v1456 = vld [vmem:[#allocation7 + $0x150] sm:$0xff]
    %v1457 = vld [vmem:[#allocation7 + $0x158] sm:$0xff]
    %v1458 = vld [vmem:[#allocation7 + $0x160] sm:$0xff]
    %v1459 = vld [vmem:[#allocation7 + $0x168] sm:$0xff]
    %v1460 = vld [vmem:[#allocation7 + $0x170] sm:$0xff]
    %v1461 = vld [vmem:[#allocation7 + $0x178] sm:$0xff]
    %1462 = vmatprep.subr.mxu0 %v1415
    %1463 = vmatpush1.msra.mxu0 %v1414
    %1464 = vmatprep.subr.mxu0 %v1418
    %1465 = vmatpush1.msra.mxu0 %v1417
    %1466 = vmatprep.subr.mxu0 %v1421
    %1467 = vmatpush1.msra.mxu0 %v1420
    %1468 = vmatprep.subr.mxu0 %v1424
    %1469 = vmatpush1.msra.mxu0 %v1423
    %1470 = vmatprep.subr.mxu0 %v1427
    %1471 = vmatpush1.msra.mxu0 %v1426
    %1472 = vmatprep.subr.mxu0 %v1430
    %1473 = vmatpush1.msra.mxu0 %v1429
    %1474 = vmatprep.subr.mxu0 %v1433
    %1475 = vmatpush1.msra.mxu0 %v1432
    %1476 = vmatprep.subr.mxu0 %v1436
    %1477 = vmatpush1.msra.mxu0 %v1435
    %1478 = vmatprep.subr.mxu0 %v1439
    %1479 = vmatpush1.msra.mxu0 %v1438
    %1480 = vmatprep.subr.mxu0 %v1442
    %1481 = vmatpush1.msra.mxu0 %v1441
    %1482 = vmatprep.subr.mxu0 %v1445
    %1483 = vmatpush1.msra.mxu0 %v1444
    %1484 = vmatprep.subr.mxu0 %v1448
    %1485 = vmatpush1.msra.mxu0 %v1447
    %1486 = vmatprep.subr.mxu0 %v1451
    %1487 = vmatpush1.msra.mxu0 %v1450
    %1488 = vmatprep.subr.mxu0 %v1454
    %1489 = vmatpush1.msra.mxu0 %v1453
    %1490 = vmatprep.subr.mxu0 %v1457
    %1491 = vmatpush1.msra.mxu0 %v1456
    %1492 = vmatprep.subr.mxu0 %v1460
    %1493 = vmatpush1.msra.mxu0 %v1459
    %1494 = vmatprep.subr.mxu0 0.0
    %1495 = vmatpush1.msra.mxu0 0.0
    %1496 = vmatprep.subr.mxu0 0.0
    %1497 = vmatpush1.msra.mxu0 0.0
    %1498 = vmatprep.subr.mxu0 0.0
    %1499 = vmatpush1.msra.mxu0 0.0
    %1500 = vmatprep.subr.mxu0 0.0
    %1501 = vmatpush1.msra.mxu0 0.0
    %1502 = vmatprep.subr.mxu0 0.0
    %1503 = vmatpush1.msra.mxu0 0.0
    %1504 = vmatprep.subr.mxu0 0.0
    %1505 = vmatpush1.msra.mxu0 0.0
    %1506 = vmatprep.subr.mxu0 0.0
    %1507 = vmatpush1.msra.mxu0 0.0
    %1508 = vmatprep.subr.mxu0 0.0
    %1509 = vmatpush1.msra.mxu0 0.0
    %1510 = vmatprep.subr.mxu0 0.0
    %1511 = vmatpush1.msra.mxu0 0.0
    %1512 = vmatprep.subr.mxu0 0.0
    %1513 = vmatpush1.msra.mxu0 0.0
    %1514 = vmatprep.subr.mxu0 0.0
    %1515 = vmatpush1.msra.mxu0 0.0
    %1516 = vmatprep.subr.mxu0 0.0
    %1517 = vmatpush1.msra.mxu0 0.0
    %1518 = vmatprep.subr.mxu0 0.0
    %1519 = vmatpush1.msra.mxu0 0.0
    %1520 = vmatprep.subr.mxu0 0.0
    %1521 = vmatpush1.msra.mxu0 0.0
    %1522 = vmatprep.subr.mxu0 0.0
    %1523 = vmatpush1.msra.mxu0 0.0
    %1524 = vmatprep.subr.mxu0 0.0
    %1525 = vmatpush1.msra.mxu0 0.0
    %1526 = vmatprep.mubr.f32.mxu0 0.0
    %1527 = vmatmul.mubr.f32.gmra.mrb[0].mxu0 %v1406
    %v1528 = vpop.f32.mrb[0].mxu0
    %v1529 = vadd.f32 0.0, %v1528
    %v1530 = vpop.f32.mrb[0].mxu0
    %v1531 = vadd.f32 0.0, %v1530
    %1532 = vmatprep.mubr.f32.mxu0 0.0
    %1533 = vmatmul.mubr.f32.gmra.mrb[0].mxu0 %v1407
    %v1534 = vpop.f32.mrb[0].mxu0
    %v1535 = vadd.f32 0.0, %v1534
    %v1536 = vpop.f32.mrb[0].mxu0
    %v1537 = vadd.f32 0.0, %v1536
    %1538 = vmatprep.mubr.f32.mxu0 0.0
    %1539 = vmatmul.mubr.f32.gmra.mrb[0].mxu0 %v1408
    %v1540 = vpop.f32.mrb[0].mxu0
    %v1541 = vadd.f32 0.0, %v1540
    %v1542 = vpop.f32.mrb[0].mxu0
    %v1543 = vadd.f32 0.0, %v1542
    %1544 = vmatprep.mubr.f32.mxu0 0.0
    %1545 = vmatmul.mubr.f32.gmra.mrb[0].mxu0 %v1409
    %v1546 = vpop.f32.mrb[0].mxu0
    %v1547 = vadd.f32 0.0, %v1546
    %v1548 = vpop.f32.mrb[0].mxu0
    %v1549 = vadd.f32 0.0, %v1548
    %1550 = vmatprep.mubr.f32.mxu0 0.0
    %1551 = vmatmul.mubr.f32.gmra.mrb[0].mxu0 %v1410
    %v1552 = vpop.f32.mrb[0].mxu0
    %v1553 = vadd.f32 0.0, %v1552
    %v1554 = vpop.f32.mrb[0].mxu0
    %v1555 = vadd.f32 0.0, %v1554
    %1556 = vmatprep.mubr.f32.mxu0 0.0
    %1557 = vmatmul.mubr.f32.gmra.mrb[0].mxu0 %v1411
    %v1558 = vpop.f32.mrb[0].mxu0
    %v1559 = vadd.f32 0.0, %v1558
    %v1560 = vpop.f32.mrb[0].mxu0
    %v1561 = vadd.f32 0.0, %v1560
    %1562 = vmatprep.mubr.f32.mxu0 0.0
    %1563 = vmatmul.mubr.f32.gmra.mrb[0].mxu0 %v1412
    %v1564 = vpop.f32.mrb[0].mxu0
    %v1565 = vadd.f32 0.0, %v1564
    %v1566 = vpop.f32.mrb[0].mxu0
    %v1567 = vadd.f32 0.0, %v1566
    %1568 = vmatprep.mubr.f32.mxu0 0.0
    %1569 = vmatmul.mubr.f32.gmra.mrb[0].mxu0 %v1413
    %v1570 = vpop.f32.mrb[0].mxu0
    %v1571 = vadd.f32 0.0, %v1570
    %v1572 = vpop.f32.mrb[0].mxu0
    %v1573 = vadd.f32 0.0, %v1572
    %1574 = vdwg.mxu0
    %1575 = vmatprep.subr.mxu0 0.0
    %1576 = vmatpush1.msra.mxu0 %v1416
    %1577 = vmatprep.subr.mxu0 0.0
    %1578 = vmatpush1.msra.mxu0 %v1419
    %1579 = vmatprep.subr.mxu0 0.0
    %1580 = vmatpush1.msra.mxu0 %v1422
    %1581 = vmatprep.subr.mxu0 0.0
    %1582 = vmatpush1.msra.mxu0 %v1425
    %1583 = vmatprep.subr.mxu0 0.0
    %1584 = vmatpush1.msra.mxu0 %v1428
    %1585 = vmatprep.subr.mxu0 0.0
    %1586 = vmatpush1.msra.mxu0 %v1431
    %1587 = vmatprep.subr.mxu0 0.0
    %1588 = vmatpush1.msra.mxu0 %v1434
    %1589 = vmatprep.subr.mxu0 0.0
    %1590 = vmatpush1.msra.mxu0 %v1437
    %1591 = vmatprep.subr.mxu0 0.0
    %1592 = vmatpush1.msra.mxu0 %v1440
    %1593 = vmatprep.subr.mxu0 0.0
    %1594 = vmatpush1.msra.mxu0 %v1443
    %1595 = vmatprep.subr.mxu0 0.0
    %1596 = vmatpush1.msra.mxu0 %v1446
    %1597 = vmatprep.subr.mxu0 0.0
    %1598 = vmatpush1.msra.mxu0 %v1449
    %1599 = vmatprep.subr.mxu0 0.0
    %1600 = vmatpush1.msra.mxu0 %v1452
    %1601 = vmatprep.subr.mxu0 0.0
    %1602 = vmatpush1.msra.mxu0 %v1455
    %1603 = vmatprep.subr.mxu0 0.0
    %1604 = vmatpush1.msra.mxu0 %v1458
    %1605 = vmatprep.subr.mxu0 0.0
    %1606 = vmatpush1.msra.mxu0 %v1461
    %1607 = vmatprep.subr.mxu0 0.0
    %1608 = vmatpush1.msra.mxu0 0.0
    %1609 = vmatprep.subr.mxu0 0.0
    %1610 = vmatpush1.msra.mxu0 0.0
    %1611 = vmatprep.subr.mxu0 0.0
    %1612 = vmatpush1.msra.mxu0 0.0
    %1613 = vmatprep.subr.mxu0 0.0
    %1614 = vmatpush1.msra.mxu0 0.0
    %1615 = vmatprep.subr.mxu0 0.0
    %1616 = vmatpush1.msra.mxu0 0.0
    %1617 = vmatprep.subr.mxu0 0.0
    %1618 = vmatpush1.msra.mxu0 0.0
    %1619 = vmatprep.subr.mxu0 0.0
    %1620 = vmatpush1.msra.mxu0 0.0
    %1621 = vmatprep.subr.mxu0 0.0
    %1622 = vmatpush1.msra.mxu0 0.0
    %1623 = vmatprep.subr.mxu0 0.0
    %1624 = vmatpush1.msra.mxu0 0.0
    %1625 = vmatprep.subr.mxu0 0.0
    %1626 = vmatpush1.msra.mxu0 0.0
    %1627 = vmatprep.subr.mxu0 0.0
    %1628 = vmatpush1.msra.mxu0 0.0
    %1629 = vmatprep.subr.mxu0 0.0
    %1630 = vmatpush1.msra.mxu0 0.0
    %1631 = vmatprep.subr.mxu0 0.0
    %1632 = vmatpush1.msra.mxu0 0.0
    %1633 = vmatprep.subr.mxu0 0.0
    %1634 = vmatpush1.msra.mxu0 0.0
    %1635 = vmatprep.subr.mxu0 0.0
    %1636 = vmatpush1.msra.mxu0 0.0
    %1637 = vmatprep.subr.mxu0 0.0
    %1638 = vmatpush1.msra.mxu0 0.0
    %1639 = vmatprep.mubr.f32.mxu0 0.0
    %1640 = vmatmul.mubr.f32.gmra.mrb[0].mxu0 %v1406
    %v1641 = vpop.f32.mrb[0].mxu0
    %v1642 = vadd.f32 0.0, %v1641
    %v1643 = vpop.f32.mrb[0].mxu0
    %1644 = vmatprep.mubr.f32.mxu0 0.0
    %1645 = vmatmul.mubr.f32.gmra.mrb[0].mxu0 %v1407
    %v1646 = vpop.f32.mrb[0].mxu0
    %v1647 = vadd.f32 0.0, %v1646
    %v1648 = vpop.f32.mrb[0].mxu0
    %1649 = vmatprep.mubr.f32.mxu0 0.0
    %1650 = vmatmul.mubr.f32.gmra.mrb[0].mxu0 %v1408
    %v1651 = vpop.f32.mrb[0].mxu0
    %v1652 = vadd.f32 0.0, %v1651
    %v1653 = vpop.f32.mrb[0].mxu0
    %1654 = vmatprep.mubr.f32.mxu0 0.0
    %1655 = vmatmul.mubr.f32.gmra.mrb[0].mxu0 %v1409
    %v1656 = vpop.f32.mrb[0].mxu0
    %v1657 = vadd.f32 0.0, %v1656
    %v1658 = vpop.f32.mrb[0].mxu0
    %1659 = vmatprep.mubr.f32.mxu0 0.0
    %1660 = vmatmul.mubr.f32.gmra.mrb[0].mxu0 %v1410
    %v1661 = vpop.f32.mrb[0].mxu0
    %v1662 = vadd.f32 0.0, %v1661
    %v1663 = vpop.f32.mrb[0].mxu0
    %1664 = vmatprep.mubr.f32.mxu0 0.0
    %1665 = vmatmul.mubr.f32.gmra.mrb[0].mxu0 %v1411
    %v1666 = vpop.f32.mrb[0].mxu0
    %v1667 = vadd.f32 0.0, %v1666
    %v1668 = vpop.f32.mrb[0].mxu0
    %1669 = vmatprep.mubr.f32.mxu0 0.0
    %1670 = vmatmul.mubr.f32.gmra.mrb[0].mxu0 %v1412
    %v1671 = vpop.f32.mrb[0].mxu0
    %v1672 = vadd.f32 0.0, %v1671
    %v1673 = vpop.f32.mrb[0].mxu0
    %1674 = vmatprep.mubr.f32.mxu0 0.0
    %1675 = vmatmul.mubr.f32.gmra.mrb[0].mxu0 %v1413
    %v1676 = vpop.f32.mrb[0].mxu0
    %v1677 = vadd.f32 0.0, %v1676
    %v1678 = vpop.f32.mrb[0].mxu0
    %1679 = vdwg.mxu0
    %1680 = vst [vmem:[#allocation3] sm:$0xff] %v1529
    %1681 = vst [vmem:[#allocation3 + $0x8] sm:$0xff] %v1531
    %1682 = vst [vmem:[#allocation3 + $0x10] sm:$0xff] %v1642
    %1683 = vst [vmem:[#allocation3 + $0x18] sm:$0xff] %v1535
    %1684 = vst [vmem:[#allocation3 + $0x20] sm:$0xff] %v1537
    %1685 = vst [vmem:[#allocation3 + $0x28] sm:$0xff] %v1647
    %1686 = vst [vmem:[#allocation3 + $0x30] sm:$0xff] %v1541
    %1687 = vst [vmem:[#allocation3 + $0x38] sm:$0xff] %v1543
    %1688 = vst [vmem:[#allocation3 + $0x40] sm:$0xff] %v1652
    %1689 = vst [vmem:[#allocation3 + $0x48] sm:$0xff] %v1547
    %1690 = vst [vmem:[#allocation3 + $0x50] sm:$0xff] %v1549
    %1691 = vst [vmem:[#allocation3 + $0x58] sm:$0xff] %v1657
    %1692 = vst [vmem:[#allocation3 + $0x60] sm:$0xff] %v1553
    %1693 = vst [vmem:[#allocation3 + $0x68] sm:$0xff] %v1555
    %1694 = vst [vmem:[#allocation3 + $0x70] sm:$0xff] %v1662
    %1695 = vst [vmem:[#allocation3 + $0x78] sm:$0xff] %v1559
    %1696 = vst [vmem:[#allocation3 + $0x80] sm:$0xff] %v1561
    %1697 = vst [vmem:[#allocation3 + $0x88] sm:$0xff] %v1667
    %1698 = vst [vmem:[#allocation3 + $0x90] sm:$0xff] %v1565
    %1699 = vst [vmem:[#allocation3 + $0x98] sm:$0xff] %v1567
    %1700 = vst [vmem:[#allocation3 + $0xa0] sm:$0xff] %v1672
    %1701 = vst [vmem:[#allocation3 + $0xa8] sm:$0xff] %v1571
    %1702 = vst [vmem:[#allocation3 + $0xb0] sm:$0xff] %v1573
    %1703 = vst [vmem:[#allocation3 + $0xb8] sm:$0xff] %v1677
    %s1704 = scalar_lea.vmem [#allocation9], 384
    %v1705 = vld [vmem:[%s1704] sm:$0xff]
    %v1706 = vld [vmem:[%s1704 + $0x8] sm:$0xff]
    %v1707 = vld [vmem:[%s1704 + $0x10] sm:$0xff]
    %v1708 = vld [vmem:[%s1704 + $0x18] sm:$0xff]
    %v1709 = vld [vmem:[%s1704 + $0x20] sm:$0xff]
    %v1710 = vld [vmem:[%s1704 + $0x28] sm:$0xff]
    %v1711 = vld [vmem:[%s1704 + $0x30] sm:$0xff]
    %v1712 = vld [vmem:[%s1704 + $0x38] sm:$0xff]
    %v1713 = vld [vmem:[%s1704 + $0x40] sm:$0xff]
    %v1714 = vld [vmem:[%s1704 + $0x48] sm:$0xff]
    %v1715 = vld [vmem:[%s1704 + $0x50] sm:$0xff]
    %v1716 = vld [vmem:[%s1704 + $0x58] sm:$0xff]
    %v1717 = vld [vmem:[%s1704 + $0x60] sm:$0xff]
    %v1718 = vld [vmem:[%s1704 + $0x68] sm:$0xff]
    %v1719 = vld [vmem:[%s1704 + $0x70] sm:$0xff]
    %v1720 = vld [vmem:[%s1704 + $0x78] sm:$0xff]
    %v1721 = vld [vmem:[%s1704 + $0x80] sm:$0xff]
    %v1722 = vld [vmem:[%s1704 + $0x88] sm:$0xff]
    %v1723 = vld [vmem:[%s1704 + $0x90] sm:$0xff]
    %v1724 = vld [vmem:[%s1704 + $0x98] sm:$0xff]
    %v1725 = vld [vmem:[%s1704 + $0xa0] sm:$0xff]
    %v1726 = vld [vmem:[%s1704 + $0xa8] sm:$0xff]
    %v1727 = vld [vmem:[%s1704 + $0xb0] sm:$0xff]
    %v1728 = vld [vmem:[%s1704 + $0xb8] sm:$0xff]
    %v1729 = vld [vmem:[%s1704 + $0xc0] sm:$0xff]
    %v1730 = vld [vmem:[%s1704 + $0xc8] sm:$0xff]
    %v1731 = vld [vmem:[%s1704 + $0xd0] sm:$0xff]
    %v1732 = vld [vmem:[%s1704 + $0xd8] sm:$0xff]
    %v1733 = vld [vmem:[%s1704 + $0xe0] sm:$0xff]
    %v1734 = vld [vmem:[%s1704 + $0xe8] sm:$0xff]
    %v1735 = vld [vmem:[%s1704 + $0xf0] sm:$0xff]
    %v1736 = vld [vmem:[%s1704 + $0xf8] sm:$0xff]
    %v1737 = vld [vmem:[%s1704 + $0x100] sm:$0xff]
    %v1738 = vld [vmem:[%s1704 + $0x108] sm:$0xff]
    %v1739 = vld [vmem:[%s1704 + $0x110] sm:$0xff]
    %v1740 = vld [vmem:[%s1704 + $0x118] sm:$0xff]
    %v1741 = vld [vmem:[%s1704 + $0x120] sm:$0xff]
    %v1742 = vld [vmem:[%s1704 + $0x128] sm:$0xff]
    %v1743 = vld [vmem:[%s1704 + $0x130] sm:$0xff]
    %v1744 = vld [vmem:[%s1704 + $0x138] sm:$0xff]
    %v1745 = vld [vmem:[%s1704 + $0x140] sm:$0xff]
    %v1746 = vld [vmem:[%s1704 + $0x148] sm:$0xff]
    %v1747 = vld [vmem:[%s1704 + $0x150] sm:$0xff]
    %v1748 = vld [vmem:[%s1704 + $0x158] sm:$0xff]
    %v1749 = vld [vmem:[%s1704 + $0x160] sm:$0xff]
    %v1750 = vld [vmem:[%s1704 + $0x168] sm:$0xff]
    %v1751 = vld [vmem:[%s1704 + $0x170] sm:$0xff]
    %v1752 = vld [vmem:[%s1704 + $0x178] sm:$0xff]
    %v1753 = vld [vmem:[#allocation3] sm:$0xff]
    %v1754 = vld [vmem:[#allocation3 + $0x8] sm:$0xff]
    %v1755 = vld [vmem:[#allocation3 + $0x10] sm:$0xff]
    %1756 = vmatprep.subr.mxu0 %v1706
    %1757 = vmatpush1.msra.mxu0 %v1705
    %1758 = vmatprep.subr.mxu0 %v1709
    %1759 = vmatpush1.msra.mxu0 %v1708
    %1760 = vmatprep.subr.mxu0 %v1712
    %1761 = vmatpush1.msra.mxu0 %v1711
    %1762 = vmatprep.subr.mxu0 %v1715
    %1763 = vmatpush1.msra.mxu0 %v1714
    %1764 = vmatprep.subr.mxu0 %v1718
    %1765 = vmatpush1.msra.mxu0 %v1717
    %1766 = vmatprep.subr.mxu0 %v1721
    %1767 = vmatpush1.msra.mxu0 %v1720
    %1768 = vmatprep.subr.mxu0 %v1724
    %1769 = vmatpush1.msra.mxu0 %v1723
    %1770 = vmatprep.subr.mxu0 %v1727
    %1771 = vmatpush1.msra.mxu0 %v1726
    %1772 = vmatprep.subr.mxu0 %v1730
    %1773 = vmatpush1.msra.mxu0 %v1729
    %1774 = vmatprep.subr.mxu0 %v1733
    %1775 = vmatpush1.msra.mxu0 %v1732
    %1776 = vmatprep.subr.mxu0 %v1736
    %1777 = vmatpush1.msra.mxu0 %v1735
    %1778 = vmatprep.subr.mxu0 %v1739
    %1779 = vmatpush1.msra.mxu0 %v1738
    %1780 = vmatprep.subr.mxu0 %v1742
    %1781 = vmatpush1.msra.mxu0 %v1741
    %1782 = vmatprep.subr.mxu0 %v1745
    %1783 = vmatpush1.msra.mxu0 %v1744
    %1784 = vmatprep.subr.mxu0 %v1748
    %1785 = vmatpush1.msra.mxu0 %v1747
    %1786 = vmatprep.subr.mxu0 %v1751
    %1787 = vmatpush1.msra.mxu0 %v1750
    %1788 = vmatprep.subr.mxu0 0.0
    %1789 = vmatpush1.msra.mxu0 0.0
    %1790 = vmatprep.subr.mxu0 0.0
    %1791 = vmatpush1.msra.mxu0 0.0
    %1792 = vmatprep.subr.mxu0 0.0
    %1793 = vmatpush1.msra.mxu0 0.0
    %1794 = vmatprep.subr.mxu0 0.0
    %1795 = vmatpush1.msra.mxu0 0.0
    %1796 = vmatprep.subr.mxu0 0.0
    %1797 = vmatpush1.msra.mxu0 0.0
    %1798 = vmatprep.subr.mxu0 0.0
    %1799 = vmatpush1.msra.mxu0 0.0
    %1800 = vmatprep.subr.mxu0 0.0
    %1801 = vmatpush1.msra.mxu0 0.0
    %1802 = vmatprep.subr.mxu0 0.0
    %1803 = vmatpush1.msra.mxu0 0.0
    %1804 = vmatprep.subr.mxu0 0.0
    %1805 = vmatpush1.msra.mxu0 0.0
    %1806 = vmatprep.subr.mxu0 0.0
    %1807 = vmatpush1.msra.mxu0 0.0
    %1808 = vmatprep.subr.mxu0 0.0
    %1809 = vmatpush1.msra.mxu0 0.0
    %1810 = vmatprep.subr.mxu0 0.0
    %1811 = vmatpush1.msra.mxu0 0.0
    %1812 = vmatprep.subr.mxu0 0.0
    %1813 = vmatpush1.msra.mxu0 0.0
    %1814 = vmatprep.subr.mxu0 0.0
    %1815 = vmatpush1.msra.mxu0 0.0
    %1816 = vmatprep.subr.mxu0 0.0
    %1817 = vmatpush1.msra.mxu0 0.0
    %1818 = vmatprep.subr.mxu0 0.0
    %1819 = vmatpush1.msra.mxu0 0.0
    %1820 = vmatprep.mubr.f32.mxu0 0.0
    %1821 = vmatmul.mubr.f32.gmra.mrb[0].mxu0 0.0
    %v1822 = vpop.f32.mrb[0].mxu0
    %v1823 = vadd.f32 0.0, %v1822
    %v1824 = vpop.f32.mrb[0].mxu0
    %v1825 = vadd.f32 0.0, %v1824
    %1826 = vdwg.mxu0
    %1827 = vmatprep.subr.mxu0 0.0
    %1828 = vmatpush1.msra.mxu0 %v1707
    %1829 = vmatprep.subr.mxu0 0.0
    %1830 = vmatpush1.msra.mxu0 %v1710
    %1831 = vmatprep.subr.mxu0 0.0
    %1832 = vmatpush1.msra.mxu0 %v1713
    %1833 = vmatprep.subr.mxu0 0.0
    %1834 = vmatpush1.msra.mxu0 %v1716
    %1835 = vmatprep.subr.mxu0 0.0
    %1836 = vmatpush1.msra.mxu0 %v1719
    %1837 = vmatprep.subr.mxu0 0.0
    %1838 = vmatpush1.msra.mxu0 %v1722
    %1839 = vmatprep.subr.mxu0 0.0
    %1840 = vmatpush1.msra.mxu0 %v1725
    %1841 = vmatprep.subr.mxu0 0.0
    %1842 = vmatpush1.msra.mxu0 %v1728
    %1843 = vmatprep.subr.mxu0 0.0
    %1844 = vmatpush1.msra.mxu0 %v1731
    %1845 = vmatprep.subr.mxu0 0.0
    %1846 = vmatpush1.msra.mxu0 %v1734
    %1847 = vmatprep.subr.mxu0 0.0
    %1848 = vmatpush1.msra.mxu0 %v1737
    %1849 = vmatprep.subr.mxu0 0.0
    %1850 = vmatpush1.msra.mxu0 %v1740
    %1851 = vmatprep.subr.mxu0 0.0
    %1852 = vmatpush1.msra.mxu0 %v1743
    %1853 = vmatprep.subr.mxu0 0.0
    %1854 = vmatpush1.msra.mxu0 %v1746
    %1855 = vmatprep.subr.mxu0 0.0
    %1856 = vmatpush1.msra.mxu0 %v1749
    %1857 = vmatprep.subr.mxu0 0.0
    %1858 = vmatpush1.msra.mxu0 %v1752
    %1859 = vmatprep.subr.mxu0 0.0
    %1860 = vmatpush1.msra.mxu0 0.0
    %1861 = vmatprep.subr.mxu0 0.0
    %1862 = vmatpush1.msra.mxu0 0.0
    %1863 = vmatprep.subr.mxu0 0.0
    %1864 = vmatpush1.msra.mxu0 0.0
    %1865 = vmatprep.subr.mxu0 0.0
    %1866 = vmatpush1.msra.mxu0 0.0
    %1867 = vmatprep.subr.mxu0 0.0
    %1868 = vmatpush1.msra.mxu0 0.0
    %1869 = vmatprep.subr.mxu0 0.0
    %1870 = vmatpush1.msra.mxu0 0.0
    %1871 = vmatprep.subr.mxu0 0.0
    %1872 = vmatpush1.msra.mxu0 0.0
    %1873 = vmatprep.subr.mxu0 0.0
    %1874 = vmatpush1.msra.mxu0 0.0
    %1875 = vmatprep.subr.mxu0 0.0
    %1876 = vmatpush1.msra.mxu0 0.0
    %1877 = vmatprep.subr.mxu0 0.0
    %1878 = vmatpush1.msra.mxu0 0.0
    %1879 = vmatprep.subr.mxu0 0.0
    %1880 = vmatpush1.msra.mxu0 0.0
    %1881 = vmatprep.subr.mxu0 0.0
    %1882 = vmatpush1.msra.mxu0 0.0
    %1883 = vmatprep.subr.mxu0 0.0
    %1884 = vmatpush1.msra.mxu0 0.0
    %1885 = vmatprep.subr.mxu0 0.0
    %1886 = vmatpush1.msra.mxu0 0.0
    %1887 = vmatprep.subr.mxu0 0.0
    %1888 = vmatpush1.msra.mxu0 0.0
    %1889 = vmatprep.subr.mxu0 0.0
    %1890 = vmatpush1.msra.mxu0 0.0
    %1891 = vmatprep.mubr.f32.mxu0 0.0
    %1892 = vmatmul.mubr.f32.gmra.mrb[0].mxu0 0.0
    %v1893 = vpop.f32.mrb[0].mxu0
    %v1894 = vadd.f32 0.0, %v1893
    %v1895 = vpop.f32.mrb[0].mxu0
    %1896 = vdwg.mxu0
    %v1897 = vadd.f32 %v1753, %v1823
    %v1898 = vmul.f32 %v1897, 0.5
    %v1899 = vtanh.pop %v1898
    %v1900 = vadd.f32 %v1899, 1.0
    %v1901 = vmul.f32 %v1900, 0.5
    %v1902 = vadd.f32 %v1754, %v1825
    %v1903 = vmul.f32 %v1902, 0.5
    %v1904 = vtanh.pop %v1903
    %v1905 = vadd.f32 %v1904, 1.0
    %v1906 = vmul.f32 %v1905, 0.5
    %v1907 = vmul.f32 %v1901, %v1894
    %v1908 = vadd.f32 %v1755, %v1907
    %v1909 = vtanh.pop %v1908
    %v1910 = vsub.f32 0.0, %v1909
    %v1911 = vmul.f32 %v1906, %v1910
    %v1912 = vadd.f32 %v1909, %v1911
    %s1913 = scalar_lea.vmem [#allocation3], 24
    %v1914 = vld [vmem:[%s1913] sm:$0xff]
    %v1915 = vld [vmem:[%s1913 + $0x8] sm:$0xff]
    %v1916 = vld [vmem:[%s1913 + $0x10] sm:$0xff]
    %1917 = vmatprep.subr.mxu0 %v1706
    %1918 = vmatpush1.msra.mxu0 %v1705
    %1919 = vmatprep.subr.mxu0 %v1709
    %1920 = vmatpush1.msra.mxu0 %v1708
    %1921 = vmatprep.subr.mxu0 %v1712
    %1922 = vmatpush1.msra.mxu0 %v1711
    %1923 = vmatprep.subr.mxu0 %v1715
    %1924 = vmatpush1.msra.mxu0 %v1714
    %1925 = vmatprep.subr.mxu0 %v1718
    %1926 = vmatpush1.msra.mxu0 %v1717
    %1927 = vmatprep.subr.mxu0 %v1721
    %1928 = vmatpush1.msra.mxu0 %v1720
    %1929 = vmatprep.subr.mxu0 %v1724
    %1930 = vmatpush1.msra.mxu0 %v1723
    %1931 = vmatprep.subr.mxu0 %v1727
    %1932 = vmatpush1.msra.mxu0 %v1726
    %1933 = vmatprep.subr.mxu0 %v1730
    %1934 = vmatpush1.msra.mxu0 %v1729
    %1935 = vmatprep.subr.mxu0 %v1733
    %1936 = vmatpush1.msra.mxu0 %v1732
    %1937 = vmatprep.subr.mxu0 %v1736
    %1938 = vmatpush1.msra.mxu0 %v1735
    %1939 = vmatprep.subr.mxu0 %v1739
    %1940 = vmatpush1.msra.mxu0 %v1738
    %1941 = vmatprep.subr.mxu0 %v1742
    %1942 = vmatpush1.msra.mxu0 %v1741
    %1943 = vmatprep.subr.mxu0 %v1745
    %1944 = vmatpush1.msra.mxu0 %v1744
    %1945 = vmatprep.subr.mxu0 %v1748
    %1946 = vmatpush1.msra.mxu0 %v1747
    %1947 = vmatprep.subr.mxu0 %v1751
    %1948 = vmatpush1.msra.mxu0 %v1750
    %1949 = vmatprep.subr.mxu0 0.0
    %1950 = vmatpush1.msra.mxu0 0.0
    %1951 = vmatprep.subr.mxu0 0.0
    %1952 = vmatpush1.msra.mxu0 0.0
    %1953 = vmatprep.subr.mxu0 0.0
    %1954 = vmatpush1.msra.mxu0 0.0
    %1955 = vmatprep.subr.mxu0 0.0
    %1956 = vmatpush1.msra.mxu0 0.0
    %1957 = vmatprep.subr.mxu0 0.0
    %1958 = vmatpush1.msra.mxu0 0.0
    %1959 = vmatprep.subr.mxu0 0.0
    %1960 = vmatpush1.msra.mxu0 0.0
    %1961 = vmatprep.subr.mxu0 0.0
    %1962 = vmatpush1.msra.mxu0 0.0
    %1963 = vmatprep.subr.mxu0 0.0
    %1964 = vmatpush1.msra.mxu0 0.0
    %1965 = vmatprep.subr.mxu0 0.0
    %1966 = vmatpush1.msra.mxu0 0.0
    %1967 = vmatprep.subr.mxu0 0.0
    %1968 = vmatpush1.msra.mxu0 0.0
    %1969 = vmatprep.subr.mxu0 0.0
    %1970 = vmatpush1.msra.mxu0 0.0
    %1971 = vmatprep.subr.mxu0 0.0
    %1972 = vmatpush1.msra.mxu0 0.0
    %1973 = vmatprep.subr.mxu0 0.0
    %1974 = vmatpush1.msra.mxu0 0.0
    %1975 = vmatprep.subr.mxu0 0.0
    %1976 = vmatpush1.msra.mxu0 0.0
    %1977 = vmatprep.subr.mxu0 0.0
    %1978 = vmatpush1.msra.mxu0 0.0
    %1979 = vmatprep.subr.mxu0 0.0
    %1980 = vmatpush1.msra.mxu0 0.0
    %1981 = vmatprep.mubr.f32.mxu0 0.0
    %1982 = vmatmul.mubr.f32.gmra.mrb[0].mxu0 %v1912
    %v1983 = vpop.f32.mrb[0].mxu0
    %v1984 = vadd.f32 0.0, %v1983
    %v1985 = vpop.f32.mrb[0].mxu0
    %v1986 = vadd.f32 0.0, %v1985
    %1987 = vdwg.mxu0
    %1988 = vmatprep.subr.mxu0 0.0
    %1989 = vmatpush1.msra.mxu0 %v1707
    %1990 = vmatprep.subr.mxu0 0.0
    %1991 = vmatpush1.msra.mxu0 %v1710
    %1992 = vmatprep.subr.mxu0 0.0
    %1993 = vmatpush1.msra.mxu0 %v1713
    %1994 = vmatprep.subr.mxu0 0.0
    %1995 = vmatpush1.msra.mxu0 %v1716
    %1996 = vmatprep.subr.mxu0 0.0
    %1997 = vmatpush1.msra.mxu0 %v1719
    %1998 = vmatprep.subr.mxu0 0.0
    %1999 = vmatpush1.msra.mxu0 %v1722
    %2000 = vmatprep.subr.mxu0 0.0
    %2001 = vmatpush1.msra.mxu0 %v1725
    %2002 = vmatprep.subr.mxu0 0.0
    %2003 = vmatpush1.msra.mxu0 %v1728
    %2004 = vmatprep.subr.mxu0 0.0
    %2005 = vmatpush1.msra.mxu0 %v1731
    %2006 = vmatprep.subr.mxu0 0.0
    %2007 = vmatpush1.msra.mxu0 %v1734
    %2008 = vmatprep.subr.mxu0 0.0
    %2009 = vmatpush1.msra.mxu0 %v1737
    %2010 = vmatprep.subr.mxu0 0.0
    %2011 = vmatpush1.msra.mxu0 %v1740
    %2012 = vmatprep.subr.mxu0 0.0
    %2013 = vmatpush1.msra.mxu0 %v1743
    %2014 = vmatprep.subr.mxu0 0.0
    %2015 = vmatpush1.msra.mxu0 %v1746
    %2016 = vmatprep.subr.mxu0 0.0
    %2017 = vmatpush1.msra.mxu0 %v1749
    %2018 = vmatprep.subr.mxu0 0.0
    %2019 = vmatpush1.msra.mxu0 %v1752
    %2020 = vmatprep.subr.mxu0 0.0
    %2021 = vmatpush1.msra.mxu0 0.0
    %2022 = vmatprep.subr.mxu0 0.0
    %2023 = vmatpush1.msra.mxu0 0.0
    %2024 = vmatprep.subr.mxu0 0.0
    %2025 = vmatpush1.msra.mxu0 0.0
    %2026 = vmatprep.subr.mxu0 0.0
    %2027 = vmatpush1.msra.mxu0 0.0
    %2028 = vmatprep.subr.mxu0 0.0
    %2029 = vmatpush1.msra.mxu0 0.0
    %2030 = vmatprep.subr.mxu0 0.0
    %2031 = vmatpush1.msra.mxu0 0.0
    %2032 = vmatprep.subr.mxu0 0.0
    %2033 = vmatpush1.msra.mxu0 0.0
    %2034 = vmatprep.subr.mxu0 0.0
    %2035 = vmatpush1.msra.mxu0 0.0
    %2036 = vmatprep.subr.mxu0 0.0
    %2037 = vmatpush1.msra.mxu0 0.0
    %2038 = vmatprep.subr.mxu0 0.0
    %2039 = vmatpush1.msra.mxu0 0.0
    %2040 = vmatprep.subr.mxu0 0.0
    %2041 = vmatpush1.msra.mxu0 0.0
    %2042 = vmatprep.subr.mxu0 0.0
    %2043 = vmatpush1.msra.mxu0 0.0
    %2044 = vmatprep.subr.mxu0 0.0
    %2045 = vmatpush1.msra.mxu0 0.0
    %2046 = vmatprep.subr.mxu0 0.0
    %2047 = vmatpush1.msra.mxu0 0.0
    %2048 = vmatprep.subr.mxu0 0.0
    %2049 = vmatpush1.msra.mxu0 0.0
    %2050 = vmatprep.subr.mxu0 0.0
    %2051 = vmatpush1.msra.mxu0 0.0
    %2052 = vmatprep.mubr.f32.mxu0 0.0
    %2053 = vmatmul.mubr.f32.gmra.mrb[0].mxu0 %v1912
    %v2054 = vpop.f32.mrb[0].mxu0
    %v2055 = vadd.f32 0.0, %v2054
    %v2056 = vpop.f32.mrb[0].mxu0
    %2057 = vdwg.mxu0
    %v2058 = vadd.f32 %v1914, %v1984
    %v2059 = vmul.f32 %v2058, 0.5
    %v2060 = vtanh.pop %v2059
    %v2061 = vadd.f32 %v2060, 1.0
    %v2062 = vmul.f32 %v2061, 0.5
    %v2063 = vadd.f32 %v1915, %v1986
    %v2064 = vmul.f32 %v2063, 0.5
    %v2065 = vtanh.pop %v2064
    %v2066 = vadd.f32 %v2065, 1.0
    %v2067 = vmul.f32 %v2066, 0.5
    %v2068 = vmul.f32 %v2062, %v2055
    %v2069 = vadd.f32 %v1916, %v2068
    %v2070 = vtanh.pop %v2069
    %v2071 = vsub.f32 %v1912, %v2070
    %v2072 = vmul.f32 %v2067, %v2071
    %v2073 = vadd.f32 %v2070, %v2072
    %s2074 = scalar_lea.vmem [#allocation3], 48
    %v2075 = vld [vmem:[%s2074] sm:$0xff]
    %v2076 = vld [vmem:[%s2074 + $0x8] sm:$0xff]
    %v2077 = vld [vmem:[%s2074 + $0x10] sm:$0xff]
    %2078 = vmatprep.subr.mxu0 %v1706
    %2079 = vmatpush1.msra.mxu0 %v1705
    %2080 = vmatprep.subr.mxu0 %v1709
    %2081 = vmatpush1.msra.mxu0 %v1708
    %2082 = vmatprep.subr.mxu0 %v1712
    %2083 = vmatpush1.msra.mxu0 %v1711
    %2084 = vmatprep.subr.mxu0 %v1715
    %2085 = vmatpush1.msra.mxu0 %v1714
    %2086 = vmatprep.subr.mxu0 %v1718
    %2087 = vmatpush1.msra.mxu0 %v1717
    %2088 = vmatprep.subr.mxu0 %v1721
    %2089 = vmatpush1.msra.mxu0 %v1720
    %2090 = vmatprep.subr.mxu0 %v1724
    %2091 = vmatpush1.msra.mxu0 %v1723
    %2092 = vmatprep.subr.mxu0 %v1727
    %2093 = vmatpush1.msra.mxu0 %v1726
    %2094 = vmatprep.subr.mxu0 %v1730
    %2095 = vmatpush1.msra.mxu0 %v1729
    %2096 = vmatprep.subr.mxu0 %v1733
    %2097 = vmatpush1.msra.mxu0 %v1732
    %2098 = vmatprep.subr.mxu0 %v1736
    %2099 = vmatpush1.msra.mxu0 %v1735
    %2100 = vmatprep.subr.mxu0 %v1739
    %2101 = vmatpush1.msra.mxu0 %v1738
    %2102 = vmatprep.subr.mxu0 %v1742
    %2103 = vmatpush1.msra.mxu0 %v1741
    %2104 = vmatprep.subr.mxu0 %v1745
    %2105 = vmatpush1.msra.mxu0 %v1744
    %2106 = vmatprep.subr.mxu0 %v1748
    %2107 = vmatpush1.msra.mxu0 %v1747
    %2108 = vmatprep.subr.mxu0 %v1751
    %2109 = vmatpush1.msra.mxu0 %v1750
    %2110 = vmatprep.subr.mxu0 0.0
    %2111 = vmatpush1.msra.mxu0 0.0
    %2112 = vmatprep.subr.mxu0 0.0
    %2113 = vmatpush1.msra.mxu0 0.0
    %2114 = vmatprep.subr.mxu0 0.0
    %2115 = vmatpush1.msra.mxu0 0.0
    %2116 = vmatprep.subr.mxu0 0.0
    %2117 = vmatpush1.msra.mxu0 0.0
    %2118 = vmatprep.subr.mxu0 0.0
    %2119 = vmatpush1.msra.mxu0 0.0
    %2120 = vmatprep.subr.mxu0 0.0
    %2121 = vmatpush1.msra.mxu0 0.0
    %2122 = vmatprep.subr.mxu0 0.0
    %2123 = vmatpush1.msra.mxu0 0.0
    %2124 = vmatprep.subr.mxu0 0.0
    %2125 = vmatpush1.msra.mxu0 0.0
    %2126 = vmatprep.subr.mxu0 0.0
    %2127 = vmatpush1.msra.mxu0 0.0
    %2128 = vmatprep.subr.mxu0 0.0
    %2129 = vmatpush1.msra.mxu0 0.0
    %2130 = vmatprep.subr.mxu0 0.0
    %2131 = vmatpush1.msra.mxu0 0.0
    %2132 = vmatprep.subr.mxu0 0.0
    %2133 = vmatpush1.msra.mxu0 0.0
    %2134 = vmatprep.subr.mxu0 0.0
    %2135 = vmatpush1.msra.mxu0 0.0
    %2136 = vmatprep.subr.mxu0 0.0
    %2137 = vmatpush1.msra.mxu0 0.0
    %2138 = vmatprep.subr.mxu0 0.0
    %2139 = vmatpush1.msra.mxu0 0.0
    %2140 = vmatprep.subr.mxu0 0.0
    %2141 = vmatpush1.msra.mxu0 0.0
    %2142 = vmatprep.mubr.f32.mxu0 0.0
    %2143 = vmatmul.mubr.f32.gmra.mrb[0].mxu0 %v2073
    %v2144 = vpop.f32.mrb[0].mxu0
    %v2145 = vadd.f32 0.0, %v2144
    %v2146 = vpop.f32.mrb[0].mxu0
    %v2147 = vadd.f32 0.0, %v2146
    %2148 = vdwg.mxu0
    %2149 = vmatprep.subr.mxu0 0.0
    %2150 = vmatpush1.msra.mxu0 %v1707
    %2151 = vmatprep.subr.mxu0 0.0
    %2152 = vmatpush1.msra.mxu0 %v1710
    %2153 = vmatprep.subr.mxu0 0.0
    %2154 = vmatpush1.msra.mxu0 %v1713
    %2155 = vmatprep.subr.mxu0 0.0
    %2156 = vmatpush1.msra.mxu0 %v1716
    %2157 = vmatprep.subr.mxu0 0.0
    %2158 = vmatpush1.msra.mxu0 %v1719
    %2159 = vmatprep.subr.mxu0 0.0
    %2160 = vmatpush1.msra.mxu0 %v1722
    %2161 = vmatprep.subr.mxu0 0.0
    %2162 = vmatpush1.msra.mxu0 %v1725
    %2163 = vmatprep.subr.mxu0 0.0
    %2164 = vmatpush1.msra.mxu0 %v1728
    %2165 = vmatprep.subr.mxu0 0.0
    %2166 = vmatpush1.msra.mxu0 %v1731
    %2167 = vmatprep.subr.mxu0 0.0
    %2168 = vmatpush1.msra.mxu0 %v1734
    %2169 = vmatprep.subr.mxu0 0.0
    %2170 = vmatpush1.msra.mxu0 %v1737
    %2171 = vmatprep.subr.mxu0 0.0
    %2172 = vmatpush1.msra.mxu0 %v1740
    %2173 = vmatprep.subr.mxu0 0.0
    %2174 = vmatpush1.msra.mxu0 %v1743
    %2175 = vmatprep.subr.mxu0 0.0
    %2176 = vmatpush1.msra.mxu0 %v1746
    %2177 = vmatprep.subr.mxu0 0.0
    %2178 = vmatpush1.msra.mxu0 %v1749
    %2179 = vmatprep.subr.mxu0 0.0
    %2180 = vmatpush1.msra.mxu0 %v1752
    %2181 = vmatprep.subr.mxu0 0.0
    %2182 = vmatpush1.msra.mxu0 0.0
    %2183 = vmatprep.subr.mxu0 0.0
    %2184 = vmatpush1.msra.mxu0 0.0
    %2185 = vmatprep.subr.mxu0 0.0
    %2186 = vmatpush1.msra.mxu0 0.0
    %2187 = vmatprep.subr.mxu0 0.0
    %2188 = vmatpush1.msra.mxu0 0.0
    %2189 = vmatprep.subr.mxu0 0.0
    %2190 = vmatpush1.msra.mxu0 0.0
    %2191 = vmatprep.subr.mxu0 0.0
    %2192 = vmatpush1.msra.mxu0 0.0
    %2193 = vmatprep.subr.mxu0 0.0
    %2194 = vmatpush1.msra.mxu0 0.0
    %2195 = vmatprep.subr.mxu0 0.0
    %2196 = vmatpush1.msra.mxu0 0.0
    %2197 = vmatprep.subr.mxu0 0.0
    %2198 = vmatpush1.msra.mxu0 0.0
    %2199 = vmatprep.subr.mxu0 0.0
    %2200 = vmatpush1.msra.mxu0 0.0
    %2201 = vmatprep.subr.mxu0 0.0
    %2202 = vmatpush1.msra.mxu0 0.0
    %2203 = vmatprep.subr.mxu0 0.0
    %2204 = vmatpush1.msra.mxu0 0.0
    %2205 = vmatprep.subr.mxu0 0.0
    %2206 = vmatpush1.msra.mxu0 0.0
    %2207 = vmatprep.subr.mxu0 0.0
    %2208 = vmatpush1.msra.mxu0 0.0
    %2209 = vmatprep.subr.mxu0 0.0
    %2210 = vmatpush1.msra.mxu0 0.0
    %2211 = vmatprep.subr.mxu0 0.0
    %2212 = vmatpush1.msra.mxu0 0.0
    %2213 = vmatprep.mubr.f32.mxu0 0.0
    %2214 = vmatmul.mubr.f32.gmra.mrb[0].mxu0 %v2073
    %v2215 = vpop.f32.mrb[0].mxu0
    %v2216 = vadd.f32 0.0, %v2215
    %v2217 = vpop.f32.mrb[0].mxu0
    %2218 = vdwg.mxu0
    %v2219 = vadd.f32 %v2075, %v2145
    %v2220 = vmul.f32 %v2219, 0.5
    %v2221 = vtanh.pop %v2220
    %v2222 = vadd.f32 %v2221, 1.0
    %v2223 = vmul.f32 %v2222, 0.5
    %v2224 = vadd.f32 %v2076, %v2147
    %v2225 = vmul.f32 %v2224, 0.5
    %v2226 = vtanh.pop %v2225
    %v2227 = vadd.f32 %v2226, 1.0
    %v2228 = vmul.f32 %v2227, 0.5
    %v2229 = vmul.f32 %v2223, %v2216
    %v2230 = vadd.f32 %v2077, %v2229
    %v2231 = vtanh.pop %v2230
    %v2232 = vsub.f32 %v2073, %v2231
    %v2233 = vmul.f32 %v2228, %v2232
    %v2234 = vadd.f32 %v2231, %v2233
    %s2235 = scalar_lea.vmem [#allocation3], 72
    %v2236 = vld [vmem:[%s2235] sm:$0xff]
    %v2237 = vld [vmem:[%s2235 + $0x8] sm:$0xff]
    %v2238 = vld [vmem:[%s2235 + $0x10] sm:$0xff]
    %2239 = vmatprep.subr.mxu0 %v1706
    %2240 = vmatpush1.msra.mxu0 %v1705
    %2241 = vmatprep.subr.mxu0 %v1709
    %2242 = vmatpush1.msra.mxu0 %v1708
    %2243 = vmatprep.subr.mxu0 %v1712
    %2244 = vmatpush1.msra.mxu0 %v1711
    %2245 = vmatprep.subr.mxu0 %v1715
    %2246 = vmatpush1.msra.mxu0 %v1714
    %2247 = vmatprep.subr.mxu0 %v1718
    %2248 = vmatpush1.msra.mxu0 %v1717
    %2249 = vmatprep.subr.mxu0 %v1721
    %2250 = vmatpush1.msra.mxu0 %v1720
    %2251 = vmatprep.subr.mxu0 %v1724
    %2252 = vmatpush1.msra.mxu0 %v1723
    %2253 = vmatprep.subr.mxu0 %v1727
    %2254 = vmatpush1.msra.mxu0 %v1726
    %2255 = vmatprep.subr.mxu0 %v1730
    %2256 = vmatpush1.msra.mxu0 %v1729
    %2257 = vmatprep.subr.mxu0 %v1733
    %2258 = vmatpush1.msra.mxu0 %v1732
    %2259 = vmatprep.subr.mxu0 %v1736
    %2260 = vmatpush1.msra.mxu0 %v1735
    %2261 = vmatprep.subr.mxu0 %v1739
    %2262 = vmatpush1.msra.mxu0 %v1738
    %2263 = vmatprep.subr.mxu0 %v1742
    %2264 = vmatpush1.msra.mxu0 %v1741
    %2265 = vmatprep.subr.mxu0 %v1745
    %2266 = vmatpush1.msra.mxu0 %v1744
    %2267 = vmatprep.subr.mxu0 %v1748
    %2268 = vmatpush1.msra.mxu0 %v1747
    %2269 = vmatprep.subr.mxu0 %v1751
    %2270 = vmatpush1.msra.mxu0 %v1750
    %2271 = vmatprep.subr.mxu0 0.0
    %2272 = vmatpush1.msra.mxu0 0.0
    %2273 = vmatprep.subr.mxu0 0.0
    %2274 = vmatpush1.msra.mxu0 0.0
    %2275 = vmatprep.subr.mxu0 0.0
    %2276 = vmatpush1.msra.mxu0 0.0
    %2277 = vmatprep.subr.mxu0 0.0
    %2278 = vmatpush1.msra.mxu0 0.0
    %2279 = vmatprep.subr.mxu0 0.0
    %2280 = vmatpush1.msra.mxu0 0.0
    %2281 = vmatprep.subr.mxu0 0.0
    %2282 = vmatpush1.msra.mxu0 0.0
    %2283 = vmatprep.subr.mxu0 0.0
    %2284 = vmatpush1.msra.mxu0 0.0
    %2285 = vmatprep.subr.mxu0 0.0
    %2286 = vmatpush1.msra.mxu0 0.0
    %2287 = vmatprep.subr.mxu0 0.0
    %2288 = vmatpush1.msra.mxu0 0.0
    %2289 = vmatprep.subr.mxu0 0.0
    %2290 = vmatpush1.msra.mxu0 0.0
    %2291 = vmatprep.subr.mxu0 0.0
    %2292 = vmatpush1.msra.mxu0 0.0
    %2293 = vmatprep.subr.mxu0 0.0
    %2294 = vmatpush1.msra.mxu0 0.0
    %2295 = vmatprep.subr.mxu0 0.0
    %2296 = vmatpush1.msra.mxu0 0.0
    %2297 = vmatprep.subr.mxu0 0.0
    %2298 = vmatpush1.msra.mxu0 0.0
    %2299 = vmatprep.subr.mxu0 0.0
    %2300 = vmatpush1.msra.mxu0 0.0
    %2301 = vmatprep.subr.mxu0 0.0
    %2302 = vmatpush1.msra.mxu0 0.0
    %2303 = vmatprep.mubr.f32.mxu0 0.0
    %2304 = vmatmul.mubr.f32.gmra.mrb[0].mxu0 %v2234
    %v2305 = vpop.f32.mrb[0].mxu0
    %v2306 = vadd.f32 0.0, %v2305
    %v2307 = vpop.f32.mrb[0].mxu0
    %v2308 = vadd.f32 0.0, %v2307
    %2309 = vdwg.mxu0
    %2310 = vmatprep.subr.mxu0 0.0
    %2311 = vmatpush1.msra.mxu0 %v1707
    %2312 = vmatprep.subr.mxu0 0.0
    %2313 = vmatpush1.msra.mxu0 %v1710
    %2314 = vmatprep.subr.mxu0 0.0
    %2315 = vmatpush1.msra.mxu0 %v1713
    %2316 = vmatprep.subr.mxu0 0.0
    %2317 = vmatpush1.msra.mxu0 %v1716
    %2318 = vmatprep.subr.mxu0 0.0
    %2319 = vmatpush1.msra.mxu0 %v1719
    %2320 = vmatprep.subr.mxu0 0.0
    %2321 = vmatpush1.msra.mxu0 %v1722
    %2322 = vmatprep.subr.mxu0 0.0
    %2323 = vmatpush1.msra.mxu0 %v1725
    %2324 = vmatprep.subr.mxu0 0.0
    %2325 = vmatpush1.msra.mxu0 %v1728
    %2326 = vmatprep.subr.mxu0 0.0
    %2327 = vmatpush1.msra.mxu0 %v1731
    %2328 = vmatprep.subr.mxu0 0.0
    %2329 = vmatpush1.msra.mxu0 %v1734
    %2330 = vmatprep.subr.mxu0 0.0
    %2331 = vmatpush1.msra.mxu0 %v1737
    %2332 = vmatprep.subr.mxu0 0.0
    %2333 = vmatpush1.msra.mxu0 %v1740
    %2334 = vmatprep.subr.mxu0 0.0
    %2335 = vmatpush1.msra.mxu0 %v1743
    %2336 = vmatprep.subr.mxu0 0.0
    %2337 = vmatpush1.msra.mxu0 %v1746
    %2338 = vmatprep.subr.mxu0 0.0
    %2339 = vmatpush1.msra.mxu0 %v1749
    %2340 = vmatprep.subr.mxu0 0.0
    %2341 = vmatpush1.msra.mxu0 %v1752
    %2342 = vmatprep.subr.mxu0 0.0
    %2343 = vmatpush1.msra.mxu0 0.0
    %2344 = vmatprep.subr.mxu0 0.0
    %2345 = vmatpush1.msra.mxu0 0.0
    %2346 = vmatprep.subr.mxu0 0.0
    %2347 = vmatpush1.msra.mxu0 0.0
    %2348 = vmatprep.subr.mxu0 0.0
    %2349 = vmatpush1.msra.mxu0 0.0
    %2350 = vmatprep.subr.mxu0 0.0
    %2351 = vmatpush1.msra.mxu0 0.0
    %2352 = vmatprep.subr.mxu0 0.0
    %2353 = vmatpush1.msra.mxu0 0.0
    %2354 = vmatprep.subr.mxu0 0.0
    %2355 = vmatpush1.msra.mxu0 0.0
    %2356 = vmatprep.subr.mxu0 0.0
    %2357 = vmatpush1.msra.mxu0 0.0
    %2358 = vmatprep.subr.mxu0 0.0
    %2359 = vmatpush1.msra.mxu0 0.0
    %2360 = vmatprep.subr.mxu0 0.0
    %2361 = vmatpush1.msra.mxu0 0.0
    %2362 = vmatprep.subr.mxu0 0.0
    %2363 = vmatpush1.msra.mxu0 0.0
    %2364 = vmatprep.subr.mxu0 0.0
    %2365 = vmatpush1.msra.mxu0 0.0
    %2366 = vmatprep.subr.mxu0 0.0
    %2367 = vmatpush1.msra.mxu0 0.0
    %2368 = vmatprep.subr.mxu0 0.0
    %2369 = vmatpush1.msra.mxu0 0.0
    %2370 = vmatprep.subr.mxu0 0.0
    %2371 = vmatpush1.msra.mxu0 0.0
    %2372 = vmatprep.subr.mxu0 0.0
    %2373 = vmatpush1.msra.mxu0 0.0
    %2374 = vmatprep.mubr.f32.mxu0 0.0
    %2375 = vmatmul.mubr.f32.gmra.mrb[0].mxu0 %v2234
    %v2376 = vpop.f32.mrb[0].mxu0
    %v2377 = vadd.f32 0.0, %v2376
    %v2378 = vpop.f32.mrb[0].mxu0
    %2379 = vdwg.mxu0
    %v2380 = vadd.f32 %v2236, %v2306
    %v2381 = vmul.f32 %v2380, 0.5
    %v2382 = vtanh.pop %v2381
    %v2383 = vadd.f32 %v2382, 1.0
    %v2384 = vmul.f32 %v2383, 0.5
    %v2385 = vadd.f32 %v2237, %v2308
    %v2386 = vmul.f32 %v2385, 0.5
    %v2387 = vtanh.pop %v2386
    %v2388 = vadd.f32 %v2387, 1.0
    %v2389 = vmul.f32 %v2388, 0.5
    %v2390 = vmul.f32 %v2384, %v2377
    %v2391 = vadd.f32 %v2238, %v2390
    %v2392 = vtanh.pop %v2391
    %v2393 = vsub.f32 %v2234, %v2392
    %v2394 = vmul.f32 %v2389, %v2393
    %v2395 = vadd.f32 %v2392, %v2394
    %s2396 = scalar_lea.vmem [#allocation3], 96
    %v2397 = vld [vmem:[%s2396] sm:$0xff]
    %v2398 = vld [vmem:[%s2396 + $0x8] sm:$0xff]
    %v2399 = vld [vmem:[%s2396 + $0x10] sm:$0xff]
    %2400 = vmatprep.subr.mxu0 %v1706
    %2401 = vmatpush1.msra.mxu0 %v1705
    %2402 = vmatprep.subr.mxu0 %v1709
    %2403 = vmatpush1.msra.mxu0 %v1708
    %2404 = vmatprep.subr.mxu0 %v1712
    %2405 = vmatpush1.msra.mxu0 %v1711
    %2406 = vmatprep.subr.mxu0 %v1715
    %2407 = vmatpush1.msra.mxu0 %v1714
    %2408 = vmatprep.subr.mxu0 %v1718
    %2409 = vmatpush1.msra.mxu0 %v1717
    %2410 = vmatprep.subr.mxu0 %v1721
    %2411 = vmatpush1.msra.mxu0 %v1720
    %2412 = vmatprep.subr.mxu0 %v1724
    %2413 = vmatpush1.msra.mxu0 %v1723
    %2414 = vmatprep.subr.mxu0 %v1727
    %2415 = vmatpush1.msra.mxu0 %v1726
    %2416 = vmatprep.subr.mxu0 %v1730
    %2417 = vmatpush1.msra.mxu0 %v1729
    %2418 = vmatprep.subr.mxu0 %v1733
    %2419 = vmatpush1.msra.mxu0 %v1732
    %2420 = vmatprep.subr.mxu0 %v1736
    %2421 = vmatpush1.msra.mxu0 %v1735
    %2422 = vmatprep.subr.mxu0 %v1739
    %2423 = vmatpush1.msra.mxu0 %v1738
    %2424 = vmatprep.subr.mxu0 %v1742
    %2425 = vmatpush1.msra.mxu0 %v1741
    %2426 = vmatprep.subr.mxu0 %v1745
    %2427 = vmatpush1.msra.mxu0 %v1744
    %2428 = vmatprep.subr.mxu0 %v1748
    %2429 = vmatpush1.msra.mxu0 %v1747
    %2430 = vmatprep.subr.mxu0 %v1751
    %2431 = vmatpush1.msra.mxu0 %v1750
    %2432 = vmatprep.subr.mxu0 0.0
    %2433 = vmatpush1.msra.mxu0 0.0
    %2434 = vmatprep.subr.mxu0 0.0
    %2435 = vmatpush1.msra.mxu0 0.0
    %2436 = vmatprep.subr.mxu0 0.0
    %2437 = vmatpush1.msra.mxu0 0.0
    %2438 = vmatprep.subr.mxu0 0.0
    %2439 = vmatpush1.msra.mxu0 0.0
    %2440 = vmatprep.subr.mxu0 0.0
    %2441 = vmatpush1.msra.mxu0 0.0
    %2442 = vmatprep.subr.mxu0 0.0
    %2443 = vmatpush1.msra.mxu0 0.0
    %2444 = vmatprep.subr.mxu0 0.0
    %2445 = vmatpush1.msra.mxu0 0.0
    %2446 = vmatprep.subr.mxu0 0.0
    %2447 = vmatpush1.msra.mxu0 0.0
    %2448 = vmatprep.subr.mxu0 0.0
    %2449 = vmatpush1.msra.mxu0 0.0
    %2450 = vmatprep.subr.mxu0 0.0
    %2451 = vmatpush1.msra.mxu0 0.0
    %2452 = vmatprep.subr.mxu0 0.0
    %2453 = vmatpush1.msra.mxu0 0.0
    %2454 = vmatprep.subr.mxu0 0.0
    %2455 = vmatpush1.msra.mxu0 0.0
    %2456 = vmatprep.subr.mxu0 0.0
    %2457 = vmatpush1.msra.mxu0 0.0
    %2458 = vmatprep.subr.mxu0 0.0
    %2459 = vmatpush1.msra.mxu0 0.0
    %2460 = vmatprep.subr.mxu0 0.0
    %2461 = vmatpush1.msra.mxu0 0.0
    %2462 = vmatprep.subr.mxu0 0.0
    %2463 = vmatpush1.msra.mxu0 0.0
    %2464 = vmatprep.mubr.f32.mxu0 0.0
    %2465 = vmatmul.mubr.f32.gmra.mrb[0].mxu0 %v2395
    %v2466 = vpop.f32.mrb[0].mxu0
    %v2467 = vadd.f32 0.0, %v2466
    %v2468 = vpop.f32.mrb[0].mxu0
    %v2469 = vadd.f32 0.0, %v2468
    %2470 = vdwg.mxu0
    %2471 = vmatprep.subr.mxu0 0.0
    %2472 = vmatpush1.msra.mxu0 %v1707
    %2473 = vmatprep.subr.mxu0 0.0
    %2474 = vmatpush1.msra.mxu0 %v1710
    %2475 = vmatprep.subr.mxu0 0.0
    %2476 = vmatpush1.msra.mxu0 %v1713
    %2477 = vmatprep.subr.mxu0 0.0
    %2478 = vmatpush1.msra.mxu0 %v1716
    %2479 = vmatprep.subr.mxu0 0.0
    %2480 = vmatpush1.msra.mxu0 %v1719
    %2481 = vmatprep.subr.mxu0 0.0
    %2482 = vmatpush1.msra.mxu0 %v1722
    %2483 = vmatprep.subr.mxu0 0.0
    %2484 = vmatpush1.msra.mxu0 %v1725
    %2485 = vmatprep.subr.mxu0 0.0
    %2486 = vmatpush1.msra.mxu0 %v1728
    %2487 = vmatprep.subr.mxu0 0.0
    %2488 = vmatpush1.msra.mxu0 %v1731
    %2489 = vmatprep.subr.mxu0 0.0
    %2490 = vmatpush1.msra.mxu0 %v1734
    %2491 = vmatprep.subr.mxu0 0.0
    %2492 = vmatpush1.msra.mxu0 %v1737
    %2493 = vmatprep.subr.mxu0 0.0
    %2494 = vmatpush1.msra.mxu0 %v1740
    %2495 = vmatprep.subr.mxu0 0.0
    %2496 = vmatpush1.msra.mxu0 %v1743
    %2497 = vmatprep.subr.mxu0 0.0
    %2498 = vmatpush1.msra.mxu0 %v1746
    %2499 = vmatprep.subr.mxu0 0.0
    %2500 = vmatpush1.msra.mxu0 %v1749
    %2501 = vmatprep.subr.mxu0 0.0
    %2502 = vmatpush1.msra.mxu0 %v1752
    %2503 = vmatprep.subr.mxu0 0.0
    %2504 = vmatpush1.msra.mxu0 0.0
    %2505 = vmatprep.subr.mxu0 0.0
    %2506 = vmatpush1.msra.mxu0 0.0
    %2507 = vmatprep.subr.mxu0 0.0
    %2508 = vmatpush1.msra.mxu0 0.0
    %2509 = vmatprep.subr.mxu0 0.0
    %2510 = vmatpush1.msra.mxu0 0.0
    %2511 = vmatprep.subr.mxu0 0.0
    %2512 = vmatpush1.msra.mxu0 0.0
    %2513 = vmatprep.subr.mxu0 0.0
    %2514 = vmatpush1.msra.mxu0 0.0
    %2515 = vmatprep.subr.mxu0 0.0
    %2516 = vmatpush1.msra.mxu0 0.0
    %2517 = vmatprep.subr.mxu0 0.0
    %2518 = vmatpush1.msra.mxu0 0.0
    %2519 = vmatprep.subr.mxu0 0.0
    %2520 = vmatpush1.msra.mxu0 0.0
    %2521 = vmatprep.subr.mxu0 0.0
    %2522 = vmatpush1.msra.mxu0 0.0
    %2523 = vmatprep.subr.mxu0 0.0
    %2524 = vmatpush1.msra.mxu0 0.0
    %2525 = vmatprep.subr.mxu0 0.0
    %2526 = vmatpush1.msra.mxu0 0.0
    %2527 = vmatprep.subr.mxu0 0.0
    %2528 = vmatpush1.msra.mxu0 0.0
    %2529 = vmatprep.subr.mxu0 0.0
    %2530 = vmatpush1.msra.mxu0 0.0
    %2531 = vmatprep.subr.mxu0 0.0
    %2532 = vmatpush1.msra.mxu0 0.0
    %2533 = vmatprep.subr.mxu0 0.0
    %2534 = vmatpush1.msra.mxu0 0.0
    %2535 = vmatprep.mubr.f32.mxu0 0.0
    %2536 = vmatmul.mubr.f32.gmra.mrb[0].mxu0 %v2395
    %v2537 = vpop.f32.mrb[0].mxu0
    %v2538 = vadd.f32 0.0, %v2537
    %v2539 = vpop.f32.mrb[0].mxu0
    %2540 = vdwg.mxu0
    %v2541 = vadd.f32 %v2397, %v2467
    %v2542 = vmul.f32 %v2541, 0.5
    %v2543 = vtanh.pop %v2542
    %v2544 = vadd.f32 %v2543, 1.0
    %v2545 = vmul.f32 %v2544, 0.5
    %v2546 = vadd.f32 %v2398, %v2469
    %v2547 = vmul.f32 %v2546, 0.5
    %v2548 = vtanh.pop %v2547
    %v2549 = vadd.f32 %v2548, 1.0
    %v2550 = vmul.f32 %v2549, 0.5
    %v2551 = vmul.f32 %v2545, %v2538
    %v2552 = vadd.f32 %v2399, %v2551
    %v2553 = vtanh.pop %v2552
    %v2554 = vsub.f32 %v2395, %v2553
    %v2555 = vmul.f32 %v2550, %v2554
    %v2556 = vadd.f32 %v2553, %v2555
    %s2557 = scalar_lea.vmem [#allocation3], 120
    %v2558 = vld [vmem:[%s2557] sm:$0xff]
    %v2559 = vld [vmem:[%s2557 + $0x8] sm:$0xff]
    %v2560 = vld [vmem:[%s2557 + $0x10] sm:$0xff]
    %2561 = vmatprep.subr.mxu0 %v1706
    %2562 = vmatpush1.msra.mxu0 %v1705
    %2563 = vmatprep.subr.mxu0 %v1709
    %2564 = vmatpush1.msra.mxu0 %v1708
    %2565 = vmatprep.subr.mxu0 %v1712
    %2566 = vmatpush1.msra.mxu0 %v1711
    %2567 = vmatprep.subr.mxu0 %v1715
    %2568 = vmatpush1.msra.mxu0 %v1714
    %2569 = vmatprep.subr.mxu0 %v1718
    %2570 = vmatpush1.msra.mxu0 %v1717
    %2571 = vmatprep.subr.mxu0 %v1721
    %2572 = vmatpush1.msra.mxu0 %v1720
    %2573 = vmatprep.subr.mxu0 %v1724
    %2574 = vmatpush1.msra.mxu0 %v1723
    %2575 = vmatprep.subr.mxu0 %v1727
    %2576 = vmatpush1.msra.mxu0 %v1726
    %2577 = vmatprep.subr.mxu0 %v1730
    %2578 = vmatpush1.msra.mxu0 %v1729
    %2579 = vmatprep.subr.mxu0 %v1733
    %2580 = vmatpush1.msra.mxu0 %v1732
    %2581 = vmatprep.subr.mxu0 %v1736
    %2582 = vmatpush1.msra.mxu0 %v1735
    %2583 = vmatprep.subr.mxu0 %v1739
    %2584 = vmatpush1.msra.mxu0 %v1738
    %2585 = vmatprep.subr.mxu0 %v1742
    %2586 = vmatpush1.msra.mxu0 %v1741
    %2587 = vmatprep.subr.mxu0 %v1745
    %2588 = vmatpush1.msra.mxu0 %v1744
    %2589 = vmatprep.subr.mxu0 %v1748
    %2590 = vmatpush1.msra.mxu0 %v1747
    %2591 = vmatprep.subr.mxu0 %v1751
    %2592 = vmatpush1.msra.mxu0 %v1750
    %2593 = vmatprep.subr.mxu0 0.0
    %2594 = vmatpush1.msra.mxu0 0.0
    %2595 = vmatprep.subr.mxu0 0.0
    %2596 = vmatpush1.msra.mxu0 0.0
    %2597 = vmatprep.subr.mxu0 0.0
    %2598 = vmatpush1.msra.mxu0 0.0
    %2599 = vmatprep.subr.mxu0 0.0
    %2600 = vmatpush1.msra.mxu0 0.0
    %2601 = vmatprep.subr.mxu0 0.0
    %2602 = vmatpush1.msra.mxu0 0.0
    %2603 = vmatprep.subr.mxu0 0.0
    %2604 = vmatpush1.msra.mxu0 0.0
    %2605 = vmatprep.subr.mxu0 0.0
    %2606 = vmatpush1.msra.mxu0 0.0
    %2607 = vmatprep.subr.mxu0 0.0
    %2608 = vmatpush1.msra.mxu0 0.0
    %2609 = vmatprep.subr.mxu0 0.0
    %2610 = vmatpush1.msra.mxu0 0.0
    %2611 = vmatprep.subr.mxu0 0.0
    %2612 = vmatpush1.msra.mxu0 0.0
    %2613 = vmatprep.subr.mxu0 0.0
    %2614 = vmatpush1.msra.mxu0 0.0
    %2615 = vmatprep.subr.mxu0 0.0
    %2616 = vmatpush1.msra.mxu0 0.0
    %2617 = vmatprep.subr.mxu0 0.0
    %2618 = vmatpush1.msra.mxu0 0.0
    %2619 = vmatprep.subr.mxu0 0.0
    %2620 = vmatpush1.msra.mxu0 0.0
    %2621 = vmatprep.subr.mxu0 0.0
    %2622 = vmatpush1.msra.mxu0 0.0
    %2623 = vmatprep.subr.mxu0 0.0
    %2624 = vmatpush1.msra.mxu0 0.0
    %2625 = vmatprep.mubr.f32.mxu0 0.0
    %2626 = vmatmul.mubr.f32.gmra.mrb[0].mxu0 %v2556
    %v2627 = vpop.f32.mrb[0].mxu0
    %v2628 = vadd.f32 0.0, %v2627
    %v2629 = vpop.f32.mrb[0].mxu0
    %v2630 = vadd.f32 0.0, %v2629
    %2631 = vdwg.mxu0
    %2632 = vmatprep.subr.mxu0 0.0
    %2633 = vmatpush1.msra.mxu0 %v1707
    %2634 = vmatprep.subr.mxu0 0.0
    %2635 = vmatpush1.msra.mxu0 %v1710
    %2636 = vmatprep.subr.mxu0 0.0
    %2637 = vmatpush1.msra.mxu0 %v1713
    %2638 = vmatprep.subr.mxu0 0.0
    %2639 = vmatpush1.msra.mxu0 %v1716
    %2640 = vmatprep.subr.mxu0 0.0
    %2641 = vmatpush1.msra.mxu0 %v1719
    %2642 = vmatprep.subr.mxu0 0.0
    %2643 = vmatpush1.msra.mxu0 %v1722
    %2644 = vmatprep.subr.mxu0 0.0
    %2645 = vmatpush1.msra.mxu0 %v1725
    %2646 = vmatprep.subr.mxu0 0.0
    %2647 = vmatpush1.msra.mxu0 %v1728
    %2648 = vmatprep.subr.mxu0 0.0
    %2649 = vmatpush1.msra.mxu0 %v1731
    %2650 = vmatprep.subr.mxu0 0.0
    %2651 = vmatpush1.msra.mxu0 %v1734
    %2652 = vmatprep.subr.mxu0 0.0
    %2653 = vmatpush1.msra.mxu0 %v1737
    %2654 = vmatprep.subr.mxu0 0.0
    %2655 = vmatpush1.msra.mxu0 %v1740
    %2656 = vmatprep.subr.mxu0 0.0
    %2657 = vmatpush1.msra.mxu0 %v1743
    %2658 = vmatprep.subr.mxu0 0.0
    %2659 = vmatpush1.msra.mxu0 %v1746
    %2660 = vmatprep.subr.mxu0 0.0
    %2661 = vmatpush1.msra.mxu0 %v1749
    %2662 = vmatprep.subr.mxu0 0.0
    %2663 = vmatpush1.msra.mxu0 %v1752
    %2664 = vmatprep.subr.mxu0 0.0
    %2665 = vmatpush1.msra.mxu0 0.0
    %2666 = vmatprep.subr.mxu0 0.0
    %2667 = vmatpush1.msra.mxu0 0.0
    %2668 = vmatprep.subr.mxu0 0.0
    %2669 = vmatpush1.msra.mxu0 0.0
    %2670 = vmatprep.subr.mxu0 0.0
    %2671 = vmatpush1.msra.mxu0 0.0
    %2672 = vmatprep.subr.mxu0 0.0
    %2673 = vmatpush1.msra.mxu0 0.0
    %2674 = vmatprep.subr.mxu0 0.0
    %2675 = vmatpush1.msra.mxu0 0.0
    %2676 = vmatprep.subr.mxu0 0.0
    %2677 = vmatpush1.msra.mxu0 0.0
    %2678 = vmatprep.subr.mxu0 0.0
    %2679 = vmatpush1.msra.mxu0 0.0
    %2680 = vmatprep.subr.mxu0 0.0
    %2681 = vmatpush1.msra.mxu0 0.0
    %2682 = vmatprep.subr.mxu0 0.0
    %2683 = vmatpush1.msra.mxu0 0.0
    %2684 = vmatprep.subr.mxu0 0.0
    %2685 = vmatpush1.msra.mxu0 0.0
    %2686 = vmatprep.subr.mxu0 0.0
    %2687 = vmatpush1.msra.mxu0 0.0
    %2688 = vmatprep.subr.mxu0 0.0
    %2689 = vmatpush1.msra.mxu0 0.0
    %2690 = vmatprep.subr.mxu0 0.0
    %2691 = vmatpush1.msra.mxu0 0.0
    %2692 = vmatprep.subr.mxu0 0.0
    %2693 = vmatpush1.msra.mxu0 0.0
    %2694 = vmatprep.subr.mxu0 0.0
    %2695 = vmatpush1.msra.mxu0 0.0
    %2696 = vmatprep.mubr.f32.mxu0 0.0
    %2697 = vmatmul.mubr.f32.gmra.mrb[0].mxu0 %v2556
    %v2698 = vpop.f32.mrb[0].mxu0
    %v2699 = vadd.f32 0.0, %v2698
    %v2700 = vpop.f32.mrb[0].mxu0
    %2701 = vdwg.mxu0
    %v2702 = vadd.f32 %v2558, %v2628
    %v2703 = vmul.f32 %v2702, 0.5
    %v2704 = vtanh.pop %v2703
    %v2705 = vadd.f32 %v2704, 1.0
    %v2706 = vmul.f32 %v2705, 0.5
    %v2707 = vadd.f32 %v2559, %v2630
    %v2708 = vmul.f32 %v2707, 0.5
    %v2709 = vtanh.pop %v2708
    %v2710 = vadd.f32 %v2709, 1.0
    %v2711 = vmul.f32 %v2710, 0.5
    %v2712 = vmul.f32 %v2706, %v2699
    %v2713 = vadd.f32 %v2560, %v2712
    %v2714 = vtanh.pop %v2713
    %v2715 = vsub.f32 %v2556, %v2714
    %v2716 = vmul.f32 %v2711, %v2715
    %v2717 = vadd.f32 %v2714, %v2716
    %s2718 = scalar_lea.vmem [#allocation3], 144
    %v2719 = vld [vmem:[%s2718] sm:$0xff]
    %v2720 = vld [vmem:[%s2718 + $0x8] sm:$0xff]
    %v2721 = vld [vmem:[%s2718 + $0x10] sm:$0xff]
    %2722 = vmatprep.subr.mxu0 %v1706
    %2723 = vmatpush1.msra.mxu0 %v1705
    %2724 = vmatprep.subr.mxu0 %v1709
    %2725 = vmatpush1.msra.mxu0 %v1708
    %2726 = vmatprep.subr.mxu0 %v1712
    %2727 = vmatpush1.msra.mxu0 %v1711
    %2728 = vmatprep.subr.mxu0 %v1715
    %2729 = vmatpush1.msra.mxu0 %v1714
    %2730 = vmatprep.subr.mxu0 %v1718
    %2731 = vmatpush1.msra.mxu0 %v1717
    %2732 = vmatprep.subr.mxu0 %v1721
    %2733 = vmatpush1.msra.mxu0 %v1720
    %2734 = vmatprep.subr.mxu0 %v1724
    %2735 = vmatpush1.msra.mxu0 %v1723
    %2736 = vmatprep.subr.mxu0 %v1727
    %2737 = vmatpush1.msra.mxu0 %v1726
    %2738 = vmatprep.subr.mxu0 %v1730
    %2739 = vmatpush1.msra.mxu0 %v1729
    %2740 = vmatprep.subr.mxu0 %v1733
    %2741 = vmatpush1.msra.mxu0 %v1732
    %2742 = vmatprep.subr.mxu0 %v1736
    %2743 = vmatpush1.msra.mxu0 %v1735
    %2744 = vmatprep.subr.mxu0 %v1739
    %2745 = vmatpush1.msra.mxu0 %v1738
    %2746 = vmatprep.subr.mxu0 %v1742
    %2747 = vmatpush1.msra.mxu0 %v1741
    %2748 = vmatprep.subr.mxu0 %v1745
    %2749 = vmatpush1.msra.mxu0 %v1744
    %2750 = vmatprep.subr.mxu0 %v1748
    %2751 = vmatpush1.msra.mxu0 %v1747
    %2752 = vmatprep.subr.mxu0 %v1751
    %2753 = vmatpush1.msra.mxu0 %v1750
    %2754 = vmatprep.subr.mxu0 0.0
    %2755 = vmatpush1.msra.mxu0 0.0
    %2756 = vmatprep.subr.mxu0 0.0
    %2757 = vmatpush1.msra.mxu0 0.0
    %2758 = vmatprep.subr.mxu0 0.0
    %2759 = vmatpush1.msra.mxu0 0.0
    %2760 = vmatprep.subr.mxu0 0.0
    %2761 = vmatpush1.msra.mxu0 0.0
    %2762 = vmatprep.subr.mxu0 0.0
    %2763 = vmatpush1.msra.mxu0 0.0
    %2764 = vmatprep.subr.mxu0 0.0
    %2765 = vmatpush1.msra.mxu0 0.0
    %2766 = vmatprep.subr.mxu0 0.0
    %2767 = vmatpush1.msra.mxu0 0.0
    %2768 = vmatprep.subr.mxu0 0.0
    %2769 = vmatpush1.msra.mxu0 0.0
    %2770 = vmatprep.subr.mxu0 0.0
    %2771 = vmatpush1.msra.mxu0 0.0
    %2772 = vmatprep.subr.mxu0 0.0
    %2773 = vmatpush1.msra.mxu0 0.0
    %2774 = vmatprep.subr.mxu0 0.0
    %2775 = vmatpush1.msra.mxu0 0.0
    %2776 = vmatprep.subr.mxu0 0.0
    %2777 = vmatpush1.msra.mxu0 0.0
    %2778 = vmatprep.subr.mxu0 0.0
    %2779 = vmatpush1.msra.mxu0 0.0
    %2780 = vmatprep.subr.mxu0 0.0
    %2781 = vmatpush1.msra.mxu0 0.0
    %2782 = vmatprep.subr.mxu0 0.0
    %2783 = vmatpush1.msra.mxu0 0.0
    %2784 = vmatprep.subr.mxu0 0.0
    %2785 = vmatpush1.msra.mxu0 0.0
    %2786 = vmatprep.mubr.f32.mxu0 0.0
    %2787 = vmatmul.mubr.f32.gmra.mrb[0].mxu0 %v2717
    %v2788 = vpop.f32.mrb[0].mxu0
    %v2789 = vadd.f32 0.0, %v2788
    %v2790 = vpop.f32.mrb[0].mxu0
    %v2791 = vadd.f32 0.0, %v2790
    %2792 = vdwg.mxu0
    %2793 = vmatprep.subr.mxu0 0.0
    %2794 = vmatpush1.msra.mxu0 %v1707
    %2795 = vmatprep.subr.mxu0 0.0
    %2796 = vmatpush1.msra.mxu0 %v1710
    %2797 = vmatprep.subr.mxu0 0.0
    %2798 = vmatpush1.msra.mxu0 %v1713
    %2799 = vmatprep.subr.mxu0 0.0
    %2800 = vmatpush1.msra.mxu0 %v1716
    %2801 = vmatprep.subr.mxu0 0.0
    %2802 = vmatpush1.msra.mxu0 %v1719
    %2803 = vmatprep.subr.mxu0 0.0
    %2804 = vmatpush1.msra.mxu0 %v1722
    %2805 = vmatprep.subr.mxu0 0.0
    %2806 = vmatpush1.msra.mxu0 %v1725
    %2807 = vmatprep.subr.mxu0 0.0
    %2808 = vmatpush1.msra.mxu0 %v1728
    %2809 = vmatprep.subr.mxu0 0.0
    %2810 = vmatpush1.msra.mxu0 %v1731
    %2811 = vmatprep.subr.mxu0 0.0
    %2812 = vmatpush1.msra.mxu0 %v1734
    %2813 = vmatprep.subr.mxu0 0.0
    %2814 = vmatpush1.msra.mxu0 %v1737
    %2815 = vmatprep.subr.mxu0 0.0
    %2816 = vmatpush1.msra.mxu0 %v1740
    %2817 = vmatprep.subr.mxu0 0.0
    %2818 = vmatpush1.msra.mxu0 %v1743
    %2819 = vmatprep.subr.mxu0 0.0
    %2820 = vmatpush1.msra.mxu0 %v1746
    %2821 = vmatprep.subr.mxu0 0.0
    %2822 = vmatpush1.msra.mxu0 %v1749
    %2823 = vmatprep.subr.mxu0 0.0
    %2824 = vmatpush1.msra.mxu0 %v1752
    %2825 = vmatprep.subr.mxu0 0.0
    %2826 = vmatpush1.msra.mxu0 0.0
    %2827 = vmatprep.subr.mxu0 0.0
    %2828 = vmatpush1.msra.mxu0 0.0
    %2829 = vmatprep.subr.mxu0 0.0
    %2830 = vmatpush1.msra.mxu0 0.0
    %2831 = vmatprep.subr.mxu0 0.0
    %2832 = vmatpush1.msra.mxu0 0.0
    %2833 = vmatprep.subr.mxu0 0.0
    %2834 = vmatpush1.msra.mxu0 0.0
    %2835 = vmatprep.subr.mxu0 0.0
    %2836 = vmatpush1.msra.mxu0 0.0
    %2837 = vmatprep.subr.mxu0 0.0
    %2838 = vmatpush1.msra.mxu0 0.0
    %2839 = vmatprep.subr.mxu0 0.0
    %2840 = vmatpush1.msra.mxu0 0.0
    %2841 = vmatprep.subr.mxu0 0.0
    %2842 = vmatpush1.msra.mxu0 0.0
    %2843 = vmatprep.subr.mxu0 0.0
    %2844 = vmatpush1.msra.mxu0 0.0
    %2845 = vmatprep.subr.mxu0 0.0
    %2846 = vmatpush1.msra.mxu0 0.0
    %2847 = vmatprep.subr.mxu0 0.0
    %2848 = vmatpush1.msra.mxu0 0.0
    %2849 = vmatprep.subr.mxu0 0.0
    %2850 = vmatpush1.msra.mxu0 0.0
    %2851 = vmatprep.subr.mxu0 0.0
    %2852 = vmatpush1.msra.mxu0 0.0
    %2853 = vmatprep.subr.mxu0 0.0
    %2854 = vmatpush1.msra.mxu0 0.0
    %2855 = vmatprep.subr.mxu0 0.0
    %2856 = vmatpush1.msra.mxu0 0.0
    %2857 = vmatprep.mubr.f32.mxu0 0.0
    %2858 = vmatmul.mubr.f32.gmra.mrb[0].mxu0 %v2717
    %v2859 = vpop.f32.mrb[0].mxu0
    %v2860 = vadd.f32 0.0, %v2859
    %v2861 = vpop.f32.mrb[0].mxu0
    %2862 = vdwg.mxu0
    %v2863 = vadd.f32 %v2719, %v2789
    %v2864 = vmul.f32 %v2863, 0.5
    %v2865 = vtanh.pop %v2864
    %v2866 = vadd.f32 %v2865, 1.0
    %v2867 = vmul.f32 %v2866, 0.5
    %v2868 = vadd.f32 %v2720, %v2791
    %v2869 = vmul.f32 %v2868, 0.5
    %v2870 = vtanh.pop %v2869
    %v2871 = vadd.f32 %v2870, 1.0
    %v2872 = vmul.f32 %v2871, 0.5
    %v2873 = vmul.f32 %v2867, %v2860
    %v2874 = vadd.f32 %v2721, %v2873
    %v2875 = vtanh.pop %v2874
    %v2876 = vsub.f32 %v2717, %v2875
    %v2877 = vmul.f32 %v2872, %v2876
    %v2878 = vadd.f32 %v2875, %v2877
    %s2879 = scalar_lea.vmem [#allocation3], 168
    %v2880 = vld [vmem:[%s2879] sm:$0xff]
    %v2881 = vld [vmem:[%s2879 + $0x8] sm:$0xff]
    %v2882 = vld [vmem:[%s2879 + $0x10] sm:$0xff]
    %2883 = vmatprep.subr.mxu0 %v1706
    %2884 = vmatpush1.msra.mxu0 %v1705
    %2885 = vmatprep.subr.mxu0 %v1709
    %2886 = vmatpush1.msra.mxu0 %v1708
    %2887 = vmatprep.subr.mxu0 %v1712
    %2888 = vmatpush1.msra.mxu0 %v1711
    %2889 = vmatprep.subr.mxu0 %v1715
    %2890 = vmatpush1.msra.mxu0 %v1714
    %2891 = vmatprep.subr.mxu0 %v1718
    %2892 = vmatpush1.msra.mxu0 %v1717
    %2893 = vmatprep.subr.mxu0 %v1721
    %2894 = vmatpush1.msra.mxu0 %v1720
    %2895 = vmatprep.subr.mxu0 %v1724
    %2896 = vmatpush1.msra.mxu0 %v1723
    %2897 = vmatprep.subr.mxu0 %v1727
    %2898 = vmatpush1.msra.mxu0 %v1726
    %2899 = vmatprep.subr.mxu0 %v1730
    %2900 = vmatpush1.msra.mxu0 %v1729
    %2901 = vmatprep.subr.mxu0 %v1733
    %2902 = vmatpush1.msra.mxu0 %v1732
    %2903 = vmatprep.subr.mxu0 %v1736
    %2904 = vmatpush1.msra.mxu0 %v1735
    %2905 = vmatprep.subr.mxu0 %v1739
    %2906 = vmatpush1.msra.mxu0 %v1738
    %2907 = vmatprep.subr.mxu0 %v1742
    %2908 = vmatpush1.msra.mxu0 %v1741
    %2909 = vmatprep.subr.mxu0 %v1745
    %2910 = vmatpush1.msra.mxu0 %v1744
    %2911 = vmatprep.subr.mxu0 %v1748
    %2912 = vmatpush1.msra.mxu0 %v1747
    %2913 = vmatprep.subr.mxu0 %v1751
    %2914 = vmatpush1.msra.mxu0 %v1750
    %2915 = vmatprep.subr.mxu0 0.0
    %2916 = vmatpush1.msra.mxu0 0.0
    %2917 = vmatprep.subr.mxu0 0.0
    %2918 = vmatpush1.msra.mxu0 0.0
    %2919 = vmatprep.subr.mxu0 0.0
    %2920 = vmatpush1.msra.mxu0 0.0
    %2921 = vmatprep.subr.mxu0 0.0
    %2922 = vmatpush1.msra.mxu0 0.0
    %2923 = vmatprep.subr.mxu0 0.0
    %2924 = vmatpush1.msra.mxu0 0.0
    %2925 = vmatprep.subr.mxu0 0.0
    %2926 = vmatpush1.msra.mxu0 0.0
    %2927 = vmatprep.subr.mxu0 0.0
    %2928 = vmatpush1.msra.mxu0 0.0
    %2929 = vmatprep.subr.mxu0 0.0
    %2930 = vmatpush1.msra.mxu0 0.0
    %2931 = vmatprep.subr.mxu0 0.0
    %2932 = vmatpush1.msra.mxu0 0.0
    %2933 = vmatprep.subr.mxu0 0.0
    %2934 = vmatpush1.msra.mxu0 0.0
    %2935 = vmatprep.subr.mxu0 0.0
    %2936 = vmatpush1.msra.mxu0 0.0
    %2937 = vmatprep.subr.mxu0 0.0
    %2938 = vmatpush1.msra.mxu0 0.0
    %2939 = vmatprep.subr.mxu0 0.0
    %2940 = vmatpush1.msra.mxu0 0.0
    %2941 = vmatprep.subr.mxu0 0.0
    %2942 = vmatpush1.msra.mxu0 0.0
    %2943 = vmatprep.subr.mxu0 0.0
    %2944 = vmatpush1.msra.mxu0 0.0
    %2945 = vmatprep.subr.mxu0 0.0
    %2946 = vmatpush1.msra.mxu0 0.0
    %2947 = vmatprep.mubr.f32.mxu0 0.0
    %2948 = vmatmul.mubr.f32.gmra.mrb[0].mxu0 %v2878
    %v2949 = vpop.f32.mrb[0].mxu0
    %v2950 = vadd.f32 0.0, %v2949
    %v2951 = vpop.f32.mrb[0].mxu0
    %v2952 = vadd.f32 0.0, %v2951
    %2953 = vdwg.mxu0
    %2954 = vmatprep.subr.mxu0 0.0
    %2955 = vmatpush1.msra.mxu0 %v1707
    %2956 = vmatprep.subr.mxu0 0.0
    %2957 = vmatpush1.msra.mxu0 %v1710
    %2958 = vmatprep.subr.mxu0 0.0
    %2959 = vmatpush1.msra.mxu0 %v1713
    %2960 = vmatprep.subr.mxu0 0.0
    %2961 = vmatpush1.msra.mxu0 %v1716
    %2962 = vmatprep.subr.mxu0 0.0
    %2963 = vmatpush1.msra.mxu0 %v1719
    %2964 = vmatprep.subr.mxu0 0.0
    %2965 = vmatpush1.msra.mxu0 %v1722
    %2966 = vmatprep.subr.mxu0 0.0
    %2967 = vmatpush1.msra.mxu0 %v1725
    %2968 = vmatprep.subr.mxu0 0.0
    %2969 = vmatpush1.msra.mxu0 %v1728
    %2970 = vmatprep.subr.mxu0 0.0
    %2971 = vmatpush1.msra.mxu0 %v1731
    %2972 = vmatprep.subr.mxu0 0.0
    %2973 = vmatpush1.msra.mxu0 %v1734
    %2974 = vmatprep.subr.mxu0 0.0
    %2975 = vmatpush1.msra.mxu0 %v1737
    %2976 = vmatprep.subr.mxu0 0.0
    %2977 = vmatpush1.msra.mxu0 %v1740
    %2978 = vmatprep.subr.mxu0 0.0
    %2979 = vmatpush1.msra.mxu0 %v1743
    %2980 = vmatprep.subr.mxu0 0.0
    %2981 = vmatpush1.msra.mxu0 %v1746
    %2982 = vmatprep.subr.mxu0 0.0
    %2983 = vmatpush1.msra.mxu0 %v1749
    %2984 = vmatprep.subr.mxu0 0.0
    %2985 = vmatpush1.msra.mxu0 %v1752
    %2986 = vmatprep.subr.mxu0 0.0
    %2987 = vmatpush1.msra.mxu0 0.0
    %2988 = vmatprep.subr.mxu0 0.0
    %2989 = vmatpush1.msra.mxu0 0.0
    %2990 = vmatprep.subr.mxu0 0.0
    %2991 = vmatpush1.msra.mxu0 0.0
    %2992 = vmatprep.subr.mxu0 0.0
    %2993 = vmatpush1.msra.mxu0 0.0
    %2994 = vmatprep.subr.mxu0 0.0
    %2995 = vmatpush1.msra.mxu0 0.0
    %2996 = vmatprep.subr.mxu0 0.0
    %2997 = vmatpush1.msra.mxu0 0.0
    %2998 = vmatprep.subr.mxu0 0.0
    %2999 = vmatpush1.msra.mxu0 0.0
    %3000 = vmatprep.subr.mxu0 0.0
    %3001 = vmatpush1.msra.mxu0 0.0
    %3002 = vmatprep.subr.mxu0 0.0
    %3003 = vmatpush1.msra.mxu0 0.0
    %3004 = vmatprep.subr.mxu0 0.0
    %3005 = vmatpush1.msra.mxu0 0.0
    %3006 = vmatprep.subr.mxu0 0.0
    %3007 = vmatpush1.msra.mxu0 0.0
    %3008 = vmatprep.subr.mxu0 0.0
    %3009 = vmatpush1.msra.mxu0 0.0
    %3010 = vmatprep.subr.mxu0 0.0
    %3011 = vmatpush1.msra.mxu0 0.0
    %3012 = vmatprep.subr.mxu0 0.0
    %3013 = vmatpush1.msra.mxu0 0.0
    %3014 = vmatprep.subr.mxu0 0.0
    %3015 = vmatpush1.msra.mxu0 0.0
    %3016 = vmatprep.subr.mxu0 0.0
    %3017 = vmatpush1.msra.mxu0 0.0
    %3018 = vmatprep.mubr.f32.mxu0 0.0
    %3019 = vmatmul.mubr.f32.gmra.mrb[0].mxu0 %v2878
    %v3020 = vpop.f32.mrb[0].mxu0
    %v3021 = vadd.f32 0.0, %v3020
    %v3022 = vpop.f32.mrb[0].mxu0
    %3023 = vdwg.mxu0
    %v3024 = vadd.f32 %v2880, %v2950
    %v3025 = vmul.f32 %v3024, 0.5
    %v3026 = vtanh.pop %v3025
    %v3027 = vadd.f32 %v3026, 1.0
    %v3028 = vmul.f32 %v3027, 0.5
    %v3029 = vadd.f32 %v2881, %v2952
    %v3030 = vmul.f32 %v3029, 0.5
    %v3031 = vtanh.pop %v3030
    %v3032 = vadd.f32 %v3031, 1.0
    %v3033 = vmul.f32 %v3032, 0.5
    %v3034 = vmul.f32 %v3028, %v3021
    %v3035 = vadd.f32 %v2882, %v3034
    %v3036 = vtanh.pop %v3035
    %v3037 = vsub.f32 %v2878, %v3036
    %v3038 = vmul.f32 %v3033, %v3037
    %v3039 = vadd.f32 %v3036, %v3038
    %3040 = vst [vmem:[#allocation10] sm:$0xff] %v3039
    // Predicated region
    $region26: #{tpu_custom_call.1} parent=1 // pred_check
      _
    $region27: #{tpu_custom_call.1} parent=1 // pred_check_branch
      %3042 = sbr.rel (0) target = $region29
    $region28: #{tpu_custom_call.1} parent=1 // pred_region
      %s3044 = ssub.s32 128, 128
      %3045 = vsyncadd [#allocation6], %s3044
      %s3047 = sshll.u32 [#allocation10], 4
      %s3048 = int_to_ptr.vmem [resolvable:$true] %s3047
      %3050 = dma.vmem_to_hbm [thread:$0]  %s3048, 128, %s3, [#allocation6]
    $region29: #{tpu_custom_call.1} parent=1 // pred_fallthru
      _
    // Predicated region
    $region30: #{tpu_custom_call.1} parent=1 // pred_check
      _
    $region31: #{tpu_custom_call.1} parent=1 // pred_check_branch
      %3052 = sbr.rel (0) target = $region33
    $region32: #{tpu_custom_call.1} parent=1 // pred_region
      %3053 = dma.done [#allocation6], 128
    $region33: #{tpu_custom_call.1} parent=1 // pred_fallthru
      _
    %3054 = vsyncpa [#allocation5], 1
    %3055 = vsyncpa [#allocation8], 1
    %3056 = vsyncpa [#allocation6], 1

// kernel: tpu_custom_call.1
$region0: #{tpu_custom_call.1}
  #allocation0 [shape = 'u32[]', space=smem, size = 0x4, offset = 0x4, fixed_abs, tag = 'smem constant byte address 0x4 - core index']
  #allocation1 [shape = 'u32[144,128]{1,0:T(1,128)}', space=vmem, size = 0x12000, scoped, tag = 'internal scratch']
  #allocation2 [shape = 'f32[8,8,128]{2,1,0:T(8,128)}', space=vmem, size = 0x8000, scoped, tag = 'scratch operand']
  #allocation3 [shape = 'f32[8,8,384]{2,1,0:T(8,128)}', space=vmem, size = 0x18000, scoped, tag = 'scratch operand']
  %s0 = inlined_call_operand.hbm [shape: f32[1,8,8,384], index: 0, kind: input, shape index: {}]
  %s1 = inlined_call_operand.hbm [shape: f32[1,128,384], index: 1, kind: input, shape index: {}]
  %s2 = inlined_call_operand.hbm [shape: f32[2,128,384], index: 2, kind: input, shape index: {}]
  %s3 = inlined_call_operand.hbm [shape: f32[8,128], index: 3, kind: output, shape index: {}]
  %s4 = sld [smem:[#allocation0]]
  $region34: #{tpu_custom_call.1} parent=0
    _
  %s6 = ssub.s32 1, %s4
  %s7 = scalar_select 0, %s6, %s4
  $region1: #{tpu_custom_call.1} parent=0
    #allocation4 [shape = 'u8[98304]{0}', space=vmem, size = 0x18000, scoped, tag = 'input window, operand 0, single buffered']
    #allocation5 [shape = 's32[1]{0}', space=sflag, size = 0x4, scoped, tag = 'scoped memory for tpu_custom_call.1']
    #allocation6 [shape = 's32[1]{0}', space=sflag, size = 0x4, scoped, tag = 'scoped memory for tpu_custom_call.1']
    #allocation7 [shape = 'u8[196608]{0}', space=vmem, size = 0x30000, scoped, tag = 'input window, operand 1, single buffered']
    #allocation8 [shape = 's32[1]{0}', space=sflag, size = 0x4, scoped, tag = 'scoped memory for tpu_custom_call.1']
    #allocation9 [shape = 'u8[393216]{0}', space=vmem, size = 0x60000, scoped, tag = 'input window, operand 2, single buffered']
    #allocation10 [shape = 'u8[4096]{0}', space=vmem, size = 0x1000, scoped, tag = 'output window, operand 0, single buffered']
    %8 = vsyncpa [#allocation5], 0
    %9 = vsyncpa [#allocation8], 0
    %10 = vsyncpa [#allocation6], 0
    // Predicated region
    $region2: #{tpu_custom_call.1} parent=1 // pred_check
      _
    $region3: #{tpu_custom_call.1} parent=1 // pred_check_branch
      %12 = sbr.rel (0) target = $region5
    $region4: #{tpu_custom_call.1} parent=1 // pred_region
      %s14 = ssub.s32 3072, 3072
      %15 = vsyncadd [#allocation5], %s14
      %s16 = sshll.u32 [#allocation4], 4
      %s17 = int_to_ptr.vmem [resolvable:$true] %s16
      %22 = dma.hbm_to_vmem [thread:$0]  %s0, 3072, %s17, [#allocation5], 384, 384, 24
    $region5: #{tpu_custom_call.1} parent=1 // pred_fallthru
      _
    // Predicated region
    $region6: #{tpu_custom_call.1} parent=1 // pred_check
      _
    $region7: #{tpu_custom_call.1} parent=1 // pred_check_branch
      %24 = sbr.rel (0) target = $region9
    $region8: #{tpu_custom_call.1} parent=1 // pred_region
      %s26 = ssub.s32 6144, 6144
      %27 = vsyncadd [#allocation8], %s26
      %s28 = sshll.u32 [#allocation7], 4
      %s29 = int_to_ptr.vmem [resolvable:$true] %s28
      %34 = dma.hbm_to_vmem [thread:$0]  %s1, 6144, %s29, [#allocation8], 384, 384, 24
    $region9: #{tpu_custom_call.1} parent=1 // pred_fallthru
      _
    // Predicated region
    $region10: #{tpu_custom_call.1} parent=1 // pred_check
      _
    $region11: #{tpu_custom_call.1} parent=1 // pred_check_branch
      %36 = sbr.rel (0) target = $region13
    $region12: #{tpu_custom_call.1} parent=1 // pred_region
      %s38 = ssub.s32 12288, 12288
      %39 = vsyncadd [#allocation8], %s38
      %s40 = sshll.u32 [#allocation9], 4
      %s41 = int_to_ptr.vmem [resolvable:$true] %s40
      %46 = dma.hbm_to_vmem [thread:$0]  %s2, 12288, %s41, [#allocation8], 384, 384, 24
    $region13: #{tpu_custom_call.1} parent=1 // pred_fallthru
      _
    // Predicated region
    $region14: #{tpu_custom_call.1} parent=1 // pred_check
      _
    $region15: #{tpu_custom_call.1} parent=1 // pred_check_branch
      %48 = sbr.rel (0) target = $region17
    $region16: #{tpu_custom_call.1} parent=1 // pred_region
      %49 = dma.done [#allocation5], 3072
    $region17: #{tpu_custom_call.1} parent=1 // pred_fallthru
      _
    // Predicated region
    $region18: #{tpu_custom_call.1} parent=1 // pred_check
      _
    $region19: #{tpu_custom_call.1} parent=1 // pred_check_branch
      %51 = sbr.rel (0) target = $region21
    $region20: #{tpu_custom_call.1} parent=1 // pred_region
      %52 = dma.done [#allocation8], 6144
    $region21: #{tpu_custom_call.1} parent=1 // pred_fallthru
      _
    // Predicated region
    $region22: #{tpu_custom_call.1} parent=1 // pred_check
      _
    $region23: #{tpu_custom_call.1} parent=1 // pred_check_branch
      %54 = sbr.rel (0) target = $region25
    $region24: #{tpu_custom_call.1} parent=1 // pred_region
      %55 = dma.done [#allocation8], 12288
    $region25: #{tpu_custom_call.1} parent=1 // pred_fallthru
      _
    %v56 = vld [vmem:[#allocation9] sm:$0xff]
    %v57 = vld [vmem:[#allocation9 + $0x8] sm:$0xff]
    %v58 = vld [vmem:[#allocation9 + $0x10] sm:$0xff]
    %v59 = vld [vmem:[#allocation9 + $0x18] sm:$0xff]
    %v60 = vld [vmem:[#allocation9 + $0x20] sm:$0xff]
    %v61 = vld [vmem:[#allocation9 + $0x28] sm:$0xff]
    %v62 = vld [vmem:[#allocation9 + $0x30] sm:$0xff]
    %v63 = vld [vmem:[#allocation9 + $0x38] sm:$0xff]
    %v64 = vld [vmem:[#allocation9 + $0x40] sm:$0xff]
    %v65 = vld [vmem:[#allocation9 + $0x48] sm:$0xff]
    %v66 = vld [vmem:[#allocation9 + $0x50] sm:$0xff]
    %v67 = vld [vmem:[#allocation9 + $0x58] sm:$0xff]
    %v68 = vld [vmem:[#allocation9 + $0x60] sm:$0xff]
    %v69 = vld [vmem:[#allocation9 + $0x68] sm:$0xff]
    %v70 = vld [vmem:[#allocation9 + $0x70] sm:$0xff]
    %v71 = vld [vmem:[#allocation9 + $0x78] sm:$0xff]
    %v72 = vld [vmem:[#allocation9 + $0x80] sm:$0xff]
    %v73 = vld [vmem:[#allocation9 + $0x88] sm:$0xff]
    %v74 = vld [vmem:[#allocation9 + $0x90] sm:$0xff]
    %v75 = vld [vmem:[#allocation9 + $0x98] sm:$0xff]
    %v76 = vld [vmem:[#allocation9 + $0xa0] sm:$0xff]
    %v77 = vld [vmem:[#allocation9 + $0xa8] sm:$0xff]
    %v78 = vld [vmem:[#allocation9 + $0xb0] sm:$0xff]
    %v79 = vld [vmem:[#allocation9 + $0xb8] sm:$0xff]
    %v80 = vld [vmem:[#allocation9 + $0xc0] sm:$0xff]
    %v81 = vld [vmem:[#allocation9 + $0xc8] sm:$0xff]
    %v82 = vld [vmem:[#allocation9 + $0xd0] sm:$0xff]
    %v83 = vld [vmem:[#allocation9 + $0xd8] sm:$0xff]
    %v84 = vld [vmem:[#allocation9 + $0xe0] sm:$0xff]
    %v85 = vld [vmem:[#allocation9 + $0xe8] sm:$0xff]
    %v86 = vld [vmem:[#allocation9 + $0xf0] sm:$0xff]
    %v87 = vld [vmem:[#allocation9 + $0xf8] sm:$0xff]
    %v88 = vld [vmem:[#allocation9 + $0x100] sm:$0xff]
    %v89 = vld [vmem:[#allocation9 + $0x108] sm:$0xff]
    %v90 = vld [vmem:[#allocation9 + $0x110] sm:$0xff]
    %v91 = vld [vmem:[#allocation9 + $0x118] sm:$0xff]
    %v92 = vld [vmem:[#allocation9 + $0x120] sm:$0xff]
    %v93 = vld [vmem:[#allocation9 + $0x128] sm:$0xff]
    %v94 = vld [vmem:[#allocation9 + $0x130] sm:$0xff]
    %v95 = vld [vmem:[#allocation9 + $0x138] sm:$0xff]
    %v96 = vld [vmem:[#allocation9 + $0x140] sm:$0xff]
    %v97 = vld [vmem:[#allocation9 + $0x148] sm:$0xff]
    %v98 = vld [vmem:[#allocation9 + $0x150] sm:$0xff]
    %v99 = vld [vmem:[#allocation9 + $0x158] sm:$0xff]
    %v100 = vld [vmem:[#allocation9 + $0x160] sm:$0xff]
    %v101 = vld [vmem:[#allocation9 + $0x168] sm:$0xff]
    %v102 = vld [vmem:[#allocation9 + $0x170] sm:$0xff]
    %v103 = vld [vmem:[#allocation9 + $0x178] sm:$0xff]
    %v104 = vld [vmem:[#allocation4] sm:$0xff]
    %v105 = vld [vmem:[#allocation4 + $0x8] sm:$0xff]
    %v106 = vld [vmem:[#allocation4 + $0x10] sm:$0xff]
    %107 = vmatprep.subr.mxu0 %v57
    %108 = vmatpush1.msra.mxu0 %v56
    %109 = vmatprep.subr.mxu0 %v60
    %110 = vmatpush1.msra.mxu0 %v59
    %111 = vmatprep.subr.mxu0 %v63
    %112 = vmatpush1.msra.mxu0 %v62
    %113 = vmatprep.subr.mxu0 %v66
    %114 = vmatpush1.msra.mxu0 %v65
    %115 = vmatprep.subr.mxu0 %v69
    %116 = vmatpush1.msra.mxu0 %v68
    %117 = vmatprep.subr.mxu0 %v72
    %118 = vmatpush1.msra.mxu0 %v71
    %119 = vmatprep.subr.mxu0 %v75
    %120 = vmatpush1.msra.mxu0 %v74
    %121 = vmatprep.subr.mxu0 %v78
    %122 = vmatpush1.msra.mxu0 %v77
    %123 = vmatprep.subr.mxu0 %v81
    %124 = vmatpush1.msra.mxu0 %v80
    %125 = vmatprep.subr.mxu0 %v84
    %126 = vmatpush1.msra.mxu0 %v83
    %127 = vmatprep.subr.mxu0 %v87
    %128 = vmatpush1.msra.mxu0 %v86
    %129 = vmatprep.subr.mxu0 %v90
    %130 = vmatpush1.msra.mxu0 %v89
    %131 = vmatprep.subr.mxu0 %v93
    %132 = vmatpush1.msra.mxu0 %v92
    %133 = vmatprep.subr.mxu0 %v96
    %134 = vmatpush1.msra.mxu0 %v95
    %135 = vmatprep.subr.mxu0 %v99
    %136 = vmatpush1.msra.mxu0 %v98
    %137 = vmatprep.subr.mxu0 %v102
    %138 = vmatpush1.msra.mxu0 %v101
    %139 = vmatprep.subr.mxu0 0.0
    %140 = vmatpush1.msra.mxu0 0.0
    %141 = vmatprep.subr.mxu0 0.0
    %142 = vmatpush1.msra.mxu0 0.0
    %143 = vmatprep.subr.mxu0 0.0
    %144 = vmatpush1.msra.mxu0 0.0
    %145 = vmatprep.subr.mxu0 0.0
    %146 = vmatpush1.msra.mxu0 0.0
    %147 = vmatprep.subr.mxu0 0.0
    %148 = vmatpush1.msra.mxu0 0.0
    %149 = vmatprep.subr.mxu0 0.0
    %150 = vmatpush1.msra.mxu0 0.0
    %151 = vmatprep.subr.mxu0 0.0
    %152 = vmatpush1.msra.mxu0 0.0
    %153 = vmatprep.subr.mxu0 0.0
    %154 = vmatpush1.msra.mxu0 0.0
    %155 = vmatprep.subr.mxu0 0.0
    %156 = vmatpush1.msra.mxu0 0.0
    %157 = vmatprep.subr.mxu0 0.0
    %158 = vmatpush1.msra.mxu0 0.0
    %159 = vmatprep.subr.mxu0 0.0
    %160 = vmatpush1.msra.mxu0 0.0
    %161 = vmatprep.subr.mxu0 0.0
    %162 = vmatpush1.msra.mxu0 0.0
    %163 = vmatprep.subr.mxu0 0.0
    %164 = vmatpush1.msra.mxu0 0.0
    %165 = vmatprep.subr.mxu0 0.0
    %166 = vmatpush1.msra.mxu0 0.0
    %167 = vmatprep.subr.mxu0 0.0
    %168 = vmatpush1.msra.mxu0 0.0
    %169 = vmatprep.subr.mxu0 0.0
    %170 = vmatpush1.msra.mxu0 0.0
    %171 = vmatprep.mubr.f32.mxu0 0.0
    %172 = vmatmul.mubr.f32.gmra.mrb[0].mxu0 0.0
    %v173 = vpop.f32.mrb[0].mxu0
    %v174 = vadd.f32 0.0, %v173
    %v175 = vpop.f32.mrb[0].mxu0
    %v176 = vadd.f32 0.0, %v175
    %177 = vdwg.mxu0
    %178 = vmatprep.subr.mxu0 0.0
    %179 = vmatpush1.msra.mxu0 %v58
    %180 = vmatprep.subr.mxu0 0.0
    %181 = vmatpush1.msra.mxu0 %v61
    %182 = vmatprep.subr.mxu0 0.0
    %183 = vmatpush1.msra.mxu0 %v64
    %184 = vmatprep.subr.mxu0 0.0
    %185 = vmatpush1.msra.mxu0 %v67
    %186 = vmatprep.subr.mxu0 0.0
    %187 = vmatpush1.msra.mxu0 %v70
    %188 = vmatprep.subr.mxu0 0.0
    %189 = vmatpush1.msra.mxu0 %v73
    %190 = vmatprep.subr.mxu0 0.0
    %191 = vmatpush1.msra.mxu0 %v76
    %192 = vmatprep.subr.mxu0 0.0
    %193 = vmatpush1.msra.mxu0 %v79
    %194 = vmatprep.subr.mxu0 0.0
    %195 = vmatpush1.msra.mxu0 %v82
    %196 = vmatprep.subr.mxu0 0.0
    %197 = vmatpush1.msra.mxu0 %v85
    %198 = vmatprep.subr.mxu0 0.0
    %199 = vmatpush1.msra.mxu0 %v88
    %200 = vmatprep.subr.mxu0 0.0
    %201 = vmatpush1.msra.mxu0 %v91
    %202 = vmatprep.subr.mxu0 0.0
    %203 = vmatpush1.msra.mxu0 %v94
    %204 = vmatprep.subr.mxu0 0.0
    %205 = vmatpush1.msra.mxu0 %v97
    %206 = vmatprep.subr.mxu0 0.0
    %207 = vmatpush1.msra.mxu0 %v100
    %208 = vmatprep.subr.mxu0 0.0
    %209 = vmatpush1.msra.mxu0 %v103
    %210 = vmatprep.subr.mxu0 0.0
    %211 = vmatpush1.msra.mxu0 0.0
    %212 = vmatprep.subr.mxu0 0.0
    %213 = vmatpush1.msra.mxu0 0.0
    %214 = vmatprep.subr.mxu0 0.0
    %215 = vmatpush1.msra.mxu0 0.0
    %216 = vmatprep.subr.mxu0 0.0
    %217 = vmatpush1.msra.mxu0 0.0
    %218 = vmatprep.subr.mxu0 0.0
    %219 = vmatpush1.msra.mxu0 0.0
    %220 = vmatprep.subr.mxu0 0.0
    %221 = vmatpush1.msra.mxu0 0.0
    %222 = vmatprep.subr.mxu0 0.0
    %223 = vmatpush1.msra.mxu0 0.0
    %224 = vmatprep.subr.mxu0 0.0
    %225 = vmatpush1.msra.mxu0 0.0
    %226 = vmatprep.subr.mxu0 0.0
    %227 = vmatpush1.msra.mxu0 0.0
    %228 = vmatprep.subr.mxu0 0.0
    %229 = vmatpush1.msra.mxu0 0.0
    %230 = vmatprep.subr.mxu0 0.0
    %231 = vmatpush1.msra.mxu0 0.0
    %232 = vmatprep.subr.mxu0 0.0
    %233 = vmatpush1.msra.mxu0 0.0
    %234 = vmatprep.subr.mxu0 0.0
    %235 = vmatpush1.msra.mxu0 0.0
    %236 = vmatprep.subr.mxu0 0.0
    %237 = vmatpush1.msra.mxu0 0.0
    %238 = vmatprep.subr.mxu0 0.0
    %239 = vmatpush1.msra.mxu0 0.0
    %240 = vmatprep.subr.mxu0 0.0
    %241 = vmatpush1.msra.mxu0 0.0
    %242 = vmatprep.mubr.f32.mxu0 0.0
    %243 = vmatmul.mubr.f32.gmra.mrb[0].mxu0 0.0
    %v244 = vpop.f32.mrb[0].mxu0
    %v245 = vadd.f32 0.0, %v244
    %v246 = vpop.f32.mrb[0].mxu0
    %247 = vdwg.mxu0
    %v248 = vadd.f32 %v104, %v174
    %v249 = vmul.f32 %v248, 0.5
    %v250 = vtanh.pop %v249
    %v251 = vadd.f32 %v250, 1.0
    %v252 = vmul.f32 %v251, 0.5
    %v253 = vadd.f32 %v105, %v176
    %v254 = vmul.f32 %v253, 0.5
    %v255 = vtanh.pop %v254
    %v256 = vadd.f32 %v255, 1.0
    %v257 = vmul.f32 %v256, 0.5
    %v258 = vmul.f32 %v252, %v245
    %v259 = vadd.f32 %v106, %v258
    %v260 = vtanh.pop %v259
    %v261 = vsub.f32 0.0, %v260
    %v262 = vmul.f32 %v257, %v261
    %v263 = vadd.f32 %v260, %v262
    %264 = vst [vmem:[#allocation2] sm:$0xff] %v263
    %s265 = scalar_lea.vmem [#allocation4], 24
    %v266 = vld [vmem:[%s265] sm:$0xff]
    %v267 = vld [vmem:[%s265 + $0x8] sm:$0xff]
    %v268 = vld [vmem:[%s265 + $0x10] sm:$0xff]
    %269 = vmatprep.subr.mxu0 %v57
    %270 = vmatpush1.msra.mxu0 %v56
    %271 = vmatprep.subr.mxu0 %v60
    %272 = vmatpush1.msra.mxu0 %v59
    %273 = vmatprep.subr.mxu0 %v63
    %274 = vmatpush1.msra.mxu0 %v62
    %275 = vmatprep.subr.mxu0 %v66
    %276 = vmatpush1.msra.mxu0 %v65
    %277 = vmatprep.subr.mxu0 %v69
    %278 = vmatpush1.msra.mxu0 %v68
    %279 = vmatprep.subr.mxu0 %v72
    %280 = vmatpush1.msra.mxu0 %v71
    %281 = vmatprep.subr.mxu0 %v75
    %282 = vmatpush1.msra.mxu0 %v74
    %283 = vmatprep.subr.mxu0 %v78
    %284 = vmatpush1.msra.mxu0 %v77
    %285 = vmatprep.subr.mxu0 %v81
    %286 = vmatpush1.msra.mxu0 %v80
    %287 = vmatprep.subr.mxu0 %v84
    %288 = vmatpush1.msra.mxu0 %v83
    %289 = vmatprep.subr.mxu0 %v87
    %290 = vmatpush1.msra.mxu0 %v86
    %291 = vmatprep.subr.mxu0 %v90
    %292 = vmatpush1.msra.mxu0 %v89
    %293 = vmatprep.subr.mxu0 %v93
    %294 = vmatpush1.msra.mxu0 %v92
    %295 = vmatprep.subr.mxu0 %v96
    %296 = vmatpush1.msra.mxu0 %v95
    %297 = vmatprep.subr.mxu0 %v99
    %298 = vmatpush1.msra.mxu0 %v98
    %299 = vmatprep.subr.mxu0 %v102
    %300 = vmatpush1.msra.mxu0 %v101
    %301 = vmatprep.subr.mxu0 0.0
    %302 = vmatpush1.msra.mxu0 0.0
    %303 = vmatprep.subr.mxu0 0.0
    %304 = vmatpush1.msra.mxu0 0.0
    %305 = vmatprep.subr.mxu0 0.0
    %306 = vmatpush1.msra.mxu0 0.0
    %307 = vmatprep.subr.mxu0 0.0
    %308 = vmatpush1.msra.mxu0 0.0
    %309 = vmatprep.subr.mxu0 0.0
    %310 = vmatpush1.msra.mxu0 0.0
    %311 = vmatprep.subr.mxu0 0.0
    %312 = vmatpush1.msra.mxu0 0.0
    %313 = vmatprep.subr.mxu0 0.0
    %314 = vmatpush1.msra.mxu0 0.0
    %315 = vmatprep.subr.mxu0 0.0
    %316 = vmatpush1.msra.mxu0 0.0
    %317 = vmatprep.subr.mxu0 0.0
    %318 = vmatpush1.msra.mxu0 0.0
    %319 = vmatprep.subr.mxu0 0.0
    %320 = vmatpush1.msra.mxu0 0.0
    %321 = vmatprep.subr.mxu0 0.0
    %322 = vmatpush1.msra.mxu0 0.0
    %323 = vmatprep.subr.mxu0 0.0
    %324 = vmatpush1.msra.mxu0 0.0
    %325 = vmatprep.subr.mxu0 0.0
    %326 = vmatpush1.msra.mxu0 0.0
    %327 = vmatprep.subr.mxu0 0.0
    %328 = vmatpush1.msra.mxu0 0.0
    %329 = vmatprep.subr.mxu0 0.0
    %330 = vmatpush1.msra.mxu0 0.0
    %331 = vmatprep.subr.mxu0 0.0
    %332 = vmatpush1.msra.mxu0 0.0
    %333 = vmatprep.mubr.f32.mxu0 0.0
    %334 = vmatmul.mubr.f32.gmra.mrb[0].mxu0 %v263
    %v335 = vpop.f32.mrb[0].mxu0
    %v336 = vadd.f32 0.0, %v335
    %v337 = vpop.f32.mrb[0].mxu0
    %v338 = vadd.f32 0.0, %v337
    %339 = vdwg.mxu0
    %340 = vmatprep.subr.mxu0 0.0
    %341 = vmatpush1.msra.mxu0 %v58
    %342 = vmatprep.subr.mxu0 0.0
    %343 = vmatpush1.msra.mxu0 %v61
    %344 = vmatprep.subr.mxu0 0.0
    %345 = vmatpush1.msra.mxu0 %v64
    %346 = vmatprep.subr.mxu0 0.0
    %347 = vmatpush1.msra.mxu0 %v67
    %348 = vmatprep.subr.mxu0 0.0
    %349 = vmatpush1.msra.mxu0 %v70
    %350 = vmatprep.subr.mxu0 0.0
    %351 = vmatpush1.msra.mxu0 %v73
    %352 = vmatprep.subr.mxu0 0.0
    %353 = vmatpush1.msra.mxu0 %v76
    %354 = vmatprep.subr.mxu0 0.0
    %355 = vmatpush1.msra.mxu0 %v79
    %356 = vmatprep.subr.mxu0 0.0
    %357 = vmatpush1.msra.mxu0 %v82
    %358 = vmatprep.subr.mxu0 0.0
    %359 = vmatpush1.msra.mxu0 %v85
    %360 = vmatprep.subr.mxu0 0.0
    %361 = vmatpush1.msra.mxu0 %v88
    %362 = vmatprep.subr.mxu0 0.0
    %363 = vmatpush1.msra.mxu0 %v91
    %364 = vmatprep.subr.mxu0 0.0
    %365 = vmatpush1.msra.mxu0 %v94
    %366 = vmatprep.subr.mxu0 0.0
    %367 = vmatpush1.msra.mxu0 %v97
    %368 = vmatprep.subr.mxu0 0.0
    %369 = vmatpush1.msra.mxu0 %v100
    %370 = vmatprep.subr.mxu0 0.0
    %371 = vmatpush1.msra.mxu0 %v103
    %372 = vmatprep.subr.mxu0 0.0
    %373 = vmatpush1.msra.mxu0 0.0
    %374 = vmatprep.subr.mxu0 0.0
    %375 = vmatpush1.msra.mxu0 0.0
    %376 = vmatprep.subr.mxu0 0.0
    %377 = vmatpush1.msra.mxu0 0.0
    %378 = vmatprep.subr.mxu0 0.0
    %379 = vmatpush1.msra.mxu0 0.0
    %380 = vmatprep.subr.mxu0 0.0
    %381 = vmatpush1.msra.mxu0 0.0
    %382 = vmatprep.subr.mxu0 0.0
    %383 = vmatpush1.msra.mxu0 0.0
    %384 = vmatprep.subr.mxu0 0.0
    %385 = vmatpush1.msra.mxu0 0.0
    %386 = vmatprep.subr.mxu0 0.0
    %387 = vmatpush1.msra.mxu0 0.0
    %388 = vmatprep.subr.mxu0 0.0
    %389 = vmatpush1.msra.mxu0 0.0
    %390 = vmatprep.subr.mxu0 0.0
    %391 = vmatpush1.msra.mxu0 0.0
    %392 = vmatprep.subr.mxu0 0.0
    %393 = vmatpush1.msra.mxu0 0.0
    %394 = vmatprep.subr.mxu0 0.0
    %395 = vmatpush1.msra.mxu0 0.0
    %396 = vmatprep.subr.mxu0 0.0
    %397 = vmatpush1.msra.mxu0 0.0
    %398 = vmatprep.subr.mxu0 0.0
    %399 = vmatpush1.msra.mxu0 0.0
    %400 = vmatprep.subr.mxu0 0.0
    %401 = vmatpush1.msra.mxu0 0.0
    %402 = vmatprep.subr.mxu0 0.0
    %403 = vmatpush1.msra.mxu0 0.0
    %404 = vmatprep.mubr.f32.mxu0 0.0
    %405 = vmatmul.mubr.f32.gmra.mrb[0].mxu0 %v263
    %v406 = vpop.f32.mrb[0].mxu0
    %v407 = vadd.f32 0.0, %v406
    %v408 = vpop.f32.mrb[0].mxu0
    %409 = vdwg.mxu0
    %v410 = vadd.f32 %v266, %v336
    %v411 = vmul.f32 %v410, 0.5
    %v412 = vtanh.pop %v411
    %v413 = vadd.f32 %v412, 1.0
    %v414 = vmul.f32 %v413, 0.5
    %v415 = vadd.f32 %v267, %v338
    %v416 = vmul.f32 %v415, 0.5
    %v417 = vtanh.pop %v416
    %v418 = vadd.f32 %v417, 1.0
    %v419 = vmul.f32 %v418, 0.5
    %v420 = vmul.f32 %v414, %v407
    %v421 = vadd.f32 %v268, %v420
    %v422 = vtanh.pop %v421
    %v423 = vsub.f32 %v263, %v422
    %v424 = vmul.f32 %v419, %v423
    %v425 = vadd.f32 %v422, %v424
    %s426 = scalar_lea.vmem [#allocation2], 8
    %427 = vst [vmem:[%s426] sm:$0xff] %v425
    %s428 = scalar_lea.vmem [#allocation4], 48
    %v429 = vld [vmem:[%s428] sm:$0xff]
    %v430 = vld [vmem:[%s428 + $0x8] sm:$0xff]
    %v431 = vld [vmem:[%s428 + $0x10] sm:$0xff]
    %432 = vmatprep.subr.mxu0 %v57
    %433 = vmatpush1.msra.mxu0 %v56
    %434 = vmatprep.subr.mxu0 %v60
    %435 = vmatpush1.msra.mxu0 %v59
    %436 = vmatprep.subr.mxu0 %v63
    %437 = vmatpush1.msra.mxu0 %v62
    %438 = vmatprep.subr.mxu0 %v66
    %439 = vmatpush1.msra.mxu0 %v65
    %440 = vmatprep.subr.mxu0 %v69
    %441 = vmatpush1.msra.mxu0 %v68
    %442 = vmatprep.subr.mxu0 %v72
    %443 = vmatpush1.msra.mxu0 %v71
    %444 = vmatprep.subr.mxu0 %v75
    %445 = vmatpush1.msra.mxu0 %v74
    %446 = vmatprep.subr.mxu0 %v78
    %447 = vmatpush1.msra.mxu0 %v77
    %448 = vmatprep.subr.mxu0 %v81
    %449 = vmatpush1.msra.mxu0 %v80
    %450 = vmatprep.subr.mxu0 %v84
    %451 = vmatpush1.msra.mxu0 %v83
    %452 = vmatprep.subr.mxu0 %v87
    %453 = vmatpush1.msra.mxu0 %v86
    %454 = vmatprep.subr.mxu0 %v90
    %455 = vmatpush1.msra.mxu0 %v89
    %456 = vmatprep.subr.mxu0 %v93
    %457 = vmatpush1.msra.mxu0 %v92
    %458 = vmatprep.subr.mxu0 %v96
    %459 = vmatpush1.msra.mxu0 %v95
    %460 = vmatprep.subr.mxu0 %v99
    %461 = vmatpush1.msra.mxu0 %v98
    %462 = vmatprep.subr.mxu0 %v102
    %463 = vmatpush1.msra.mxu0 %v101
    %464 = vmatprep.subr.mxu0 0.0
    %465 = vmatpush1.msra.mxu0 0.0
    %466 = vmatprep.subr.mxu0 0.0
    %467 = vmatpush1.msra.mxu0 0.0
    %468 = vmatprep.subr.mxu0 0.0
    %469 = vmatpush1.msra.mxu0 0.0
    %470 = vmatprep.subr.mxu0 0.0
    %471 = vmatpush1.msra.mxu0 0.0
    %472 = vmatprep.subr.mxu0 0.0
    %473 = vmatpush1.msra.mxu0 0.0
    %474 = vmatprep.subr.mxu0 0.0
    %475 = vmatpush1.msra.mxu0 0.0
    %476 = vmatprep.subr.mxu0 0.0
    %477 = vmatpush1.msra.mxu0 0.0
    %478 = vmatprep.subr.mxu0 0.0
    %479 = vmatpush1.msra.mxu0 0.0
    %480 = vmatprep.subr.mxu0 0.0
    %481 = vmatpush1.msra.mxu0 0.0
    %482 = vmatprep.subr.mxu0 0.0
    %483 = vmatpush1.msra.mxu0 0.0
    %484 = vmatprep.subr.mxu0 0.0
    %485 = vmatpush1.msra.mxu0 0.0
    %486 = vmatprep.subr.mxu0 0.0
    %487 = vmatpush1.msra.mxu0 0.0
    %488 = vmatprep.subr.mxu0 0.0
    %489 = vmatpush1.msra.mxu0 0.0
    %490 = vmatprep.subr.mxu0 0.0
    %491 = vmatpush1.msra.mxu0 0.0
    %492 = vmatprep.subr.mxu0 0.0
    %493 = vmatpush1.msra.mxu0 0.0
    %494 = vmatprep.subr.mxu0 0.0
    %495 = vmatpush1.msra.mxu0 0.0
    %496 = vmatprep.mubr.f32.mxu0 0.0
    %497 = vmatmul.mubr.f32.gmra.mrb[0].mxu0 %v425
    %v498 = vpop.f32.mrb[0].mxu0
    %v499 = vadd.f32 0.0, %v498
    %v500 = vpop.f32.mrb[0].mxu0
    %v501 = vadd.f32 0.0, %v500
    %502 = vdwg.mxu0
    %503 = vmatprep.subr.mxu0 0.0
    %504 = vmatpush1.msra.mxu0 %v58
    %505 = vmatprep.subr.mxu0 0.0
    %506 = vmatpush1.msra.mxu0 %v61
    %507 = vmatprep.subr.mxu0 0.0
    %508 = vmatpush1.msra.mxu0 %v64
    %509 = vmatprep.subr.mxu0 0.0
    %510 = vmatpush1.msra.mxu0 %v67
    %511 = vmatprep.subr.mxu0 0.0
    %512 = vmatpush1.msra.mxu0 %v70
    %513 = vmatprep.subr.mxu0 0.0
    %514 = vmatpush1.msra.mxu0 %v73
    %515 = vmatprep.subr.mxu0 0.0
    %516 = vmatpush1.msra.mxu0 %v76
    %517 = vmatprep.subr.mxu0 0.0
    %518 = vmatpush1.msra.mxu0 %v79
    %519 = vmatprep.subr.mxu0 0.0
    %520 = vmatpush1.msra.mxu0 %v82
    %521 = vmatprep.subr.mxu0 0.0
    %522 = vmatpush1.msra.mxu0 %v85
    %523 = vmatprep.subr.mxu0 0.0
    %524 = vmatpush1.msra.mxu0 %v88
    %525 = vmatprep.subr.mxu0 0.0
    %526 = vmatpush1.msra.mxu0 %v91
    %527 = vmatprep.subr.mxu0 0.0
    %528 = vmatpush1.msra.mxu0 %v94
    %529 = vmatprep.subr.mxu0 0.0
    %530 = vmatpush1.msra.mxu0 %v97
    %531 = vmatprep.subr.mxu0 0.0
    %532 = vmatpush1.msra.mxu0 %v100
    %533 = vmatprep.subr.mxu0 0.0
    %534 = vmatpush1.msra.mxu0 %v103
    %535 = vmatprep.subr.mxu0 0.0
    %536 = vmatpush1.msra.mxu0 0.0
    %537 = vmatprep.subr.mxu0 0.0
    %538 = vmatpush1.msra.mxu0 0.0
    %539 = vmatprep.subr.mxu0 0.0
    %540 = vmatpush1.msra.mxu0 0.0
    %541 = vmatprep.subr.mxu0 0.0
    %542 = vmatpush1.msra.mxu0 0.0
    %543 = vmatprep.subr.mxu0 0.0
    %544 = vmatpush1.msra.mxu0 0.0
    %545 = vmatprep.subr.mxu0 0.0
    %546 = vmatpush1.msra.mxu0 0.0
    %547 = vmatprep.subr.mxu0 0.0
    %548 = vmatpush1.msra.mxu0 0.0
    %549 = vmatprep.subr.mxu0 0.0
    %550 = vmatpush1.msra.mxu0 0.0
    %551 = vmatprep.subr.mxu0 0.0
    %552 = vmatpush1.msra.mxu0 0.0
    %553 = vmatprep.subr.mxu0 0.0
    %554 = vmatpush1.msra.mxu0 0.0
    %555 = vmatprep.subr.mxu0 0.0
    %556 = vmatpush1.msra.mxu0 0.0
    %557 = vmatprep.subr.mxu0 0.0
    %558 = vmatpush1.msra.mxu0 0.0
    %559 = vmatprep.subr.mxu0 0.0
    %560 = vmatpush1.msra.mxu0 0.0
    %561 = vmatprep.subr.mxu0 0.0
    %562 = vmatpush1.msra.mxu0 0.0
    %563 = vmatprep.subr.mxu0 0.0
    %564 = vmatpush1.msra.mxu0 0.0
    %565 = vmatprep.subr.mxu0 0.0
    %566 = vmatpush1.msra.mxu0 0.0
    %567 = vmatprep.mubr.f32.mxu0 0.0
    %568 = vmatmul.mubr.f32.gmra.mrb[0].mxu0 %v425
    %v569 = vpop.f32.mrb[0].mxu0
    %v570 = vadd.f32 0.0, %v569
    %v571 = vpop.f32.mrb[0].mxu0
    %572 = vdwg.mxu0
    %v573 = vadd.f32 %v429, %v499
    %v574 = vmul.f32 %v573, 0.5
    %v575 = vtanh.pop %v574
    %v576 = vadd.f32 %v575, 1.0
    %v577 = vmul.f32 %v576, 0.5
    %v578 = vadd.f32 %v430, %v501
    %v579 = vmul.f32 %v578, 0.5
    %v580 = vtanh.pop %v579
    %v581 = vadd.f32 %v580, 1.0
    %v582 = vmul.f32 %v581, 0.5
    %v583 = vmul.f32 %v577, %v570
    %v584 = vadd.f32 %v431, %v583
    %v585 = vtanh.pop %v584
    %v586 = vsub.f32 %v425, %v585
    %v587 = vmul.f32 %v582, %v586
    %v588 = vadd.f32 %v585, %v587
    %s589 = scalar_lea.vmem [#allocation2], 16
    %590 = vst [vmem:[%s589] sm:$0xff] %v588
    %s591 = scalar_lea.vmem [#allocation4], 72
    %v592 = vld [vmem:[%s591] sm:$0xff]
    %v593 = vld [vmem:[%s591 + $0x8] sm:$0xff]
    %v594 = vld [vmem:[%s591 + $0x10] sm:$0xff]
    %595 = vmatprep.subr.mxu0 %v57
    %596 = vmatpush1.msra.mxu0 %v56
    %597 = vmatprep.subr.mxu0 %v60
    %598 = vmatpush1.msra.mxu0 %v59
    %599 = vmatprep.subr.mxu0 %v63
    %600 = vmatpush1.msra.mxu0 %v62
    %601 = vmatprep.subr.mxu0 %v66
    %602 = vmatpush1.msra.mxu0 %v65
    %603 = vmatprep.subr.mxu0 %v69
    %604 = vmatpush1.msra.mxu0 %v68
    %605 = vmatprep.subr.mxu0 %v72
    %606 = vmatpush1.msra.mxu0 %v71
    %607 = vmatprep.subr.mxu0 %v75
    %608 = vmatpush1.msra.mxu0 %v74
    %609 = vmatprep.subr.mxu0 %v78
    %610 = vmatpush1.msra.mxu0 %v77
    %611 = vmatprep.subr.mxu0 %v81
    %612 = vmatpush1.msra.mxu0 %v80
    %613 = vmatprep.subr.mxu0 %v84
    %614 = vmatpush1.msra.mxu0 %v83
    %615 = vmatprep.subr.mxu0 %v87
    %616 = vmatpush1.msra.mxu0 %v86
    %617 = vmatprep.subr.mxu0 %v90
    %618 = vmatpush1.msra.mxu0 %v89
    %619 = vmatprep.subr.mxu0 %v93
    %620 = vmatpush1.msra.mxu0 %v92
    %621 = vmatprep.subr.mxu0 %v96
    %622 = vmatpush1.msra.mxu0 %v95
    %623 = vmatprep.subr.mxu0 %v99
    %624 = vmatpush1.msra.mxu0 %v98
    %625 = vmatprep.subr.mxu0 %v102
    %626 = vmatpush1.msra.mxu0 %v101
    %627 = vmatprep.subr.mxu0 0.0
    %628 = vmatpush1.msra.mxu0 0.0
    %629 = vmatprep.subr.mxu0 0.0
    %630 = vmatpush1.msra.mxu0 0.0
    %631 = vmatprep.subr.mxu0 0.0
    %632 = vmatpush1.msra.mxu0 0.0
    %633 = vmatprep.subr.mxu0 0.0
    %634 = vmatpush1.msra.mxu0 0.0
    %635 = vmatprep.subr.mxu0 0.0
    %636 = vmatpush1.msra.mxu0 0.0
    %637 = vmatprep.subr.mxu0 0.0
    %638 = vmatpush1.msra.mxu0 0.0
    %639 = vmatprep.subr.mxu0 0.0
    %640 = vmatpush1.msra.mxu0 0.0
    %641 = vmatprep.subr.mxu0 0.0
    %642 = vmatpush1.msra.mxu0 0.0
    %643 = vmatprep.subr.mxu0 0.0
    %644 = vmatpush1.msra.mxu0 0.0
    %645 = vmatprep.subr.mxu0 0.0
    %646 = vmatpush1.msra.mxu0 0.0
    %647 = vmatprep.subr.mxu0 0.0
    %648 = vmatpush1.msra.mxu0 0.0
    %649 = vmatprep.subr.mxu0 0.0
    %650 = vmatpush1.msra.mxu0 0.0
    %651 = vmatprep.subr.mxu0 0.0
    %652 = vmatpush1.msra.mxu0 0.0
    %653 = vmatprep.subr.mxu0 0.0
    %654 = vmatpush1.msra.mxu0 0.0
    %655 = vmatprep.subr.mxu0 0.0
    %656 = vmatpush1.msra.mxu0 0.0
    %657 = vmatprep.subr.mxu0 0.0
    %658 = vmatpush1.msra.mxu0 0.0
    %659 = vmatprep.mubr.f32.mxu0 0.0
    %660 = vmatmul.mubr.f32.gmra.mrb[0].mxu0 %v588
    %v661 = vpop.f32.mrb[0].mxu0
    %v662 = vadd.f32 0.0, %v661
    %v663 = vpop.f32.mrb[0].mxu0
    %v664 = vadd.f32 0.0, %v663
    %665 = vdwg.mxu0
    %666 = vmatprep.subr.mxu0 0.0
    %667 = vmatpush1.msra.mxu0 %v58
    %668 = vmatprep.subr.mxu0 0.0
    %669 = vmatpush1.msra.mxu0 %v61
    %670 = vmatprep.subr.mxu0 0.0
    %671 = vmatpush1.msra.mxu0 %v64
    %672 = vmatprep.subr.mxu0 0.0
    %673 = vmatpush1.msra.mxu0 %v67
    %674 = vmatprep.subr.mxu0 0.0
    %675 = vmatpush1.msra.mxu0 %v70
    %676 = vmatprep.subr.mxu0 0.0
    %677 = vmatpush1.msra.mxu0 %v73
    %678 = vmatprep.subr.mxu0 0.0
    %679 = vmatpush1.msra.mxu0 %v76
    %680 = vmatprep.subr.mxu0 0.0
    %681 = vmatpush1.msra.mxu0 %v79
    %682 = vmatprep.subr.mxu0 0.0
    %683 = vmatpush1.msra.mxu0 %v82
    %684 = vmatprep.subr.mxu0 0.0
    %685 = vmatpush1.msra.mxu0 %v85
    %686 = vmatprep.subr.mxu0 0.0
    %687 = vmatpush1.msra.mxu0 %v88
    %688 = vmatprep.subr.mxu0 0.0
    %689 = vmatpush1.msra.mxu0 %v91
    %690 = vmatprep.subr.mxu0 0.0
    %691 = vmatpush1.msra.mxu0 %v94
    %692 = vmatprep.subr.mxu0 0.0
    %693 = vmatpush1.msra.mxu0 %v97
    %694 = vmatprep.subr.mxu0 0.0
    %695 = vmatpush1.msra.mxu0 %v100
    %696 = vmatprep.subr.mxu0 0.0
    %697 = vmatpush1.msra.mxu0 %v103
    %698 = vmatprep.subr.mxu0 0.0
    %699 = vmatpush1.msra.mxu0 0.0
    %700 = vmatprep.subr.mxu0 0.0
    %701 = vmatpush1.msra.mxu0 0.0
    %702 = vmatprep.subr.mxu0 0.0
    %703 = vmatpush1.msra.mxu0 0.0
    %704 = vmatprep.subr.mxu0 0.0
    %705 = vmatpush1.msra.mxu0 0.0
    %706 = vmatprep.subr.mxu0 0.0
    %707 = vmatpush1.msra.mxu0 0.0
    %708 = vmatprep.subr.mxu0 0.0
    %709 = vmatpush1.msra.mxu0 0.0
    %710 = vmatprep.subr.mxu0 0.0
    %711 = vmatpush1.msra.mxu0 0.0
    %712 = vmatprep.subr.mxu0 0.0
    %713 = vmatpush1.msra.mxu0 0.0
    %714 = vmatprep.subr.mxu0 0.0
    %715 = vmatpush1.msra.mxu0 0.0
    %716 = vmatprep.subr.mxu0 0.0
    %717 = vmatpush1.msra.mxu0 0.0
    %718 = vmatprep.subr.mxu0 0.0
    %719 = vmatpush1.msra.mxu0 0.0
    %720 = vmatprep.subr.mxu0 0.0
    %721 = vmatpush1.msra.mxu0 0.0
    %722 = vmatprep.subr.mxu0 0.0
    %723 = vmatpush1.msra.mxu0 0.0
    %724 = vmatprep.subr.mxu0 0.0
    %725 = vmatpush1.msra.mxu0 0.0
    %726 = vmatprep.subr.mxu0 0.0
    %727 = vmatpush1.msra.mxu0 0.0
    %728 = vmatprep.subr.mxu0 0.0
    %729 = vmatpush1.msra.mxu0 0.0
    %730 = vmatprep.mubr.f32.mxu0 0.0
    %731 = vmatmul.mubr.f32.gmra.mrb[0].mxu0 %v588
    %v732 = vpop.f32.mrb[0].mxu0
    %v733 = vadd.f32 0.0, %v732
    %v734 = vpop.f32.mrb[0].mxu0
    %735 = vdwg.mxu0
    %v736 = vadd.f32 %v592, %v662
    %v737 = vmul.f32 %v736, 0.5
    %v738 = vtanh.pop %v737
    %v739 = vadd.f32 %v738, 1.0
    %v740 = vmul.f32 %v739, 0.5
    %v741 = vadd.f32 %v593, %v664
    %v742 = vmul.f32 %v741, 0.5
    %v743 = vtanh.pop %v742
    %v744 = vadd.f32 %v743, 1.0
    %v745 = vmul.f32 %v744, 0.5
    %v746 = vmul.f32 %v740, %v733
    %v747 = vadd.f32 %v594, %v746
    %v748 = vtanh.pop %v747
    %v749 = vsub.f32 %v588, %v748
    %v750 = vmul.f32 %v745, %v749
    %v751 = vadd.f32 %v748, %v750
    %s752 = scalar_lea.vmem [#allocation2], 24
    %753 = vst [vmem:[%s752] sm:$0xff] %v751
    %s754 = scalar_lea.vmem [#allocation4], 96
    %v755 = vld [vmem:[%s754] sm:$0xff]
    %v756 = vld [vmem:[%s754 + $0x8] sm:$0xff]
    %v757 = vld [vmem:[%s754 + $0x10] sm:$0xff]
    %758 = vmatprep.subr.mxu0 %v57
    %759 = vmatpush1.msra.mxu0 %v56
    %760 = vmatprep.subr.mxu0 %v60
    %761 = vmatpush1.msra.mxu0 %v59
    %762 = vmatprep.subr.mxu0 %v63
    %763 = vmatpush1.msra.mxu0 %v62
    %764 = vmatprep.subr.mxu0 %v66
    %765 = vmatpush1.msra.mxu0 %v65
    %766 = vmatprep.subr.mxu0 %v69
    %767 = vmatpush1.msra.mxu0 %v68
    %768 = vmatprep.subr.mxu0 %v72
    %769 = vmatpush1.msra.mxu0 %v71
    %770 = vmatprep.subr.mxu0 %v75
    %771 = vmatpush1.msra.mxu0 %v74
    %772 = vmatprep.subr.mxu0 %v78
    %773 = vmatpush1.msra.mxu0 %v77
    %774 = vmatprep.subr.mxu0 %v81
    %775 = vmatpush1.msra.mxu0 %v80
    %776 = vmatprep.subr.mxu0 %v84
    %777 = vmatpush1.msra.mxu0 %v83
    %778 = vmatprep.subr.mxu0 %v87
    %779 = vmatpush1.msra.mxu0 %v86
    %780 = vmatprep.subr.mxu0 %v90
    %781 = vmatpush1.msra.mxu0 %v89
    %782 = vmatprep.subr.mxu0 %v93
    %783 = vmatpush1.msra.mxu0 %v92
    %784 = vmatprep.subr.mxu0 %v96
    %785 = vmatpush1.msra.mxu0 %v95
    %786 = vmatprep.subr.mxu0 %v99
    %787 = vmatpush1.msra.mxu0 %v98
    %788 = vmatprep.subr.mxu0 %v102
    %789 = vmatpush1.msra.mxu0 %v101
    %790 = vmatprep.subr.mxu0 0.0
    %791 = vmatpush1.msra.mxu0 0.0
    %792 = vmatprep.subr.mxu0 0.0
    %793 = vmatpush1.msra.mxu0 0.0
    %794 = vmatprep.subr.mxu0 0.0
    %795 = vmatpush1.msra.mxu0 0.0
    %796 = vmatprep.subr.mxu0 0.0
    %797 = vmatpush1.msra.mxu0 0.0
    %798 = vmatprep.subr.mxu0 0.0
    %799 = vmatpush1.msra.mxu0 0.0
    %800 = vmatprep.subr.mxu0 0.0
    %801 = vmatpush1.msra.mxu0 0.0
    %802 = vmatprep.subr.mxu0 0.0
    %803 = vmatpush1.msra.mxu0 0.0
    %804 = vmatprep.subr.mxu0 0.0
    %805 = vmatpush1.msra.mxu0 0.0
    %806 = vmatprep.subr.mxu0 0.0
    %807 = vmatpush1.msra.mxu0 0.0
    %808 = vmatprep.subr.mxu0 0.0
    %809 = vmatpush1.msra.mxu0 0.0
    %810 = vmatprep.subr.mxu0 0.0
    %811 = vmatpush1.msra.mxu0 0.0
    %812 = vmatprep.subr.mxu0 0.0
    %813 = vmatpush1.msra.mxu0 0.0
    %814 = vmatprep.subr.mxu0 0.0
    %815 = vmatpush1.msra.mxu0 0.0
    %816 = vmatprep.subr.mxu0 0.0
    %817 = vmatpush1.msra.mxu0 0.0
    %818 = vmatprep.subr.mxu0 0.0
    %819 = vmatpush1.msra.mxu0 0.0
    %820 = vmatprep.subr.mxu0 0.0
    %821 = vmatpush1.msra.mxu0 0.0
    %822 = vmatprep.mubr.f32.mxu0 0.0
    %823 = vmatmul.mubr.f32.gmra.mrb[0].mxu0 %v751
    %v824 = vpop.f32.mrb[0].mxu0
    %v825 = vadd.f32 0.0, %v824
    %v826 = vpop.f32.mrb[0].mxu0
    %v827 = vadd.f32 0.0, %v826
    %828 = vdwg.mxu0
    %829 = vmatprep.subr.mxu0 0.0
    %830 = vmatpush1.msra.mxu0 %v58
    %831 = vmatprep.subr.mxu0 0.0
    %832 = vmatpush1.msra.mxu0 %v61
    %833 = vmatprep.subr.mxu0 0.0
    %834 = vmatpush1.msra.mxu0 %v64
    %835 = vmatprep.subr.mxu0 0.0
    %836 = vmatpush1.msra.mxu0 %v67
    %837 = vmatprep.subr.mxu0 0.0
    %838 = vmatpush1.msra.mxu0 %v70
    %839 = vmatprep.subr.mxu0 0.0
    %840 = vmatpush1.msra.mxu0 %v73
    %841 = vmatprep.subr.mxu0 0.0
    %842 = vmatpush1.msra.mxu0 %v76
    %843 = vmatprep.subr.mxu0 0.0
    %844 = vmatpush1.msra.mxu0 %v79
    %845 = vmatprep.subr.mxu0 0.0
    %846 = vmatpush1.msra.mxu0 %v82
    %847 = vmatprep.subr.mxu0 0.0
    %848 = vmatpush1.msra.mxu0 %v85
    %849 = vmatprep.subr.mxu0 0.0
    %850 = vmatpush1.msra.mxu0 %v88
    %851 = vmatprep.subr.mxu0 0.0
    %852 = vmatpush1.msra.mxu0 %v91
    %853 = vmatprep.subr.mxu0 0.0
    %854 = vmatpush1.msra.mxu0 %v94
    %855 = vmatprep.subr.mxu0 0.0
    %856 = vmatpush1.msra.mxu0 %v97
    %857 = vmatprep.subr.mxu0 0.0
    %858 = vmatpush1.msra.mxu0 %v100
    %859 = vmatprep.subr.mxu0 0.0
    %860 = vmatpush1.msra.mxu0 %v103
    %861 = vmatprep.subr.mxu0 0.0
    %862 = vmatpush1.msra.mxu0 0.0
    %863 = vmatprep.subr.mxu0 0.0
    %864 = vmatpush1.msra.mxu0 0.0
    %865 = vmatprep.subr.mxu0 0.0
    %866 = vmatpush1.msra.mxu0 0.0
    %867 = vmatprep.subr.mxu0 0.0
    %868 = vmatpush1.msra.mxu0 0.0
    %869 = vmatprep.subr.mxu0 0.0
    %870 = vmatpush1.msra.mxu0 0.0
    %871 = vmatprep.subr.mxu0 0.0
    %872 = vmatpush1.msra.mxu0 0.0
    %873 = vmatprep.subr.mxu0 0.0
    %874 = vmatpush1.msra.mxu0 0.0
    %875 = vmatprep.subr.mxu0 0.0
    %876 = vmatpush1.msra.mxu0 0.0
    %877 = vmatprep.subr.mxu0 0.0
    %878 = vmatpush1.msra.mxu0 0.0
    %879 = vmatprep.subr.mxu0 0.0
    %880 = vmatpush1.msra.mxu0 0.0
    %881 = vmatprep.subr.mxu0 0.0
    %882 = vmatpush1.msra.mxu0 0.0
    %883 = vmatprep.subr.mxu0 0.0
    %884 = vmatpush1.msra.mxu0 0.0
    %885 = vmatprep.subr.mxu0 0.0
    %886 = vmatpush1.msra.mxu0 0.0
    %887 = vmatprep.subr.mxu0 0.0
    %888 = vmatpush1.msra.mxu0 0.0
    %889 = vmatprep.subr.mxu0 0.0
    %890 = vmatpush1.msra.mxu0 0.0
    %891 = vmatprep.subr.mxu0 0.0
    %892 = vmatpush1.msra.mxu0 0.0
    %893 = vmatprep.mubr.f32.mxu0 0.0
    %894 = vmatmul.mubr.f32.gmra.mrb[0].mxu0 %v751
    %v895 = vpop.f32.mrb[0].mxu0
    %v896 = vadd.f32 0.0, %v895
    %v897 = vpop.f32.mrb[0].mxu0
    %898 = vdwg.mxu0
    %v899 = vadd.f32 %v755, %v825
    %v900 = vmul.f32 %v899, 0.5
    %v901 = vtanh.pop %v900
    %v902 = vadd.f32 %v901, 1.0
    %v903 = vmul.f32 %v902, 0.5
    %v904 = vadd.f32 %v756, %v827
    %v905 = vmul.f32 %v904, 0.5
    %v906 = vtanh.pop %v905
    %v907 = vadd.f32 %v906, 1.0
    %v908 = vmul.f32 %v907, 0.5
    %v909 = vmul.f32 %v903, %v896
    %v910 = vadd.f32 %v757, %v909
    %v911 = vtanh.pop %v910
    %v912 = vsub.f32 %v751, %v911
    %v913 = vmul.f32 %v908, %v912
    %v914 = vadd.f32 %v911, %v913
    %s915 = scalar_lea.vmem [#allocation2], 32
    %916 = vst [vmem:[%s915] sm:$0xff] %v914
    %s917 = scalar_lea.vmem [#allocation4], 120
    %v918 = vld [vmem:[%s917] sm:$0xff]
    %v919 = vld [vmem:[%s917 + $0x8] sm:$0xff]
    %v920 = vld [vmem:[%s917 + $0x10] sm:$0xff]
    %921 = vmatprep.subr.mxu0 %v57
    %922 = vmatpush1.msra.mxu0 %v56
    %923 = vmatprep.subr.mxu0 %v60
    %924 = vmatpush1.msra.mxu0 %v59
    %925 = vmatprep.subr.mxu0 %v63
    %926 = vmatpush1.msra.mxu0 %v62
    %927 = vmatprep.subr.mxu0 %v66
    %928 = vmatpush1.msra.mxu0 %v65
    %929 = vmatprep.subr.mxu0 %v69
    %930 = vmatpush1.msra.mxu0 %v68
    %931 = vmatprep.subr.mxu0 %v72
    %932 = vmatpush1.msra.mxu0 %v71
    %933 = vmatprep.subr.mxu0 %v75
    %934 = vmatpush1.msra.mxu0 %v74
    %935 = vmatprep.subr.mxu0 %v78
    %936 = vmatpush1.msra.mxu0 %v77
    %937 = vmatprep.subr.mxu0 %v81
    %938 = vmatpush1.msra.mxu0 %v80
    %939 = vmatprep.subr.mxu0 %v84
    %940 = vmatpush1.msra.mxu0 %v83
    %941 = vmatprep.subr.mxu0 %v87
    %942 = vmatpush1.msra.mxu0 %v86
    %943 = vmatprep.subr.mxu0 %v90
    %944 = vmatpush1.msra.mxu0 %v89
    %945 = vmatprep.subr.mxu0 %v93
    %946 = vmatpush1.msra.mxu0 %v92
    %947 = vmatprep.subr.mxu0 %v96
    %948 = vmatpush1.msra.mxu0 %v95
    %949 = vmatprep.subr.mxu0 %v99
    %950 = vmatpush1.msra.mxu0 %v98
    %951 = vmatprep.subr.mxu0 %v102
    %952 = vmatpush1.msra.mxu0 %v101
    %953 = vmatprep.subr.mxu0 0.0
    %954 = vmatpush1.msra.mxu0 0.0
    %955 = vmatprep.subr.mxu0 0.0
    %956 = vmatpush1.msra.mxu0 0.0
    %957 = vmatprep.subr.mxu0 0.0
    %958 = vmatpush1.msra.mxu0 0.0
    %959 = vmatprep.subr.mxu0 0.0
    %960 = vmatpush1.msra.mxu0 0.0
    %961 = vmatprep.subr.mxu0 0.0
    %962 = vmatpush1.msra.mxu0 0.0
    %963 = vmatprep.subr.mxu0 0.0
    %964 = vmatpush1.msra.mxu0 0.0
    %965 = vmatprep.subr.mxu0 0.0
    %966 = vmatpush1.msra.mxu0 0.0
    %967 = vmatprep.subr.mxu0 0.0
    %968 = vmatpush1.msra.mxu0 0.0
    %969 = vmatprep.subr.mxu0 0.0
    %970 = vmatpush1.msra.mxu0 0.0
    %971 = vmatprep.subr.mxu0 0.0
    %972 = vmatpush1.msra.mxu0 0.0
    %973 = vmatprep.subr.mxu0 0.0
    %974 = vmatpush1.msra.mxu0 0.0
    %975 = vmatprep.subr.mxu0 0.0
    %976 = vmatpush1.msra.mxu0 0.0
    %977 = vmatprep.subr.mxu0 0.0
    %978 = vmatpush1.msra.mxu0 0.0
    %979 = vmatprep.subr.mxu0 0.0
    %980 = vmatpush1.msra.mxu0 0.0
    %981 = vmatprep.subr.mxu0 0.0
    %982 = vmatpush1.msra.mxu0 0.0
    %983 = vmatprep.subr.mxu0 0.0
    %984 = vmatpush1.msra.mxu0 0.0
    %985 = vmatprep.mubr.f32.mxu0 0.0
    %986 = vmatmul.mubr.f32.gmra.mrb[0].mxu0 %v914
    %v987 = vpop.f32.mrb[0].mxu0
    %v988 = vadd.f32 0.0, %v987
    %v989 = vpop.f32.mrb[0].mxu0
    %v990 = vadd.f32 0.0, %v989
    %991 = vdwg.mxu0
    %992 = vmatprep.subr.mxu0 0.0
    %993 = vmatpush1.msra.mxu0 %v58
    %994 = vmatprep.subr.mxu0 0.0
    %995 = vmatpush1.msra.mxu0 %v61
    %996 = vmatprep.subr.mxu0 0.0
    %997 = vmatpush1.msra.mxu0 %v64
    %998 = vmatprep.subr.mxu0 0.0
    %999 = vmatpush1.msra.mxu0 %v67
    %1000 = vmatprep.subr.mxu0 0.0
    %1001 = vmatpush1.msra.mxu0 %v70
    %1002 = vmatprep.subr.mxu0 0.0
    %1003 = vmatpush1.msra.mxu0 %v73
    %1004 = vmatprep.subr.mxu0 0.0
    %1005 = vmatpush1.msra.mxu0 %v76
    %1006 = vmatprep.subr.mxu0 0.0
    %1007 = vmatpush1.msra.mxu0 %v79
    %1008 = vmatprep.subr.mxu0 0.0
    %1009 = vmatpush1.msra.mxu0 %v82
    %1010 = vmatprep.subr.mxu0 0.0
    %1011 = vmatpush1.msra.mxu0 %v85
    %1012 = vmatprep.subr.mxu0 0.0
    %1013 = vmatpush1.msra.mxu0 %v88
    %1014 = vmatprep.subr.mxu0 0.0
    %1015 = vmatpush1.msra.mxu0 %v91
    %1016 = vmatprep.subr.mxu0 0.0
    %1017 = vmatpush1.msra.mxu0 %v94
    %1018 = vmatprep.subr.mxu0 0.0
    %1019 = vmatpush1.msra.mxu0 %v97
    %1020 = vmatprep.subr.mxu0 0.0
    %1021 = vmatpush1.msra.mxu0 %v100
    %1022 = vmatprep.subr.mxu0 0.0
    %1023 = vmatpush1.msra.mxu0 %v103
    %1024 = vmatprep.subr.mxu0 0.0
    %1025 = vmatpush1.msra.mxu0 0.0
    %1026 = vmatprep.subr.mxu0 0.0
    %1027 = vmatpush1.msra.mxu0 0.0
    %1028 = vmatprep.subr.mxu0 0.0
    %1029 = vmatpush1.msra.mxu0 0.0
    %1030 = vmatprep.subr.mxu0 0.0
    %1031 = vmatpush1.msra.mxu0 0.0
    %1032 = vmatprep.subr.mxu0 0.0
    %1033 = vmatpush1.msra.mxu0 0.0
    %1034 = vmatprep.subr.mxu0 0.0
    %1035 = vmatpush1.msra.mxu0 0.0
    %1036 = vmatprep.subr.mxu0 0.0
    %1037 = vmatpush1.msra.mxu0 0.0
    %1038 = vmatprep.subr.mxu0 0.0
    %1039 = vmatpush1.msra.mxu0 0.0
    %1040 = vmatprep.subr.mxu0 0.0
    %1041 = vmatpush1.msra.mxu0 0.0
    %1042 = vmatprep.subr.mxu0 0.0
    %1043 = vmatpush1.msra.mxu0 0.0
    %1044 = vmatprep.subr.mxu0 0.0
    %1045 = vmatpush1.msra.mxu0 0.0
    %1046 = vmatprep.subr.mxu0 0.0
    %1047 = vmatpush1.msra.mxu0 0.0
    %1048 = vmatprep.subr.mxu0 0.0
    %1049 = vmatpush1.msra.mxu0 0.0
    %1050 = vmatprep.subr.mxu0 0.0
    %1051 = vmatpush1.msra.mxu0 0.0
    %1052 = vmatprep.subr.mxu0 0.0
    %1053 = vmatpush1.msra.mxu0 0.0
    %1054 = vmatprep.subr.mxu0 0.0
    %1055 = vmatpush1.msra.mxu0 0.0
    %1056 = vmatprep.mubr.f32.mxu0 0.0
    %1057 = vmatmul.mubr.f32.gmra.mrb[0].mxu0 %v914
    %v1058 = vpop.f32.mrb[0].mxu0
    %v1059 = vadd.f32 0.0, %v1058
    %v1060 = vpop.f32.mrb[0].mxu0
    %1061 = vdwg.mxu0
    %v1062 = vadd.f32 %v918, %v988
    %v1063 = vmul.f32 %v1062, 0.5
    %v1064 = vtanh.pop %v1063
    %v1065 = vadd.f32 %v1064, 1.0
    %v1066 = vmul.f32 %v1065, 0.5
    %v1067 = vadd.f32 %v919, %v990
    %v1068 = vmul.f32 %v1067, 0.5
    %v1069 = vtanh.pop %v1068
    %v1070 = vadd.f32 %v1069, 1.0
    %v1071 = vmul.f32 %v1070, 0.5
    %v1072 = vmul.f32 %v1066, %v1059
    %v1073 = vadd.f32 %v920, %v1072
    %v1074 = vtanh.pop %v1073
    %v1075 = vsub.f32 %v914, %v1074
    %v1076 = vmul.f32 %v1071, %v1075
    %v1077 = vadd.f32 %v1074, %v1076
    %s1078 = scalar_lea.vmem [#allocation2], 40
    %1079 = vst [vmem:[%s1078] sm:$0xff] %v1077
    %s1080 = scalar_lea.vmem [#allocation4], 144
    %v1081 = vld [vmem:[%s1080] sm:$0xff]
    %v1082 = vld [vmem:[%s1080 + $0x8] sm:$0xff]
    %v1083 = vld [vmem:[%s1080 + $0x10] sm:$0xff]
    %1084 = vmatprep.subr.mxu0 %v57
    %1085 = vmatpush1.msra.mxu0 %v56
    %1086 = vmatprep.subr.mxu0 %v60
    %1087 = vmatpush1.msra.mxu0 %v59
    %1088 = vmatprep.subr.mxu0 %v63
    %1089 = vmatpush1.msra.mxu0 %v62
    %1090 = vmatprep.subr.mxu0 %v66
    %1091 = vmatpush1.msra.mxu0 %v65
    %1092 = vmatprep.subr.mxu0 %v69
    %1093 = vmatpush1.msra.mxu0 %v68
    %1094 = vmatprep.subr.mxu0 %v72
    %1095 = vmatpush1.msra.mxu0 %v71
    %1096 = vmatprep.subr.mxu0 %v75
    %1097 = vmatpush1.msra.mxu0 %v74
    %1098 = vmatprep.subr.mxu0 %v78
    %1099 = vmatpush1.msra.mxu0 %v77
    %1100 = vmatprep.subr.mxu0 %v81
    %1101 = vmatpush1.msra.mxu0 %v80
    %1102 = vmatprep.subr.mxu0 %v84
    %1103 = vmatpush1.msra.mxu0 %v83
    %1104 = vmatprep.subr.mxu0 %v87
    %1105 = vmatpush1.msra.mxu0 %v86
    %1106 = vmatprep.subr.mxu0 %v90
    %1107 = vmatpush1.msra.mxu0 %v89
    %1108 = vmatprep.subr.mxu0 %v93
    %1109 = vmatpush1.msra.mxu0 %v92
    %1110 = vmatprep.subr.mxu0 %v96
    %1111 = vmatpush1.msra.mxu0 %v95
    %1112 = vmatprep.subr.mxu0 %v99
    %1113 = vmatpush1.msra.mxu0 %v98
    %1114 = vmatprep.subr.mxu0 %v102
    %1115 = vmatpush1.msra.mxu0 %v101
    %1116 = vmatprep.subr.mxu0 0.0
    %1117 = vmatpush1.msra.mxu0 0.0
    %1118 = vmatprep.subr.mxu0 0.0
    %1119 = vmatpush1.msra.mxu0 0.0
    %1120 = vmatprep.subr.mxu0 0.0
    %1121 = vmatpush1.msra.mxu0 0.0
    %1122 = vmatprep.subr.mxu0 0.0
    %1123 = vmatpush1.msra.mxu0 0.0
    %1124 = vmatprep.subr.mxu0 0.0
    %1125 = vmatpush1.msra.mxu0 0.0
    %1126 = vmatprep.subr.mxu0 0.0
    %1127 = vmatpush1.msra.mxu0 0.0
    %1128 = vmatprep.subr.mxu0 0.0
    %1129 = vmatpush1.msra.mxu0 0.0
    %1130 = vmatprep.subr.mxu0 0.0
    %1131 = vmatpush1.msra.mxu0 0.0
    %1132 = vmatprep.subr.mxu0 0.0
    %1133 = vmatpush1.msra.mxu0 0.0
    %1134 = vmatprep.subr.mxu0 0.0
    %1135 = vmatpush1.msra.mxu0 0.0
    %1136 = vmatprep.subr.mxu0 0.0
    %1137 = vmatpush1.msra.mxu0 0.0
    %1138 = vmatprep.subr.mxu0 0.0
    %1139 = vmatpush1.msra.mxu0 0.0
    %1140 = vmatprep.subr.mxu0 0.0
    %1141 = vmatpush1.msra.mxu0 0.0
    %1142 = vmatprep.subr.mxu0 0.0
    %1143 = vmatpush1.msra.mxu0 0.0
    %1144 = vmatprep.subr.mxu0 0.0
    %1145 = vmatpush1.msra.mxu0 0.0
    %1146 = vmatprep.subr.mxu0 0.0
    %1147 = vmatpush1.msra.mxu0 0.0
    %1148 = vmatprep.mubr.f32.mxu0 0.0
    %1149 = vmatmul.mubr.f32.gmra.mrb[0].mxu0 %v1077
    %v1150 = vpop.f32.mrb[0].mxu0
    %v1151 = vadd.f32 0.0, %v1150
    %v1152 = vpop.f32.mrb[0].mxu0
    %v1153 = vadd.f32 0.0, %v1152
    %1154 = vdwg.mxu0
    %1155 = vmatprep.subr.mxu0 0.0
    %1156 = vmatpush1.msra.mxu0 %v58
    %1157 = vmatprep.subr.mxu0 0.0
    %1158 = vmatpush1.msra.mxu0 %v61
    %1159 = vmatprep.subr.mxu0 0.0
    %1160 = vmatpush1.msra.mxu0 %v64
    %1161 = vmatprep.subr.mxu0 0.0
    %1162 = vmatpush1.msra.mxu0 %v67
    %1163 = vmatprep.subr.mxu0 0.0
    %1164 = vmatpush1.msra.mxu0 %v70
    %1165 = vmatprep.subr.mxu0 0.0
    %1166 = vmatpush1.msra.mxu0 %v73
    %1167 = vmatprep.subr.mxu0 0.0
    %1168 = vmatpush1.msra.mxu0 %v76
    %1169 = vmatprep.subr.mxu0 0.0
    %1170 = vmatpush1.msra.mxu0 %v79
    %1171 = vmatprep.subr.mxu0 0.0
    %1172 = vmatpush1.msra.mxu0 %v82
    %1173 = vmatprep.subr.mxu0 0.0
    %1174 = vmatpush1.msra.mxu0 %v85
    %1175 = vmatprep.subr.mxu0 0.0
    %1176 = vmatpush1.msra.mxu0 %v88
    %1177 = vmatprep.subr.mxu0 0.0
    %1178 = vmatpush1.msra.mxu0 %v91
    %1179 = vmatprep.subr.mxu0 0.0
    %1180 = vmatpush1.msra.mxu0 %v94
    %1181 = vmatprep.subr.mxu0 0.0
    %1182 = vmatpush1.msra.mxu0 %v97
    %1183 = vmatprep.subr.mxu0 0.0
    %1184 = vmatpush1.msra.mxu0 %v100
    %1185 = vmatprep.subr.mxu0 0.0
    %1186 = vmatpush1.msra.mxu0 %v103
    %1187 = vmatprep.subr.mxu0 0.0
    %1188 = vmatpush1.msra.mxu0 0.0
    %1189 = vmatprep.subr.mxu0 0.0
    %1190 = vmatpush1.msra.mxu0 0.0
    %1191 = vmatprep.subr.mxu0 0.0
    %1192 = vmatpush1.msra.mxu0 0.0
    %1193 = vmatprep.subr.mxu0 0.0
    %1194 = vmatpush1.msra.mxu0 0.0
    %1195 = vmatprep.subr.mxu0 0.0
    %1196 = vmatpush1.msra.mxu0 0.0
    %1197 = vmatprep.subr.mxu0 0.0
    %1198 = vmatpush1.msra.mxu0 0.0
    %1199 = vmatprep.subr.mxu0 0.0
    %1200 = vmatpush1.msra.mxu0 0.0
    %1201 = vmatprep.subr.mxu0 0.0
    %1202 = vmatpush1.msra.mxu0 0.0
    %1203 = vmatprep.subr.mxu0 0.0
    %1204 = vmatpush1.msra.mxu0 0.0
    %1205 = vmatprep.subr.mxu0 0.0
    %1206 = vmatpush1.msra.mxu0 0.0
    %1207 = vmatprep.subr.mxu0 0.0
    %1208 = vmatpush1.msra.mxu0 0.0
    %1209 = vmatprep.subr.mxu0 0.0
    %1210 = vmatpush1.msra.mxu0 0.0
    %1211 = vmatprep.subr.mxu0 0.0
    %1212 = vmatpush1.msra.mxu0 0.0
    %1213 = vmatprep.subr.mxu0 0.0
    %1214 = vmatpush1.msra.mxu0 0.0
    %1215 = vmatprep.subr.mxu0 0.0
    %1216 = vmatpush1.msra.mxu0 0.0
    %1217 = vmatprep.subr.mxu0 0.0
    %1218 = vmatpush1.msra.mxu0 0.0
    %1219 = vmatprep.mubr.f32.mxu0 0.0
    %1220 = vmatmul.mubr.f32.gmra.mrb[0].mxu0 %v1077
    %v1221 = vpop.f32.mrb[0].mxu0
    %v1222 = vadd.f32 0.0, %v1221
    %v1223 = vpop.f32.mrb[0].mxu0
    %1224 = vdwg.mxu0
    %v1225 = vadd.f32 %v1081, %v1151
    %v1226 = vmul.f32 %v1225, 0.5
    %v1227 = vtanh.pop %v1226
    %v1228 = vadd.f32 %v1227, 1.0
    %v1229 = vmul.f32 %v1228, 0.5
    %v1230 = vadd.f32 %v1082, %v1153
    %v1231 = vmul.f32 %v1230, 0.5
    %v1232 = vtanh.pop %v1231
    %v1233 = vadd.f32 %v1232, 1.0
    %v1234 = vmul.f32 %v1233, 0.5
    %v1235 = vmul.f32 %v1229, %v1222
    %v1236 = vadd.f32 %v1083, %v1235
    %v1237 = vtanh.pop %v1236
    %v1238 = vsub.f32 %v1077, %v1237
    %v1239 = vmul.f32 %v1234, %v1238
    %v1240 = vadd.f32 %v1237, %v1239
    %s1241 = scalar_lea.vmem [#allocation2], 48
    %1242 = vst [vmem:[%s1241] sm:$0xff] %v1240
    %s1243 = scalar_lea.vmem [#allocation4], 168
    %v1244 = vld [vmem:[%s1243] sm:$0xff]
    %v1245 = vld [vmem:[%s1243 + $0x8] sm:$0xff]
    %v1246 = vld [vmem:[%s1243 + $0x10] sm:$0xff]
    %1247 = vmatprep.subr.mxu0 %v57
    %1248 = vmatpush1.msra.mxu0 %v56
    %1249 = vmatprep.subr.mxu0 %v60
    %1250 = vmatpush1.msra.mxu0 %v59
    %1251 = vmatprep.subr.mxu0 %v63
    %1252 = vmatpush1.msra.mxu0 %v62
    %1253 = vmatprep.subr.mxu0 %v66
    %1254 = vmatpush1.msra.mxu0 %v65
    %1255 = vmatprep.subr.mxu0 %v69
    %1256 = vmatpush1.msra.mxu0 %v68
    %1257 = vmatprep.subr.mxu0 %v72
    %1258 = vmatpush1.msra.mxu0 %v71
    %1259 = vmatprep.subr.mxu0 %v75
    %1260 = vmatpush1.msra.mxu0 %v74
    %1261 = vmatprep.subr.mxu0 %v78
    %1262 = vmatpush1.msra.mxu0 %v77
    %1263 = vmatprep.subr.mxu0 %v81
    %1264 = vmatpush1.msra.mxu0 %v80
    %1265 = vmatprep.subr.mxu0 %v84
    %1266 = vmatpush1.msra.mxu0 %v83
    %1267 = vmatprep.subr.mxu0 %v87
    %1268 = vmatpush1.msra.mxu0 %v86
    %1269 = vmatprep.subr.mxu0 %v90
    %1270 = vmatpush1.msra.mxu0 %v89
    %1271 = vmatprep.subr.mxu0 %v93
    %1272 = vmatpush1.msra.mxu0 %v92
    %1273 = vmatprep.subr.mxu0 %v96
    %1274 = vmatpush1.msra.mxu0 %v95
    %1275 = vmatprep.subr.mxu0 %v99
    %1276 = vmatpush1.msra.mxu0 %v98
    %1277 = vmatprep.subr.mxu0 %v102
    %1278 = vmatpush1.msra.mxu0 %v101
    %1279 = vmatprep.subr.mxu0 0.0
    %1280 = vmatpush1.msra.mxu0 0.0
    %1281 = vmatprep.subr.mxu0 0.0
    %1282 = vmatpush1.msra.mxu0 0.0
    %1283 = vmatprep.subr.mxu0 0.0
    %1284 = vmatpush1.msra.mxu0 0.0
    %1285 = vmatprep.subr.mxu0 0.0
    %1286 = vmatpush1.msra.mxu0 0.0
    %1287 = vmatprep.subr.mxu0 0.0
    %1288 = vmatpush1.msra.mxu0 0.0
    %1289 = vmatprep.subr.mxu0 0.0
    %1290 = vmatpush1.msra.mxu0 0.0
    %1291 = vmatprep.subr.mxu0 0.0
    %1292 = vmatpush1.msra.mxu0 0.0
    %1293 = vmatprep.subr.mxu0 0.0
    %1294 = vmatpush1.msra.mxu0 0.0
    %1295 = vmatprep.subr.mxu0 0.0
    %1296 = vmatpush1.msra.mxu0 0.0
    %1297 = vmatprep.subr.mxu0 0.0
    %1298 = vmatpush1.msra.mxu0 0.0
    %1299 = vmatprep.subr.mxu0 0.0
    %1300 = vmatpush1.msra.mxu0 0.0
    %1301 = vmatprep.subr.mxu0 0.0
    %1302 = vmatpush1.msra.mxu0 0.0
    %1303 = vmatprep.subr.mxu0 0.0
    %1304 = vmatpush1.msra.mxu0 0.0
    %1305 = vmatprep.subr.mxu0 0.0
    %1306 = vmatpush1.msra.mxu0 0.0
    %1307 = vmatprep.subr.mxu0 0.0
    %1308 = vmatpush1.msra.mxu0 0.0
    %1309 = vmatprep.subr.mxu0 0.0
    %1310 = vmatpush1.msra.mxu0 0.0
    %1311 = vmatprep.mubr.f32.mxu0 0.0
    %1312 = vmatmul.mubr.f32.gmra.mrb[0].mxu0 %v1240
    %v1313 = vpop.f32.mrb[0].mxu0
    %v1314 = vadd.f32 0.0, %v1313
    %v1315 = vpop.f32.mrb[0].mxu0
    %v1316 = vadd.f32 0.0, %v1315
    %1317 = vdwg.mxu0
    %1318 = vmatprep.subr.mxu0 0.0
    %1319 = vmatpush1.msra.mxu0 %v58
    %1320 = vmatprep.subr.mxu0 0.0
    %1321 = vmatpush1.msra.mxu0 %v61
    %1322 = vmatprep.subr.mxu0 0.0
    %1323 = vmatpush1.msra.mxu0 %v64
    %1324 = vmatprep.subr.mxu0 0.0
    %1325 = vmatpush1.msra.mxu0 %v67
    %1326 = vmatprep.subr.mxu0 0.0
    %1327 = vmatpush1.msra.mxu0 %v70
    %1328 = vmatprep.subr.mxu0 0.0
    %1329 = vmatpush1.msra.mxu0 %v73
    %1330 = vmatprep.subr.mxu0 0.0
    %1331 = vmatpush1.msra.mxu0 %v76
    %1332 = vmatprep.subr.mxu0 0.0
    %1333 = vmatpush1.msra.mxu0 %v79
    %1334 = vmatprep.subr.mxu0 0.0
    %1335 = vmatpush1.msra.mxu0 %v82
    %1336 = vmatprep.subr.mxu0 0.0
    %1337 = vmatpush1.msra.mxu0 %v85
    %1338 = vmatprep.subr.mxu0 0.0
    %1339 = vmatpush1.msra.mxu0 %v88
    %1340 = vmatprep.subr.mxu0 0.0
    %1341 = vmatpush1.msra.mxu0 %v91
    %1342 = vmatprep.subr.mxu0 0.0
    %1343 = vmatpush1.msra.mxu0 %v94
    %1344 = vmatprep.subr.mxu0 0.0
    %1345 = vmatpush1.msra.mxu0 %v97
    %1346 = vmatprep.subr.mxu0 0.0
    %1347 = vmatpush1.msra.mxu0 %v100
    %1348 = vmatprep.subr.mxu0 0.0
    %1349 = vmatpush1.msra.mxu0 %v103
    %1350 = vmatprep.subr.mxu0 0.0
    %1351 = vmatpush1.msra.mxu0 0.0
    %1352 = vmatprep.subr.mxu0 0.0
    %1353 = vmatpush1.msra.mxu0 0.0
    %1354 = vmatprep.subr.mxu0 0.0
    %1355 = vmatpush1.msra.mxu0 0.0
    %1356 = vmatprep.subr.mxu0 0.0
    %1357 = vmatpush1.msra.mxu0 0.0
    %1358 = vmatprep.subr.mxu0 0.0
    %1359 = vmatpush1.msra.mxu0 0.0
    %1360 = vmatprep.subr.mxu0 0.0
    %1361 = vmatpush1.msra.mxu0 0.0
    %1362 = vmatprep.subr.mxu0 0.0
    %1363 = vmatpush1.msra.mxu0 0.0
    %1364 = vmatprep.subr.mxu0 0.0
    %1365 = vmatpush1.msra.mxu0 0.0
    %1366 = vmatprep.subr.mxu0 0.0
    %1367 = vmatpush1.msra.mxu0 0.0
    %1368 = vmatprep.subr.mxu0 0.0
    %1369 = vmatpush1.msra.mxu0 0.0
    %1370 = vmatprep.subr.mxu0 0.0
    %1371 = vmatpush1.msra.mxu0 0.0
    %1372 = vmatprep.subr.mxu0 0.0
    %1373 = vmatpush1.msra.mxu0 0.0
    %1374 = vmatprep.subr.mxu0 0.0
    %1375 = vmatpush1.msra.mxu0 0.0
    %1376 = vmatprep.subr.mxu0 0.0
    %1377 = vmatpush1.msra.mxu0 0.0
    %1378 = vmatprep.subr.mxu0 0.0
    %1379 = vmatpush1.msra.mxu0 0.0
    %1380 = vmatprep.subr.mxu0 0.0
    %1381 = vmatpush1.msra.mxu0 0.0
    %1382 = vmatprep.mubr.f32.mxu0 0.0
    %1383 = vmatmul.mubr.f32.gmra.mrb[0].mxu0 %v1240
    %v1384 = vpop.f32.mrb[0].mxu0
    %v1385 = vadd.f32 0.0, %v1384
    %v1386 = vpop.f32.mrb[0].mxu0
    %1387 = vdwg.mxu0
    %v1388 = vadd.f32 %v1244, %v1314
    %v1389 = vmul.f32 %v1388, 0.5
    %v1390 = vtanh.pop %v1389
    %v1391 = vadd.f32 %v1390, 1.0
    %v1392 = vmul.f32 %v1391, 0.5
    %v1393 = vadd.f32 %v1245, %v1316
    %v1394 = vmul.f32 %v1393, 0.5
    %v1395 = vtanh.pop %v1394
    %v1396 = vadd.f32 %v1395, 1.0
    %v1397 = vmul.f32 %v1396, 0.5
    %v1398 = vmul.f32 %v1392, %v1385
    %v1399 = vadd.f32 %v1246, %v1398
    %v1400 = vtanh.pop %v1399
    %v1401 = vsub.f32 %v1240, %v1400
    %v1402 = vmul.f32 %v1397, %v1401
    %v1403 = vadd.f32 %v1400, %v1402
    %s1404 = scalar_lea.vmem [#allocation2], 56
    %1405 = vst [vmem:[%s1404] sm:$0xff] %v1403
    %v1406 = vld [vmem:[#allocation2] sm:$0xff]
    %v1407 = vld [vmem:[#allocation2 + $0x8] sm:$0xff]
    %v1408 = vld [vmem:[#allocation2 + $0x10] sm:$0xff]
    %v1409 = vld [vmem:[#allocation2 + $0x18] sm:$0xff]
    %v1410 = vld [vmem:[#allocation2 + $0x20] sm:$0xff]
    %v1411 = vld [vmem:[#allocation2 + $0x28] sm:$0xff]
    %v1412 = vld [vmem:[#allocation2 + $0x30] sm:$0xff]
    %v1413 = vld [vmem:[#allocation2 + $0x38] sm:$0xff]
    %v1414 = vld [vmem:[#allocation7] sm:$0xff]
    %v1415 = vld [vmem:[#allocation7 + $0x8] sm:$0xff]
    %v1416 = vld [vmem:[#allocation7 + $0x10] sm:$0xff]
    %v1417 = vld [vmem:[#allocation7 + $0x18] sm:$0xff]
    %v1418 = vld [vmem:[#allocation7 + $0x20] sm:$0xff]
    %v1419 = vld [vmem:[#allocation7 + $0x28] sm:$0xff]
    %v1420 = vld [vmem:[#allocation7 + $0x30] sm:$0xff]
    %v1421 = vld [vmem:[#allocation7 + $0x38] sm:$0xff]
    %v1422 = vld [vmem:[#allocation7 + $0x40] sm:$0xff]
    %v1423 = vld [vmem:[#allocation7 + $0x48] sm:$0xff]
    %v1424 = vld [vmem:[#allocation7 + $0x50] sm:$0xff]
    %v1425 = vld [vmem:[#allocation7 + $0x58] sm:$0xff]
    %v1426 = vld [vmem:[#allocation7 + $0x60] sm:$0xff]
    %v1427 = vld [vmem:[#allocation7 + $0x68] sm:$0xff]
    %v1428 = vld [vmem:[#allocation7 + $0x70] sm:$0xff]
    %v1429 = vld [vmem:[#allocation7 + $0x78] sm:$0xff]
    %v1430 = vld [vmem:[#allocation7 + $0x80] sm:$0xff]
    %v1431 = vld [vmem:[#allocation7 + $0x88] sm:$0xff]
    %v1432 = vld [vmem:[#allocation7 + $0x90] sm:$0xff]
    %v1433 = vld [vmem:[#allocation7 + $0x98] sm:$0xff]
    %v1434 = vld [vmem:[#allocation7 + $0xa0] sm:$0xff]
    %v1435 = vld [vmem:[#allocation7 + $0xa8] sm:$0xff]
    %v1436 = vld [vmem:[#allocation7 + $0xb0] sm:$0xff]
    %v1437 = vld [vmem:[#allocation7 + $0xb8] sm:$0xff]
    %v1438 = vld [vmem:[#allocation7 + $0xc0] sm:$0xff]
    %v1439 = vld [vmem:[#allocation7 + $0xc8] sm:$0xff]
    %v1440 = vld [vmem:[#allocation7 + $0xd0] sm:$0xff]
    %v1441 = vld [vmem:[#allocation7 + $0xd8] sm:$0xff]
    %v1442 = vld [vmem:[#allocation7 + $0xe0] sm:$0xff]
    %v1443 = vld [vmem:[#allocation7 + $0xe8] sm:$0xff]
    %v1444 = vld [vmem:[#allocation7 + $0xf0] sm:$0xff]
    %v1445 = vld [vmem:[#allocation7 + $0xf8] sm:$0xff]
    %v1446 = vld [vmem:[#allocation7 + $0x100] sm:$0xff]
    %v1447 = vld [vmem:[#allocation7 + $0x108] sm:$0xff]
    %v1448 = vld [vmem:[#allocation7 + $0x110] sm:$0xff]
    %v1449 = vld [vmem:[#allocation7 + $0x118] sm:$0xff]
    %v1450 = vld [vmem:[#allocation7 + $0x120] sm:$0xff]
    %v1451 = vld [vmem:[#allocation7 + $0x128] sm:$0xff]
    %v1452 = vld [vmem:[#allocation7 + $0x130] sm:$0xff]
    %v1453 = vld [vmem:[#allocation7 + $0x138] sm:$0xff]
    %v1454 = vld [vmem:[#allocation7 + $0x140] sm:$0xff]
    %v1455 = vld [vmem:[#allocation7 + $0x148] sm:$0xff]
    %v1456 = vld [vmem:[#allocation7 + $0x150] sm:$0xff]
    %v1457 = vld [vmem:[#allocation7 + $0x158] sm:$0xff]
    %v1458 = vld [vmem:[#allocation7 + $0x160] sm:$0xff]
    %v1459 = vld [vmem:[#allocation7 + $0x168] sm:$0xff]
    %v1460 = vld [vmem:[#allocation7 + $0x170] sm:$0xff]
    %v1461 = vld [vmem:[#allocation7 + $0x178] sm:$0xff]
    %1462 = vmatprep.subr.mxu0 %v1415
    %1463 = vmatpush1.msra.mxu0 %v1414
    %1464 = vmatprep.subr.mxu0 %v1418
    %1465 = vmatpush1.msra.mxu0 %v1417
    %1466 = vmatprep.subr.mxu0 %v1421
    %1467 = vmatpush1.msra.mxu0 %v1420
    %1468 = vmatprep.subr.mxu0 %v1424
    %1469 = vmatpush1.msra.mxu0 %v1423
    %1470 = vmatprep.subr.mxu0 %v1427
    %1471 = vmatpush1.msra.mxu0 %v1426
    %1472 = vmatprep.subr.mxu0 %v1430
    %1473 = vmatpush1.msra.mxu0 %v1429
    %1474 = vmatprep.subr.mxu0 %v1433
    %1475 = vmatpush1.msra.mxu0 %v1432
    %1476 = vmatprep.subr.mxu0 %v1436
    %1477 = vmatpush1.msra.mxu0 %v1435
    %1478 = vmatprep.subr.mxu0 %v1439
    %1479 = vmatpush1.msra.mxu0 %v1438
    %1480 = vmatprep.subr.mxu0 %v1442
    %1481 = vmatpush1.msra.mxu0 %v1441
    %1482 = vmatprep.subr.mxu0 %v1445
    %1483 = vmatpush1.msra.mxu0 %v1444
    %1484 = vmatprep.subr.mxu0 %v1448
    %1485 = vmatpush1.msra.mxu0 %v1447
    %1486 = vmatprep.subr.mxu0 %v1451
    %1487 = vmatpush1.msra.mxu0 %v1450
    %1488 = vmatprep.subr.mxu0 %v1454
    %1489 = vmatpush1.msra.mxu0 %v1453
    %1490 = vmatprep.subr.mxu0 %v1457
    %1491 = vmatpush1.msra.mxu0 %v1456
    %1492 = vmatprep.subr.mxu0 %v1460
    %1493 = vmatpush1.msra.mxu0 %v1459
    %1494 = vmatprep.subr.mxu0 0.0
    %1495 = vmatpush1.msra.mxu0 0.0
    %1496 = vmatprep.subr.mxu0 0.0
    %1497 = vmatpush1.msra.mxu0 0.0
    %1498 = vmatprep.subr.mxu0 0.0
    %1499 = vmatpush1.msra.mxu0 0.0
    %1500 = vmatprep.subr.mxu0 0.0
    %1501 = vmatpush1.msra.mxu0 0.0
    %1502 = vmatprep.subr.mxu0 0.0
    %1503 = vmatpush1.msra.mxu0 0.0
    %1504 = vmatprep.subr.mxu0 0.0
    %1505 = vmatpush1.msra.mxu0 0.0
    %1506 = vmatprep.subr.mxu0 0.0
    %1507 = vmatpush1.msra.mxu0 0.0
    %1508 = vmatprep.subr.mxu0 0.0
    %1509 = vmatpush1.msra.mxu0 0.0
    %1510 = vmatprep.subr.mxu0 0.0
    %1511 = vmatpush1.msra.mxu0 0.0
    %1512 = vmatprep.subr.mxu0 0.0
    %1513 = vmatpush1.msra.mxu0 0.0
    %1514 = vmatprep.subr.mxu0 0.0
    %1515 = vmatpush1.msra.mxu0 0.0
    %1516 = vmatprep.subr.mxu0 0.0
    %1517 = vmatpush1.msra.mxu0 0.0
    %1518 = vmatprep.subr.mxu0 0.0
    %1519 = vmatpush1.msra.mxu0 0.0
    %1520 = vmatprep.subr.mxu0 0.0
    %1521 = vmatpush1.msra.mxu0 0.0
    %1522 = vmatprep.subr.mxu0 0.0
    %1523 = vmatpush1.msra.mxu0 0.0
    %1524 = vmatprep.subr.mxu0 0.0
    %1525 = vmatpush1.msra.mxu0 0.0
    %1526 = vmatprep.mubr.f32.mxu0 0.0
    %1527 = vmatmul.mubr.f32.gmra.mrb[0].mxu0 %v1406
    %v1528 = vpop.f32.mrb[0].mxu0
    %v1529 = vadd.f32 0.0, %v1528
    %v1530 = vpop.f32.mrb[0].mxu0
    %v1531 = vadd.f32 0.0, %v1530
    %1532 = vmatprep.mubr.f32.mxu0 0.0
    %1533 = vmatmul.mubr.f32.gmra.mrb[0].mxu0 %v1407
    %v1534 = vpop.f32.mrb[0].mxu0
    %v1535 = vadd.f32 0.0, %v1534
    %v1536 = vpop.f32.mrb[0].mxu0
    %v1537 = vadd.f32 0.0, %v1536
    %1538 = vmatprep.mubr.f32.mxu0 0.0
    %1539 = vmatmul.mubr.f32.gmra.mrb[0].mxu0 %v1408
    %v1540 = vpop.f32.mrb[0].mxu0
    %v1541 = vadd.f32 0.0, %v1540
    %v1542 = vpop.f32.mrb[0].mxu0
    %v1543 = vadd.f32 0.0, %v1542
    %1544 = vmatprep.mubr.f32.mxu0 0.0
    %1545 = vmatmul.mubr.f32.gmra.mrb[0].mxu0 %v1409
    %v1546 = vpop.f32.mrb[0].mxu0
    %v1547 = vadd.f32 0.0, %v1546
    %v1548 = vpop.f32.mrb[0].mxu0
    %v1549 = vadd.f32 0.0, %v1548
    %1550 = vmatprep.mubr.f32.mxu0 0.0
    %1551 = vmatmul.mubr.f32.gmra.mrb[0].mxu0 %v1410
    %v1552 = vpop.f32.mrb[0].mxu0
    %v1553 = vadd.f32 0.0, %v1552
    %v1554 = vpop.f32.mrb[0].mxu0
    %v1555 = vadd.f32 0.0, %v1554
    %1556 = vmatprep.mubr.f32.mxu0 0.0
    %1557 = vmatmul.mubr.f32.gmra.mrb[0].mxu0 %v1411
    %v1558 = vpop.f32.mrb[0].mxu0
    %v1559 = vadd.f32 0.0, %v1558
    %v1560 = vpop.f32.mrb[0].mxu0
    %v1561 = vadd.f32 0.0, %v1560
    %1562 = vmatprep.mubr.f32.mxu0 0.0
    %1563 = vmatmul.mubr.f32.gmra.mrb[0].mxu0 %v1412
    %v1564 = vpop.f32.mrb[0].mxu0
    %v1565 = vadd.f32 0.0, %v1564
    %v1566 = vpop.f32.mrb[0].mxu0
    %v1567 = vadd.f32 0.0, %v1566
    %1568 = vmatprep.mubr.f32.mxu0 0.0
    %1569 = vmatmul.mubr.f32.gmra.mrb[0].mxu0 %v1413
    %v1570 = vpop.f32.mrb[0].mxu0
    %v1571 = vadd.f32 0.0, %v1570
    %v1572 = vpop.f32.mrb[0].mxu0
    %v1573 = vadd.f32 0.0, %v1572
    %1574 = vdwg.mxu0
    %1575 = vmatprep.subr.mxu0 0.0
    %1576 = vmatpush1.msra.mxu0 %v1416
    %1577 = vmatprep.subr.mxu0 0.0
    %1578 = vmatpush1.msra.mxu0 %v1419
    %1579 = vmatprep.subr.mxu0 0.0
    %1580 = vmatpush1.msra.mxu0 %v1422
    %1581 = vmatprep.subr.mxu0 0.0
    %1582 = vmatpush1.msra.mxu0 %v1425
    %1583 = vmatprep.subr.mxu0 0.0
    %1584 = vmatpush1.msra.mxu0 %v1428
    %1585 = vmatprep.subr.mxu0 0.0
    %1586 = vmatpush1.msra.mxu0 %v1431
    %1587 = vmatprep.subr.mxu0 0.0
    %1588 = vmatpush1.msra.mxu0 %v1434
    %1589 = vmatprep.subr.mxu0 0.0
    %1590 = vmatpush1.msra.mxu0 %v1437
    %1591 = vmatprep.subr.mxu0 0.0
    %1592 = vmatpush1.msra.mxu0 %v1440
    %1593 = vmatprep.subr.mxu0 0.0
    %1594 = vmatpush1.msra.mxu0 %v1443
    %1595 = vmatprep.subr.mxu0 0.0
    %1596 = vmatpush1.msra.mxu0 %v1446
    %1597 = vmatprep.subr.mxu0 0.0
    %1598 = vmatpush1.msra.mxu0 %v1449
    %1599 = vmatprep.subr.mxu0 0.0
    %1600 = vmatpush1.msra.mxu0 %v1452
    %1601 = vmatprep.subr.mxu0 0.0
    %1602 = vmatpush1.msra.mxu0 %v1455
    %1603 = vmatprep.subr.mxu0 0.0
    %1604 = vmatpush1.msra.mxu0 %v1458
    %1605 = vmatprep.subr.mxu0 0.0
    %1606 = vmatpush1.msra.mxu0 %v1461
    %1607 = vmatprep.subr.mxu0 0.0
    %1608 = vmatpush1.msra.mxu0 0.0
    %1609 = vmatprep.subr.mxu0 0.0
    %1610 = vmatpush1.msra.mxu0 0.0
    %1611 = vmatprep.subr.mxu0 0.0
    %1612 = vmatpush1.msra.mxu0 0.0
    %1613 = vmatprep.subr.mxu0 0.0
    %1614 = vmatpush1.msra.mxu0 0.0
    %1615 = vmatprep.subr.mxu0 0.0
    %1616 = vmatpush1.msra.mxu0 0.0
    %1617 = vmatprep.subr.mxu0 0.0
    %1618 = vmatpush1.msra.mxu0 0.0
    %1619 = vmatprep.subr.mxu0 0.0
    %1620 = vmatpush1.msra.mxu0 0.0
    %1621 = vmatprep.subr.mxu0 0.0
    %1622 = vmatpush1.msra.mxu0 0.0
    %1623 = vmatprep.subr.mxu0 0.0
    %1624 = vmatpush1.msra.mxu0 0.0
    %1625 = vmatprep.subr.mxu0 0.0
    %1626 = vmatpush1.msra.mxu0 0.0
    %1627 = vmatprep.subr.mxu0 0.0
    %1628 = vmatpush1.msra.mxu0 0.0
    %1629 = vmatprep.subr.mxu0 0.0
    %1630 = vmatpush1.msra.mxu0 0.0
    %1631 = vmatprep.subr.mxu0 0.0
    %1632 = vmatpush1.msra.mxu0 0.0
    %1633 = vmatprep.subr.mxu0 0.0
    %1634 = vmatpush1.msra.mxu0 0.0
    %1635 = vmatprep.subr.mxu0 0.0
    %1636 = vmatpush1.msra.mxu0 0.0
    %1637 = vmatprep.subr.mxu0 0.0
    %1638 = vmatpush1.msra.mxu0 0.0
    %1639 = vmatprep.mubr.f32.mxu0 0.0
    %1640 = vmatmul.mubr.f32.gmra.mrb[0].mxu0 %v1406
    %v1641 = vpop.f32.mrb[0].mxu0
    %v1642 = vadd.f32 0.0, %v1641
    %v1643 = vpop.f32.mrb[0].mxu0
    %1644 = vmatprep.mubr.f32.mxu0 0.0
    %1645 = vmatmul.mubr.f32.gmra.mrb[0].mxu0 %v1407
    %v1646 = vpop.f32.mrb[0].mxu0
    %v1647 = vadd.f32 0.0, %v1646
    %v1648 = vpop.f32.mrb[0].mxu0
    %1649 = vmatprep.mubr.f32.mxu0 0.0
    %1650 = vmatmul.mubr.f32.gmra.mrb[0].mxu0 %v1408
    %v1651 = vpop.f32.mrb[0].mxu0
    %v1652 = vadd.f32 0.0, %v1651
    %v1653 = vpop.f32.mrb[0].mxu0
    %1654 = vmatprep.mubr.f32.mxu0 0.0
    %1655 = vmatmul.mubr.f32.gmra.mrb[0].mxu0 %v1409
    %v1656 = vpop.f32.mrb[0].mxu0
    %v1657 = vadd.f32 0.0, %v1656
    %v1658 = vpop.f32.mrb[0].mxu0
    %1659 = vmatprep.mubr.f32.mxu0 0.0
    %1660 = vmatmul.mubr.f32.gmra.mrb[0].mxu0 %v1410
    %v1661 = vpop.f32.mrb[0].mxu0
    %v1662 = vadd.f32 0.0, %v1661
    %v1663 = vpop.f32.mrb[0].mxu0
    %1664 = vmatprep.mubr.f32.mxu0 0.0
    %1665 = vmatmul.mubr.f32.gmra.mrb[0].mxu0 %v1411
    %v1666 = vpop.f32.mrb[0].mxu0
    %v1667 = vadd.f32 0.0, %v1666
    %v1668 = vpop.f32.mrb[0].mxu0
    %1669 = vmatprep.mubr.f32.mxu0 0.0
    %1670 = vmatmul.mubr.f32.gmra.mrb[0].mxu0 %v1412
    %v1671 = vpop.f32.mrb[0].mxu0
    %v1672 = vadd.f32 0.0, %v1671
    %v1673 = vpop.f32.mrb[0].mxu0
    %1674 = vmatprep.mubr.f32.mxu0 0.0
    %1675 = vmatmul.mubr.f32.gmra.mrb[0].mxu0 %v1413
    %v1676 = vpop.f32.mrb[0].mxu0
    %v1677 = vadd.f32 0.0, %v1676
    %v1678 = vpop.f32.mrb[0].mxu0
    %1679 = vdwg.mxu0
    %1680 = vst [vmem:[#allocation3] sm:$0xff] %v1529
    %1681 = vst [vmem:[#allocation3 + $0x8] sm:$0xff] %v1531
    %1682 = vst [vmem:[#allocation3 + $0x10] sm:$0xff] %v1642
    %1683 = vst [vmem:[#allocation3 + $0x18] sm:$0xff] %v1535
    %1684 = vst [vmem:[#allocation3 + $0x20] sm:$0xff] %v1537
    %1685 = vst [vmem:[#allocation3 + $0x28] sm:$0xff] %v1647
    %1686 = vst [vmem:[#allocation3 + $0x30] sm:$0xff] %v1541
    %1687 = vst [vmem:[#allocation3 + $0x38] sm:$0xff] %v1543
    %1688 = vst [vmem:[#allocation3 + $0x40] sm:$0xff] %v1652
    %1689 = vst [vmem:[#allocation3 + $0x48] sm:$0xff] %v1547
    %1690 = vst [vmem:[#allocation3 + $0x50] sm:$0xff] %v1549
    %1691 = vst [vmem:[#allocation3 + $0x58] sm:$0xff] %v1657
    %1692 = vst [vmem:[#allocation3 + $0x60] sm:$0xff] %v1553
    %1693 = vst [vmem:[#allocation3 + $0x68] sm:$0xff] %v1555
    %1694 = vst [vmem:[#allocation3 + $0x70] sm:$0xff] %v1662
    %1695 = vst [vmem:[#allocation3 + $0x78] sm:$0xff] %v1559
    %1696 = vst [vmem:[#allocation3 + $0x80] sm:$0xff] %v1561
    %1697 = vst [vmem:[#allocation3 + $0x88] sm:$0xff] %v1667
    %1698 = vst [vmem:[#allocation3 + $0x90] sm:$0xff] %v1565
    %1699 = vst [vmem:[#allocation3 + $0x98] sm:$0xff] %v1567
    %1700 = vst [vmem:[#allocation3 + $0xa0] sm:$0xff] %v1672
    %1701 = vst [vmem:[#allocation3 + $0xa8] sm:$0xff] %v1571
    %1702 = vst [vmem:[#allocation3 + $0xb0] sm:$0xff] %v1573
    %1703 = vst [vmem:[#allocation3 + $0xb8] sm:$0xff] %v1677
    %s1704 = scalar_lea.vmem [#allocation9], 384
    %v1705 = vld [vmem:[%s1704] sm:$0xff]
    %v1706 = vld [vmem:[%s1704 + $0x8] sm:$0xff]
    %v1707 = vld [vmem:[%s1704 + $0x10] sm:$0xff]
    %v1708 = vld [vmem:[%s1704 + $0x18] sm:$0xff]
    %v1709 = vld [vmem:[%s1704 + $0x20] sm:$0xff]
    %v1710 = vld [vmem:[%s1704 + $0x28] sm:$0xff]
    %v1711 = vld [vmem:[%s1704 + $0x30] sm:$0xff]
    %v1712 = vld [vmem:[%s1704 + $0x38] sm:$0xff]
    %v1713 = vld [vmem:[%s1704 + $0x40] sm:$0xff]
    %v1714 = vld [vmem:[%s1704 + $0x48] sm:$0xff]
    %v1715 = vld [vmem:[%s1704 + $0x50] sm:$0xff]
    %v1716 = vld [vmem:[%s1704 + $0x58] sm:$0xff]
    %v1717 = vld [vmem:[%s1704 + $0x60] sm:$0xff]
    %v1718 = vld [vmem:[%s1704 + $0x68] sm:$0xff]
    %v1719 = vld [vmem:[%s1704 + $0x70] sm:$0xff]
    %v1720 = vld [vmem:[%s1704 + $0x78] sm:$0xff]
    %v1721 = vld [vmem:[%s1704 + $0x80] sm:$0xff]
    %v1722 = vld [vmem:[%s1704 + $0x88] sm:$0xff]
    %v1723 = vld [vmem:[%s1704 + $0x90] sm:$0xff]
    %v1724 = vld [vmem:[%s1704 + $0x98] sm:$0xff]
    %v1725 = vld [vmem:[%s1704 + $0xa0] sm:$0xff]
    %v1726 = vld [vmem:[%s1704 + $0xa8] sm:$0xff]
    %v1727 = vld [vmem:[%s1704 + $0xb0] sm:$0xff]
    %v1728 = vld [vmem:[%s1704 + $0xb8] sm:$0xff]
    %v1729 = vld [vmem:[%s1704 + $0xc0] sm:$0xff]
    %v1730 = vld [vmem:[%s1704 + $0xc8] sm:$0xff]
    %v1731 = vld [vmem:[%s1704 + $0xd0] sm:$0xff]
    %v1732 = vld [vmem:[%s1704 + $0xd8] sm:$0xff]
    %v1733 = vld [vmem:[%s1704 + $0xe0] sm:$0xff]
    %v1734 = vld [vmem:[%s1704 + $0xe8] sm:$0xff]
    %v1735 = vld [vmem:[%s1704 + $0xf0] sm:$0xff]
    %v1736 = vld [vmem:[%s1704 + $0xf8] sm:$0xff]
    %v1737 = vld [vmem:[%s1704 + $0x100] sm:$0xff]
    %v1738 = vld [vmem:[%s1704 + $0x108] sm:$0xff]
    %v1739 = vld [vmem:[%s1704 + $0x110] sm:$0xff]
    %v1740 = vld [vmem:[%s1704 + $0x118] sm:$0xff]
    %v1741 = vld [vmem:[%s1704 + $0x120] sm:$0xff]
    %v1742 = vld [vmem:[%s1704 + $0x128] sm:$0xff]
    %v1743 = vld [vmem:[%s1704 + $0x130] sm:$0xff]
    %v1744 = vld [vmem:[%s1704 + $0x138] sm:$0xff]
    %v1745 = vld [vmem:[%s1704 + $0x140] sm:$0xff]
    %v1746 = vld [vmem:[%s1704 + $0x148] sm:$0xff]
    %v1747 = vld [vmem:[%s1704 + $0x150] sm:$0xff]
    %v1748 = vld [vmem:[%s1704 + $0x158] sm:$0xff]
    %v1749 = vld [vmem:[%s1704 + $0x160] sm:$0xff]
    %v1750 = vld [vmem:[%s1704 + $0x168] sm:$0xff]
    %v1751 = vld [vmem:[%s1704 + $0x170] sm:$0xff]
    %v1752 = vld [vmem:[%s1704 + $0x178] sm:$0xff]
    %v1753 = vld [vmem:[#allocation3] sm:$0xff]
    %v1754 = vld [vmem:[#allocation3 + $0x8] sm:$0xff]
    %v1755 = vld [vmem:[#allocation3 + $0x10] sm:$0xff]
    %1756 = vmatprep.subr.mxu0 %v1706
    %1757 = vmatpush1.msra.mxu0 %v1705
    %1758 = vmatprep.subr.mxu0 %v1709
    %1759 = vmatpush1.msra.mxu0 %v1708
    %1760 = vmatprep.subr.mxu0 %v1712
    %1761 = vmatpush1.msra.mxu0 %v1711
    %1762 = vmatprep.subr.mxu0 %v1715
    %1763 = vmatpush1.msra.mxu0 %v1714
    %1764 = vmatprep.subr.mxu0 %v1718
    %1765 = vmatpush1.msra.mxu0 %v1717
    %1766 = vmatprep.subr.mxu0 %v1721
    %1767 = vmatpush1.msra.mxu0 %v1720
    %1768 = vmatprep.subr.mxu0 %v1724
    %1769 = vmatpush1.msra.mxu0 %v1723
    %1770 = vmatprep.subr.mxu0 %v1727
    %1771 = vmatpush1.msra.mxu0 %v1726
    %1772 = vmatprep.subr.mxu0 %v1730
    %1773 = vmatpush1.msra.mxu0 %v1729
    %1774 = vmatprep.subr.mxu0 %v1733
    %1775 = vmatpush1.msra.mxu0 %v1732
    %1776 = vmatprep.subr.mxu0 %v1736
    %1777 = vmatpush1.msra.mxu0 %v1735
    %1778 = vmatprep.subr.mxu0 %v1739
    %1779 = vmatpush1.msra.mxu0 %v1738
    %1780 = vmatprep.subr.mxu0 %v1742
    %1781 = vmatpush1.msra.mxu0 %v1741
    %1782 = vmatprep.subr.mxu0 %v1745
    %1783 = vmatpush1.msra.mxu0 %v1744
    %1784 = vmatprep.subr.mxu0 %v1748
    %1785 = vmatpush1.msra.mxu0 %v1747
    %1786 = vmatprep.subr.mxu0 %v1751
    %1787 = vmatpush1.msra.mxu0 %v1750
    %1788 = vmatprep.subr.mxu0 0.0
    %1789 = vmatpush1.msra.mxu0 0.0
    %1790 = vmatprep.subr.mxu0 0.0
    %1791 = vmatpush1.msra.mxu0 0.0
    %1792 = vmatprep.subr.mxu0 0.0
    %1793 = vmatpush1.msra.mxu0 0.0
    %1794 = vmatprep.subr.mxu0 0.0
    %1795 = vmatpush1.msra.mxu0 0.0
    %1796 = vmatprep.subr.mxu0 0.0
    %1797 = vmatpush1.msra.mxu0 0.0
    %1798 = vmatprep.subr.mxu0 0.0
    %1799 = vmatpush1.msra.mxu0 0.0
    %1800 = vmatprep.subr.mxu0 0.0
    %1801 = vmatpush1.msra.mxu0 0.0
    %1802 = vmatprep.subr.mxu0 0.0
    %1803 = vmatpush1.msra.mxu0 0.0
    %1804 = vmatprep.subr.mxu0 0.0
    %1805 = vmatpush1.msra.mxu0 0.0
    %1806 = vmatprep.subr.mxu0 0.0
    %1807 = vmatpush1.msra.mxu0 0.0
    %1808 = vmatprep.subr.mxu0 0.0
    %1809 = vmatpush1.msra.mxu0 0.0
    %1810 = vmatprep.subr.mxu0 0.0
    %1811 = vmatpush1.msra.mxu0 0.0
    %1812 = vmatprep.subr.mxu0 0.0
    %1813 = vmatpush1.msra.mxu0 0.0
    %1814 = vmatprep.subr.mxu0 0.0
    %1815 = vmatpush1.msra.mxu0 0.0
    %1816 = vmatprep.subr.mxu0 0.0
    %1817 = vmatpush1.msra.mxu0 0.0
    %1818 = vmatprep.subr.mxu0 0.0
    %1819 = vmatpush1.msra.mxu0 0.0
    %1820 = vmatprep.mubr.f32.mxu0 0.0
    %1821 = vmatmul.mubr.f32.gmra.mrb[0].mxu0 0.0
    %v1822 = vpop.f32.mrb[0].mxu0
    %v1823 = vadd.f32 0.0, %v1822
    %v1824 = vpop.f32.mrb[0].mxu0
    %v1825 = vadd.f32 0.0, %v1824
    %1826 = vdwg.mxu0
    %1827 = vmatprep.subr.mxu0 0.0
    %1828 = vmatpush1.msra.mxu0 %v1707
    %1829 = vmatprep.subr.mxu0 0.0
    %1830 = vmatpush1.msra.mxu0 %v1710
    %1831 = vmatprep.subr.mxu0 0.0
    %1832 = vmatpush1.msra.mxu0 %v1713
    %1833 = vmatprep.subr.mxu0 0.0
    %1834 = vmatpush1.msra.mxu0 %v1716
    %1835 = vmatprep.subr.mxu0 0.0
    %1836 = vmatpush1.msra.mxu0 %v1719
    %1837 = vmatprep.subr.mxu0 0.0
    %1838 = vmatpush1.msra.mxu0 %v1722
    %1839 = vmatprep.subr.mxu0 0.0
    %1840 = vmatpush1.msra.mxu0 %v1725
    %1841 = vmatprep.subr.mxu0 0.0
    %1842 = vmatpush1.msra.mxu0 %v1728
    %1843 = vmatprep.subr.mxu0 0.0
    %1844 = vmatpush1.msra.mxu0 %v1731
    %1845 = vmatprep.subr.mxu0 0.0
    %1846 = vmatpush1.msra.mxu0 %v1734
    %1847 = vmatprep.subr.mxu0 0.0
    %1848 = vmatpush1.msra.mxu0 %v1737
    %1849 = vmatprep.subr.mxu0 0.0
    %1850 = vmatpush1.msra.mxu0 %v1740
    %1851 = vmatprep.subr.mxu0 0.0
    %1852 = vmatpush1.msra.mxu0 %v1743
    %1853 = vmatprep.subr.mxu0 0.0
    %1854 = vmatpush1.msra.mxu0 %v1746
    %1855 = vmatprep.subr.mxu0 0.0
    %1856 = vmatpush1.msra.mxu0 %v1749
    %1857 = vmatprep.subr.mxu0 0.0
    %1858 = vmatpush1.msra.mxu0 %v1752
    %1859 = vmatprep.subr.mxu0 0.0
    %1860 = vmatpush1.msra.mxu0 0.0
    %1861 = vmatprep.subr.mxu0 0.0
    %1862 = vmatpush1.msra.mxu0 0.0
    %1863 = vmatprep.subr.mxu0 0.0
    %1864 = vmatpush1.msra.mxu0 0.0
    %1865 = vmatprep.subr.mxu0 0.0
    %1866 = vmatpush1.msra.mxu0 0.0
    %1867 = vmatprep.subr.mxu0 0.0
    %1868 = vmatpush1.msra.mxu0 0.0
    %1869 = vmatprep.subr.mxu0 0.0
    %1870 = vmatpush1.msra.mxu0 0.0
    %1871 = vmatprep.subr.mxu0 0.0
    %1872 = vmatpush1.msra.mxu0 0.0
    %1873 = vmatprep.subr.mxu0 0.0
    %1874 = vmatpush1.msra.mxu0 0.0
    %1875 = vmatprep.subr.mxu0 0.0
    %1876 = vmatpush1.msra.mxu0 0.0
    %1877 = vmatprep.subr.mxu0 0.0
    %1878 = vmatpush1.msra.mxu0 0.0
    %1879 = vmatprep.subr.mxu0 0.0
    %1880 = vmatpush1.msra.mxu0 0.0
    %1881 = vmatprep.subr.mxu0 0.0
    %1882 = vmatpush1.msra.mxu0 0.0
    %1883 = vmatprep.subr.mxu0 0.0
    %1884 = vmatpush1.msra.mxu0 0.0
    %1885 = vmatprep.subr.mxu0 0.0
    %1886 = vmatpush1.msra.mxu0 0.0
    %1887 = vmatprep.subr.mxu0 0.0
    %1888 = vmatpush1.msra.mxu0 0.0
    %1889 = vmatprep.subr.mxu0 0.0
    %1890 = vmatpush1.msra.mxu0 0.0
    %1891 = vmatprep.mubr.f32.mxu0 0.0
    %1892 = vmatmul.mubr.f32.gmra.mrb[0].mxu0 0.0
    %v1893 = vpop.f32.mrb[0].mxu0
    %v1894 = vadd.f32 0.0, %v1893
    %v1895 = vpop.f32.mrb[0].mxu0
    %1896 = vdwg.mxu0
    %v1897 = vadd.f32 %v1753, %v1823
    %v1898 = vmul.f32 %v1897, 0.5
    %v1899 = vtanh.pop %v1898
    %v1900 = vadd.f32 %v1899, 1.0
    %v1901 = vmul.f32 %v1900, 0.5
    %v1902 = vadd.f32 %v1754, %v1825
    %v1903 = vmul.f32 %v1902, 0.5
    %v1904 = vtanh.pop %v1903
    %v1905 = vadd.f32 %v1904, 1.0
    %v1906 = vmul.f32 %v1905, 0.5
    %v1907 = vmul.f32 %v1901, %v1894
    %v1908 = vadd.f32 %v1755, %v1907
    %v1909 = vtanh.pop %v1908
    %v1910 = vsub.f32 0.0, %v1909
    %v1911 = vmul.f32 %v1906, %v1910
    %v1912 = vadd.f32 %v1909, %v1911
    %s1913 = scalar_lea.vmem [#allocation3], 24
    %v1914 = vld [vmem:[%s1913] sm:$0xff]
    %v1915 = vld [vmem:[%s1913 + $0x8] sm:$0xff]
    %v1916 = vld [vmem:[%s1913 + $0x10] sm:$0xff]
    %1917 = vmatprep.subr.mxu0 %v1706
    %1918 = vmatpush1.msra.mxu0 %v1705
    %1919 = vmatprep.subr.mxu0 %v1709
    %1920 = vmatpush1.msra.mxu0 %v1708
    %1921 = vmatprep.subr.mxu0 %v1712
    %1922 = vmatpush1.msra.mxu0 %v1711
    %1923 = vmatprep.subr.mxu0 %v1715
    %1924 = vmatpush1.msra.mxu0 %v1714
    %1925 = vmatprep.subr.mxu0 %v1718
    %1926 = vmatpush1.msra.mxu0 %v1717
    %1927 = vmatprep.subr.mxu0 %v1721
    %1928 = vmatpush1.msra.mxu0 %v1720
    %1929 = vmatprep.subr.mxu0 %v1724
    %1930 = vmatpush1.msra.mxu0 %v1723
    %1931 = vmatprep.subr.mxu0 %v1727
    %1932 = vmatpush1.msra.mxu0 %v1726
    %1933 = vmatprep.subr.mxu0 %v1730
    %1934 = vmatpush1.msra.mxu0 %v1729
    %1935 = vmatprep.subr.mxu0 %v1733
    %1936 = vmatpush1.msra.mxu0 %v1732
    %1937 = vmatprep.subr.mxu0 %v1736
    %1938 = vmatpush1.msra.mxu0 %v1735
    %1939 = vmatprep.subr.mxu0 %v1739
    %1940 = vmatpush1.msra.mxu0 %v1738
    %1941 = vmatprep.subr.mxu0 %v1742
    %1942 = vmatpush1.msra.mxu0 %v1741
    %1943 = vmatprep.subr.mxu0 %v1745
    %1944 = vmatpush1.msra.mxu0 %v1744
    %1945 = vmatprep.subr.mxu0 %v1748
    %1946 = vmatpush1.msra.mxu0 %v1747
    %1947 = vmatprep.subr.mxu0 %v1751
    %1948 = vmatpush1.msra.mxu0 %v1750
    %1949 = vmatprep.subr.mxu0 0.0
    %1950 = vmatpush1.msra.mxu0 0.0
    %1951 = vmatprep.subr.mxu0 0.0
    %1952 = vmatpush1.msra.mxu0 0.0
    %1953 = vmatprep.subr.mxu0 0.0
    %1954 = vmatpush1.msra.mxu0 0.0
    %1955 = vmatprep.subr.mxu0 0.0
    %1956 = vmatpush1.msra.mxu0 0.0
    %1957 = vmatprep.subr.mxu0 0.0
    %1958 = vmatpush1.msra.mxu0 0.0
    %1959 = vmatprep.subr.mxu0 0.0
    %1960 = vmatpush1.msra.mxu0 0.0
    %1961 = vmatprep.subr.mxu0 0.0
    %1962 = vmatpush1.msra.mxu0 0.0
    %1963 = vmatprep.subr.mxu0 0.0
    %1964 = vmatpush1.msra.mxu0 0.0
    %1965 = vmatprep.subr.mxu0 0.0
    %1966 = vmatpush1.msra.mxu0 0.0
    %1967 = vmatprep.subr.mxu0 0.0
    %1968 = vmatpush1.msra.mxu0 0.0
    %1969 = vmatprep.subr.mxu0 0.0
    %1970 = vmatpush1.msra.mxu0 0.0
    %1971 = vmatprep.subr.mxu0 0.0
    %1972 = vmatpush1.msra.mxu0 0.0
    %1973 = vmatprep.subr.mxu0 0.0
    %1974 = vmatpush1.msra.mxu0 0.0
    %1975 = vmatprep.subr.mxu0 0.0
    %1976 = vmatpush1.msra.mxu0 0.0
    %1977 = vmatprep.subr.mxu0 0.0
    %1978 = vmatpush1.msra.mxu0 0.0
    %1979 = vmatprep.subr.mxu0 0.0
    %1980 = vmatpush1.msra.mxu0 0.0
    %1981 = vmatprep.mubr.f32.mxu0 0.0
    %1982 = vmatmul.mubr.f32.gmra.mrb[0].mxu0 %v1912
    %v1983 = vpop.f32.mrb[0].mxu0
    %v1984 = vadd.f32 0.0, %v1983
    %v1985 = vpop.f32.mrb[0].mxu0
    %v1986 = vadd.f32 0.0, %v1985
    %1987 = vdwg.mxu0
    %1988 = vmatprep.subr.mxu0 0.0
    %1989 = vmatpush1.msra.mxu0 %v1707
    %1990 = vmatprep.subr.mxu0 0.0
    %1991 = vmatpush1.msra.mxu0 %v1710
    %1992 = vmatprep.subr.mxu0 0.0
    %1993 = vmatpush1.msra.mxu0 %v1713
    %1994 = vmatprep.subr.mxu0 0.0
    %1995 = vmatpush1.msra.mxu0 %v1716
    %1996 = vmatprep.subr.mxu0 0.0
    %1997 = vmatpush1.msra.mxu0 %v1719
    %1998 = vmatprep.subr.mxu0 0.0
    %1999 = vmatpush1.msra.mxu0 %v1722
    %2000 = vmatprep.subr.mxu0 0.0
    %2001 = vmatpush1.msra.mxu0 %v1725
    %2002 = vmatprep.subr.mxu0 0.0
    %2003 = vmatpush1.msra.mxu0 %v1728
    %2004 = vmatprep.subr.mxu0 0.0
    %2005 = vmatpush1.msra.mxu0 %v1731
    %2006 = vmatprep.subr.mxu0 0.0
    %2007 = vmatpush1.msra.mxu0 %v1734
    %2008 = vmatprep.subr.mxu0 0.0
    %2009 = vmatpush1.msra.mxu0 %v1737
    %2010 = vmatprep.subr.mxu0 0.0
    %2011 = vmatpush1.msra.mxu0 %v1740
    %2012 = vmatprep.subr.mxu0 0.0
    %2013 = vmatpush1.msra.mxu0 %v1743
    %2014 = vmatprep.subr.mxu0 0.0
    %2015 = vmatpush1.msra.mxu0 %v1746
    %2016 = vmatprep.subr.mxu0 0.0
    %2017 = vmatpush1.msra.mxu0 %v1749
    %2018 = vmatprep.subr.mxu0 0.0
    %2019 = vmatpush1.msra.mxu0 %v1752
    %2020 = vmatprep.subr.mxu0 0.0
    %2021 = vmatpush1.msra.mxu0 0.0
    %2022 = vmatprep.subr.mxu0 0.0
    %2023 = vmatpush1.msra.mxu0 0.0
    %2024 = vmatprep.subr.mxu0 0.0
    %2025 = vmatpush1.msra.mxu0 0.0
    %2026 = vmatprep.subr.mxu0 0.0
    %2027 = vmatpush1.msra.mxu0 0.0
    %2028 = vmatprep.subr.mxu0 0.0
    %2029 = vmatpush1.msra.mxu0 0.0
    %2030 = vmatprep.subr.mxu0 0.0
    %2031 = vmatpush1.msra.mxu0 0.0
    %2032 = vmatprep.subr.mxu0 0.0
    %2033 = vmatpush1.msra.mxu0 0.0
    %2034 = vmatprep.subr.mxu0 0.0
    %2035 = vmatpush1.msra.mxu0 0.0
    %2036 = vmatprep.subr.mxu0 0.0
    %2037 = vmatpush1.msra.mxu0 0.0
    %2038 = vmatprep.subr.mxu0 0.0
    %2039 = vmatpush1.msra.mxu0 0.0
    %2040 = vmatprep.subr.mxu0 0.0
    %2041 = vmatpush1.msra.mxu0 0.0
    %2042 = vmatprep.subr.mxu0 0.0
    %2043 = vmatpush1.msra.mxu0 0.0
    %2044 = vmatprep.subr.mxu0 0.0
    %2045 = vmatpush1.msra.mxu0 0.0
    %2046 = vmatprep.subr.mxu0 0.0
    %2047 = vmatpush1.msra.mxu0 0.0
    %2048 = vmatprep.subr.mxu0 0.0
    %2049 = vmatpush1.msra.mxu0 0.0
    %2050 = vmatprep.subr.mxu0 0.0
    %2051 = vmatpush1.msra.mxu0 0.0
    %2052 = vmatprep.mubr.f32.mxu0 0.0
    %2053 = vmatmul.mubr.f32.gmra.mrb[0].mxu0 %v1912
    %v2054 = vpop.f32.mrb[0].mxu0
    %v2055 = vadd.f32 0.0, %v2054
    %v2056 = vpop.f32.mrb[0].mxu0
    %2057 = vdwg.mxu0
    %v2058 = vadd.f32 %v1914, %v1984
    %v2059 = vmul.f32 %v2058, 0.5
    %v2060 = vtanh.pop %v2059
    %v2061 = vadd.f32 %v2060, 1.0
    %v2062 = vmul.f32 %v2061, 0.5
    %v2063 = vadd.f32 %v1915, %v1986
    %v2064 = vmul.f32 %v2063, 0.5
    %v2065 = vtanh.pop %v2064
    %v2066 = vadd.f32 %v2065, 1.0
    %v2067 = vmul.f32 %v2066, 0.5
    %v2068 = vmul.f32 %v2062, %v2055
    %v2069 = vadd.f32 %v1916, %v2068
    %v2070 = vtanh.pop %v2069
    %v2071 = vsub.f32 %v1912, %v2070
    %v2072 = vmul.f32 %v2067, %v2071
    %v2073 = vadd.f32 %v2070, %v2072
    %s2074 = scalar_lea.vmem [#allocation3], 48
    %v2075 = vld [vmem:[%s2074] sm:$0xff]
    %v2076 = vld [vmem:[%s2074 + $0x8] sm:$0xff]
    %v2077 = vld [vmem:[%s2074 + $0x10] sm:$0xff]
    %2078 = vmatprep.subr.mxu0 %v1706
    %2079 = vmatpush1.msra.mxu0 %v1705
    %2080 = vmatprep.subr.mxu0 %v1709
    %2081 = vmatpush1.msra.mxu0 %v1708
    %2082 = vmatprep.subr.mxu0 %v1712
    %2083 = vmatpush1.msra.mxu0 %v1711
    %2084 = vmatprep.subr.mxu0 %v1715
    %2085 = vmatpush1.msra.mxu0 %v1714
    %2086 = vmatprep.subr.mxu0 %v1718
    %2087 = vmatpush1.msra.mxu0 %v1717
    %2088 = vmatprep.subr.mxu0 %v1721
    %2089 = vmatpush1.msra.mxu0 %v1720
    %2090 = vmatprep.subr.mxu0 %v1724
    %2091 = vmatpush1.msra.mxu0 %v1723
    %2092 = vmatprep.subr.mxu0 %v1727
    %2093 = vmatpush1.msra.mxu0 %v1726
    %2094 = vmatprep.subr.mxu0 %v1730
    %2095 = vmatpush1.msra.mxu0 %v1729
    %2096 = vmatprep.subr.mxu0 %v1733
    %2097 = vmatpush1.msra.mxu0 %v1732
    %2098 = vmatprep.subr.mxu0 %v1736
    %2099 = vmatpush1.msra.mxu0 %v1735
    %2100 = vmatprep.subr.mxu0 %v1739
    %2101 = vmatpush1.msra.mxu0 %v1738
    %2102 = vmatprep.subr.mxu0 %v1742
    %2103 = vmatpush1.msra.mxu0 %v1741
    %2104 = vmatprep.subr.mxu0 %v1745
    %2105 = vmatpush1.msra.mxu0 %v1744
    %2106 = vmatprep.subr.mxu0 %v1748
    %2107 = vmatpush1.msra.mxu0 %v1747
    %2108 = vmatprep.subr.mxu0 %v1751
    %2109 = vmatpush1.msra.mxu0 %v1750
    %2110 = vmatprep.subr.mxu0 0.0
    %2111 = vmatpush1.msra.mxu0 0.0
    %2112 = vmatprep.subr.mxu0 0.0
    %2113 = vmatpush1.msra.mxu0 0.0
    %2114 = vmatprep.subr.mxu0 0.0
    %2115 = vmatpush1.msra.mxu0 0.0
    %2116 = vmatprep.subr.mxu0 0.0
    %2117 = vmatpush1.msra.mxu0 0.0
    %2118 = vmatprep.subr.mxu0 0.0
    %2119 = vmatpush1.msra.mxu0 0.0
    %2120 = vmatprep.subr.mxu0 0.0
    %2121 = vmatpush1.msra.mxu0 0.0
    %2122 = vmatprep.subr.mxu0 0.0
    %2123 = vmatpush1.msra.mxu0 0.0
    %2124 = vmatprep.subr.mxu0 0.0
    %2125 = vmatpush1.msra.mxu0 0.0
    %2126 = vmatprep.subr.mxu0 0.0
    %2127 = vmatpush1.msra.mxu0 0.0
    %2128 = vmatprep.subr.mxu0 0.0
    %2129 = vmatpush1.msra.mxu0 0.0
    %2130 = vmatprep.subr.mxu0 0.0
    %2131 = vmatpush1.msra.mxu0 0.0
    %2132 = vmatprep.subr.mxu0 0.0
    %2133 = vmatpush1.msra.mxu0 0.0
    %2134 = vmatprep.subr.mxu0 0.0
    %2135 = vmatpush1.msra.mxu0 0.0
    %2136 = vmatprep.subr.mxu0 0.0
    %2137 = vmatpush1.msra.mxu0 0.0
    %2138 = vmatprep.subr.mxu0 0.0
    %2139 = vmatpush1.msra.mxu0 0.0
    %2140 = vmatprep.subr.mxu0 0.0
    %2141 = vmatpush1.msra.mxu0 0.0
    %2142 = vmatprep.mubr.f32.mxu0 0.0
    %2143 = vmatmul.mubr.f32.gmra.mrb[0].mxu0 %v2073
    %v2144 = vpop.f32.mrb[0].mxu0
    %v2145 = vadd.f32 0.0, %v2144
    %v2146 = vpop.f32.mrb[0].mxu0
    %v2147 = vadd.f32 0.0, %v2146
    %2148 = vdwg.mxu0
    %2149 = vmatprep.subr.mxu0 0.0
    %2150 = vmatpush1.msra.mxu0 %v1707
    %2151 = vmatprep.subr.mxu0 0.0
    %2152 = vmatpush1.msra.mxu0 %v1710
    %2153 = vmatprep.subr.mxu0 0.0
    %2154 = vmatpush1.msra.mxu0 %v1713
    %2155 = vmatprep.subr.mxu0 0.0
    %2156 = vmatpush1.msra.mxu0 %v1716
    %2157 = vmatprep.subr.mxu0 0.0
    %2158 = vmatpush1.msra.mxu0 %v1719
    %2159 = vmatprep.subr.mxu0 0.0
    %2160 = vmatpush1.msra.mxu0 %v1722
    %2161 = vmatprep.subr.mxu0 0.0
    %2162 = vmatpush1.msra.mxu0 %v1725
    %2163 = vmatprep.subr.mxu0 0.0
    %2164 = vmatpush1.msra.mxu0 %v1728
    %2165 = vmatprep.subr.mxu0 0.0
    %2166 = vmatpush1.msra.mxu0 %v1731
    %2167 = vmatprep.subr.mxu0 0.0
    %2168 = vmatpush1.msra.mxu0 %v1734
    %2169 = vmatprep.subr.mxu0 0.0
    %2170 = vmatpush1.msra.mxu0 %v1737
    %2171 = vmatprep.subr.mxu0 0.0
    %2172 = vmatpush1.msra.mxu0 %v1740
    %2173 = vmatprep.subr.mxu0 0.0
    %2174 = vmatpush1.msra.mxu0 %v1743
    %2175 = vmatprep.subr.mxu0 0.0
    %2176 = vmatpush1.msra.mxu0 %v1746
    %2177 = vmatprep.subr.mxu0 0.0
    %2178 = vmatpush1.msra.mxu0 %v1749
    %2179 = vmatprep.subr.mxu0 0.0
    %2180 = vmatpush1.msra.mxu0 %v1752
    %2181 = vmatprep.subr.mxu0 0.0
    %2182 = vmatpush1.msra.mxu0 0.0
    %2183 = vmatprep.subr.mxu0 0.0
    %2184 = vmatpush1.msra.mxu0 0.0
    %2185 = vmatprep.subr.mxu0 0.0
    %2186 = vmatpush1.msra.mxu0 0.0
    %2187 = vmatprep.subr.mxu0 0.0
    %2188 = vmatpush1.msra.mxu0 0.0
    %2189 = vmatprep.subr.mxu0 0.0
    %2190 = vmatpush1.msra.mxu0 0.0
    %2191 = vmatprep.subr.mxu0 0.0
    %2192 = vmatpush1.msra.mxu0 0.0
    %2193 = vmatprep.subr.mxu0 0.0
    %2194 = vmatpush1.msra.mxu0 0.0
    %2195 = vmatprep.subr.mxu0 0.0
    %2196 = vmatpush1.msra.mxu0 0.0
    %2197 = vmatprep.subr.mxu0 0.0
    %2198 = vmatpush1.msra.mxu0 0.0
    %2199 = vmatprep.subr.mxu0 0.0
    %2200 = vmatpush1.msra.mxu0 0.0
    %2201 = vmatprep.subr.mxu0 0.0
    %2202 = vmatpush1.msra.mxu0 0.0
    %2203 = vmatprep.subr.mxu0 0.0
    %2204 = vmatpush1.msra.mxu0 0.0
    %2205 = vmatprep.subr.mxu0 0.0
    %2206 = vmatpush1.msra.mxu0 0.0
    %2207 = vmatprep.subr.mxu0 0.0
    %2208 = vmatpush1.msra.mxu0 0.0
    %2209 = vmatprep.subr.mxu0 0.0
    %2210 = vmatpush1.msra.mxu0 0.0
    %2211 = vmatprep.subr.mxu0 0.0
    %2212 = vmatpush1.msra.mxu0 0.0
    %2213 = vmatprep.mubr.f32.mxu0 0.0
    %2214 = vmatmul.mubr.f32.gmra.mrb[0].mxu0 %v2073
    %v2215 = vpop.f32.mrb[0].mxu0
    %v2216 = vadd.f32 0.0, %v2215
    %v2217 = vpop.f32.mrb[0].mxu0
    %2218 = vdwg.mxu0
    %v2219 = vadd.f32 %v2075, %v2145
    %v2220 = vmul.f32 %v2219, 0.5
    %v2221 = vtanh.pop %v2220
    %v2222 = vadd.f32 %v2221, 1.0
    %v2223 = vmul.f32 %v2222, 0.5
    %v2224 = vadd.f32 %v2076, %v2147
    %v2225 = vmul.f32 %v2224, 0.5
    %v2226 = vtanh.pop %v2225
    %v2227 = vadd.f32 %v2226, 1.0
    %v2228 = vmul.f32 %v2227, 0.5
    %v2229 = vmul.f32 %v2223, %v2216
    %v2230 = vadd.f32 %v2077, %v2229
    %v2231 = vtanh.pop %v2230
    %v2232 = vsub.f32 %v2073, %v2231
    %v2233 = vmul.f32 %v2228, %v2232
    %v2234 = vadd.f32 %v2231, %v2233
    %s2235 = scalar_lea.vmem [#allocation3], 72
    %v2236 = vld [vmem:[%s2235] sm:$0xff]
    %v2237 = vld [vmem:[%s2235 + $0x8] sm:$0xff]
    %v2238 = vld [vmem:[%s2235 + $0x10] sm:$0xff]
    %2239 = vmatprep.subr.mxu0 %v1706
    %2240 = vmatpush1.msra.mxu0 %v1705
    %2241 = vmatprep.subr.mxu0 %v1709
    %2242 = vmatpush1.msra.mxu0 %v1708
    %2243 = vmatprep.subr.mxu0 %v1712
    %2244 = vmatpush1.msra.mxu0 %v1711
    %2245 = vmatprep.subr.mxu0 %v1715
    %2246 = vmatpush1.msra.mxu0 %v1714
    %2247 = vmatprep.subr.mxu0 %v1718
    %2248 = vmatpush1.msra.mxu0 %v1717
    %2249 = vmatprep.subr.mxu0 %v1721
    %2250 = vmatpush1.msra.mxu0 %v1720
    %2251 = vmatprep.subr.mxu0 %v1724
    %2252 = vmatpush1.msra.mxu0 %v1723
    %2253 = vmatprep.subr.mxu0 %v1727
    %2254 = vmatpush1.msra.mxu0 %v1726
    %2255 = vmatprep.subr.mxu0 %v1730
    %2256 = vmatpush1.msra.mxu0 %v1729
    %2257 = vmatprep.subr.mxu0 %v1733
    %2258 = vmatpush1.msra.mxu0 %v1732
    %2259 = vmatprep.subr.mxu0 %v1736
    %2260 = vmatpush1.msra.mxu0 %v1735
    %2261 = vmatprep.subr.mxu0 %v1739
    %2262 = vmatpush1.msra.mxu0 %v1738
    %2263 = vmatprep.subr.mxu0 %v1742
    %2264 = vmatpush1.msra.mxu0 %v1741
    %2265 = vmatprep.subr.mxu0 %v1745
    %2266 = vmatpush1.msra.mxu0 %v1744
    %2267 = vmatprep.subr.mxu0 %v1748
    %2268 = vmatpush1.msra.mxu0 %v1747
    %2269 = vmatprep.subr.mxu0 %v1751
    %2270 = vmatpush1.msra.mxu0 %v1750
    %2271 = vmatprep.subr.mxu0 0.0
    %2272 = vmatpush1.msra.mxu0 0.0
    %2273 = vmatprep.subr.mxu0 0.0
    %2274 = vmatpush1.msra.mxu0 0.0
    %2275 = vmatprep.subr.mxu0 0.0
    %2276 = vmatpush1.msra.mxu0 0.0
    %2277 = vmatprep.subr.mxu0 0.0
    %2278 = vmatpush1.msra.mxu0 0.0
    %2279 = vmatprep.subr.mxu0 0.0
    %2280 = vmatpush1.msra.mxu0 0.0
    %2281 = vmatprep.subr.mxu0 0.0
    %2282 = vmatpush1.msra.mxu0 0.0
    %2283 = vmatprep.subr.mxu0 0.0
    %2284 = vmatpush1.msra.mxu0 0.0
    %2285 = vmatprep.subr.mxu0 0.0
    %2286 = vmatpush1.msra.mxu0 0.0
    %2287 = vmatprep.subr.mxu0 0.0
    %2288 = vmatpush1.msra.mxu0 0.0
    %2289 = vmatprep.subr.mxu0 0.0
    %2290 = vmatpush1.msra.mxu0 0.0
    %2291 = vmatprep.subr.mxu0 0.0
    %2292 = vmatpush1.msra.mxu0 0.0
    %2293 = vmatprep.subr.mxu0 0.0
    %2294 = vmatpush1.msra.mxu0 0.0
    %2295 = vmatprep.subr.mxu0 0.0
    %2296 = vmatpush1.msra.mxu0 0.0
    %2297 = vmatprep.subr.mxu0 0.0
    %2298 = vmatpush1.msra.mxu0 0.0
    %2299 = vmatprep.subr.mxu0 0.0
    %2300 = vmatpush1.msra.mxu0 0.0
    %2301 = vmatprep.subr.mxu0 0.0
    %2302 = vmatpush1.msra.mxu0 0.0
    %2303 = vmatprep.mubr.f32.mxu0 0.0
    %2304 = vmatmul.mubr.f32.gmra.mrb[0].mxu0 %v2234
    %v2305 = vpop.f32.mrb[0].mxu0
    %v2306 = vadd.f32 0.0, %v2305
    %v2307 = vpop.f32.mrb[0].mxu0
    %v2308 = vadd.f32 0.0, %v2307
    %2309 = vdwg.mxu0
    %2310 = vmatprep.subr.mxu0 0.0
    %2311 = vmatpush1.msra.mxu0 %v1707
    %2312 = vmatprep.subr.mxu0 0.0
    %2313 = vmatpush1.msra.mxu0 %v1710
    %2314 = vmatprep.subr.mxu0 0.0
    %2315 = vmatpush1.msra.mxu0 %v1713
    %2316 = vmatprep.subr.mxu0 0.0
    %2317 = vmatpush1.msra.mxu0 %v1716
    %2318 = vmatprep.subr.mxu0 0.0
    %2319 = vmatpush1.msra.mxu0 %v1719
    %2320 = vmatprep.subr.mxu0 0.0
    %2321 = vmatpush1.msra.mxu0 %v1722
    %2322 = vmatprep.subr.mxu0 0.0
    %2323 = vmatpush1.msra.mxu0 %v1725
    %2324 = vmatprep.subr.mxu0 0.0
    %2325 = vmatpush1.msra.mxu0 %v1728
    %2326 = vmatprep.subr.mxu0 0.0
    %2327 = vmatpush1.msra.mxu0 %v1731
    %2328 = vmatprep.subr.mxu0 0.0
    %2329 = vmatpush1.msra.mxu0 %v1734
    %2330 = vmatprep.subr.mxu0 0.0
    %2331 = vmatpush1.msra.mxu0 %v1737
    %2332 = vmatprep.subr.mxu0 0.0
    %2333 = vmatpush1.msra.mxu0 %v1740
    %2334 = vmatprep.subr.mxu0 0.0
    %2335 = vmatpush1.msra.mxu0 %v1743
    %2336 = vmatprep.subr.mxu0 0.0
    %2337 = vmatpush1.msra.mxu0 %v1746
    %2338 = vmatprep.subr.mxu0 0.0
    %2339 = vmatpush1.msra.mxu0 %v1749
    %2340 = vmatprep.subr.mxu0 0.0
    %2341 = vmatpush1.msra.mxu0 %v1752
    %2342 = vmatprep.subr.mxu0 0.0
    %2343 = vmatpush1.msra.mxu0 0.0
    %2344 = vmatprep.subr.mxu0 0.0
    %2345 = vmatpush1.msra.mxu0 0.0
    %2346 = vmatprep.subr.mxu0 0.0
    %2347 = vmatpush1.msra.mxu0 0.0
    %2348 = vmatprep.subr.mxu0 0.0
    %2349 = vmatpush1.msra.mxu0 0.0
    %2350 = vmatprep.subr.mxu0 0.0
    %2351 = vmatpush1.msra.mxu0 0.0
    %2352 = vmatprep.subr.mxu0 0.0
    %2353 = vmatpush1.msra.mxu0 0.0
    %2354 = vmatprep.subr.mxu0 0.0
    %2355 = vmatpush1.msra.mxu0 0.0
    %2356 = vmatprep.subr.mxu0 0.0
    %2357 = vmatpush1.msra.mxu0 0.0
    %2358 = vmatprep.subr.mxu0 0.0
    %2359 = vmatpush1.msra.mxu0 0.0
    %2360 = vmatprep.subr.mxu0 0.0
    %2361 = vmatpush1.msra.mxu0 0.0
    %2362 = vmatprep.subr.mxu0 0.0
    %2363 = vmatpush1.msra.mxu0 0.0
    %2364 = vmatprep.subr.mxu0 0.0
    %2365 = vmatpush1.msra.mxu0 0.0
    %2366 = vmatprep.subr.mxu0 0.0
    %2367 = vmatpush1.msra.mxu0 0.0
    %2368 = vmatprep.subr.mxu0 0.0
    %2369 = vmatpush1.msra.mxu0 0.0
    %2370 = vmatprep.subr.mxu0 0.0
    %2371 = vmatpush1.msra.mxu0 0.0
    %2372 = vmatprep.subr.mxu0 0.0
    %2373 = vmatpush1.msra.mxu0 0.0
    %2374 = vmatprep.mubr.f32.mxu0 0.0
    %2375 = vmatmul.mubr.f32.gmra.mrb[0].mxu0 %v2234
    %v2376 = vpop.f32.mrb[0].mxu0
    %v2377 = vadd.f32 0.0, %v2376
    %v2378 = vpop.f32.mrb[0].mxu0
    %2379 = vdwg.mxu0
    %v2380 = vadd.f32 %v2236, %v2306
    %v2381 = vmul.f32 %v2380, 0.5
    %v2382 = vtanh.pop %v2381
    %v2383 = vadd.f32 %v2382, 1.0
    %v2384 = vmul.f32 %v2383, 0.5
    %v2385 = vadd.f32 %v2237, %v2308
    %v2386 = vmul.f32 %v2385, 0.5
    %v2387 = vtanh.pop %v2386
    %v2388 = vadd.f32 %v2387, 1.0
    %v2389 = vmul.f32 %v2388, 0.5
    %v2390 = vmul.f32 %v2384, %v2377
    %v2391 = vadd.f32 %v2238, %v2390
    %v2392 = vtanh.pop %v2391
    %v2393 = vsub.f32 %v2234, %v2392
    %v2394 = vmul.f32 %v2389, %v2393
    %v2395 = vadd.f32 %v2392, %v2394
    %s2396 = scalar_lea.vmem [#allocation3], 96
    %v2397 = vld [vmem:[%s2396] sm:$0xff]
    %v2398 = vld [vmem:[%s2396 + $0x8] sm:$0xff]
    %v2399 = vld [vmem:[%s2396 + $0x10] sm:$0xff]
    %2400 = vmatprep.subr.mxu0 %v1706
    %2401 = vmatpush1.msra.mxu0 %v1705
    %2402 = vmatprep.subr.mxu0 %v1709
    %2403 = vmatpush1.msra.mxu0 %v1708
    %2404 = vmatprep.subr.mxu0 %v1712
    %2405 = vmatpush1.msra.mxu0 %v1711
    %2406 = vmatprep.subr.mxu0 %v1715
    %2407 = vmatpush1.msra.mxu0 %v1714
    %2408 = vmatprep.subr.mxu0 %v1718
    %2409 = vmatpush1.msra.mxu0 %v1717
    %2410 = vmatprep.subr.mxu0 %v1721
    %2411 = vmatpush1.msra.mxu0 %v1720
    %2412 = vmatprep.subr.mxu0 %v1724
    %2413 = vmatpush1.msra.mxu0 %v1723
    %2414 = vmatprep.subr.mxu0 %v1727
    %2415 = vmatpush1.msra.mxu0 %v1726
    %2416 = vmatprep.subr.mxu0 %v1730
    %2417 = vmatpush1.msra.mxu0 %v1729
    %2418 = vmatprep.subr.mxu0 %v1733
    %2419 = vmatpush1.msra.mxu0 %v1732
    %2420 = vmatprep.subr.mxu0 %v1736
    %2421 = vmatpush1.msra.mxu0 %v1735
    %2422 = vmatprep.subr.mxu0 %v1739
    %2423 = vmatpush1.msra.mxu0 %v1738
    %2424 = vmatprep.subr.mxu0 %v1742
    %2425 = vmatpush1.msra.mxu0 %v1741
    %2426 = vmatprep.subr.mxu0 %v1745
    %2427 = vmatpush1.msra.mxu0 %v1744
    %2428 = vmatprep.subr.mxu0 %v1748
    %2429 = vmatpush1.msra.mxu0 %v1747
    %2430 = vmatprep.subr.mxu0 %v1751
    %2431 = vmatpush1.msra.mxu0 %v1750
    %2432 = vmatprep.subr.mxu0 0.0
    %2433 = vmatpush1.msra.mxu0 0.0
    %2434 = vmatprep.subr.mxu0 0.0
    %2435 = vmatpush1.msra.mxu0 0.0
    %2436 = vmatprep.subr.mxu0 0.0
    %2437 = vmatpush1.msra.mxu0 0.0
    %2438 = vmatprep.subr.mxu0 0.0
    %2439 = vmatpush1.msra.mxu0 0.0
    %2440 = vmatprep.subr.mxu0 0.0
    %2441 = vmatpush1.msra.mxu0 0.0
    %2442 = vmatprep.subr.mxu0 0.0
    %2443 = vmatpush1.msra.mxu0 0.0
    %2444 = vmatprep.subr.mxu0 0.0
    %2445 = vmatpush1.msra.mxu0 0.0
    %2446 = vmatprep.subr.mxu0 0.0
    %2447 = vmatpush1.msra.mxu0 0.0
    %2448 = vmatprep.subr.mxu0 0.0
    %2449 = vmatpush1.msra.mxu0 0.0
    %2450 = vmatprep.subr.mxu0 0.0
    %2451 = vmatpush1.msra.mxu0 0.0
    %2452 = vmatprep.subr.mxu0 0.0
    %2453 = vmatpush1.msra.mxu0 0.0
    %2454 = vmatprep.subr.mxu0 0.0
    %2455 = vmatpush1.msra.mxu0 0.0
    %2456 = vmatprep.subr.mxu0 0.0
    %2457 = vmatpush1.msra.mxu0 0.0
    %2458 = vmatprep.subr.mxu0 0.0
    %2459 = vmatpush1.msra.mxu0 0.0
    %2460 = vmatprep.subr.mxu0 0.0
    %2461 = vmatpush1.msra.mxu0 0.0
    %2462 = vmatprep.subr.mxu0 0.0
    %2463 = vmatpush1.msra.mxu0 0.0
    %2464 = vmatprep.mubr.f32.mxu0 0.0
    %2465 = vmatmul.mubr.f32.gmra.mrb[0].mxu0 %v2395
    %v2466 = vpop.f32.mrb[0].mxu0
    %v2467 = vadd.f32 0.0, %v2466
    %v2468 = vpop.f32.mrb[0].mxu0
    %v2469 = vadd.f32 0.0, %v2468
    %2470 = vdwg.mxu0
    %2471 = vmatprep.subr.mxu0 0.0
    %2472 = vmatpush1.msra.mxu0 %v1707
    %2473 = vmatprep.subr.mxu0 0.0
    %2474 = vmatpush1.msra.mxu0 %v1710
    %2475 = vmatprep.subr.mxu0 0.0
    %2476 = vmatpush1.msra.mxu0 %v1713
    %2477 = vmatprep.subr.mxu0 0.0
    %2478 = vmatpush1.msra.mxu0 %v1716
    %2479 = vmatprep.subr.mxu0 0.0
    %2480 = vmatpush1.msra.mxu0 %v1719
    %2481 = vmatprep.subr.mxu0 0.0
    %2482 = vmatpush1.msra.mxu0 %v1722
    %2483 = vmatprep.subr.mxu0 0.0
    %2484 = vmatpush1.msra.mxu0 %v1725
    %2485 = vmatprep.subr.mxu0 0.0
    %2486 = vmatpush1.msra.mxu0 %v1728
    %2487 = vmatprep.subr.mxu0 0.0
    %2488 = vmatpush1.msra.mxu0 %v1731
    %2489 = vmatprep.subr.mxu0 0.0
    %2490 = vmatpush1.msra.mxu0 %v1734
    %2491 = vmatprep.subr.mxu0 0.0
    %2492 = vmatpush1.msra.mxu0 %v1737
    %2493 = vmatprep.subr.mxu0 0.0
    %2494 = vmatpush1.msra.mxu0 %v1740
    %2495 = vmatprep.subr.mxu0 0.0
    %2496 = vmatpush1.msra.mxu0 %v1743
    %2497 = vmatprep.subr.mxu0 0.0
    %2498 = vmatpush1.msra.mxu0 %v1746
    %2499 = vmatprep.subr.mxu0 0.0
    %2500 = vmatpush1.msra.mxu0 %v1749
    %2501 = vmatprep.subr.mxu0 0.0
    %2502 = vmatpush1.msra.mxu0 %v1752
    %2503 = vmatprep.subr.mxu0 0.0
    %2504 = vmatpush1.msra.mxu0 0.0
    %2505 = vmatprep.subr.mxu0 0.0
    %2506 = vmatpush1.msra.mxu0 0.0
    %2507 = vmatprep.subr.mxu0 0.0
    %2508 = vmatpush1.msra.mxu0 0.0
    %2509 = vmatprep.subr.mxu0 0.0
    %2510 = vmatpush1.msra.mxu0 0.0
    %2511 = vmatprep.subr.mxu0 0.0
    %2512 = vmatpush1.msra.mxu0 0.0
    %2513 = vmatprep.subr.mxu0 0.0
    %2514 = vmatpush1.msra.mxu0 0.0
    %2515 = vmatprep.subr.mxu0 0.0
    %2516 = vmatpush1.msra.mxu0 0.0
    %2517 = vmatprep.subr.mxu0 0.0
    %2518 = vmatpush1.msra.mxu0 0.0
    %2519 = vmatprep.subr.mxu0 0.0
    %2520 = vmatpush1.msra.mxu0 0.0
    %2521 = vmatprep.subr.mxu0 0.0
    %2522 = vmatpush1.msra.mxu0 0.0
    %2523 = vmatprep.subr.mxu0 0.0
    %2524 = vmatpush1.msra.mxu0 0.0
    %2525 = vmatprep.subr.mxu0 0.0
    %2526 = vmatpush1.msra.mxu0 0.0
    %2527 = vmatprep.subr.mxu0 0.0
    %2528 = vmatpush1.msra.mxu0 0.0
    %2529 = vmatprep.subr.mxu0 0.0
    %2530 = vmatpush1.msra.mxu0 0.0
    %2531 = vmatprep.subr.mxu0 0.0
    %2532 = vmatpush1.msra.mxu0 0.0
    %2533 = vmatprep.subr.mxu0 0.0
    %2534 = vmatpush1.msra.mxu0 0.0
    %2535 = vmatprep.mubr.f32.mxu0 0.0
    %2536 = vmatmul.mubr.f32.gmra.mrb[0].mxu0 %v2395
    %v2537 = vpop.f32.mrb[0].mxu0
    %v2538 = vadd.f32 0.0, %v2537
    %v2539 = vpop.f32.mrb[0].mxu0
    %2540 = vdwg.mxu0
    %v2541 = vadd.f32 %v2397, %v2467
    %v2542 = vmul.f32 %v2541, 0.5
    %v2543 = vtanh.pop %v2542
    %v2544 = vadd.f32 %v2543, 1.0
    %v2545 = vmul.f32 %v2544, 0.5
    %v2546 = vadd.f32 %v2398, %v2469
    %v2547 = vmul.f32 %v2546, 0.5
    %v2548 = vtanh.pop %v2547
    %v2549 = vadd.f32 %v2548, 1.0
    %v2550 = vmul.f32 %v2549, 0.5
    %v2551 = vmul.f32 %v2545, %v2538
    %v2552 = vadd.f32 %v2399, %v2551
    %v2553 = vtanh.pop %v2552
    %v2554 = vsub.f32 %v2395, %v2553
    %v2555 = vmul.f32 %v2550, %v2554
    %v2556 = vadd.f32 %v2553, %v2555
    %s2557 = scalar_lea.vmem [#allocation3], 120
    %v2558 = vld [vmem:[%s2557] sm:$0xff]
    %v2559 = vld [vmem:[%s2557 + $0x8] sm:$0xff]
    %v2560 = vld [vmem:[%s2557 + $0x10] sm:$0xff]
    %2561 = vmatprep.subr.mxu0 %v1706
    %2562 = vmatpush1.msra.mxu0 %v1705
    %2563 = vmatprep.subr.mxu0 %v1709
    %2564 = vmatpush1.msra.mxu0 %v1708
    %2565 = vmatprep.subr.mxu0 %v1712
    %2566 = vmatpush1.msra.mxu0 %v1711
    %2567 = vmatprep.subr.mxu0 %v1715
    %2568 = vmatpush1.msra.mxu0 %v1714
    %2569 = vmatprep.subr.mxu0 %v1718
    %2570 = vmatpush1.msra.mxu0 %v1717
    %2571 = vmatprep.subr.mxu0 %v1721
    %2572 = vmatpush1.msra.mxu0 %v1720
    %2573 = vmatprep.subr.mxu0 %v1724
    %2574 = vmatpush1.msra.mxu0 %v1723
    %2575 = vmatprep.subr.mxu0 %v1727
    %2576 = vmatpush1.msra.mxu0 %v1726
    %2577 = vmatprep.subr.mxu0 %v1730
    %2578 = vmatpush1.msra.mxu0 %v1729
    %2579 = vmatprep.subr.mxu0 %v1733
    %2580 = vmatpush1.msra.mxu0 %v1732
    %2581 = vmatprep.subr.mxu0 %v1736
    %2582 = vmatpush1.msra.mxu0 %v1735
    %2583 = vmatprep.subr.mxu0 %v1739
    %2584 = vmatpush1.msra.mxu0 %v1738
    %2585 = vmatprep.subr.mxu0 %v1742
    %2586 = vmatpush1.msra.mxu0 %v1741
    %2587 = vmatprep.subr.mxu0 %v1745
    %2588 = vmatpush1.msra.mxu0 %v1744
    %2589 = vmatprep.subr.mxu0 %v1748
    %2590 = vmatpush1.msra.mxu0 %v1747
    %2591 = vmatprep.subr.mxu0 %v1751
    %2592 = vmatpush1.msra.mxu0 %v1750
    %2593 = vmatprep.subr.mxu0 0.0
    %2594 = vmatpush1.msra.mxu0 0.0
    %2595 = vmatprep.subr.mxu0 0.0
    %2596 = vmatpush1.msra.mxu0 0.0
    %2597 = vmatprep.subr.mxu0 0.0
    %2598 = vmatpush1.msra.mxu0 0.0
    %2599 = vmatprep.subr.mxu0 0.0
    %2600 = vmatpush1.msra.mxu0 0.0
    %2601 = vmatprep.subr.mxu0 0.0
    %2602 = vmatpush1.msra.mxu0 0.0
    %2603 = vmatprep.subr.mxu0 0.0
    %2604 = vmatpush1.msra.mxu0 0.0
    %2605 = vmatprep.subr.mxu0 0.0
    %2606 = vmatpush1.msra.mxu0 0.0
    %2607 = vmatprep.subr.mxu0 0.0
    %2608 = vmatpush1.msra.mxu0 0.0
    %2609 = vmatprep.subr.mxu0 0.0
    %2610 = vmatpush1.msra.mxu0 0.0
    %2611 = vmatprep.subr.mxu0 0.0
    %2612 = vmatpush1.msra.mxu0 0.0
    %2613 = vmatprep.subr.mxu0 0.0
    %2614 = vmatpush1.msra.mxu0 0.0
    %2615 = vmatprep.subr.mxu0 0.0
    %2616 = vmatpush1.msra.mxu0 0.0
    %2617 = vmatprep.subr.mxu0 0.0
    %2618 = vmatpush1.msra.mxu0 0.0
    %2619 = vmatprep.subr.mxu0 0.0
    %2620 = vmatpush1.msra.mxu0 0.0
    %2621 = vmatprep.subr.mxu0 0.0
    %2622 = vmatpush1.msra.mxu0 0.0
    %2623 = vmatprep.subr.mxu0 0.0
    %2624 = vmatpush1.msra.mxu0 0.0
    %2625 = vmatprep.mubr.f32.mxu0 0.0
    %2626 = vmatmul.mubr.f32.gmra.mrb[0].mxu0 %v2556
    %v2627 = vpop.f32.mrb[0].mxu0
    %v2628 = vadd.f32 0.0, %v2627
    %v2629 = vpop.f32.mrb[0].mxu0
    %v2630 = vadd.f32 0.0, %v2629
    %2631 = vdwg.mxu0
    %2632 = vmatprep.subr.mxu0 0.0
    %2633 = vmatpush1.msra.mxu0 %v1707
    %2634 = vmatprep.subr.mxu0 0.0
    %2635 = vmatpush1.msra.mxu0 %v1710
    %2636 = vmatprep.subr.mxu0 0.0
    %2637 = vmatpush1.msra.mxu0 %v1713
    %2638 = vmatprep.subr.mxu0 0.0
    %2639 = vmatpush1.msra.mxu0 %v1716
    %2640 = vmatprep.subr.mxu0 0.0
    %2641 = vmatpush1.msra.mxu0 %v1719
    %2642 = vmatprep.subr.mxu0 0.0
    %2643 = vmatpush1.msra.mxu0 %v1722
    %2644 = vmatprep.subr.mxu0 0.0
    %2645 = vmatpush1.msra.mxu0 %v1725
    %2646 = vmatprep.subr.mxu0 0.0
    %2647 = vmatpush1.msra.mxu0 %v1728
    %2648 = vmatprep.subr.mxu0 0.0
    %2649 = vmatpush1.msra.mxu0 %v1731
    %2650 = vmatprep.subr.mxu0 0.0
    %2651 = vmatpush1.msra.mxu0 %v1734
    %2652 = vmatprep.subr.mxu0 0.0
    %2653 = vmatpush1.msra.mxu0 %v1737
    %2654 = vmatprep.subr.mxu0 0.0
    %2655 = vmatpush1.msra.mxu0 %v1740
    %2656 = vmatprep.subr.mxu0 0.0
    %2657 = vmatpush1.msra.mxu0 %v1743
    %2658 = vmatprep.subr.mxu0 0.0
    %2659 = vmatpush1.msra.mxu0 %v1746
    %2660 = vmatprep.subr.mxu0 0.0
    %2661 = vmatpush1.msra.mxu0 %v1749
    %2662 = vmatprep.subr.mxu0 0.0
    %2663 = vmatpush1.msra.mxu0 %v1752
    %2664 = vmatprep.subr.mxu0 0.0
    %2665 = vmatpush1.msra.mxu0 0.0
    %2666 = vmatprep.subr.mxu0 0.0
    %2667 = vmatpush1.msra.mxu0 0.0
    %2668 = vmatprep.subr.mxu0 0.0
    %2669 = vmatpush1.msra.mxu0 0.0
    %2670 = vmatprep.subr.mxu0 0.0
    %2671 = vmatpush1.msra.mxu0 0.0
    %2672 = vmatprep.subr.mxu0 0.0
    %2673 = vmatpush1.msra.mxu0 0.0
    %2674 = vmatprep.subr.mxu0 0.0
    %2675 = vmatpush1.msra.mxu0 0.0
    %2676 = vmatprep.subr.mxu0 0.0
    %2677 = vmatpush1.msra.mxu0 0.0
    %2678 = vmatprep.subr.mxu0 0.0
    %2679 = vmatpush1.msra.mxu0 0.0
    %2680 = vmatprep.subr.mxu0 0.0
    %2681 = vmatpush1.msra.mxu0 0.0
    %2682 = vmatprep.subr.mxu0 0.0
    %2683 = vmatpush1.msra.mxu0 0.0
    %2684 = vmatprep.subr.mxu0 0.0
    %2685 = vmatpush1.msra.mxu0 0.0
    %2686 = vmatprep.subr.mxu0 0.0
    %2687 = vmatpush1.msra.mxu0 0.0
    %2688 = vmatprep.subr.mxu0 0.0
    %2689 = vmatpush1.msra.mxu0 0.0
    %2690 = vmatprep.subr.mxu0 0.0
    %2691 = vmatpush1.msra.mxu0 0.0
    %2692 = vmatprep.subr.mxu0 0.0
    %2693 = vmatpush1.msra.mxu0 0.0
    %2694 = vmatprep.subr.mxu0 0.0
    %2695 = vmatpush1.msra.mxu0 0.0
    %2696 = vmatprep.mubr.f32.mxu0 0.0
    %2697 = vmatmul.mubr.f32.gmra.mrb[0].mxu0 %v2556
    %v2698 = vpop.f32.mrb[0].mxu0
    %v2699 = vadd.f32 0.0, %v2698
    %v2700 = vpop.f32.mrb[0].mxu0
    %2701 = vdwg.mxu0
    %v2702 = vadd.f32 %v2558, %v2628
    %v2703 = vmul.f32 %v2702, 0.5
    %v2704 = vtanh.pop %v2703
    %v2705 = vadd.f32 %v2704, 1.0
    %v2706 = vmul.f32 %v2705, 0.5
    %v2707 = vadd.f32 %v2559, %v2630
    %v2708 = vmul.f32 %v2707, 0.5
    %v2709 = vtanh.pop %v2708
    %v2710 = vadd.f32 %v2709, 1.0
    %v2711 = vmul.f32 %v2710, 0.5
    %v2712 = vmul.f32 %v2706, %v2699
    %v2713 = vadd.f32 %v2560, %v2712
    %v2714 = vtanh.pop %v2713
    %v2715 = vsub.f32 %v2556, %v2714
    %v2716 = vmul.f32 %v2711, %v2715
    %v2717 = vadd.f32 %v2714, %v2716
    %s2718 = scalar_lea.vmem [#allocation3], 144
    %v2719 = vld [vmem:[%s2718] sm:$0xff]
    %v2720 = vld [vmem:[%s2718 + $0x8] sm:$0xff]
    %v2721 = vld [vmem:[%s2718 + $0x10] sm:$0xff]
    %2722 = vmatprep.subr.mxu0 %v1706
    %2723 = vmatpush1.msra.mxu0 %v1705
    %2724 = vmatprep.subr.mxu0 %v1709
    %2725 = vmatpush1.msra.mxu0 %v1708
    %2726 = vmatprep.subr.mxu0 %v1712
    %2727 = vmatpush1.msra.mxu0 %v1711
    %2728 = vmatprep.subr.mxu0 %v1715
    %2729 = vmatpush1.msra.mxu0 %v1714
    %2730 = vmatprep.subr.mxu0 %v1718
    %2731 = vmatpush1.msra.mxu0 %v1717
    %2732 = vmatprep.subr.mxu0 %v1721
    %2733 = vmatpush1.msra.mxu0 %v1720
    %2734 = vmatprep.subr.mxu0 %v1724
    %2735 = vmatpush1.msra.mxu0 %v1723
    %2736 = vmatprep.subr.mxu0 %v1727
    %2737 = vmatpush1.msra.mxu0 %v1726
    %2738 = vmatprep.subr.mxu0 %v1730
    %2739 = vmatpush1.msra.mxu0 %v1729
    %2740 = vmatprep.subr.mxu0 %v1733
    %2741 = vmatpush1.msra.mxu0 %v1732
    %2742 = vmatprep.subr.mxu0 %v1736
    %2743 = vmatpush1.msra.mxu0 %v1735
    %2744 = vmatprep.subr.mxu0 %v1739
    %2745 = vmatpush1.msra.mxu0 %v1738
    %2746 = vmatprep.subr.mxu0 %v1742
    %2747 = vmatpush1.msra.mxu0 %v1741
    %2748 = vmatprep.subr.mxu0 %v1745
    %2749 = vmatpush1.msra.mxu0 %v1744
    %2750 = vmatprep.subr.mxu0 %v1748
    %2751 = vmatpush1.msra.mxu0 %v1747
    %2752 = vmatprep.subr.mxu0 %v1751
    %2753 = vmatpush1.msra.mxu0 %v1750
    %2754 = vmatprep.subr.mxu0 0.0
    %2755 = vmatpush1.msra.mxu0 0.0
    %2756 = vmatprep.subr.mxu0 0.0
    %2757 = vmatpush1.msra.mxu0 0.0
    %2758 = vmatprep.subr.mxu0 0.0
    %2759 = vmatpush1.msra.mxu0 0.0
    %2760 = vmatprep.subr.mxu0 0.0
    %2761 = vmatpush1.msra.mxu0 0.0
    %2762 = vmatprep.subr.mxu0 0.0
    %2763 = vmatpush1.msra.mxu0 0.0
    %2764 = vmatprep.subr.mxu0 0.0
    %2765 = vmatpush1.msra.mxu0 0.0
    %2766 = vmatprep.subr.mxu0 0.0
    %2767 = vmatpush1.msra.mxu0 0.0
    %2768 = vmatprep.subr.mxu0 0.0
    %2769 = vmatpush1.msra.mxu0 0.0
    %2770 = vmatprep.subr.mxu0 0.0
    %2771 = vmatpush1.msra.mxu0 0.0
    %2772 = vmatprep.subr.mxu0 0.0
    %2773 = vmatpush1.msra.mxu0 0.0
    %2774 = vmatprep.subr.mxu0 0.0
    %2775 = vmatpush1.msra.mxu0 0.0
    %2776 = vmatprep.subr.mxu0 0.0
    %2777 = vmatpush1.msra.mxu0 0.0
    %2778 = vmatprep.subr.mxu0 0.0
    %2779 = vmatpush1.msra.mxu0 0.0
    %2780 = vmatprep.subr.mxu0 0.0
    %2781 = vmatpush1.msra.mxu0 0.0
    %2782 = vmatprep.subr.mxu0 0.0
    %2783 = vmatpush1.msra.mxu0 0.0
    %2784 = vmatprep.subr.mxu0 0.0
    %2785 = vmatpush1.msra.mxu0 0.0
    %2786 = vmatprep.mubr.f32.mxu0 0.0
    %2787 = vmatmul.mubr.f32.gmra.mrb[0].mxu0 %v2717
    %v2788 = vpop.f32.mrb[0].mxu0
    %v2789 = vadd.f32 0.0, %v2788
    %v2790 = vpop.f32.mrb[0].mxu0
    %v2791 = vadd.f32 0.0, %v2790
    %2792 = vdwg.mxu0
    %2793 = vmatprep.subr.mxu0 0.0
    %2794 = vmatpush1.msra.mxu0 %v1707
    %2795 = vmatprep.subr.mxu0 0.0
    %2796 = vmatpush1.msra.mxu0 %v1710
    %2797 = vmatprep.subr.mxu0 0.0
    %2798 = vmatpush1.msra.mxu0 %v1713
    %2799 = vmatprep.subr.mxu0 0.0
    %2800 = vmatpush1.msra.mxu0 %v1716
    %2801 = vmatprep.subr.mxu0 0.0
    %2802 = vmatpush1.msra.mxu0 %v1719
    %2803 = vmatprep.subr.mxu0 0.0
    %2804 = vmatpush1.msra.mxu0 %v1722
    %2805 = vmatprep.subr.mxu0 0.0
    %2806 = vmatpush1.msra.mxu0 %v1725
    %2807 = vmatprep.subr.mxu0 0.0
    %2808 = vmatpush1.msra.mxu0 %v1728
    %2809 = vmatprep.subr.mxu0 0.0
    %2810 = vmatpush1.msra.mxu0 %v1731
    %2811 = vmatprep.subr.mxu0 0.0
    %2812 = vmatpush1.msra.mxu0 %v1734
    %2813 = vmatprep.subr.mxu0 0.0
    %2814 = vmatpush1.msra.mxu0 %v1737
    %2815 = vmatprep.subr.mxu0 0.0
    %2816 = vmatpush1.msra.mxu0 %v1740
    %2817 = vmatprep.subr.mxu0 0.0
    %2818 = vmatpush1.msra.mxu0 %v1743
    %2819 = vmatprep.subr.mxu0 0.0
    %2820 = vmatpush1.msra.mxu0 %v1746
    %2821 = vmatprep.subr.mxu0 0.0
    %2822 = vmatpush1.msra.mxu0 %v1749
    %2823 = vmatprep.subr.mxu0 0.0
    %2824 = vmatpush1.msra.mxu0 %v1752
    %2825 = vmatprep.subr.mxu0 0.0
    %2826 = vmatpush1.msra.mxu0 0.0
    %2827 = vmatprep.subr.mxu0 0.0
    %2828 = vmatpush1.msra.mxu0 0.0
    %2829 = vmatprep.subr.mxu0 0.0
    %2830 = vmatpush1.msra.mxu0 0.0
    %2831 = vmatprep.subr.mxu0 0.0
    %2832 = vmatpush1.msra.mxu0 0.0
    %2833 = vmatprep.subr.mxu0 0.0
    %2834 = vmatpush1.msra.mxu0 0.0
    %2835 = vmatprep.subr.mxu0 0.0
    %2836 = vmatpush1.msra.mxu0 0.0
    %2837 = vmatprep.subr.mxu0 0.0
    %2838 = vmatpush1.msra.mxu0 0.0
    %2839 = vmatprep.subr.mxu0 0.0
    %2840 = vmatpush1.msra.mxu0 0.0
    %2841 = vmatprep.subr.mxu0 0.0
    %2842 = vmatpush1.msra.mxu0 0.0
    %2843 = vmatprep.subr.mxu0 0.0
    %2844 = vmatpush1.msra.mxu0 0.0
    %2845 = vmatprep.subr.mxu0 0.0
    %2846 = vmatpush1.msra.mxu0 0.0
    %2847 = vmatprep.subr.mxu0 0.0
    %2848 = vmatpush1.msra.mxu0 0.0
    %2849 = vmatprep.subr.mxu0 0.0
    %2850 = vmatpush1.msra.mxu0 0.0
    %2851 = vmatprep.subr.mxu0 0.0
    %2852 = vmatpush1.msra.mxu0 0.0
    %2853 = vmatprep.subr.mxu0 0.0
    %2854 = vmatpush1.msra.mxu0 0.0
    %2855 = vmatprep.subr.mxu0 0.0
    %2856 = vmatpush1.msra.mxu0 0.0
    %2857 = vmatprep.mubr.f32.mxu0 0.0
    %2858 = vmatmul.mubr.f32.gmra.mrb[0].mxu0 %v2717
    %v2859 = vpop.f32.mrb[0].mxu0
    %v2860 = vadd.f32 0.0, %v2859
    %v2861 = vpop.f32.mrb[0].mxu0
    %2862 = vdwg.mxu0
    %v2863 = vadd.f32 %v2719, %v2789
    %v2864 = vmul.f32 %v2863, 0.5
    %v2865 = vtanh.pop %v2864
    %v2866 = vadd.f32 %v2865, 1.0
    %v2867 = vmul.f32 %v2866, 0.5
    %v2868 = vadd.f32 %v2720, %v2791
    %v2869 = vmul.f32 %v2868, 0.5
    %v2870 = vtanh.pop %v2869
    %v2871 = vadd.f32 %v2870, 1.0
    %v2872 = vmul.f32 %v2871, 0.5
    %v2873 = vmul.f32 %v2867, %v2860
    %v2874 = vadd.f32 %v2721, %v2873
    %v2875 = vtanh.pop %v2874
    %v2876 = vsub.f32 %v2717, %v2875
    %v2877 = vmul.f32 %v2872, %v2876
    %v2878 = vadd.f32 %v2875, %v2877
    %s2879 = scalar_lea.vmem [#allocation3], 168
    %v2880 = vld [vmem:[%s2879] sm:$0xff]
    %v2881 = vld [vmem:[%s2879 + $0x8] sm:$0xff]
    %v2882 = vld [vmem:[%s2879 + $0x10] sm:$0xff]
    %2883 = vmatprep.subr.mxu0 %v1706
    %2884 = vmatpush1.msra.mxu0 %v1705
    %2885 = vmatprep.subr.mxu0 %v1709
    %2886 = vmatpush1.msra.mxu0 %v1708
    %2887 = vmatprep.subr.mxu0 %v1712
    %2888 = vmatpush1.msra.mxu0 %v1711
    %2889 = vmatprep.subr.mxu0 %v1715
    %2890 = vmatpush1.msra.mxu0 %v1714
    %2891 = vmatprep.subr.mxu0 %v1718
    %2892 = vmatpush1.msra.mxu0 %v1717
    %2893 = vmatprep.subr.mxu0 %v1721
    %2894 = vmatpush1.msra.mxu0 %v1720
    %2895 = vmatprep.subr.mxu0 %v1724
    %2896 = vmatpush1.msra.mxu0 %v1723
    %2897 = vmatprep.subr.mxu0 %v1727
    %2898 = vmatpush1.msra.mxu0 %v1726
    %2899 = vmatprep.subr.mxu0 %v1730
    %2900 = vmatpush1.msra.mxu0 %v1729
    %2901 = vmatprep.subr.mxu0 %v1733
    %2902 = vmatpush1.msra.mxu0 %v1732
    %2903 = vmatprep.subr.mxu0 %v1736
    %2904 = vmatpush1.msra.mxu0 %v1735
    %2905 = vmatprep.subr.mxu0 %v1739
    %2906 = vmatpush1.msra.mxu0 %v1738
    %2907 = vmatprep.subr.mxu0 %v1742
    %2908 = vmatpush1.msra.mxu0 %v1741
    %2909 = vmatprep.subr.mxu0 %v1745
    %2910 = vmatpush1.msra.mxu0 %v1744
    %2911 = vmatprep.subr.mxu0 %v1748
    %2912 = vmatpush1.msra.mxu0 %v1747
    %2913 = vmatprep.subr.mxu0 %v1751
    %2914 = vmatpush1.msra.mxu0 %v1750
    %2915 = vmatprep.subr.mxu0 0.0
    %2916 = vmatpush1.msra.mxu0 0.0
    %2917 = vmatprep.subr.mxu0 0.0
    %2918 = vmatpush1.msra.mxu0 0.0
    %2919 = vmatprep.subr.mxu0 0.0
    %2920 = vmatpush1.msra.mxu0 0.0
    %2921 = vmatprep.subr.mxu0 0.0
    %2922 = vmatpush1.msra.mxu0 0.0
    %2923 = vmatprep.subr.mxu0 0.0
    %2924 = vmatpush1.msra.mxu0 0.0
    %2925 = vmatprep.subr.mxu0 0.0
    %2926 = vmatpush1.msra.mxu0 0.0
    %2927 = vmatprep.subr.mxu0 0.0
    %2928 = vmatpush1.msra.mxu0 0.0
    %2929 = vmatprep.subr.mxu0 0.0
    %2930 = vmatpush1.msra.mxu0 0.0
    %2931 = vmatprep.subr.mxu0 0.0
    %2932 = vmatpush1.msra.mxu0 0.0
    %2933 = vmatprep.subr.mxu0 0.0
    %2934 = vmatpush1.msra.mxu0 0.0
    %2935 = vmatprep.subr.mxu0 0.0
    %2936 = vmatpush1.msra.mxu0 0.0
    %2937 = vmatprep.subr.mxu0 0.0
    %2938 = vmatpush1.msra.mxu0 0.0
    %2939 = vmatprep.subr.mxu0 0.0
    %2940 = vmatpush1.msra.mxu0 0.0
    %2941 = vmatprep.subr.mxu0 0.0
    %2942 = vmatpush1.msra.mxu0 0.0
    %2943 = vmatprep.subr.mxu0 0.0
    %2944 = vmatpush1.msra.mxu0 0.0
    %2945 = vmatprep.subr.mxu0 0.0
    %2946 = vmatpush1.msra.mxu0 0.0
    %2947 = vmatprep.mubr.f32.mxu0 0.0
    %2948 = vmatmul.mubr.f32.gmra.mrb[0].mxu0 %v2878
    %v2949 = vpop.f32.mrb[0].mxu0
    %v2950 = vadd.f32 0.0, %v2949
    %v2951 = vpop.f32.mrb[0].mxu0
    %v2952 = vadd.f32 0.0, %v2951
    %2953 = vdwg.mxu0
    %2954 = vmatprep.subr.mxu0 0.0
    %2955 = vmatpush1.msra.mxu0 %v1707
    %2956 = vmatprep.subr.mxu0 0.0
    %2957 = vmatpush1.msra.mxu0 %v1710
    %2958 = vmatprep.subr.mxu0 0.0
    %2959 = vmatpush1.msra.mxu0 %v1713
    %2960 = vmatprep.subr.mxu0 0.0
    %2961 = vmatpush1.msra.mxu0 %v1716
    %2962 = vmatprep.subr.mxu0 0.0
    %2963 = vmatpush1.msra.mxu0 %v1719
    %2964 = vmatprep.subr.mxu0 0.0
    %2965 = vmatpush1.msra.mxu0 %v1722
    %2966 = vmatprep.subr.mxu0 0.0
    %2967 = vmatpush1.msra.mxu0 %v1725
    %2968 = vmatprep.subr.mxu0 0.0
    %2969 = vmatpush1.msra.mxu0 %v1728
    %2970 = vmatprep.subr.mxu0 0.0
    %2971 = vmatpush1.msra.mxu0 %v1731
    %2972 = vmatprep.subr.mxu0 0.0
    %2973 = vmatpush1.msra.mxu0 %v1734
    %2974 = vmatprep.subr.mxu0 0.0
    %2975 = vmatpush1.msra.mxu0 %v1737
    %2976 = vmatprep.subr.mxu0 0.0
    %2977 = vmatpush1.msra.mxu0 %v1740
    %2978 = vmatprep.subr.mxu0 0.0
    %2979 = vmatpush1.msra.mxu0 %v1743
    %2980 = vmatprep.subr.mxu0 0.0
    %2981 = vmatpush1.msra.mxu0 %v1746
    %2982 = vmatprep.subr.mxu0 0.0
    %2983 = vmatpush1.msra.mxu0 %v1749
    %2984 = vmatprep.subr.mxu0 0.0
    %2985 = vmatpush1.msra.mxu0 %v1752
    %2986 = vmatprep.subr.mxu0 0.0
    %2987 = vmatpush1.msra.mxu0 0.0
    %2988 = vmatprep.subr.mxu0 0.0
    %2989 = vmatpush1.msra.mxu0 0.0
    %2990 = vmatprep.subr.mxu0 0.0
    %2991 = vmatpush1.msra.mxu0 0.0
    %2992 = vmatprep.subr.mxu0 0.0
    %2993 = vmatpush1.msra.mxu0 0.0
    %2994 = vmatprep.subr.mxu0 0.0
    %2995 = vmatpush1.msra.mxu0 0.0
    %2996 = vmatprep.subr.mxu0 0.0
    %2997 = vmatpush1.msra.mxu0 0.0
    %2998 = vmatprep.subr.mxu0 0.0
    %2999 = vmatpush1.msra.mxu0 0.0
    %3000 = vmatprep.subr.mxu0 0.0
    %3001 = vmatpush1.msra.mxu0 0.0
    %3002 = vmatprep.subr.mxu0 0.0
    %3003 = vmatpush1.msra.mxu0 0.0
    %3004 = vmatprep.subr.mxu0 0.0
    %3005 = vmatpush1.msra.mxu0 0.0
    %3006 = vmatprep.subr.mxu0 0.0
    %3007 = vmatpush1.msra.mxu0 0.0
    %3008 = vmatprep.subr.mxu0 0.0
    %3009 = vmatpush1.msra.mxu0 0.0
    %3010 = vmatprep.subr.mxu0 0.0
    %3011 = vmatpush1.msra.mxu0 0.0
    %3012 = vmatprep.subr.mxu0 0.0
    %3013 = vmatpush1.msra.mxu0 0.0
    %3014 = vmatprep.subr.mxu0 0.0
    %3015 = vmatpush1.msra.mxu0 0.0
    %3016 = vmatprep.subr.mxu0 0.0
    %3017 = vmatpush1.msra.mxu0 0.0
    %3018 = vmatprep.mubr.f32.mxu0 0.0
    %3019 = vmatmul.mubr.f32.gmra.mrb[0].mxu0 %v2878
    %v3020 = vpop.f32.mrb[0].mxu0
    %v3021 = vadd.f32 0.0, %v3020
    %v3022 = vpop.f32.mrb[0].mxu0
    %3023 = vdwg.mxu0
    %v3024 = vadd.f32 %v2880, %v2950
    %v3025 = vmul.f32 %v3024, 0.5
    %v3026 = vtanh.pop %v3025
    %v3027 = vadd.f32 %v3026, 1.0
    %v3028 = vmul.f32 %v3027, 0.5
    %v3029 = vadd.f32 %v2881, %v2952
    %v3030 = vmul.f32 %v3029, 0.5
    %v3031 = vtanh.pop %v3030
    %v3032 = vadd.f32 %v3031, 1.0
    %v3033 = vmul.f32 %v3032, 0.5
    %v3034 = vmul.f32 %v3028, %v3021
    %v3035 = vadd.f32 %v2882, %v3034
    %v3036 = vtanh.pop %v3035
    %v3037 = vsub.f32 %v2878, %v3036
    %v3038 = vmul.f32 %v3033, %v3037
    %v3039 = vadd.f32 %v3036, %v3038
    %3040 = vst [vmem:[#allocation10] sm:$0xff] %v3039
    // Predicated region
    $region26: #{tpu_custom_call.1} parent=1 // pred_check
      _
    $region27: #{tpu_custom_call.1} parent=1 // pred_check_branch
      %3042 = sbr.rel (0) target = $region29
    $region28: #{tpu_custom_call.1} parent=1 // pred_region
      %s3044 = ssub.s32 128, 128
      %3045 = vsyncadd [#allocation6], %s3044
      %s3047 = sshll.u32 [#allocation10], 4
      %s3048 = int_to_ptr.vmem [resolvable:$true] %s3047
      %3050 = dma.vmem_to_hbm [thread:$0]  %s3048, 128, %s3, [#allocation6]
    $region29: #{tpu_custom_call.1} parent=1 // pred_fallthru
      _
    // Predicated region
    $region30: #{tpu_custom_call.1} parent=1 // pred_check
      _
    $region31: #{tpu_custom_call.1} parent=1 // pred_check_branch
      %3052 = sbr.rel (0) target = $region33
    $region32: #{tpu_custom_call.1} parent=1 // pred_region
      %3053 = dma.done [#allocation6], 128
    $region33: #{tpu_custom_call.1} parent=1 // pred_fallthru
      _
    %3054 = vsyncpa [#allocation5], 1
    %3055 = vsyncpa [#allocation8], 1
    %3056 = vsyncpa [#allocation6], 1

</llo_original>
